<compile_context>
chip_gen: v7x
topology: tpu7x:2x2x1
jax: 0.10.0
libtpu: 0.0.40
codegen_flags: <defaults>
</compile_context>

<pallas_src>
import functools

import jax
import jax.numpy as jnp
from jax.experimental import pallas as pl
from jax.experimental.pallas import tpu as pltpu


def _round_up(x, m):
    return ((x + m - 1) // m) * m


# ---------------------------------------------------------------------------
# Fused Pallas kernel: conv1x1(+BN+ReLU) -> flatten -> fc1(+ReLU) -> fc3
# ---------------------------------------------------------------------------
def _aux_fused_kernel(x_ref, wc_ref, bns_ref, bnb_ref, w1_ref, b1_ref,
                      w3_ref, b3_ref, o_ref):
    # x_ref : (16, Np, Cinp)   bf16  pooled activations, [spatial, batch, cin]
    # wc_ref: (Cinp, 128)      bf16  1x1 conv weight (Cin padded to 128)
    # bns/bnb: (1, 128)        f32   folded BatchNorm scale / bias
    # w1_ref: (16, 128, 1024)  bf16  fc1 weight, flatten-permutation pre-applied
    # b1_ref: (1, 1024)        f32   fc1 bias
    # w3_ref: (1024, 128)      bf16  fc3 weight (Cout padded 3 -> 128)
    # b3_ref: (1, 128)         f32   fc3 bias (padded)
    # o_ref : (Np, 128)        f32   padded logits
    S, Np, _ = x_ref.shape
    Cconv = wc_ref.shape[1]
    Dfc1 = w1_ref.shape[2]

    wc = wc_ref[...]
    # Hoist broadcasts out of the unrolled loop (no CSE of broadcast_in_dim).
    bns = jnp.broadcast_to(bns_ref[...], (Np, Cconv))
    bnb = jnp.broadcast_to(bnb_ref[...], (Np, Cconv))

    h_acc = jnp.zeros((Np, Dfc1), jnp.float32)
    for s in range(S):  # 16 spatial positions, fully unrolled at trace time
        # 1x1 conv == channel GEMM; folded BN + ReLU epilogue in f32.
        z = jnp.dot(x_ref[s], wc, preferred_element_type=jnp.float32)
        z = jnp.maximum(z * bns + bnb, 0.0)
        # Partial fc1 contribution of this spatial position (flatten absorbed
        # into the weight layout -> no transpose/reshape needed).
        h_acc = h_acc + jnp.dot(z.astype(w1_ref.dtype), w1_ref[s],
                                preferred_element_type=jnp.float32)

    h = jnp.maximum(h_acc + b1_ref[...], 0.0)      # fc1 bias + ReLU
    # dropout(p=0.7) is identity in eval mode.
    out = jnp.dot(h.astype(w3_ref.dtype), w3_ref[...],
                  preferred_element_type=jnp.float32) + b3_ref[...]
    o_ref[...] = out.astype(o_ref.dtype)


# ---------------------------------------------------------------------------
# One-time parameter preprocessing (hoisted out of the per-call path)
# ---------------------------------------------------------------------------
def prepare_params(params, *, compute_dtype=jnp.bfloat16, eps=1e-3):
    conv_w = params["conv_w"]                        # (128, Cin, 1, 1)
    Cconv, Cin = conv_w.shape[0], conv_w.shape[1]
    Cinp = _round_up(max(Cin, 1), 128)

    wc = conv_w.reshape(Cconv, Cin).T                # (Cin, 128)
    wc = jnp.pad(wc, ((0, Cinp - Cin), (0, 0))).astype(compute_dtype)

    inv_std = 1.0 / jnp.sqrt(params["bn_var"].astype(jnp.float32) + eps)
    bn_scale = (params["bn_gamma"].astype(jnp.float32) * inv_std)
    bn_bias = (params["bn_beta"].astype(jnp.float32)
               - params["bn_mean"].astype(jnp.float32) * bn_scale)
    bn_scale = bn_scale.reshape(1, Cconv)
    bn_bias = bn_bias.reshape(1, Cconv)

    fc1_w = params["fc1_w"]                          # (1024, 2048)
    Dfc1 = fc1_w.shape[0]
    # torch.flatten on NCHW uses index c*16 + s (s = h*4 + w); absorb that
    # permutation into the weight once:  W1s[s, c, j] = W1[j, c*16 + s].
    w1s = jnp.transpose(fc1_w.reshape(Dfc1, Cconv, 16), (2, 1, 0))
    w1s = w1s.astype(compute_dtype)                  # (16, 128, 1024)
    b1 = params["fc1_b"].astype(jnp.float32).reshape(1, Dfc1)

    fc3_w = params["fc3_w"]                          # (Dout, 1024)
    Dout = fc3_w.shape[0]
    Doutp = _round_up(max(Dout, 1), 128)             # lane-dense output
    w3 = jnp.pad(fc3_w.T, ((0, 0), (0, Doutp - Dout))).astype(compute_dtype)
    b3 = jnp.pad(params["fc3_b"].astype(jnp.float32),
                 (0, Doutp - Dout)).reshape(1, Doutp)

    return {"wc": wc, "bn_scale": bn_scale, "bn_bias": bn_bias,
            "w1s": w1s, "b1": b1, "w3": w3, "b3": b3}


# ---------------------------------------------------------------------------
# Plain-JAX glue (tiny reductions / layout only — not the hot path)
# ---------------------------------------------------------------------------
def _adaptive_avg_pool_4x4(x_nchw):
    """PyTorch-compatible F.adaptive_avg_pool2d(x, (4, 4)) on NCHW input."""
    _, _, H, W = x_nchw.shape
    rows = []
    for i in range(4):
        h0 = (i * H) // 4
        h1 = -((-(i + 1) * H) // 4)          # ceil((i+1)*H/4)
        cols = []
        for j in range(4):
            w0 = (j * W) // 4
            w1 = -((-(j + 1) * W) // 4)
            cols.append(jnp.mean(x_nchw[:, :, h0:h1, w0:w1], axis=(2, 3)))
        rows.append(jnp.stack(cols, axis=-1))
    return jnp.stack(rows, axis=-2)          # (N, C, 4, 4)


# ---------------------------------------------------------------------------
# Aux forward (eval/inference mode) — single fused pallas_call
# ---------------------------------------------------------------------------
@functools.partial(jax.jit, static_argnames=("n_out",))
def aux_forward(x_nchw, prep, *, n_out=3):
    N, Cin = x_nchw.shape[0], x_nchw.shape[1]
    Cinp, Cconv = prep["wc"].shape
    Dfc1 = prep["w1s"].shape[2]
    Doutp = prep["w3"].shape[1]
    Np = _round_up(max(N, 1), 16)            # bf16 sublane packing

    # adaptive average pool to 4x4, then arrange as [spatial, batch, cin]
    pooled = _adaptive_avg_pool_4x4(x_nchw)                    # (N, Cin, 4, 4)
    xs = jnp.transpose(pooled.reshape(N, Cin, 16), (2, 0, 1))  # (16, N, Cin)
    xs = jnp.pad(xs, ((0, 0), (0, Np - N), (0, Cinp - Cin)))
    xs = xs.astype(prep["wc"].dtype)

    itemsize = jnp.dtype(prep["wc"].dtype).itemsize
    cost = pl.CostEstimate(
        flops=2 * Np * (16 * Cinp * Cconv + 16 * Cconv * Dfc1 + Dfc1 * Doutp),
        transcendentals=0,
        bytes_accessed=(xs.size + prep["wc"].size + prep["w1s"].size
                        + prep["w3"].size) * itemsize
        + (prep["bn_scale"].size + prep["bn_bias"].size + prep["b1"].size
           + prep["b3"].size + Np * Doutp) * 4,
    )

    vmem_spec = pl.BlockSpec(memory_space=pltpu.MemorySpace.VMEM)
    out = pl.pallas_call(
        _aux_fused_kernel,
        out_shape=jax.ShapeDtypeStruct((Np, Doutp), jnp.float32),
        in_specs=[vmem_spec] * 8,
        out_specs=vmem_spec,
        compiler_params=pltpu.CompilerParams(
            vmem_limit_bytes=32 * 1024 * 1024,   # ~4.5 MiB used; safe everywhere
        ),
        cost_estimate=cost,
    )(xs, prep["wc"], prep["bn_scale"], prep["bn_bias"],
      prep["w1s"], prep["b1"], prep["w3"], prep["b3"])
    return out[:N, :n_out]


# ---------------------------------------------------------------------------
# Pure-JAX f32 reference (correctness check)
# ---------------------------------------------------------------------------
def aux_forward_ref(x_nchw, params):
    eps = 1e-3
    conv_w = params["conv_w"]
    Cconv, Cin = conv_w.shape[0], conv_w.shape[1]
    N = x_nchw.shape[0]

    pooled = _adaptive_avg_pool_4x4(x_nchw)
    xm = jnp.transpose(pooled, (0, 2, 3, 1)).reshape(N * 16, Cin)
    wm = conv_w.reshape(Cconv, Cin).T
    y = xm @ wm
    inv_std = 1.0 / jnp.sqrt(params["bn_var"] + eps)
    scale = params["bn_gamma"] * inv_std
    bias = params["bn_beta"] - params["bn_mean"] * scale
    y = jnp.maximum(y * scale + bias, 0.0)
    flat = jnp.transpose(y.reshape(N, 4, 4, Cconv), (0, 3, 1, 2)).reshape(N, Cconv * 16)
    h = jnp.maximum(flat @ params["fc1_w"].T + params["fc1_b"], 0.0)
    return h @ params["fc3_w"].T + params["fc3_b"]


# ---------------------------------------------------------------------------
# main
# ---------------------------------------------------------------------------
if __name__ == "__main__":
    key = jax.random.PRNGKey(0)
    ks = jax.random.split(key, 8)

    # Small shapes consistent with the module: Aux(in_channels=4) on a
    # (2, 4, 16, 16) input.  fc sizes are fixed by the module (2048 -> 1024 -> 3).
    N, Cin, H, W = 2, 4, 16, 16
    Cconv = 128
    Dflat = Cconv * 4 * 4        # 2048
    Dfc1, Dout = 1024, 3

    x = jax.random.normal(ks[0], (N, Cin, H, W), dtype=jnp.float32)
    params = {
        "conv_w": jax.random.normal(ks[1], (Cconv, Cin, 1, 1), jnp.float32) * 0.5,
        "bn_gamma": 1.0 + 0.1 * jax.random.normal(ks[2], (Cconv,), jnp.float32),
        "bn_beta": 0.05 * jax.random.normal(ks[3], (Cconv,), jnp.float32),
        "bn_mean": 0.01 * jnp.arange(Cconv, dtype=jnp.float32) / Cconv,
        "bn_var": 1.0 + 0.02 * jnp.arange(Cconv, dtype=jnp.float32) / Cconv,
        "fc1_w": jax.random.normal(ks[4], (Dfc1, Dflat), jnp.float32) / jnp.sqrt(Dflat),
        "fc1_b": 0.01 * jax.random.normal(ks[5], (Dfc1,), jnp.float32),
        "fc3_w": jax.random.normal(ks[6], (Dout, Dfc1), jnp.float32) / jnp.sqrt(Dfc1),
        "fc3_b": 0.01 * jax.random.normal(ks[7], (Dout,), jnp.float32),
    }

    # One-time weight preprocessing (transpose / permute / pad / bf16-cast).
    prep = prepare_params(params)
    prep = jax.tree_util.tree_map(jax.block_until_ready, prep)

    out = aux_forward(x, prep, n_out=Dout)
    jax.block_until_ready(out)
    assert out.shape == (N, Dout), out.shape

    ref = aux_forward_ref(x, params)
    err = float(jnp.max(jnp.abs(out - ref)))
    assert err < 1e-1, f"max abs err vs f32 reference: {err}"

    print("KERNEL_OK")
</pallas_src>

<mosaic_0001>
module attributes {stable_mosaic.version = 11 : i64} {
  func.func @_aux_fused_kernel(%arg0: memref<16x16x128xbf16, #tpu.memory_space<vmem>>, %arg1: memref<128x128xbf16, #tpu.memory_space<vmem>>, %arg2: memref<1x128xf32, #tpu.memory_space<vmem>>, %arg3: memref<1x128xf32, #tpu.memory_space<vmem>>, %arg4: memref<16x128x1024xbf16, #tpu.memory_space<vmem>>, %arg5: memref<1x1024xf32, #tpu.memory_space<vmem>>, %arg6: memref<1024x128xbf16, #tpu.memory_space<vmem>>, %arg7: memref<1x128xf32, #tpu.memory_space<vmem>>, %arg8: memref<16x128xf32, #tpu.memory_space<vmem>>) attributes {dimension_semantics = [], scalar_prefetch = 0 : i64, scratch_operands = 0 : i64, tpu.core_type = #tpu.core_type<tc>} {
    %c0 = arith.constant 0 : index
    %c0_0 = arith.constant 0 : index
    %0 = vector.load %arg1[%c0, %c0_0] : memref<128x128xbf16, #tpu.memory_space<vmem>>, vector<128x128xbf16>
    %c0_1 = arith.constant 0 : index
    %c0_2 = arith.constant 0 : index
    %1 = vector.load %arg2[%c0_1, %c0_2] : memref<1x128xf32, #tpu.memory_space<vmem>>, vector<1x128xf32>
    %2 = vector.shape_cast %1 : vector<1x128xf32> to vector<1x128xf32>
    %3 = vector.broadcast %2 : vector<1x128xf32> to vector<16x128xf32>
    %c0_3 = arith.constant 0 : index
    %c0_4 = arith.constant 0 : index
    %4 = vector.load %arg3[%c0_3, %c0_4] : memref<1x128xf32, #tpu.memory_space<vmem>>, vector<1x128xf32>
    %5 = vector.shape_cast %4 : vector<1x128xf32> to vector<1x128xf32>
    %6 = vector.broadcast %5 : vector<1x128xf32> to vector<16x128xf32>
    %cst = arith.constant 0.000000e+00 : f32
    %7 = vector.broadcast %cst : f32 to vector<16x1024xf32>
    %c0_5 = arith.constant 0 : index
    %c0_6 = arith.constant 0 : index
    %c0_7 = arith.constant 0 : index
    %8 = vector.load %arg0[%c0_5, %c0_6, %c0_7] : memref<16x16x128xbf16, #tpu.memory_space<vmem>>, vector<1x16x128xbf16>
    %9 = vector.shape_cast %8 : vector<1x16x128xbf16> to vector<16x128xbf16>
    %cst_8 = arith.constant dense<0.000000e+00> : vector<16x128xf32>
    %10 = tpu.matmul %9, %0, %cst_8 {dimension_numbers = #tpu.dot_dimension_numbers<[1], [0], [0], [1], [0, 0, 1, 1], [], []>} : vector<16x128xbf16>, vector<128x128xbf16>, vector<16x128xf32> -> vector<16x128xf32>
    %11 = arith.mulf %10, %3 : vector<16x128xf32>
    %12 = arith.addf %11, %6 : vector<16x128xf32>
    %cst_9 = arith.constant 0.000000e+00 : f32
    %13 = vector.broadcast %cst_9 : f32 to vector<16x128xf32>
    %14 = arith.maximumf %12, %13 : vector<16x128xf32>
    %15 = arith.truncf %14 : vector<16x128xf32> to vector<16x128xbf16>
    %c0_10 = arith.constant 0 : index
    %c0_11 = arith.constant 0 : index
    %c0_12 = arith.constant 0 : index
    %16 = vector.load %arg4[%c0_10, %c0_11, %c0_12] : memref<16x128x1024xbf16, #tpu.memory_space<vmem>>, vector<1x128x1024xbf16>
    %17 = vector.shape_cast %16 : vector<1x128x1024xbf16> to vector<128x1024xbf16>
    %cst_13 = arith.constant dense<0.000000e+00> : vector<16x1024xf32>
    %18 = tpu.matmul %15, %17, %cst_13 {dimension_numbers = #tpu.dot_dimension_numbers<[1], [0], [0], [1], [0, 0, 1, 1], [], []>} : vector<16x128xbf16>, vector<128x1024xbf16>, vector<16x1024xf32> -> vector<16x1024xf32>
    %19 = arith.addf %7, %18 : vector<16x1024xf32>
    %c1 = arith.constant 1 : index
    %c0_14 = arith.constant 0 : index
    %c0_15 = arith.constant 0 : index
    %20 = vector.load %arg0[%c1, %c0_14, %c0_15] : memref<16x16x128xbf16, #tpu.memory_space<vmem>>, vector<1x16x128xbf16>
    %21 = vector.shape_cast %20 : vector<1x16x128xbf16> to vector<16x128xbf16>
    %cst_16 = arith.constant dense<0.000000e+00> : vector<16x128xf32>
    %22 = tpu.matmul %21, %0, %cst_16 {dimension_numbers = #tpu.dot_dimension_numbers<[1], [0], [0], [1], [0, 0, 1, 1], [], []>} : vector<16x128xbf16>, vector<128x128xbf16>, vector<16x128xf32> -> vector<16x128xf32>
    %23 = arith.mulf %22, %3 : vector<16x128xf32>
    %24 = arith.addf %23, %6 : vector<16x128xf32>
    %cst_17 = arith.constant 0.000000e+00 : f32
    %25 = vector.broadcast %cst_17 : f32 to vector<16x128xf32>
    %26 = arith.maximumf %24, %25 : vector<16x128xf32>
    %27 = arith.truncf %26 : vector<16x128xf32> to vector<16x128xbf16>
    %c1_18 = arith.constant 1 : index
    %c0_19 = arith.constant 0 : index
    %c0_20 = arith.constant 0 : index
    %28 = vector.load %arg4[%c1_18, %c0_19, %c0_20] : memref<16x128x1024xbf16, #tpu.memory_space<vmem>>, vector<1x128x1024xbf16>
    %29 = vector.shape_cast %28 : vector<1x128x1024xbf16> to vector<128x1024xbf16>
    %cst_21 = arith.constant dense<0.000000e+00> : vector<16x1024xf32>
    %30 = tpu.matmul %27, %29, %cst_21 {dimension_numbers = #tpu.dot_dimension_numbers<[1], [0], [0], [1], [0, 0, 1, 1], [], []>} : vector<16x128xbf16>, vector<128x1024xbf16>, vector<16x1024xf32> -> vector<16x1024xf32>
    %31 = arith.addf %19, %30 : vector<16x1024xf32>
    %c2 = arith.constant 2 : index
    %c0_22 = arith.constant 0 : index
    %c0_23 = arith.constant 0 : index
    %32 = vector.load %arg0[%c2, %c0_22, %c0_23] : memref<16x16x128xbf16, #tpu.memory_space<vmem>>, vector<1x16x128xbf16>
    %33 = vector.shape_cast %32 : vector<1x16x128xbf16> to vector<16x128xbf16>
    %cst_24 = arith.constant dense<0.000000e+00> : vector<16x128xf32>
    %34 = tpu.matmul %33, %0, %cst_24 {dimension_numbers = #tpu.dot_dimension_numbers<[1], [0], [0], [1], [0, 0, 1, 1], [], []>} : vector<16x128xbf16>, vector<128x128xbf16>, vector<16x128xf32> -> vector<16x128xf32>
    %35 = arith.mulf %34, %3 : vector<16x128xf32>
    %36 = arith.addf %35, %6 : vector<16x128xf32>
    %cst_25 = arith.constant 0.000000e+00 : f32
    %37 = vector.broadcast %cst_25 : f32 to vector<16x128xf32>
    %38 = arith.maximumf %36, %37 : vector<16x128xf32>
    %39 = arith.truncf %38 : vector<16x128xf32> to vector<16x128xbf16>
    %c2_26 = arith.constant 2 : index
    %c0_27 = arith.constant 0 : index
    %c0_28 = arith.constant 0 : index
    %40 = vector.load %arg4[%c2_26, %c0_27, %c0_28] : memref<16x128x1024xbf16, #tpu.memory_space<vmem>>, vector<1x128x1024xbf16>
    %41 = vector.shape_cast %40 : vector<1x128x1024xbf16> to vector<128x1024xbf16>
    %cst_29 = arith.constant dense<0.000000e+00> : vector<16x1024xf32>
    %42 = tpu.matmul %39, %41, %cst_29 {dimension_numbers = #tpu.dot_dimension_numbers<[1], [0], [0], [1], [0, 0, 1, 1], [], []>} : vector<16x128xbf16>, vector<128x1024xbf16>, vector<16x1024xf32> -> vector<16x1024xf32>
    %43 = arith.addf %31, %42 : vector<16x1024xf32>
    %c3 = arith.constant 3 : index
    %c0_30 = arith.constant 0 : index
    %c0_31 = arith.constant 0 : index
    %44 = vector.load %arg0[%c3, %c0_30, %c0_31] : memref<16x16x128xbf16, #tpu.memory_space<vmem>>, vector<1x16x128xbf16>
    %45 = vector.shape_cast %44 : vector<1x16x128xbf16> to vector<16x128xbf16>
    %cst_32 = arith.constant dense<0.000000e+00> : vector<16x128xf32>
    %46 = tpu.matmul %45, %0, %cst_32 {dimension_numbers = #tpu.dot_dimension_numbers<[1], [0], [0], [1], [0, 0, 1, 1], [], []>} : vector<16x128xbf16>, vector<128x128xbf16>, vector<16x128xf32> -> vector<16x128xf32>
    %47 = arith.mulf %46, %3 : vector<16x128xf32>
    %48 = arith.addf %47, %6 : vector<16x128xf32>
    %cst_33 = arith.constant 0.000000e+00 : f32
    %49 = vector.broadcast %cst_33 : f32 to vector<16x128xf32>
    %50 = arith.maximumf %48, %49 : vector<16x128xf32>
    %51 = arith.truncf %50 : vector<16x128xf32> to vector<16x128xbf16>
    %c3_34 = arith.constant 3 : index
    %c0_35 = arith.constant 0 : index
    %c0_36 = arith.constant 0 : index
    %52 = vector.load %arg4[%c3_34, %c0_35, %c0_36] : memref<16x128x1024xbf16, #tpu.memory_space<vmem>>, vector<1x128x1024xbf16>
    %53 = vector.shape_cast %52 : vector<1x128x1024xbf16> to vector<128x1024xbf16>
    %cst_37 = arith.constant dense<0.000000e+00> : vector<16x1024xf32>
    %54 = tpu.matmul %51, %53, %cst_37 {dimension_numbers = #tpu.dot_dimension_numbers<[1], [0], [0], [1], [0, 0, 1, 1], [], []>} : vector<16x128xbf16>, vector<128x1024xbf16>, vector<16x1024xf32> -> vector<16x1024xf32>
    %55 = arith.addf %43, %54 : vector<16x1024xf32>
    %c4 = arith.constant 4 : index
    %c0_38 = arith.constant 0 : index
    %c0_39 = arith.constant 0 : index
    %56 = vector.load %arg0[%c4, %c0_38, %c0_39] : memref<16x16x128xbf16, #tpu.memory_space<vmem>>, vector<1x16x128xbf16>
    %57 = vector.shape_cast %56 : vector<1x16x128xbf16> to vector<16x128xbf16>
    %cst_40 = arith.constant dense<0.000000e+00> : vector<16x128xf32>
    %58 = tpu.matmul %57, %0, %cst_40 {dimension_numbers = #tpu.dot_dimension_numbers<[1], [0], [0], [1], [0, 0, 1, 1], [], []>} : vector<16x128xbf16>, vector<128x128xbf16>, vector<16x128xf32> -> vector<16x128xf32>
    %59 = arith.mulf %58, %3 : vector<16x128xf32>
    %60 = arith.addf %59, %6 : vector<16x128xf32>
    %cst_41 = arith.constant 0.000000e+00 : f32
    %61 = vector.broadcast %cst_41 : f32 to vector<16x128xf32>
    %62 = arith.maximumf %60, %61 : vector<16x128xf32>
    %63 = arith.truncf %62 : vector<16x128xf32> to vector<16x128xbf16>
    %c4_42 = arith.constant 4 : index
    %c0_43 = arith.constant 0 : index
    %c0_44 = arith.constant 0 : index
    %64 = vector.load %arg4[%c4_42, %c0_43, %c0_44] : memref<16x128x1024xbf16, #tpu.memory_space<vmem>>, vector<1x128x1024xbf16>
    %65 = vector.shape_cast %64 : vector<1x128x1024xbf16> to vector<128x1024xbf16>
    %cst_45 = arith.constant dense<0.000000e+00> : vector<16x1024xf32>
    %66 = tpu.matmul %63, %65, %cst_45 {dimension_numbers = #tpu.dot_dimension_numbers<[1], [0], [0], [1], [0, 0, 1, 1], [], []>} : vector<16x128xbf16>, vector<128x1024xbf16>, vector<16x1024xf32> -> vector<16x1024xf32>
    %67 = arith.addf %55, %66 : vector<16x1024xf32>
    %c5 = arith.constant 5 : index
    %c0_46 = arith.constant 0 : index
    %c0_47 = arith.constant 0 : index
    %68 = vector.load %arg0[%c5, %c0_46, %c0_47] : memref<16x16x128xbf16, #tpu.memory_space<vmem>>, vector<1x16x128xbf16>
    %69 = vector.shape_cast %68 : vector<1x16x128xbf16> to vector<16x128xbf16>
    %cst_48 = arith.constant dense<0.000000e+00> : vector<16x128xf32>
    %70 = tpu.matmul %69, %0, %cst_48 {dimension_numbers = #tpu.dot_dimension_numbers<[1], [0], [0], [1], [0, 0, 1, 1], [], []>} : vector<16x128xbf16>, vector<128x128xbf16>, vector<16x128xf32> -> vector<16x128xf32>
    %71 = arith.mulf %70, %3 : vector<16x128xf32>
    %72 = arith.addf %71, %6 : vector<16x128xf32>
    %cst_49 = arith.constant 0.000000e+00 : f32
    %73 = vector.broadcast %cst_49 : f32 to vector<16x128xf32>
    %74 = arith.maximumf %72, %73 : vector<16x128xf32>
    %75 = arith.truncf %74 : vector<16x128xf32> to vector<16x128xbf16>
    %c5_50 = arith.constant 5 : index
    %c0_51 = arith.constant 0 : index
    %c0_52 = arith.constant 0 : index
    %76 = vector.load %arg4[%c5_50, %c0_51, %c0_52] : memref<16x128x1024xbf16, #tpu.memory_space<vmem>>, vector<1x128x1024xbf16>
    %77 = vector.shape_cast %76 : vector<1x128x1024xbf16> to vector<128x1024xbf16>
    %cst_53 = arith.constant dense<0.000000e+00> : vector<16x1024xf32>
    %78 = tpu.matmul %75, %77, %cst_53 {dimension_numbers = #tpu.dot_dimension_numbers<[1], [0], [0], [1], [0, 0, 1, 1], [], []>} : vector<16x128xbf16>, vector<128x1024xbf16>, vector<16x1024xf32> -> vector<16x1024xf32>
    %79 = arith.addf %67, %78 : vector<16x1024xf32>
    %c6 = arith.constant 6 : index
    %c0_54 = arith.constant 0 : index
    %c0_55 = arith.constant 0 : index
    %80 = vector.load %arg0[%c6, %c0_54, %c0_55] : memref<16x16x128xbf16, #tpu.memory_space<vmem>>, vector<1x16x128xbf16>
    %81 = vector.shape_cast %80 : vector<1x16x128xbf16> to vector<16x128xbf16>
    %cst_56 = arith.constant dense<0.000000e+00> : vector<16x128xf32>
    %82 = tpu.matmul %81, %0, %cst_56 {dimension_numbers = #tpu.dot_dimension_numbers<[1], [0], [0], [1], [0, 0, 1, 1], [], []>} : vector<16x128xbf16>, vector<128x128xbf16>, vector<16x128xf32> -> vector<16x128xf32>
    %83 = arith.mulf %82, %3 : vector<16x128xf32>
    %84 = arith.addf %83, %6 : vector<16x128xf32>
    %cst_57 = arith.constant 0.000000e+00 : f32
    %85 = vector.broadcast %cst_57 : f32 to vector<16x128xf32>
    %86 = arith.maximumf %84, %85 : vector<16x128xf32>
    %87 = arith.truncf %86 : vector<16x128xf32> to vector<16x128xbf16>
    %c6_58 = arith.constant 6 : index
    %c0_59 = arith.constant 0 : index
    %c0_60 = arith.constant 0 : index
    %88 = vector.load %arg4[%c6_58, %c0_59, %c0_60] : memref<16x128x1024xbf16, #tpu.memory_space<vmem>>, vector<1x128x1024xbf16>
    %89 = vector.shape_cast %88 : vector<1x128x1024xbf16> to vector<128x1024xbf16>
    %cst_61 = arith.constant dense<0.000000e+00> : vector<16x1024xf32>
    %90 = tpu.matmul %87, %89, %cst_61 {dimension_numbers = #tpu.dot_dimension_numbers<[1], [0], [0], [1], [0, 0, 1, 1], [], []>} : vector<16x128xbf16>, vector<128x1024xbf16>, vector<16x1024xf32> -> vector<16x1024xf32>
    %91 = arith.addf %79, %90 : vector<16x1024xf32>
    %c7 = arith.constant 7 : index
    %c0_62 = arith.constant 0 : index
    %c0_63 = arith.constant 0 : index
    %92 = vector.load %arg0[%c7, %c0_62, %c0_63] : memref<16x16x128xbf16, #tpu.memory_space<vmem>>, vector<1x16x128xbf16>
    %93 = vector.shape_cast %92 : vector<1x16x128xbf16> to vector<16x128xbf16>
    %cst_64 = arith.constant dense<0.000000e+00> : vector<16x128xf32>
    %94 = tpu.matmul %93, %0, %cst_64 {dimension_numbers = #tpu.dot_dimension_numbers<[1], [0], [0], [1], [0, 0, 1, 1], [], []>} : vector<16x128xbf16>, vector<128x128xbf16>, vector<16x128xf32> -> vector<16x128xf32>
    %95 = arith.mulf %94, %3 : vector<16x128xf32>
    %96 = arith.addf %95, %6 : vector<16x128xf32>
    %cst_65 = arith.constant 0.000000e+00 : f32
    %97 = vector.broadcast %cst_65 : f32 to vector<16x128xf32>
    %98 = arith.maximumf %96, %97 : vector<16x128xf32>
    %99 = arith.truncf %98 : vector<16x128xf32> to vector<16x128xbf16>
    %c7_66 = arith.constant 7 : index
    %c0_67 = arith.constant 0 : index
    %c0_68 = arith.constant 0 : index
    %100 = vector.load %arg4[%c7_66, %c0_67, %c0_68] : memref<16x128x1024xbf16, #tpu.memory_space<vmem>>, vector<1x128x1024xbf16>
    %101 = vector.shape_cast %100 : vector<1x128x1024xbf16> to vector<128x1024xbf16>
    %cst_69 = arith.constant dense<0.000000e+00> : vector<16x1024xf32>
    %102 = tpu.matmul %99, %101, %cst_69 {dimension_numbers = #tpu.dot_dimension_numbers<[1], [0], [0], [1], [0, 0, 1, 1], [], []>} : vector<16x128xbf16>, vector<128x1024xbf16>, vector<16x1024xf32> -> vector<16x1024xf32>
    %103 = arith.addf %91, %102 : vector<16x1024xf32>
    %c8 = arith.constant 8 : index
    %c0_70 = arith.constant 0 : index
    %c0_71 = arith.constant 0 : index
    %104 = vector.load %arg0[%c8, %c0_70, %c0_71] : memref<16x16x128xbf16, #tpu.memory_space<vmem>>, vector<1x16x128xbf16>
    %105 = vector.shape_cast %104 : vector<1x16x128xbf16> to vector<16x128xbf16>
    %cst_72 = arith.constant dense<0.000000e+00> : vector<16x128xf32>
    %106 = tpu.matmul %105, %0, %cst_72 {dimension_numbers = #tpu.dot_dimension_numbers<[1], [0], [0], [1], [0, 0, 1, 1], [], []>} : vector<16x128xbf16>, vector<128x128xbf16>, vector<16x128xf32> -> vector<16x128xf32>
    %107 = arith.mulf %106, %3 : vector<16x128xf32>
    %108 = arith.addf %107, %6 : vector<16x128xf32>
    %cst_73 = arith.constant 0.000000e+00 : f32
    %109 = vector.broadcast %cst_73 : f32 to vector<16x128xf32>
    %110 = arith.maximumf %108, %109 : vector<16x128xf32>
    %111 = arith.truncf %110 : vector<16x128xf32> to vector<16x128xbf16>
    %c8_74 = arith.constant 8 : index
    %c0_75 = arith.constant 0 : index
    %c0_76 = arith.constant 0 : index
    %112 = vector.load %arg4[%c8_74, %c0_75, %c0_76] : memref<16x128x1024xbf16, #tpu.memory_space<vmem>>, vector<1x128x1024xbf16>
    %113 = vector.shape_cast %112 : vector<1x128x1024xbf16> to vector<128x1024xbf16>
    %cst_77 = arith.constant dense<0.000000e+00> : vector<16x1024xf32>
    %114 = tpu.matmul %111, %113, %cst_77 {dimension_numbers = #tpu.dot_dimension_numbers<[1], [0], [0], [1], [0, 0, 1, 1], [], []>} : vector<16x128xbf16>, vector<128x1024xbf16>, vector<16x1024xf32> -> vector<16x1024xf32>
    %115 = arith.addf %103, %114 : vector<16x1024xf32>
    %c9 = arith.constant 9 : index
    %c0_78 = arith.constant 0 : index
    %c0_79 = arith.constant 0 : index
    %116 = vector.load %arg0[%c9, %c0_78, %c0_79] : memref<16x16x128xbf16, #tpu.memory_space<vmem>>, vector<1x16x128xbf16>
    %117 = vector.shape_cast %116 : vector<1x16x128xbf16> to vector<16x128xbf16>
    %cst_80 = arith.constant dense<0.000000e+00> : vector<16x128xf32>
    %118 = tpu.matmul %117, %0, %cst_80 {dimension_numbers = #tpu.dot_dimension_numbers<[1], [0], [0], [1], [0, 0, 1, 1], [], []>} : vector<16x128xbf16>, vector<128x128xbf16>, vector<16x128xf32> -> vector<16x128xf32>
    %119 = arith.mulf %118, %3 : vector<16x128xf32>
    %120 = arith.addf %119, %6 : vector<16x128xf32>
    %cst_81 = arith.constant 0.000000e+00 : f32
    %121 = vector.broadcast %cst_81 : f32 to vector<16x128xf32>
    %122 = arith.maximumf %120, %121 : vector<16x128xf32>
    %123 = arith.truncf %122 : vector<16x128xf32> to vector<16x128xbf16>
    %c9_82 = arith.constant 9 : index
    %c0_83 = arith.constant 0 : index
    %c0_84 = arith.constant 0 : index
    %124 = vector.load %arg4[%c9_82, %c0_83, %c0_84] : memref<16x128x1024xbf16, #tpu.memory_space<vmem>>, vector<1x128x1024xbf16>
    %125 = vector.shape_cast %124 : vector<1x128x1024xbf16> to vector<128x1024xbf16>
    %cst_85 = arith.constant dense<0.000000e+00> : vector<16x1024xf32>
    %126 = tpu.matmul %123, %125, %cst_85 {dimension_numbers = #tpu.dot_dimension_numbers<[1], [0], [0], [1], [0, 0, 1, 1], [], []>} : vector<16x128xbf16>, vector<128x1024xbf16>, vector<16x1024xf32> -> vector<16x1024xf32>
    %127 = arith.addf %115, %126 : vector<16x1024xf32>
    %c10 = arith.constant 10 : index
    %c0_86 = arith.constant 0 : index
    %c0_87 = arith.constant 0 : index
    %128 = vector.load %arg0[%c10, %c0_86, %c0_87] : memref<16x16x128xbf16, #tpu.memory_space<vmem>>, vector<1x16x128xbf16>
    %129 = vector.shape_cast %128 : vector<1x16x128xbf16> to vector<16x128xbf16>
    %cst_88 = arith.constant dense<0.000000e+00> : vector<16x128xf32>
    %130 = tpu.matmul %129, %0, %cst_88 {dimension_numbers = #tpu.dot_dimension_numbers<[1], [0], [0], [1], [0, 0, 1, 1], [], []>} : vector<16x128xbf16>, vector<128x128xbf16>, vector<16x128xf32> -> vector<16x128xf32>
    %131 = arith.mulf %130, %3 : vector<16x128xf32>
    %132 = arith.addf %131, %6 : vector<16x128xf32>
    %cst_89 = arith.constant 0.000000e+00 : f32
    %133 = vector.broadcast %cst_89 : f32 to vector<16x128xf32>
    %134 = arith.maximumf %132, %133 : vector<16x128xf32>
    %135 = arith.truncf %134 : vector<16x128xf32> to vector<16x128xbf16>
    %c10_90 = arith.constant 10 : index
    %c0_91 = arith.constant 0 : index
    %c0_92 = arith.constant 0 : index
    %136 = vector.load %arg4[%c10_90, %c0_91, %c0_92] : memref<16x128x1024xbf16, #tpu.memory_space<vmem>>, vector<1x128x1024xbf16>
    %137 = vector.shape_cast %136 : vector<1x128x1024xbf16> to vector<128x1024xbf16>
    %cst_93 = arith.constant dense<0.000000e+00> : vector<16x1024xf32>
    %138 = tpu.matmul %135, %137, %cst_93 {dimension_numbers = #tpu.dot_dimension_numbers<[1], [0], [0], [1], [0, 0, 1, 1], [], []>} : vector<16x128xbf16>, vector<128x1024xbf16>, vector<16x1024xf32> -> vector<16x1024xf32>
    %139 = arith.addf %127, %138 : vector<16x1024xf32>
    %c11 = arith.constant 11 : index
    %c0_94 = arith.constant 0 : index
    %c0_95 = arith.constant 0 : index
    %140 = vector.load %arg0[%c11, %c0_94, %c0_95] : memref<16x16x128xbf16, #tpu.memory_space<vmem>>, vector<1x16x128xbf16>
    %141 = vector.shape_cast %140 : vector<1x16x128xbf16> to vector<16x128xbf16>
    %cst_96 = arith.constant dense<0.000000e+00> : vector<16x128xf32>
    %142 = tpu.matmul %141, %0, %cst_96 {dimension_numbers = #tpu.dot_dimension_numbers<[1], [0], [0], [1], [0, 0, 1, 1], [], []>} : vector<16x128xbf16>, vector<128x128xbf16>, vector<16x128xf32> -> vector<16x128xf32>
    %143 = arith.mulf %142, %3 : vector<16x128xf32>
    %144 = arith.addf %143, %6 : vector<16x128xf32>
    %cst_97 = arith.constant 0.000000e+00 : f32
    %145 = vector.broadcast %cst_97 : f32 to vector<16x128xf32>
    %146 = arith.maximumf %144, %145 : vector<16x128xf32>
    %147 = arith.truncf %146 : vector<16x128xf32> to vector<16x128xbf16>
    %c11_98 = arith.constant 11 : index
    %c0_99 = arith.constant 0 : index
    %c0_100 = arith.constant 0 : index
    %148 = vector.load %arg4[%c11_98, %c0_99, %c0_100] : memref<16x128x1024xbf16, #tpu.memory_space<vmem>>, vector<1x128x1024xbf16>
    %149 = vector.shape_cast %148 : vector<1x128x1024xbf16> to vector<128x1024xbf16>
    %cst_101 = arith.constant dense<0.000000e+00> : vector<16x1024xf32>
    %150 = tpu.matmul %147, %149, %cst_101 {dimension_numbers = #tpu.dot_dimension_numbers<[1], [0], [0], [1], [0, 0, 1, 1], [], []>} : vector<16x128xbf16>, vector<128x1024xbf16>, vector<16x1024xf32> -> vector<16x1024xf32>
    %151 = arith.addf %139, %150 : vector<16x1024xf32>
    %c12 = arith.constant 12 : index
    %c0_102 = arith.constant 0 : index
    %c0_103 = arith.constant 0 : index
    %152 = vector.load %arg0[%c12, %c0_102, %c0_103] : memref<16x16x128xbf16, #tpu.memory_space<vmem>>, vector<1x16x128xbf16>
    %153 = vector.shape_cast %152 : vector<1x16x128xbf16> to vector<16x128xbf16>
    %cst_104 = arith.constant dense<0.000000e+00> : vector<16x128xf32>
    %154 = tpu.matmul %153, %0, %cst_104 {dimension_numbers = #tpu.dot_dimension_numbers<[1], [0], [0], [1], [0, 0, 1, 1], [], []>} : vector<16x128xbf16>, vector<128x128xbf16>, vector<16x128xf32> -> vector<16x128xf32>
    %155 = arith.mulf %154, %3 : vector<16x128xf32>
    %156 = arith.addf %155, %6 : vector<16x128xf32>
    %cst_105 = arith.constant 0.000000e+00 : f32
    %157 = vector.broadcast %cst_105 : f32 to vector<16x128xf32>
    %158 = arith.maximumf %156, %157 : vector<16x128xf32>
    %159 = arith.truncf %158 : vector<16x128xf32> to vector<16x128xbf16>
    %c12_106 = arith.constant 12 : index
    %c0_107 = arith.constant 0 : index
    %c0_108 = arith.constant 0 : index
    %160 = vector.load %arg4[%c12_106, %c0_107, %c0_108] : memref<16x128x1024xbf16, #tpu.memory_space<vmem>>, vector<1x128x1024xbf16>
    %161 = vector.shape_cast %160 : vector<1x128x1024xbf16> to vector<128x1024xbf16>
    %cst_109 = arith.constant dense<0.000000e+00> : vector<16x1024xf32>
    %162 = tpu.matmul %159, %161, %cst_109 {dimension_numbers = #tpu.dot_dimension_numbers<[1], [0], [0], [1], [0, 0, 1, 1], [], []>} : vector<16x128xbf16>, vector<128x1024xbf16>, vector<16x1024xf32> -> vector<16x1024xf32>
    %163 = arith.addf %151, %162 : vector<16x1024xf32>
    %c13 = arith.constant 13 : index
    %c0_110 = arith.constant 0 : index
    %c0_111 = arith.constant 0 : index
    %164 = vector.load %arg0[%c13, %c0_110, %c0_111] : memref<16x16x128xbf16, #tpu.memory_space<vmem>>, vector<1x16x128xbf16>
    %165 = vector.shape_cast %164 : vector<1x16x128xbf16> to vector<16x128xbf16>
    %cst_112 = arith.constant dense<0.000000e+00> : vector<16x128xf32>
    %166 = tpu.matmul %165, %0, %cst_112 {dimension_numbers = #tpu.dot_dimension_numbers<[1], [0], [0], [1], [0, 0, 1, 1], [], []>} : vector<16x128xbf16>, vector<128x128xbf16>, vector<16x128xf32> -> vector<16x128xf32>
    %167 = arith.mulf %166, %3 : vector<16x128xf32>
    %168 = arith.addf %167, %6 : vector<16x128xf32>
    %cst_113 = arith.constant 0.000000e+00 : f32
    %169 = vector.broadcast %cst_113 : f32 to vector<16x128xf32>
    %170 = arith.maximumf %168, %169 : vector<16x128xf32>
    %171 = arith.truncf %170 : vector<16x128xf32> to vector<16x128xbf16>
    %c13_114 = arith.constant 13 : index
    %c0_115 = arith.constant 0 : index
    %c0_116 = arith.constant 0 : index
    %172 = vector.load %arg4[%c13_114, %c0_115, %c0_116] : memref<16x128x1024xbf16, #tpu.memory_space<vmem>>, vector<1x128x1024xbf16>
    %173 = vector.shape_cast %172 : vector<1x128x1024xbf16> to vector<128x1024xbf16>
    %cst_117 = arith.constant dense<0.000000e+00> : vector<16x1024xf32>
    %174 = tpu.matmul %171, %173, %cst_117 {dimension_numbers = #tpu.dot_dimension_numbers<[1], [0], [0], [1], [0, 0, 1, 1], [], []>} : vector<16x128xbf16>, vector<128x1024xbf16>, vector<16x1024xf32> -> vector<16x1024xf32>
    %175 = arith.addf %163, %174 : vector<16x1024xf32>
    %c14 = arith.constant 14 : index
    %c0_118 = arith.constant 0 : index
    %c0_119 = arith.constant 0 : index
    %176 = vector.load %arg0[%c14, %c0_118, %c0_119] : memref<16x16x128xbf16, #tpu.memory_space<vmem>>, vector<1x16x128xbf16>
    %177 = vector.shape_cast %176 : vector<1x16x128xbf16> to vector<16x128xbf16>
    %cst_120 = arith.constant dense<0.000000e+00> : vector<16x128xf32>
    %178 = tpu.matmul %177, %0, %cst_120 {dimension_numbers = #tpu.dot_dimension_numbers<[1], [0], [0], [1], [0, 0, 1, 1], [], []>} : vector<16x128xbf16>, vector<128x128xbf16>, vector<16x128xf32> -> vector<16x128xf32>
    %179 = arith.mulf %178, %3 : vector<16x128xf32>
    %180 = arith.addf %179, %6 : vector<16x128xf32>
    %cst_121 = arith.constant 0.000000e+00 : f32
    %181 = vector.broadcast %cst_121 : f32 to vector<16x128xf32>
    %182 = arith.maximumf %180, %181 : vector<16x128xf32>
    %183 = arith.truncf %182 : vector<16x128xf32> to vector<16x128xbf16>
    %c14_122 = arith.constant 14 : index
    %c0_123 = arith.constant 0 : index
    %c0_124 = arith.constant 0 : index
    %184 = vector.load %arg4[%c14_122, %c0_123, %c0_124] : memref<16x128x1024xbf16, #tpu.memory_space<vmem>>, vector<1x128x1024xbf16>
    %185 = vector.shape_cast %184 : vector<1x128x1024xbf16> to vector<128x1024xbf16>
    %cst_125 = arith.constant dense<0.000000e+00> : vector<16x1024xf32>
    %186 = tpu.matmul %183, %185, %cst_125 {dimension_numbers = #tpu.dot_dimension_numbers<[1], [0], [0], [1], [0, 0, 1, 1], [], []>} : vector<16x128xbf16>, vector<128x1024xbf16>, vector<16x1024xf32> -> vector<16x1024xf32>
    %187 = arith.addf %175, %186 : vector<16x1024xf32>
    %c15 = arith.constant 15 : index
    %c0_126 = arith.constant 0 : index
    %c0_127 = arith.constant 0 : index
    %188 = vector.load %arg0[%c15, %c0_126, %c0_127] : memref<16x16x128xbf16, #tpu.memory_space<vmem>>, vector<1x16x128xbf16>
    %189 = vector.shape_cast %188 : vector<1x16x128xbf16> to vector<16x128xbf16>
    %cst_128 = arith.constant dense<0.000000e+00> : vector<16x128xf32>
    %190 = tpu.matmul %189, %0, %cst_128 {dimension_numbers = #tpu.dot_dimension_numbers<[1], [0], [0], [1], [0, 0, 1, 1], [], []>} : vector<16x128xbf16>, vector<128x128xbf16>, vector<16x128xf32> -> vector<16x128xf32>
    %191 = arith.mulf %190, %3 : vector<16x128xf32>
    %192 = arith.addf %191, %6 : vector<16x128xf32>
    %cst_129 = arith.constant 0.000000e+00 : f32
    %193 = vector.broadcast %cst_129 : f32 to vector<16x128xf32>
    %194 = arith.maximumf %192, %193 : vector<16x128xf32>
    %195 = arith.truncf %194 : vector<16x128xf32> to vector<16x128xbf16>
    %c15_130 = arith.constant 15 : index
    %c0_131 = arith.constant 0 : index
    %c0_132 = arith.constant 0 : index
    %196 = vector.load %arg4[%c15_130, %c0_131, %c0_132] : memref<16x128x1024xbf16, #tpu.memory_space<vmem>>, vector<1x128x1024xbf16>
    %197 = vector.shape_cast %196 : vector<1x128x1024xbf16> to vector<128x1024xbf16>
    %cst_133 = arith.constant dense<0.000000e+00> : vector<16x1024xf32>
    %198 = tpu.matmul %195, %197, %cst_133 {dimension_numbers = #tpu.dot_dimension_numbers<[1], [0], [0], [1], [0, 0, 1, 1], [], []>} : vector<16x128xbf16>, vector<128x1024xbf16>, vector<16x1024xf32> -> vector<16x1024xf32>
    %199 = arith.addf %187, %198 : vector<16x1024xf32>
    %c0_134 = arith.constant 0 : index
    %c0_135 = arith.constant 0 : index
    %200 = vector.load %arg5[%c0_134, %c0_135] : memref<1x1024xf32, #tpu.memory_space<vmem>>, vector<1x1024xf32>
    %201 = vector.broadcast %200 : vector<1x1024xf32> to vector<16x1024xf32>
    %202 = arith.addf %199, %201 : vector<16x1024xf32>
    %cst_136 = arith.constant 0.000000e+00 : f32
    %203 = vector.broadcast %cst_136 : f32 to vector<16x1024xf32>
    %204 = arith.maximumf %202, %203 : vector<16x1024xf32>
    %205 = arith.truncf %204 : vector<16x1024xf32> to vector<16x1024xbf16>
    %c0_137 = arith.constant 0 : index
    %c0_138 = arith.constant 0 : index
    %206 = vector.load %arg6[%c0_137, %c0_138] : memref<1024x128xbf16, #tpu.memory_space<vmem>>, vector<1024x128xbf16>
    %cst_139 = arith.constant dense<0.000000e+00> : vector<16x128xf32>
    %207 = tpu.matmul %205, %206, %cst_139 {dimension_numbers = #tpu.dot_dimension_numbers<[1], [0], [0], [1], [0, 0, 1, 1], [], []>} : vector<16x1024xbf16>, vector<1024x128xbf16>, vector<16x128xf32> -> vector<16x128xf32>
    %c0_140 = arith.constant 0 : index
    %c0_141 = arith.constant 0 : index
    %208 = vector.load %arg7[%c0_140, %c0_141] : memref<1x128xf32, #tpu.memory_space<vmem>>, vector<1x128xf32>
    %209 = vector.broadcast %208 : vector<1x128xf32> to vector<16x128xf32>
    %210 = arith.addf %207, %209 : vector<16x128xf32>
    %c0_142 = arith.constant 0 : index
    %c0_143 = arith.constant 0 : index
    %211 = vector.load %arg8[%c0_142, %c0_143] : memref<16x128xf32, #tpu.memory_space<vmem>>, vector<16x128xf32>
    tpu.vector_store %arg8[%c0_142, %c0_143], %210 {strides = array<i32>} : memref<16x128xf32, #tpu.memory_space<vmem>>, vector<16x128xf32>,
    return
  }
}

</mosaic_0001>

<llo_original>
// kernel: aux_forward.1
$region0: #{aux_forward.1}
  #allocation0 [shape = 'u32[]', space=smem, size = 0x4, offset = 0x4, fixed_abs, tag = 'smem constant byte address 0x4 - core index']
  #allocation1 [shape = 'u32[144,128]{1,0:T(1,128)}', space=vmem, size = 0x12000, scoped, tag = 'internal scratch']
  %s0 = inlined_call_operand.vmem [shape: bf16[16,16,128], index: 0, kind: input, shape index: {}]
  %s1 = inlined_call_operand.hbm [shape: bf16[128,128], index: 1, kind: input, shape index: {}]
  %s2 = inlined_call_operand.hbm [shape: f32[1,128], index: 2, kind: input, shape index: {}]
  %s3 = inlined_call_operand.hbm [shape: f32[1,128], index: 3, kind: input, shape index: {}]
  %s4 = inlined_call_operand.hbm [shape: bf16[16,128,1024], index: 4, kind: input, shape index: {}]
  %s5 = inlined_call_operand.hbm [shape: f32[1,1024], index: 5, kind: input, shape index: {}]
  %s6 = inlined_call_operand.hbm [shape: bf16[1024,128], index: 6, kind: input, shape index: {}]
  %s7 = inlined_call_operand.hbm [shape: f32[1,128], index: 7, kind: input, shape index: {}]
  %s8 = inlined_call_operand.vmem [shape: f32[16,128], index: 8, kind: output, shape index: {}]
  %s9 = sld [smem:[#allocation0]]
  $region70: #{aux_forward.1} parent=0
    _
  %s11 = ssub.s32 1, %s9
  %s12 = scalar_select 0, %s11, %s9
  $region1: #{aux_forward.1} parent=0
    #allocation2 [shape = 'u8[32768]{0}', space=vmem, size = 0x8000, scoped, tag = 'input window, operand 1, single buffered']
    #allocation3 [shape = 's32[1]{0}', space=sflag, size = 0x4, scoped, tag = 'scoped memory for aux_forward.1']
    #allocation4 [shape = 'u8[512]{0}', space=vmem, size = 0x400, scoped, tag = 'input window, operand 2, single buffered']
    #allocation5 [shape = 's32[1]{0}', space=sflag, size = 0x4, scoped, tag = 'scoped memory for aux_forward.1']
    #allocation6 [shape = 'u8[512]{0}', space=vmem, size = 0x400, scoped, tag = 'input window, operand 3, single buffered']
    #allocation7 [shape = 'u8[4194304]{0}', space=vmem, size = 0x400000, scoped, tag = 'input window, operand 4, single buffered']
    #allocation8 [shape = 's32[1]{0}', space=sflag, size = 0x4, scoped, tag = 'scoped memory for aux_forward.1']
    #allocation9 [shape = 'u8[4096]{0}', space=vmem, size = 0x1000, scoped, tag = 'input window, operand 5, single buffered']
    #allocation10 [shape = 'u8[262144]{0}', space=vmem, size = 0x40000, scoped, tag = 'input window, operand 6, single buffered']
    #allocation11 [shape = 's32[1]{0}', space=sflag, size = 0x4, scoped, tag = 'scoped memory for aux_forward.1']
    #allocation12 [shape = 'u8[512]{0}', space=vmem, size = 0x400, scoped, tag = 'input window, operand 7, single buffered']
    %13 = vsyncpa [#allocation3], 0
    %14 = vsyncpa [#allocation5], 0
    %15 = vsyncpa [#allocation8], 0
    %16 = vsyncpa [#allocation11], 0
    // Predicated region
    $region2: #{aux_forward.1} parent=1 // pred_check
      _
    $region3: #{aux_forward.1} parent=1 // pred_check_branch
      %18 = sbr.rel (0) target = $region5
    $region4: #{aux_forward.1} parent=1 // pred_region
      _
    $region5: #{aux_forward.1} parent=1 // pred_fallthru
      _
    // Predicated region
    $region6: #{aux_forward.1} parent=1 // pred_check
      _
    $region7: #{aux_forward.1} parent=1 // pred_check_branch
      %20 = sbr.rel (0) target = $region9
    $region8: #{aux_forward.1} parent=1 // pred_region
      %s22 = ssub.s32 1024, 1024
      %23 = vsyncadd [#allocation3], %s22
      %s24 = sshll.u32 [#allocation2], 4
      %s25 = int_to_ptr.vmem [resolvable:$true] %s24
      %30 = dma.hbm_to_vmem [thread:$0]  %s1, 1024, %s25, [#allocation3], 64, 64, 4
    $region9: #{aux_forward.1} parent=1 // pred_fallthru
      _
    // Predicated region
    $region10: #{aux_forward.1} parent=1 // pred_check
      _
    $region11: #{aux_forward.1} parent=1 // pred_check_branch
      %32 = sbr.rel (0) target = $region13
    $region12: #{aux_forward.1} parent=1 // pred_region
      %s34 = ssub.s32 16, 16
      %35 = vsyncadd [#allocation5], %s34
      %s37 = sshll.u32 [#allocation4], 4
      %s38 = int_to_ptr.vmem [resolvable:$true] %s37
      %40 = dma.hbm_to_vmem [thread:$0]  %s2, 16, %s38, [#allocation5]
    $region13: #{aux_forward.1} parent=1 // pred_fallthru
      _
    // Predicated region
    $region14: #{aux_forward.1} parent=1 // pred_check
      _
    $region15: #{aux_forward.1} parent=1 // pred_check_branch
      %42 = sbr.rel (0) target = $region17
    $region16: #{aux_forward.1} parent=1 // pred_region
      %s44 = ssub.s32 16, 16
      %45 = vsyncadd [#allocation5], %s44
      %s47 = sshll.u32 [#allocation6], 4
      %s48 = int_to_ptr.vmem [resolvable:$true] %s47
      %50 = dma.hbm_to_vmem [thread:$0]  %s3, 16, %s48, [#allocation5]
    $region17: #{aux_forward.1} parent=1 // pred_fallthru
      _
    // Predicated region
    $region18: #{aux_forward.1} parent=1 // pred_check
      _
    $region19: #{aux_forward.1} parent=1 // pred_check_branch
      %52 = sbr.rel (0) target = $region21
    $region20: #{aux_forward.1} parent=1 // pred_region
      %s54 = ssub.s32 131072, 131072
      %55 = vsyncadd [#allocation8], %s54
      %s56 = sshll.u32 [#allocation7], 4
      %s57 = int_to_ptr.vmem [resolvable:$true] %s56
      %62 = dma.hbm_to_vmem [thread:$0]  %s4, 131072, %s57, [#allocation8], 512, 512, 32
    $region21: #{aux_forward.1} parent=1 // pred_fallthru
      _
    // Predicated region
    $region22: #{aux_forward.1} parent=1 // pred_check
      _
    $region23: #{aux_forward.1} parent=1 // pred_check_branch
      %64 = sbr.rel (0) target = $region25
    $region24: #{aux_forward.1} parent=1 // pred_region
      %s66 = ssub.s32 128, 128
      %67 = vsyncadd [#allocation8], %s66
      %s69 = sshll.u32 [#allocation9], 4
      %s70 = int_to_ptr.vmem [resolvable:$true] %s69
      %72 = dma.hbm_to_vmem [thread:$0]  %s5, 128, %s70, [#allocation8]
    $region25: #{aux_forward.1} parent=1 // pred_fallthru
      _
    // Predicated region
    $region26: #{aux_forward.1} parent=1 // pred_check
      _
    $region27: #{aux_forward.1} parent=1 // pred_check_branch
      %74 = sbr.rel (0) target = $region29
    $region28: #{aux_forward.1} parent=1 // pred_region
      %s76 = ssub.s32 8192, 8192
      %77 = vsyncadd [#allocation11], %s76
      %s78 = sshll.u32 [#allocation10], 4
      %s79 = int_to_ptr.vmem [resolvable:$true] %s78
      %84 = dma.hbm_to_vmem [thread:$0]  %s6, 8192, %s79, [#allocation11], 64, 64, 4
    $region29: #{aux_forward.1} parent=1 // pred_fallthru
      _
    // Predicated region
    $region30: #{aux_forward.1} parent=1 // pred_check
      _
    $region31: #{aux_forward.1} parent=1 // pred_check_branch
      %86 = sbr.rel (0) target = $region33
    $region32: #{aux_forward.1} parent=1 // pred_region
      %s88 = ssub.s32 16, 16
      %89 = vsyncadd [#allocation11], %s88
      %s91 = sshll.u32 [#allocation12], 4
      %s92 = int_to_ptr.vmem [resolvable:$true] %s91
      %94 = dma.hbm_to_vmem [thread:$0]  %s7, 16, %s92, [#allocation11]
    $region33: #{aux_forward.1} parent=1 // pred_fallthru
      _
    // Predicated region
    $region34: #{aux_forward.1} parent=1 // pred_check
      _
    $region35: #{aux_forward.1} parent=1 // pred_check_branch
      %96 = sbr.rel (0) target = $region37
    $region36: #{aux_forward.1} parent=1 // pred_region
      %97 = dma.done [#allocation3], 1024
    $region37: #{aux_forward.1} parent=1 // pred_fallthru
      _
    // Predicated region
    $region38: #{aux_forward.1} parent=1 // pred_check
      _
    $region39: #{aux_forward.1} parent=1 // pred_check_branch
      %99 = sbr.rel (0) target = $region41
    $region40: #{aux_forward.1} parent=1 // pred_region
      %100 = dma.done [#allocation5], 16
    $region41: #{aux_forward.1} parent=1 // pred_fallthru
      _
    // Predicated region
    $region42: #{aux_forward.1} parent=1 // pred_check
      _
    $region43: #{aux_forward.1} parent=1 // pred_check_branch
      %102 = sbr.rel (0) target = $region45
    $region44: #{aux_forward.1} parent=1 // pred_region
      %103 = dma.done [#allocation5], 16
    $region45: #{aux_forward.1} parent=1 // pred_fallthru
      _
    // Predicated region
    $region46: #{aux_forward.1} parent=1 // pred_check
      _
    $region47: #{aux_forward.1} parent=1 // pred_check_branch
      %105 = sbr.rel (0) target = $region49
    $region48: #{aux_forward.1} parent=1 // pred_region
      %106 = dma.done [#allocation8], 131072
    $region49: #{aux_forward.1} parent=1 // pred_fallthru
      _
    // Predicated region
    $region50: #{aux_forward.1} parent=1 // pred_check
      _
    $region51: #{aux_forward.1} parent=1 // pred_check_branch
      %108 = sbr.rel (0) target = $region53
    $region52: #{aux_forward.1} parent=1 // pred_region
      %109 = dma.done [#allocation8], 128
    $region53: #{aux_forward.1} parent=1 // pred_fallthru
      _
    // Predicated region
    $region54: #{aux_forward.1} parent=1 // pred_check
      _
    $region55: #{aux_forward.1} parent=1 // pred_check_branch
      %111 = sbr.rel (0) target = $region57
    $region56: #{aux_forward.1} parent=1 // pred_region
      %112 = dma.done [#allocation11], 8192
    $region57: #{aux_forward.1} parent=1 // pred_fallthru
      _
    // Predicated region
    $region58: #{aux_forward.1} parent=1 // pred_check
      _
    $region59: #{aux_forward.1} parent=1 // pred_check_branch
      %114 = sbr.rel (0) target = $region61
    $region60: #{aux_forward.1} parent=1 // pred_region
      %115 = dma.done [#allocation11], 16
    $region61: #{aux_forward.1} parent=1 // pred_fallthru
      _
    %v117 = vld [vmem:[#allocation2] sm:$0xf]
    %v118 = vld [vmem:[#allocation2 + $0x4] sm:$0xf]
    %v119 = vld [vmem:[#allocation2 + $0x8] sm:$0xf]
    %v120 = vld [vmem:[#allocation2 + $0xc] sm:$0xf]
    %v121 = vld [vmem:[#allocation2 + $0x10] sm:$0xf]
    %v122 = vld [vmem:[#allocation2 + $0x14] sm:$0xf]
    %v123 = vld [vmem:[#allocation2 + $0x18] sm:$0xf]
    %v124 = vld [vmem:[#allocation2 + $0x1c] sm:$0xf]
    %v125 = vld [vmem:[#allocation2 + $0x20] sm:$0xf]
    %v126 = vld [vmem:[#allocation2 + $0x24] sm:$0xf]
    %v127 = vld [vmem:[#allocation2 + $0x28] sm:$0xf]
    %v128 = vld [vmem:[#allocation2 + $0x2c] sm:$0xf]
    %v129 = vld [vmem:[#allocation2 + $0x30] sm:$0xf]
    %v130 = vld [vmem:[#allocation2 + $0x34] sm:$0xf]
    %v131 = vld [vmem:[#allocation2 + $0x38] sm:$0xf]
    %v132 = vld [vmem:[#allocation2 + $0x3c] sm:$0xf]
    %v133 = vld [vmem:[#allocation4] sm:$0x1]
    %v135 = vlaneseq
    %v136 = vshrl.u32 %v135, 7
    %v137 = vsub.s32 0, %v136
    %v138 = vrot.slane %v133, %v137
    %v140 = vld [vmem:[#allocation6] sm:$0x1]
    %v142 = vlaneseq
    %v143 = vshrl.u32 %v142, 7
    %v144 = vsub.s32 0, %v143
    %v145 = vrot.slane %v140, %v144
    %v147 = vld [vmem:[%s0] sm:$0xf]
    %v148 = vld [vmem:[%s0 + $0x4] sm:$0xf]
    %v151 = vunpack.c.l.b16 %v147
    %v152 = vunpack.c.l.b16 %v148
    %v153 = vpack.c.b16 %v152, %v151
    %v171 = vunpack.c.l.b16 %v117
    %v172 = vunpack.c.l.b16 %v118
    %v173 = vunpack.c.l.b16 %v119
    %v174 = vunpack.c.l.b16 %v120
    %v175 = vunpack.c.l.b16 %v121
    %v176 = vunpack.c.l.b16 %v122
    %v177 = vunpack.c.l.b16 %v123
    %v178 = vunpack.c.l.b16 %v124
    %v179 = vunpack.c.l.b16 %v125
    %v180 = vunpack.c.l.b16 %v126
    %v181 = vunpack.c.l.b16 %v127
    %v182 = vunpack.c.l.b16 %v128
    %v183 = vunpack.c.l.b16 %v129
    %v184 = vunpack.c.l.b16 %v130
    %v185 = vunpack.c.l.b16 %v131
    %v186 = vunpack.c.l.b16 %v132
    %v187 = vpack.c.b16 %v172, %v171
    %v188 = vpack.c.b16 %v174, %v173
    %v189 = vpack.c.b16 %v176, %v175
    %v190 = vpack.c.b16 %v178, %v177
    %v191 = vpack.c.b16 %v180, %v179
    %v192 = vpack.c.b16 %v182, %v181
    %v193 = vpack.c.b16 %v184, %v183
    %v194 = vpack.c.b16 %v186, %v185
    %203 = vmatprep.subr.bf16.mxu0 0
    %204 = vmatpush1.bf16.msra.mxu0 %v187
    %205 = vmatprep.subr.bf16.mxu0 0
    %206 = vmatpush1.bf16.msra.mxu0 %v188
    %207 = vmatprep.subr.bf16.mxu0 0
    %208 = vmatpush1.bf16.msra.mxu0 %v189
    %209 = vmatprep.subr.bf16.mxu0 0
    %210 = vmatpush1.bf16.msra.mxu0 %v190
    %211 = vmatprep.subr.bf16.mxu0 0
    %212 = vmatpush1.bf16.msra.mxu0 %v191
    %213 = vmatprep.subr.bf16.mxu0 0
    %214 = vmatpush1.bf16.msra.mxu0 %v192
    %215 = vmatprep.subr.bf16.mxu0 0
    %216 = vmatpush1.bf16.msra.mxu0 %v193
    %217 = vmatprep.subr.bf16.mxu0 0
    %218 = vmatpush1.bf16.msra.mxu0 %v194
    %219 = vmatprep.subr.bf16.mxu0 0
    %220 = vmatpush1.bf16.msra.mxu0 0
    %221 = vmatprep.subr.bf16.mxu0 0
    %222 = vmatpush1.bf16.msra.mxu0 0
    %223 = vmatprep.subr.bf16.mxu0 0
    %224 = vmatpush1.bf16.msra.mxu0 0
    %225 = vmatprep.subr.bf16.mxu0 0
    %226 = vmatpush1.bf16.msra.mxu0 0
    %227 = vmatprep.subr.bf16.mxu0 0
    %228 = vmatpush1.bf16.msra.mxu0 0
    %229 = vmatprep.subr.bf16.mxu0 0
    %230 = vmatpush1.bf16.msra.mxu0 0
    %231 = vmatprep.subr.bf16.mxu0 0
    %232 = vmatpush1.bf16.msra.mxu0 0
    %233 = vmatprep.subr.bf16.mxu0 0
    %234 = vmatpush1.bf16.msra.mxu0 0
    %235 = vmatprep.mubr.bf16.mxu0 0
    %236 = vmatmul.mubr.bf16.gmra.mrb[0].mxu0 %v153
    %v237 = vpop.f32.mrb[0].mxu0
    %v238 = vadd.f32 0.0, %v237
    %v239 = vpop.f32.mrb[0].mxu0
    %v240 = vpop.f32.mrb[0].mxu0
    %v241 = vadd.f32 0.0, %v240
    %v242 = vpop.f32.mrb[0].mxu0
    %243 = vdwg.mxu0
    %v244 = vmul.f32 %v238, %v138
    %v245 = vmul.f32 %v241, %v138
    %v246 = vadd.f32 %v244, %v145
    %v247 = vadd.f32 %v245, %v145
    %v248 = vmax.f32 %v246, 0.0
    %v249 = vmax.f32 %v247, 0.0
    %v250 = vpack.c.bf16 %v249, %v248
    %v251 = vld [vmem:[#allocation7] sm:$0xff]
    %v252 = vld [vmem:[#allocation7 + $0x8] sm:$0xff]
    %v253 = vld [vmem:[#allocation7 + $0x10] sm:$0xff]
    %v254 = vld [vmem:[#allocation7 + $0x18] sm:$0xff]
    %v255 = vld [vmem:[#allocation7 + $0x20] sm:$0xff]
    %v256 = vld [vmem:[#allocation7 + $0x28] sm:$0xff]
    %v257 = vld [vmem:[#allocation7 + $0x30] sm:$0xff]
    %v258 = vld [vmem:[#allocation7 + $0x38] sm:$0xff]
    %v259 = vld [vmem:[#allocation7 + $0x40] sm:$0xff]
    %v260 = vld [vmem:[#allocation7 + $0x48] sm:$0xff]
    %v261 = vld [vmem:[#allocation7 + $0x50] sm:$0xff]
    %v262 = vld [vmem:[#allocation7 + $0x58] sm:$0xff]
    %v263 = vld [vmem:[#allocation7 + $0x60] sm:$0xff]
    %v264 = vld [vmem:[#allocation7 + $0x68] sm:$0xff]
    %v265 = vld [vmem:[#allocation7 + $0x70] sm:$0xff]
    %v266 = vld [vmem:[#allocation7 + $0x78] sm:$0xff]
    %v267 = vld [vmem:[#allocation7 + $0x80] sm:$0xff]
    %v268 = vld [vmem:[#allocation7 + $0x88] sm:$0xff]
    %v269 = vld [vmem:[#allocation7 + $0x90] sm:$0xff]
    %v270 = vld [vmem:[#allocation7 + $0x98] sm:$0xff]
    %v271 = vld [vmem:[#allocation7 + $0xa0] sm:$0xff]
    %v272 = vld [vmem:[#allocation7 + $0xa8] sm:$0xff]
    %v273 = vld [vmem:[#allocation7 + $0xb0] sm:$0xff]
    %v274 = vld [vmem:[#allocation7 + $0xb8] sm:$0xff]
    %v275 = vld [vmem:[#allocation7 + $0xc0] sm:$0xff]
    %v276 = vld [vmem:[#allocation7 + $0xc8] sm:$0xff]
    %v277 = vld [vmem:[#allocation7 + $0xd0] sm:$0xff]
    %v278 = vld [vmem:[#allocation7 + $0xd8] sm:$0xff]
    %v279 = vld [vmem:[#allocation7 + $0xe0] sm:$0xff]
    %v280 = vld [vmem:[#allocation7 + $0xe8] sm:$0xff]
    %v281 = vld [vmem:[#allocation7 + $0xf0] sm:$0xff]
    %v282 = vld [vmem:[#allocation7 + $0xf8] sm:$0xff]
    %v283 = vld [vmem:[#allocation7 + $0x100] sm:$0xff]
    %v284 = vld [vmem:[#allocation7 + $0x108] sm:$0xff]
    %v285 = vld [vmem:[#allocation7 + $0x110] sm:$0xff]
    %v286 = vld [vmem:[#allocation7 + $0x118] sm:$0xff]
    %v287 = vld [vmem:[#allocation7 + $0x120] sm:$0xff]
    %v288 = vld [vmem:[#allocation7 + $0x128] sm:$0xff]
    %v289 = vld [vmem:[#allocation7 + $0x130] sm:$0xff]
    %v290 = vld [vmem:[#allocation7 + $0x138] sm:$0xff]
    %v291 = vld [vmem:[#allocation7 + $0x140] sm:$0xff]
    %v292 = vld [vmem:[#allocation7 + $0x148] sm:$0xff]
    %v293 = vld [vmem:[#allocation7 + $0x150] sm:$0xff]
    %v294 = vld [vmem:[#allocation7 + $0x158] sm:$0xff]
    %v295 = vld [vmem:[#allocation7 + $0x160] sm:$0xff]
    %v296 = vld [vmem:[#allocation7 + $0x168] sm:$0xff]
    %v297 = vld [vmem:[#allocation7 + $0x170] sm:$0xff]
    %v298 = vld [vmem:[#allocation7 + $0x178] sm:$0xff]
    %v299 = vld [vmem:[#allocation7 + $0x180] sm:$0xff]
    %v300 = vld [vmem:[#allocation7 + $0x188] sm:$0xff]
    %v301 = vld [vmem:[#allocation7 + $0x190] sm:$0xff]
    %v302 = vld [vmem:[#allocation7 + $0x198] sm:$0xff]
    %v303 = vld [vmem:[#allocation7 + $0x1a0] sm:$0xff]
    %v304 = vld [vmem:[#allocation7 + $0x1a8] sm:$0xff]
    %v305 = vld [vmem:[#allocation7 + $0x1b0] sm:$0xff]
    %v306 = vld [vmem:[#allocation7 + $0x1b8] sm:$0xff]
    %v307 = vld [vmem:[#allocation7 + $0x1c0] sm:$0xff]
    %v308 = vld [vmem:[#allocation7 + $0x1c8] sm:$0xff]
    %v309 = vld [vmem:[#allocation7 + $0x1d0] sm:$0xff]
    %v310 = vld [vmem:[#allocation7 + $0x1d8] sm:$0xff]
    %v311 = vld [vmem:[#allocation7 + $0x1e0] sm:$0xff]
    %v312 = vld [vmem:[#allocation7 + $0x1e8] sm:$0xff]
    %v313 = vld [vmem:[#allocation7 + $0x1f0] sm:$0xff]
    %v314 = vld [vmem:[#allocation7 + $0x1f8] sm:$0xff]
    %s315 = scalar_lea.vmem %s0, 8
    %v316 = vld [vmem:[%s315] sm:$0xf]
    %v317 = vld [vmem:[%s315 + $0x4] sm:$0xf]
    %v320 = vunpack.c.l.b16 %v316
    %v321 = vunpack.c.l.b16 %v317
    %v322 = vpack.c.b16 %v321, %v320
    %324 = vmatprep.subr.bf16.mxu0 0
    %325 = vmatpush1.bf16.msra.mxu0 %v187
    %326 = vmatprep.subr.bf16.mxu0 0
    %327 = vmatpush1.bf16.msra.mxu0 %v188
    %328 = vmatprep.subr.bf16.mxu0 0
    %329 = vmatpush1.bf16.msra.mxu0 %v189
    %330 = vmatprep.subr.bf16.mxu0 0
    %331 = vmatpush1.bf16.msra.mxu0 %v190
    %332 = vmatprep.subr.bf16.mxu0 0
    %333 = vmatpush1.bf16.msra.mxu0 %v191
    %334 = vmatprep.subr.bf16.mxu0 0
    %335 = vmatpush1.bf16.msra.mxu0 %v192
    %336 = vmatprep.subr.bf16.mxu0 0
    %337 = vmatpush1.bf16.msra.mxu0 %v193
    %338 = vmatprep.subr.bf16.mxu0 0
    %339 = vmatpush1.bf16.msra.mxu0 %v194
    %340 = vmatprep.subr.bf16.mxu0 0
    %341 = vmatpush1.bf16.msra.mxu0 0
    %342 = vmatprep.subr.bf16.mxu0 0
    %343 = vmatpush1.bf16.msra.mxu0 0
    %344 = vmatprep.subr.bf16.mxu0 0
    %345 = vmatpush1.bf16.msra.mxu0 0
    %346 = vmatprep.subr.bf16.mxu0 0
    %347 = vmatpush1.bf16.msra.mxu0 0
    %348 = vmatprep.subr.bf16.mxu0 0
    %349 = vmatpush1.bf16.msra.mxu0 0
    %350 = vmatprep.subr.bf16.mxu0 0
    %351 = vmatpush1.bf16.msra.mxu0 0
    %352 = vmatprep.subr.bf16.mxu0 0
    %353 = vmatpush1.bf16.msra.mxu0 0
    %354 = vmatprep.subr.bf16.mxu0 0
    %355 = vmatpush1.bf16.msra.mxu0 0
    %356 = vmatprep.mubr.bf16.mxu0 0
    %357 = vmatmul.mubr.bf16.gmra.mrb[0].mxu0 %v322
    %v358 = vpop.f32.mrb[0].mxu0
    %v359 = vadd.f32 0.0, %v358
    %v360 = vpop.f32.mrb[0].mxu0
    %v361 = vpop.f32.mrb[0].mxu0
    %v362 = vadd.f32 0.0, %v361
    %v363 = vpop.f32.mrb[0].mxu0
    %364 = vdwg.mxu0
    %v365 = vmul.f32 %v359, %v138
    %v366 = vmul.f32 %v362, %v138
    %v367 = vadd.f32 %v365, %v145
    %v368 = vadd.f32 %v366, %v145
    %v369 = vmax.f32 %v367, 0.0
    %v370 = vmax.f32 %v368, 0.0
    %v371 = vpack.c.bf16 %v370, %v369
    %s372 = scalar_lea.vmem [#allocation7], 512
    %v373 = vld [vmem:[%s372] sm:$0xff]
    %v374 = vld [vmem:[%s372 + $0x8] sm:$0xff]
    %v375 = vld [vmem:[%s372 + $0x10] sm:$0xff]
    %v376 = vld [vmem:[%s372 + $0x18] sm:$0xff]
    %v377 = vld [vmem:[%s372 + $0x20] sm:$0xff]
    %v378 = vld [vmem:[%s372 + $0x28] sm:$0xff]
    %v379 = vld [vmem:[%s372 + $0x30] sm:$0xff]
    %v380 = vld [vmem:[%s372 + $0x38] sm:$0xff]
    %v381 = vld [vmem:[%s372 + $0x40] sm:$0xff]
    %v382 = vld [vmem:[%s372 + $0x48] sm:$0xff]
    %v383 = vld [vmem:[%s372 + $0x50] sm:$0xff]
    %v384 = vld [vmem:[%s372 + $0x58] sm:$0xff]
    %v385 = vld [vmem:[%s372 + $0x60] sm:$0xff]
    %v386 = vld [vmem:[%s372 + $0x68] sm:$0xff]
    %v387 = vld [vmem:[%s372 + $0x70] sm:$0xff]
    %v388 = vld [vmem:[%s372 + $0x78] sm:$0xff]
    %v389 = vld [vmem:[%s372 + $0x80] sm:$0xff]
    %v390 = vld [vmem:[%s372 + $0x88] sm:$0xff]
    %v391 = vld [vmem:[%s372 + $0x90] sm:$0xff]
    %v392 = vld [vmem:[%s372 + $0x98] sm:$0xff]
    %v393 = vld [vmem:[%s372 + $0xa0] sm:$0xff]
    %v394 = vld [vmem:[%s372 + $0xa8] sm:$0xff]
    %v395 = vld [vmem:[%s372 + $0xb0] sm:$0xff]
    %v396 = vld [vmem:[%s372 + $0xb8] sm:$0xff]
    %v397 = vld [vmem:[%s372 + $0xc0] sm:$0xff]
    %v398 = vld [vmem:[%s372 + $0xc8] sm:$0xff]
    %v399 = vld [vmem:[%s372 + $0xd0] sm:$0xff]
    %v400 = vld [vmem:[%s372 + $0xd8] sm:$0xff]
    %v401 = vld [vmem:[%s372 + $0xe0] sm:$0xff]
    %v402 = vld [vmem:[%s372 + $0xe8] sm:$0xff]
    %v403 = vld [vmem:[%s372 + $0xf0] sm:$0xff]
    %v404 = vld [vmem:[%s372 + $0xf8] sm:$0xff]
    %v405 = vld [vmem:[%s372 + $0x100] sm:$0xff]
    %v406 = vld [vmem:[%s372 + $0x108] sm:$0xff]
    %v407 = vld [vmem:[%s372 + $0x110] sm:$0xff]
    %v408 = vld [vmem:[%s372 + $0x118] sm:$0xff]
    %v409 = vld [vmem:[%s372 + $0x120] sm:$0xff]
    %v410 = vld [vmem:[%s372 + $0x128] sm:$0xff]
    %v411 = vld [vmem:[%s372 + $0x130] sm:$0xff]
    %v412 = vld [vmem:[%s372 + $0x138] sm:$0xff]
    %v413 = vld [vmem:[%s372 + $0x140] sm:$0xff]
    %v414 = vld [vmem:[%s372 + $0x148] sm:$0xff]
    %v415 = vld [vmem:[%s372 + $0x150] sm:$0xff]
    %v416 = vld [vmem:[%s372 + $0x158] sm:$0xff]
    %v417 = vld [vmem:[%s372 + $0x160] sm:$0xff]
    %v418 = vld [vmem:[%s372 + $0x168] sm:$0xff]
    %v419 = vld [vmem:[%s372 + $0x170] sm:$0xff]
    %v420 = vld [vmem:[%s372 + $0x178] sm:$0xff]
    %v421 = vld [vmem:[%s372 + $0x180] sm:$0xff]
    %v422 = vld [vmem:[%s372 + $0x188] sm:$0xff]
    %v423 = vld [vmem:[%s372 + $0x190] sm:$0xff]
    %v424 = vld [vmem:[%s372 + $0x198] sm:$0xff]
    %v425 = vld [vmem:[%s372 + $0x1a0] sm:$0xff]
    %v426 = vld [vmem:[%s372 + $0x1a8] sm:$0xff]
    %v427 = vld [vmem:[%s372 + $0x1b0] sm:$0xff]
    %v428 = vld [vmem:[%s372 + $0x1b8] sm:$0xff]
    %v429 = vld [vmem:[%s372 + $0x1c0] sm:$0xff]
    %v430 = vld [vmem:[%s372 + $0x1c8] sm:$0xff]
    %v431 = vld [vmem:[%s372 + $0x1d0] sm:$0xff]
    %v432 = vld [vmem:[%s372 + $0x1d8] sm:$0xff]
    %v433 = vld [vmem:[%s372 + $0x1e0] sm:$0xff]
    %v434 = vld [vmem:[%s372 + $0x1e8] sm:$0xff]
    %v435 = vld [vmem:[%s372 + $0x1f0] sm:$0xff]
    %v436 = vld [vmem:[%s372 + $0x1f8] sm:$0xff]
    %v501 = vunpack.c.l.b16 %v373
    %v502 = vunpack.c.h.b16 %v373
    %v503 = vunpack.c.l.b16 %v374
    %v504 = vunpack.c.h.b16 %v374
    %v505 = vunpack.c.l.b16 %v375
    %v506 = vunpack.c.h.b16 %v375
    %v507 = vunpack.c.l.b16 %v376
    %v508 = vunpack.c.h.b16 %v376
    %v509 = vunpack.c.l.b16 %v377
    %v510 = vunpack.c.h.b16 %v377
    %v511 = vunpack.c.l.b16 %v378
    %v512 = vunpack.c.h.b16 %v378
    %v513 = vunpack.c.l.b16 %v379
    %v514 = vunpack.c.h.b16 %v379
    %v515 = vunpack.c.l.b16 %v380
    %v516 = vunpack.c.h.b16 %v380
    %v517 = vunpack.c.l.b16 %v381
    %v518 = vunpack.c.h.b16 %v381
    %v519 = vunpack.c.l.b16 %v382
    %v520 = vunpack.c.h.b16 %v382
    %v521 = vunpack.c.l.b16 %v383
    %v522 = vunpack.c.h.b16 %v383
    %v523 = vunpack.c.l.b16 %v384
    %v524 = vunpack.c.h.b16 %v384
    %v525 = vunpack.c.l.b16 %v385
    %v526 = vunpack.c.h.b16 %v385
    %v527 = vunpack.c.l.b16 %v386
    %v528 = vunpack.c.h.b16 %v386
    %v529 = vunpack.c.l.b16 %v387
    %v530 = vunpack.c.h.b16 %v387
    %v531 = vunpack.c.l.b16 %v388
    %v532 = vunpack.c.h.b16 %v388
    %v533 = vunpack.c.l.b16 %v389
    %v534 = vunpack.c.h.b16 %v389
    %v535 = vunpack.c.l.b16 %v390
    %v536 = vunpack.c.h.b16 %v390
    %v537 = vunpack.c.l.b16 %v391
    %v538 = vunpack.c.h.b16 %v391
    %v539 = vunpack.c.l.b16 %v392
    %v540 = vunpack.c.h.b16 %v392
    %v541 = vunpack.c.l.b16 %v393
    %v542 = vunpack.c.h.b16 %v393
    %v543 = vunpack.c.l.b16 %v394
    %v544 = vunpack.c.h.b16 %v394
    %v545 = vunpack.c.l.b16 %v395
    %v546 = vunpack.c.h.b16 %v395
    %v547 = vunpack.c.l.b16 %v396
    %v548 = vunpack.c.h.b16 %v396
    %v549 = vunpack.c.l.b16 %v397
    %v550 = vunpack.c.h.b16 %v397
    %v551 = vunpack.c.l.b16 %v398
    %v552 = vunpack.c.h.b16 %v398
    %v553 = vunpack.c.l.b16 %v399
    %v554 = vunpack.c.h.b16 %v399
    %v555 = vunpack.c.l.b16 %v400
    %v556 = vunpack.c.h.b16 %v400
    %v557 = vunpack.c.l.b16 %v401
    %v558 = vunpack.c.h.b16 %v401
    %v559 = vunpack.c.l.b16 %v402
    %v560 = vunpack.c.h.b16 %v402
    %v561 = vunpack.c.l.b16 %v403
    %v562 = vunpack.c.h.b16 %v403
    %v563 = vunpack.c.l.b16 %v404
    %v564 = vunpack.c.h.b16 %v404
    %v565 = vunpack.c.l.b16 %v405
    %v566 = vunpack.c.h.b16 %v405
    %v567 = vunpack.c.l.b16 %v406
    %v568 = vunpack.c.h.b16 %v406
    %v569 = vunpack.c.l.b16 %v407
    %v570 = vunpack.c.h.b16 %v407
    %v571 = vunpack.c.l.b16 %v408
    %v572 = vunpack.c.h.b16 %v408
    %v573 = vunpack.c.l.b16 %v409
    %v574 = vunpack.c.h.b16 %v409
    %v575 = vunpack.c.l.b16 %v410
    %v576 = vunpack.c.h.b16 %v410
    %v577 = vunpack.c.l.b16 %v411
    %v578 = vunpack.c.h.b16 %v411
    %v579 = vunpack.c.l.b16 %v412
    %v580 = vunpack.c.h.b16 %v412
    %v581 = vunpack.c.l.b16 %v413
    %v582 = vunpack.c.h.b16 %v413
    %v583 = vunpack.c.l.b16 %v414
    %v584 = vunpack.c.h.b16 %v414
    %v585 = vunpack.c.l.b16 %v415
    %v586 = vunpack.c.h.b16 %v415
    %v587 = vunpack.c.l.b16 %v416
    %v588 = vunpack.c.h.b16 %v416
    %v589 = vunpack.c.l.b16 %v417
    %v590 = vunpack.c.h.b16 %v417
    %v591 = vunpack.c.l.b16 %v418
    %v592 = vunpack.c.h.b16 %v418
    %v593 = vunpack.c.l.b16 %v419
    %v594 = vunpack.c.h.b16 %v419
    %v595 = vunpack.c.l.b16 %v420
    %v596 = vunpack.c.h.b16 %v420
    %v597 = vunpack.c.l.b16 %v421
    %v598 = vunpack.c.h.b16 %v421
    %v599 = vunpack.c.l.b16 %v422
    %v600 = vunpack.c.h.b16 %v422
    %v601 = vunpack.c.l.b16 %v423
    %v602 = vunpack.c.h.b16 %v423
    %v603 = vunpack.c.l.b16 %v424
    %v604 = vunpack.c.h.b16 %v424
    %v605 = vunpack.c.l.b16 %v425
    %v606 = vunpack.c.h.b16 %v425
    %v607 = vunpack.c.l.b16 %v426
    %v608 = vunpack.c.h.b16 %v426
    %v609 = vunpack.c.l.b16 %v427
    %v610 = vunpack.c.h.b16 %v427
    %v611 = vunpack.c.l.b16 %v428
    %v612 = vunpack.c.h.b16 %v428
    %v613 = vunpack.c.l.b16 %v429
    %v614 = vunpack.c.h.b16 %v429
    %v615 = vunpack.c.l.b16 %v430
    %v616 = vunpack.c.h.b16 %v430
    %v617 = vunpack.c.l.b16 %v431
    %v618 = vunpack.c.h.b16 %v431
    %v619 = vunpack.c.l.b16 %v432
    %v620 = vunpack.c.h.b16 %v432
    %v621 = vunpack.c.l.b16 %v433
    %v622 = vunpack.c.h.b16 %v433
    %v623 = vunpack.c.l.b16 %v434
    %v624 = vunpack.c.h.b16 %v434
    %v625 = vunpack.c.l.b16 %v435
    %v626 = vunpack.c.h.b16 %v435
    %v627 = vunpack.c.l.b16 %v436
    %v628 = vunpack.c.h.b16 %v436
    %v629 = vpack.c.b16 %v509, %v501
    %v630 = vpack.c.b16 %v510, %v502
    %v631 = vpack.c.b16 %v511, %v503
    %v632 = vpack.c.b16 %v512, %v504
    %v633 = vpack.c.b16 %v513, %v505
    %v634 = vpack.c.b16 %v514, %v506
    %v635 = vpack.c.b16 %v515, %v507
    %v636 = vpack.c.b16 %v516, %v508
    %v637 = vpack.c.b16 %v525, %v517
    %v638 = vpack.c.b16 %v526, %v518
    %v639 = vpack.c.b16 %v527, %v519
    %v640 = vpack.c.b16 %v528, %v520
    %v641 = vpack.c.b16 %v529, %v521
    %v642 = vpack.c.b16 %v530, %v522
    %v643 = vpack.c.b16 %v531, %v523
    %v644 = vpack.c.b16 %v532, %v524
    %v645 = vpack.c.b16 %v541, %v533
    %v646 = vpack.c.b16 %v542, %v534
    %v647 = vpack.c.b16 %v543, %v535
    %v648 = vpack.c.b16 %v544, %v536
    %v649 = vpack.c.b16 %v545, %v537
    %v650 = vpack.c.b16 %v546, %v538
    %v651 = vpack.c.b16 %v547, %v539
    %v652 = vpack.c.b16 %v548, %v540
    %v653 = vpack.c.b16 %v557, %v549
    %v654 = vpack.c.b16 %v558, %v550
    %v655 = vpack.c.b16 %v559, %v551
    %v656 = vpack.c.b16 %v560, %v552
    %v657 = vpack.c.b16 %v561, %v553
    %v658 = vpack.c.b16 %v562, %v554
    %v659 = vpack.c.b16 %v563, %v555
    %v660 = vpack.c.b16 %v564, %v556
    %v661 = vpack.c.b16 %v573, %v565
    %v662 = vpack.c.b16 %v574, %v566
    %v663 = vpack.c.b16 %v575, %v567
    %v664 = vpack.c.b16 %v576, %v568
    %v665 = vpack.c.b16 %v577, %v569
    %v666 = vpack.c.b16 %v578, %v570
    %v667 = vpack.c.b16 %v579, %v571
    %v668 = vpack.c.b16 %v580, %v572
    %v669 = vpack.c.b16 %v589, %v581
    %v670 = vpack.c.b16 %v590, %v582
    %v671 = vpack.c.b16 %v591, %v583
    %v672 = vpack.c.b16 %v592, %v584
    %v673 = vpack.c.b16 %v593, %v585
    %v674 = vpack.c.b16 %v594, %v586
    %v675 = vpack.c.b16 %v595, %v587
    %v676 = vpack.c.b16 %v596, %v588
    %v677 = vpack.c.b16 %v605, %v597
    %v678 = vpack.c.b16 %v606, %v598
    %v679 = vpack.c.b16 %v607, %v599
    %v680 = vpack.c.b16 %v608, %v600
    %v681 = vpack.c.b16 %v609, %v601
    %v682 = vpack.c.b16 %v610, %v602
    %v683 = vpack.c.b16 %v611, %v603
    %v684 = vpack.c.b16 %v612, %v604
    %v685 = vpack.c.b16 %v621, %v613
    %v686 = vpack.c.b16 %v622, %v614
    %v687 = vpack.c.b16 %v623, %v615
    %v688 = vpack.c.b16 %v624, %v616
    %v689 = vpack.c.b16 %v625, %v617
    %v690 = vpack.c.b16 %v626, %v618
    %v691 = vpack.c.b16 %v627, %v619
    %v692 = vpack.c.b16 %v628, %v620
    %757 = vmatprep.subr.bf16.mxu0 %v630
    %758 = vmatpush1.bf16.msra.mxu0 %v629
    %759 = vmatprep.subr.bf16.mxu0 %v638
    %760 = vmatpush1.bf16.msra.mxu0 %v637
    %761 = vmatprep.subr.bf16.mxu0 %v646
    %762 = vmatpush1.bf16.msra.mxu0 %v645
    %763 = vmatprep.subr.bf16.mxu0 %v654
    %764 = vmatpush1.bf16.msra.mxu0 %v653
    %765 = vmatprep.subr.bf16.mxu0 %v662
    %766 = vmatpush1.bf16.msra.mxu0 %v661
    %767 = vmatprep.subr.bf16.mxu0 %v670
    %768 = vmatpush1.bf16.msra.mxu0 %v669
    %769 = vmatprep.subr.bf16.mxu0 %v678
    %770 = vmatpush1.bf16.msra.mxu0 %v677
    %771 = vmatprep.subr.bf16.mxu0 %v686
    %772 = vmatpush1.bf16.msra.mxu0 %v685
    %773 = vmatprep.subr.bf16.mxu0 0
    %774 = vmatpush1.bf16.msra.mxu0 0
    %775 = vmatprep.subr.bf16.mxu0 0
    %776 = vmatpush1.bf16.msra.mxu0 0
    %777 = vmatprep.subr.bf16.mxu0 0
    %778 = vmatpush1.bf16.msra.mxu0 0
    %779 = vmatprep.subr.bf16.mxu0 0
    %780 = vmatpush1.bf16.msra.mxu0 0
    %781 = vmatprep.subr.bf16.mxu0 0
    %782 = vmatpush1.bf16.msra.mxu0 0
    %783 = vmatprep.subr.bf16.mxu0 0
    %784 = vmatpush1.bf16.msra.mxu0 0
    %785 = vmatprep.subr.bf16.mxu0 0
    %786 = vmatpush1.bf16.msra.mxu0 0
    %787 = vmatprep.subr.bf16.mxu0 0
    %788 = vmatpush1.bf16.msra.mxu0 0
    %789 = vmatprep.mubr.bf16.mxu0 0
    %790 = vmatmul.mubr.bf16.gmra.mrb[0].mxu0 %v371
    %v791 = vpop.f32.mrb[0].mxu0
    %v792 = vadd.f32 0.0, %v791
    %v793 = vpop.f32.mrb[0].mxu0
    %v794 = vadd.f32 0.0, %v793
    %v795 = vpop.f32.mrb[0].mxu0
    %v796 = vadd.f32 0.0, %v795
    %v797 = vpop.f32.mrb[0].mxu0
    %v798 = vadd.f32 0.0, %v797
    %799 = vdwg.mxu0
    %800 = vmatprep.subr.bf16.mxu0 %v632
    %801 = vmatpush1.bf16.msra.mxu0 %v631
    %802 = vmatprep.subr.bf16.mxu0 %v640
    %803 = vmatpush1.bf16.msra.mxu0 %v639
    %804 = vmatprep.subr.bf16.mxu0 %v648
    %805 = vmatpush1.bf16.msra.mxu0 %v647
    %806 = vmatprep.subr.bf16.mxu0 %v656
    %807 = vmatpush1.bf16.msra.mxu0 %v655
    %808 = vmatprep.subr.bf16.mxu0 %v664
    %809 = vmatpush1.bf16.msra.mxu0 %v663
    %810 = vmatprep.subr.bf16.mxu0 %v672
    %811 = vmatpush1.bf16.msra.mxu0 %v671
    %812 = vmatprep.subr.bf16.mxu0 %v680
    %813 = vmatpush1.bf16.msra.mxu0 %v679
    %814 = vmatprep.subr.bf16.mxu0 %v688
    %815 = vmatpush1.bf16.msra.mxu0 %v687
    %816 = vmatprep.subr.bf16.mxu0 0
    %817 = vmatpush1.bf16.msra.mxu0 0
    %818 = vmatprep.subr.bf16.mxu0 0
    %819 = vmatpush1.bf16.msra.mxu0 0
    %820 = vmatprep.subr.bf16.mxu0 0
    %821 = vmatpush1.bf16.msra.mxu0 0
    %822 = vmatprep.subr.bf16.mxu0 0
    %823 = vmatpush1.bf16.msra.mxu0 0
    %824 = vmatprep.subr.bf16.mxu0 0
    %825 = vmatpush1.bf16.msra.mxu0 0
    %826 = vmatprep.subr.bf16.mxu0 0
    %827 = vmatpush1.bf16.msra.mxu0 0
    %828 = vmatprep.subr.bf16.mxu0 0
    %829 = vmatpush1.bf16.msra.mxu0 0
    %830 = vmatprep.subr.bf16.mxu0 0
    %831 = vmatpush1.bf16.msra.mxu0 0
    %832 = vmatprep.mubr.bf16.mxu0 0
    %833 = vmatmul.mubr.bf16.gmra.mrb[0].mxu0 %v371
    %v834 = vpop.f32.mrb[0].mxu0
    %v835 = vadd.f32 0.0, %v834
    %v836 = vpop.f32.mrb[0].mxu0
    %v837 = vadd.f32 0.0, %v836
    %v838 = vpop.f32.mrb[0].mxu0
    %v839 = vadd.f32 0.0, %v838
    %v840 = vpop.f32.mrb[0].mxu0
    %v841 = vadd.f32 0.0, %v840
    %842 = vdwg.mxu0
    %843 = vmatprep.subr.bf16.mxu0 %v634
    %844 = vmatpush1.bf16.msra.mxu0 %v633
    %845 = vmatprep.subr.bf16.mxu0 %v642
    %846 = vmatpush1.bf16.msra.mxu0 %v641
    %847 = vmatprep.subr.bf16.mxu0 %v650
    %848 = vmatpush1.bf16.msra.mxu0 %v649
    %849 = vmatprep.subr.bf16.mxu0 %v658
    %850 = vmatpush1.bf16.msra.mxu0 %v657
    %851 = vmatprep.subr.bf16.mxu0 %v666
    %852 = vmatpush1.bf16.msra.mxu0 %v665
    %853 = vmatprep.subr.bf16.mxu0 %v674
    %854 = vmatpush1.bf16.msra.mxu0 %v673
    %855 = vmatprep.subr.bf16.mxu0 %v682
    %856 = vmatpush1.bf16.msra.mxu0 %v681
    %857 = vmatprep.subr.bf16.mxu0 %v690
    %858 = vmatpush1.bf16.msra.mxu0 %v689
    %859 = vmatprep.subr.bf16.mxu0 0
    %860 = vmatpush1.bf16.msra.mxu0 0
    %861 = vmatprep.subr.bf16.mxu0 0
    %862 = vmatpush1.bf16.msra.mxu0 0
    %863 = vmatprep.subr.bf16.mxu0 0
    %864 = vmatpush1.bf16.msra.mxu0 0
    %865 = vmatprep.subr.bf16.mxu0 0
    %866 = vmatpush1.bf16.msra.mxu0 0
    %867 = vmatprep.subr.bf16.mxu0 0
    %868 = vmatpush1.bf16.msra.mxu0 0
    %869 = vmatprep.subr.bf16.mxu0 0
    %870 = vmatpush1.bf16.msra.mxu0 0
    %871 = vmatprep.subr.bf16.mxu0 0
    %872 = vmatpush1.bf16.msra.mxu0 0
    %873 = vmatprep.subr.bf16.mxu0 0
    %874 = vmatpush1.bf16.msra.mxu0 0
    %875 = vmatprep.mubr.bf16.mxu0 0
    %876 = vmatmul.mubr.bf16.gmra.mrb[0].mxu0 %v371
    %v877 = vpop.f32.mrb[0].mxu0
    %v878 = vadd.f32 0.0, %v877
    %v879 = vpop.f32.mrb[0].mxu0
    %v880 = vadd.f32 0.0, %v879
    %v881 = vpop.f32.mrb[0].mxu0
    %v882 = vadd.f32 0.0, %v881
    %v883 = vpop.f32.mrb[0].mxu0
    %v884 = vadd.f32 0.0, %v883
    %885 = vdwg.mxu0
    %886 = vmatprep.subr.bf16.mxu0 %v636
    %887 = vmatpush1.bf16.msra.mxu0 %v635
    %888 = vmatprep.subr.bf16.mxu0 %v644
    %889 = vmatpush1.bf16.msra.mxu0 %v643
    %890 = vmatprep.subr.bf16.mxu0 %v652
    %891 = vmatpush1.bf16.msra.mxu0 %v651
    %892 = vmatprep.subr.bf16.mxu0 %v660
    %893 = vmatpush1.bf16.msra.mxu0 %v659
    %894 = vmatprep.subr.bf16.mxu0 %v668
    %895 = vmatpush1.bf16.msra.mxu0 %v667
    %896 = vmatprep.subr.bf16.mxu0 %v676
    %897 = vmatpush1.bf16.msra.mxu0 %v675
    %898 = vmatprep.subr.bf16.mxu0 %v684
    %899 = vmatpush1.bf16.msra.mxu0 %v683
    %900 = vmatprep.subr.bf16.mxu0 %v692
    %901 = vmatpush1.bf16.msra.mxu0 %v691
    %902 = vmatprep.subr.bf16.mxu0 0
    %903 = vmatpush1.bf16.msra.mxu0 0
    %904 = vmatprep.subr.bf16.mxu0 0
    %905 = vmatpush1.bf16.msra.mxu0 0
    %906 = vmatprep.subr.bf16.mxu0 0
    %907 = vmatpush1.bf16.msra.mxu0 0
    %908 = vmatprep.subr.bf16.mxu0 0
    %909 = vmatpush1.bf16.msra.mxu0 0
    %910 = vmatprep.subr.bf16.mxu0 0
    %911 = vmatpush1.bf16.msra.mxu0 0
    %912 = vmatprep.subr.bf16.mxu0 0
    %913 = vmatpush1.bf16.msra.mxu0 0
    %914 = vmatprep.subr.bf16.mxu0 0
    %915 = vmatpush1.bf16.msra.mxu0 0
    %916 = vmatprep.subr.bf16.mxu0 0
    %917 = vmatpush1.bf16.msra.mxu0 0
    %918 = vmatprep.mubr.bf16.mxu0 0
    %919 = vmatmul.mubr.bf16.gmra.mrb[0].mxu0 %v371
    %v920 = vpop.f32.mrb[0].mxu0
    %v921 = vadd.f32 0.0, %v920
    %v922 = vpop.f32.mrb[0].mxu0
    %v923 = vadd.f32 0.0, %v922
    %v924 = vpop.f32.mrb[0].mxu0
    %v925 = vadd.f32 0.0, %v924
    %v926 = vpop.f32.mrb[0].mxu0
    %v927 = vadd.f32 0.0, %v926
    %928 = vdwg.mxu0
    %v993 = vunpack.c.l.b16 %v251
    %v994 = vunpack.c.h.b16 %v251
    %v995 = vunpack.c.l.b16 %v252
    %v996 = vunpack.c.h.b16 %v252
    %v997 = vunpack.c.l.b16 %v253
    %v998 = vunpack.c.h.b16 %v253
    %v999 = vunpack.c.l.b16 %v254
    %v1000 = vunpack.c.h.b16 %v254
    %v1001 = vunpack.c.l.b16 %v255
    %v1002 = vunpack.c.h.b16 %v255
    %v1003 = vunpack.c.l.b16 %v256
    %v1004 = vunpack.c.h.b16 %v256
    %v1005 = vunpack.c.l.b16 %v257
    %v1006 = vunpack.c.h.b16 %v257
    %v1007 = vunpack.c.l.b16 %v258
    %v1008 = vunpack.c.h.b16 %v258
    %v1009 = vunpack.c.l.b16 %v259
    %v1010 = vunpack.c.h.b16 %v259
    %v1011 = vunpack.c.l.b16 %v260
    %v1012 = vunpack.c.h.b16 %v260
    %v1013 = vunpack.c.l.b16 %v261
    %v1014 = vunpack.c.h.b16 %v261
    %v1015 = vunpack.c.l.b16 %v262
    %v1016 = vunpack.c.h.b16 %v262
    %v1017 = vunpack.c.l.b16 %v263
    %v1018 = vunpack.c.h.b16 %v263
    %v1019 = vunpack.c.l.b16 %v264
    %v1020 = vunpack.c.h.b16 %v264
    %v1021 = vunpack.c.l.b16 %v265
    %v1022 = vunpack.c.h.b16 %v265
    %v1023 = vunpack.c.l.b16 %v266
    %v1024 = vunpack.c.h.b16 %v266
    %v1025 = vunpack.c.l.b16 %v267
    %v1026 = vunpack.c.h.b16 %v267
    %v1027 = vunpack.c.l.b16 %v268
    %v1028 = vunpack.c.h.b16 %v268
    %v1029 = vunpack.c.l.b16 %v269
    %v1030 = vunpack.c.h.b16 %v269
    %v1031 = vunpack.c.l.b16 %v270
    %v1032 = vunpack.c.h.b16 %v270
    %v1033 = vunpack.c.l.b16 %v271
    %v1034 = vunpack.c.h.b16 %v271
    %v1035 = vunpack.c.l.b16 %v272
    %v1036 = vunpack.c.h.b16 %v272
    %v1037 = vunpack.c.l.b16 %v273
    %v1038 = vunpack.c.h.b16 %v273
    %v1039 = vunpack.c.l.b16 %v274
    %v1040 = vunpack.c.h.b16 %v274
    %v1041 = vunpack.c.l.b16 %v275
    %v1042 = vunpack.c.h.b16 %v275
    %v1043 = vunpack.c.l.b16 %v276
    %v1044 = vunpack.c.h.b16 %v276
    %v1045 = vunpack.c.l.b16 %v277
    %v1046 = vunpack.c.h.b16 %v277
    %v1047 = vunpack.c.l.b16 %v278
    %v1048 = vunpack.c.h.b16 %v278
    %v1049 = vunpack.c.l.b16 %v279
    %v1050 = vunpack.c.h.b16 %v279
    %v1051 = vunpack.c.l.b16 %v280
    %v1052 = vunpack.c.h.b16 %v280
    %v1053 = vunpack.c.l.b16 %v281
    %v1054 = vunpack.c.h.b16 %v281
    %v1055 = vunpack.c.l.b16 %v282
    %v1056 = vunpack.c.h.b16 %v282
    %v1057 = vunpack.c.l.b16 %v283
    %v1058 = vunpack.c.h.b16 %v283
    %v1059 = vunpack.c.l.b16 %v284
    %v1060 = vunpack.c.h.b16 %v284
    %v1061 = vunpack.c.l.b16 %v285
    %v1062 = vunpack.c.h.b16 %v285
    %v1063 = vunpack.c.l.b16 %v286
    %v1064 = vunpack.c.h.b16 %v286
    %v1065 = vunpack.c.l.b16 %v287
    %v1066 = vunpack.c.h.b16 %v287
    %v1067 = vunpack.c.l.b16 %v288
    %v1068 = vunpack.c.h.b16 %v288
    %v1069 = vunpack.c.l.b16 %v289
    %v1070 = vunpack.c.h.b16 %v289
    %v1071 = vunpack.c.l.b16 %v290
    %v1072 = vunpack.c.h.b16 %v290
    %v1073 = vunpack.c.l.b16 %v291
    %v1074 = vunpack.c.h.b16 %v291
    %v1075 = vunpack.c.l.b16 %v292
    %v1076 = vunpack.c.h.b16 %v292
    %v1077 = vunpack.c.l.b16 %v293
    %v1078 = vunpack.c.h.b16 %v293
    %v1079 = vunpack.c.l.b16 %v294
    %v1080 = vunpack.c.h.b16 %v294
    %v1081 = vunpack.c.l.b16 %v295
    %v1082 = vunpack.c.h.b16 %v295
    %v1083 = vunpack.c.l.b16 %v296
    %v1084 = vunpack.c.h.b16 %v296
    %v1085 = vunpack.c.l.b16 %v297
    %v1086 = vunpack.c.h.b16 %v297
    %v1087 = vunpack.c.l.b16 %v298
    %v1088 = vunpack.c.h.b16 %v298
    %v1089 = vunpack.c.l.b16 %v299
    %v1090 = vunpack.c.h.b16 %v299
    %v1091 = vunpack.c.l.b16 %v300
    %v1092 = vunpack.c.h.b16 %v300
    %v1093 = vunpack.c.l.b16 %v301
    %v1094 = vunpack.c.h.b16 %v301
    %v1095 = vunpack.c.l.b16 %v302
    %v1096 = vunpack.c.h.b16 %v302
    %v1097 = vunpack.c.l.b16 %v303
    %v1098 = vunpack.c.h.b16 %v303
    %v1099 = vunpack.c.l.b16 %v304
    %v1100 = vunpack.c.h.b16 %v304
    %v1101 = vunpack.c.l.b16 %v305
    %v1102 = vunpack.c.h.b16 %v305
    %v1103 = vunpack.c.l.b16 %v306
    %v1104 = vunpack.c.h.b16 %v306
    %v1105 = vunpack.c.l.b16 %v307
    %v1106 = vunpack.c.h.b16 %v307
    %v1107 = vunpack.c.l.b16 %v308
    %v1108 = vunpack.c.h.b16 %v308
    %v1109 = vunpack.c.l.b16 %v309
    %v1110 = vunpack.c.h.b16 %v309
    %v1111 = vunpack.c.l.b16 %v310
    %v1112 = vunpack.c.h.b16 %v310
    %v1113 = vunpack.c.l.b16 %v311
    %v1114 = vunpack.c.h.b16 %v311
    %v1115 = vunpack.c.l.b16 %v312
    %v1116 = vunpack.c.h.b16 %v312
    %v1117 = vunpack.c.l.b16 %v313
    %v1118 = vunpack.c.h.b16 %v313
    %v1119 = vunpack.c.l.b16 %v314
    %v1120 = vunpack.c.h.b16 %v314
    %v1121 = vpack.c.b16 %v1001, %v993
    %v1122 = vpack.c.b16 %v1002, %v994
    %v1123 = vpack.c.b16 %v1003, %v995
    %v1124 = vpack.c.b16 %v1004, %v996
    %v1125 = vpack.c.b16 %v1005, %v997
    %v1126 = vpack.c.b16 %v1006, %v998
    %v1127 = vpack.c.b16 %v1007, %v999
    %v1128 = vpack.c.b16 %v1008, %v1000
    %v1129 = vpack.c.b16 %v1017, %v1009
    %v1130 = vpack.c.b16 %v1018, %v1010
    %v1131 = vpack.c.b16 %v1019, %v1011
    %v1132 = vpack.c.b16 %v1020, %v1012
    %v1133 = vpack.c.b16 %v1021, %v1013
    %v1134 = vpack.c.b16 %v1022, %v1014
    %v1135 = vpack.c.b16 %v1023, %v1015
    %v1136 = vpack.c.b16 %v1024, %v1016
    %v1137 = vpack.c.b16 %v1033, %v1025
    %v1138 = vpack.c.b16 %v1034, %v1026
    %v1139 = vpack.c.b16 %v1035, %v1027
    %v1140 = vpack.c.b16 %v1036, %v1028
    %v1141 = vpack.c.b16 %v1037, %v1029
    %v1142 = vpack.c.b16 %v1038, %v1030
    %v1143 = vpack.c.b16 %v1039, %v1031
    %v1144 = vpack.c.b16 %v1040, %v1032
    %v1145 = vpack.c.b16 %v1049, %v1041
    %v1146 = vpack.c.b16 %v1050, %v1042
    %v1147 = vpack.c.b16 %v1051, %v1043
    %v1148 = vpack.c.b16 %v1052, %v1044
    %v1149 = vpack.c.b16 %v1053, %v1045
    %v1150 = vpack.c.b16 %v1054, %v1046
    %v1151 = vpack.c.b16 %v1055, %v1047
    %v1152 = vpack.c.b16 %v1056, %v1048
    %v1153 = vpack.c.b16 %v1065, %v1057
    %v1154 = vpack.c.b16 %v1066, %v1058
    %v1155 = vpack.c.b16 %v1067, %v1059
    %v1156 = vpack.c.b16 %v1068, %v1060
    %v1157 = vpack.c.b16 %v1069, %v1061
    %v1158 = vpack.c.b16 %v1070, %v1062
    %v1159 = vpack.c.b16 %v1071, %v1063
    %v1160 = vpack.c.b16 %v1072, %v1064
    %v1161 = vpack.c.b16 %v1081, %v1073
    %v1162 = vpack.c.b16 %v1082, %v1074
    %v1163 = vpack.c.b16 %v1083, %v1075
    %v1164 = vpack.c.b16 %v1084, %v1076
    %v1165 = vpack.c.b16 %v1085, %v1077
    %v1166 = vpack.c.b16 %v1086, %v1078
    %v1167 = vpack.c.b16 %v1087, %v1079
    %v1168 = vpack.c.b16 %v1088, %v1080
    %v1169 = vpack.c.b16 %v1097, %v1089
    %v1170 = vpack.c.b16 %v1098, %v1090
    %v1171 = vpack.c.b16 %v1099, %v1091
    %v1172 = vpack.c.b16 %v1100, %v1092
    %v1173 = vpack.c.b16 %v1101, %v1093
    %v1174 = vpack.c.b16 %v1102, %v1094
    %v1175 = vpack.c.b16 %v1103, %v1095
    %v1176 = vpack.c.b16 %v1104, %v1096
    %v1177 = vpack.c.b16 %v1113, %v1105
    %v1178 = vpack.c.b16 %v1114, %v1106
    %v1179 = vpack.c.b16 %v1115, %v1107
    %v1180 = vpack.c.b16 %v1116, %v1108
    %v1181 = vpack.c.b16 %v1117, %v1109
    %v1182 = vpack.c.b16 %v1118, %v1110
    %v1183 = vpack.c.b16 %v1119, %v1111
    %v1184 = vpack.c.b16 %v1120, %v1112
    %1249 = vmatprep.subr.bf16.mxu0 %v1122
    %1250 = vmatpush1.bf16.msra.mxu0 %v1121
    %1251 = vmatprep.subr.bf16.mxu0 %v1130
    %1252 = vmatpush1.bf16.msra.mxu0 %v1129
    %1253 = vmatprep.subr.bf16.mxu0 %v1138
    %1254 = vmatpush1.bf16.msra.mxu0 %v1137
    %1255 = vmatprep.subr.bf16.mxu0 %v1146
    %1256 = vmatpush1.bf16.msra.mxu0 %v1145
    %1257 = vmatprep.subr.bf16.mxu0 %v1154
    %1258 = vmatpush1.bf16.msra.mxu0 %v1153
    %1259 = vmatprep.subr.bf16.mxu0 %v1162
    %1260 = vmatpush1.bf16.msra.mxu0 %v1161
    %1261 = vmatprep.subr.bf16.mxu0 %v1170
    %1262 = vmatpush1.bf16.msra.mxu0 %v1169
    %1263 = vmatprep.subr.bf16.mxu0 %v1178
    %1264 = vmatpush1.bf16.msra.mxu0 %v1177
    %1265 = vmatprep.subr.bf16.mxu0 0
    %1266 = vmatpush1.bf16.msra.mxu0 0
    %1267 = vmatprep.subr.bf16.mxu0 0
    %1268 = vmatpush1.bf16.msra.mxu0 0
    %1269 = vmatprep.subr.bf16.mxu0 0
    %1270 = vmatpush1.bf16.msra.mxu0 0
    %1271 = vmatprep.subr.bf16.mxu0 0
    %1272 = vmatpush1.bf16.msra.mxu0 0
    %1273 = vmatprep.subr.bf16.mxu0 0
    %1274 = vmatpush1.bf16.msra.mxu0 0
    %1275 = vmatprep.subr.bf16.mxu0 0
    %1276 = vmatpush1.bf16.msra.mxu0 0
    %1277 = vmatprep.subr.bf16.mxu0 0
    %1278 = vmatpush1.bf16.msra.mxu0 0
    %1279 = vmatprep.subr.bf16.mxu0 0
    %1280 = vmatpush1.bf16.msra.mxu0 0
    %1281 = vmatprep.mubr.bf16.mxu0 0
    %1282 = vmatmul.mubr.bf16.gmra.mrb[0].mxu0 %v250
    %v1283 = vpop.f32.mrb[0].mxu0
    %v1284 = vadd.f32 %v792, %v1283
    %v1285 = vpop.f32.mrb[0].mxu0
    %v1286 = vadd.f32 %v794, %v1285
    %v1287 = vpop.f32.mrb[0].mxu0
    %v1288 = vadd.f32 %v796, %v1287
    %v1289 = vpop.f32.mrb[0].mxu0
    %v1290 = vadd.f32 %v798, %v1289
    %1291 = vdwg.mxu0
    %1292 = vmatprep.subr.bf16.mxu0 %v1124
    %1293 = vmatpush1.bf16.msra.mxu0 %v1123
    %1294 = vmatprep.subr.bf16.mxu0 %v1132
    %1295 = vmatpush1.bf16.msra.mxu0 %v1131
    %1296 = vmatprep.subr.bf16.mxu0 %v1140
    %1297 = vmatpush1.bf16.msra.mxu0 %v1139
    %1298 = vmatprep.subr.bf16.mxu0 %v1148
    %1299 = vmatpush1.bf16.msra.mxu0 %v1147
    %1300 = vmatprep.subr.bf16.mxu0 %v1156
    %1301 = vmatpush1.bf16.msra.mxu0 %v1155
    %1302 = vmatprep.subr.bf16.mxu0 %v1164
    %1303 = vmatpush1.bf16.msra.mxu0 %v1163
    %1304 = vmatprep.subr.bf16.mxu0 %v1172
    %1305 = vmatpush1.bf16.msra.mxu0 %v1171
    %1306 = vmatprep.subr.bf16.mxu0 %v1180
    %1307 = vmatpush1.bf16.msra.mxu0 %v1179
    %1308 = vmatprep.subr.bf16.mxu0 0
    %1309 = vmatpush1.bf16.msra.mxu0 0
    %1310 = vmatprep.subr.bf16.mxu0 0
    %1311 = vmatpush1.bf16.msra.mxu0 0
    %1312 = vmatprep.subr.bf16.mxu0 0
    %1313 = vmatpush1.bf16.msra.mxu0 0
    %1314 = vmatprep.subr.bf16.mxu0 0
    %1315 = vmatpush1.bf16.msra.mxu0 0
    %1316 = vmatprep.subr.bf16.mxu0 0
    %1317 = vmatpush1.bf16.msra.mxu0 0
    %1318 = vmatprep.subr.bf16.mxu0 0
    %1319 = vmatpush1.bf16.msra.mxu0 0
    %1320 = vmatprep.subr.bf16.mxu0 0
    %1321 = vmatpush1.bf16.msra.mxu0 0
    %1322 = vmatprep.subr.bf16.mxu0 0
    %1323 = vmatpush1.bf16.msra.mxu0 0
    %1324 = vmatprep.mubr.bf16.mxu0 0
    %1325 = vmatmul.mubr.bf16.gmra.mrb[0].mxu0 %v250
    %v1326 = vpop.f32.mrb[0].mxu0
    %v1327 = vadd.f32 %v835, %v1326
    %v1328 = vpop.f32.mrb[0].mxu0
    %v1329 = vadd.f32 %v837, %v1328
    %v1330 = vpop.f32.mrb[0].mxu0
    %v1331 = vadd.f32 %v839, %v1330
    %v1332 = vpop.f32.mrb[0].mxu0
    %v1333 = vadd.f32 %v841, %v1332
    %1334 = vdwg.mxu0
    %1335 = vmatprep.subr.bf16.mxu0 %v1126
    %1336 = vmatpush1.bf16.msra.mxu0 %v1125
    %1337 = vmatprep.subr.bf16.mxu0 %v1134
    %1338 = vmatpush1.bf16.msra.mxu0 %v1133
    %1339 = vmatprep.subr.bf16.mxu0 %v1142
    %1340 = vmatpush1.bf16.msra.mxu0 %v1141
    %1341 = vmatprep.subr.bf16.mxu0 %v1150
    %1342 = vmatpush1.bf16.msra.mxu0 %v1149
    %1343 = vmatprep.subr.bf16.mxu0 %v1158
    %1344 = vmatpush1.bf16.msra.mxu0 %v1157
    %1345 = vmatprep.subr.bf16.mxu0 %v1166
    %1346 = vmatpush1.bf16.msra.mxu0 %v1165
    %1347 = vmatprep.subr.bf16.mxu0 %v1174
    %1348 = vmatpush1.bf16.msra.mxu0 %v1173
    %1349 = vmatprep.subr.bf16.mxu0 %v1182
    %1350 = vmatpush1.bf16.msra.mxu0 %v1181
    %1351 = vmatprep.subr.bf16.mxu0 0
    %1352 = vmatpush1.bf16.msra.mxu0 0
    %1353 = vmatprep.subr.bf16.mxu0 0
    %1354 = vmatpush1.bf16.msra.mxu0 0
    %1355 = vmatprep.subr.bf16.mxu0 0
    %1356 = vmatpush1.bf16.msra.mxu0 0
    %1357 = vmatprep.subr.bf16.mxu0 0
    %1358 = vmatpush1.bf16.msra.mxu0 0
    %1359 = vmatprep.subr.bf16.mxu0 0
    %1360 = vmatpush1.bf16.msra.mxu0 0
    %1361 = vmatprep.subr.bf16.mxu0 0
    %1362 = vmatpush1.bf16.msra.mxu0 0
    %1363 = vmatprep.subr.bf16.mxu0 0
    %1364 = vmatpush1.bf16.msra.mxu0 0
    %1365 = vmatprep.subr.bf16.mxu0 0
    %1366 = vmatpush1.bf16.msra.mxu0 0
    %1367 = vmatprep.mubr.bf16.mxu0 0
    %1368 = vmatmul.mubr.bf16.gmra.mrb[0].mxu0 %v250
    %v1369 = vpop.f32.mrb[0].mxu0
    %v1370 = vadd.f32 %v878, %v1369
    %v1371 = vpop.f32.mrb[0].mxu0
    %v1372 = vadd.f32 %v880, %v1371
    %v1373 = vpop.f32.mrb[0].mxu0
    %v1374 = vadd.f32 %v882, %v1373
    %v1375 = vpop.f32.mrb[0].mxu0
    %v1376 = vadd.f32 %v884, %v1375
    %1377 = vdwg.mxu0
    %1378 = vmatprep.subr.bf16.mxu0 %v1128
    %1379 = vmatpush1.bf16.msra.mxu0 %v1127
    %1380 = vmatprep.subr.bf16.mxu0 %v1136
    %1381 = vmatpush1.bf16.msra.mxu0 %v1135
    %1382 = vmatprep.subr.bf16.mxu0 %v1144
    %1383 = vmatpush1.bf16.msra.mxu0 %v1143
    %1384 = vmatprep.subr.bf16.mxu0 %v1152
    %1385 = vmatpush1.bf16.msra.mxu0 %v1151
    %1386 = vmatprep.subr.bf16.mxu0 %v1160
    %1387 = vmatpush1.bf16.msra.mxu0 %v1159
    %1388 = vmatprep.subr.bf16.mxu0 %v1168
    %1389 = vmatpush1.bf16.msra.mxu0 %v1167
    %1390 = vmatprep.subr.bf16.mxu0 %v1176
    %1391 = vmatpush1.bf16.msra.mxu0 %v1175
    %1392 = vmatprep.subr.bf16.mxu0 %v1184
    %1393 = vmatpush1.bf16.msra.mxu0 %v1183
    %1394 = vmatprep.subr.bf16.mxu0 0
    %1395 = vmatpush1.bf16.msra.mxu0 0
    %1396 = vmatprep.subr.bf16.mxu0 0
    %1397 = vmatpush1.bf16.msra.mxu0 0
    %1398 = vmatprep.subr.bf16.mxu0 0
    %1399 = vmatpush1.bf16.msra.mxu0 0
    %1400 = vmatprep.subr.bf16.mxu0 0
    %1401 = vmatpush1.bf16.msra.mxu0 0
    %1402 = vmatprep.subr.bf16.mxu0 0
    %1403 = vmatpush1.bf16.msra.mxu0 0
    %1404 = vmatprep.subr.bf16.mxu0 0
    %1405 = vmatpush1.bf16.msra.mxu0 0
    %1406 = vmatprep.subr.bf16.mxu0 0
    %1407 = vmatpush1.bf16.msra.mxu0 0
    %1408 = vmatprep.subr.bf16.mxu0 0
    %1409 = vmatpush1.bf16.msra.mxu0 0
    %1410 = vmatprep.mubr.bf16.mxu0 0
    %1411 = vmatmul.mubr.bf16.gmra.mrb[0].mxu0 %v250
    %v1412 = vpop.f32.mrb[0].mxu0
    %v1413 = vadd.f32 %v921, %v1412
    %v1414 = vpop.f32.mrb[0].mxu0
    %v1415 = vadd.f32 %v923, %v1414
    %v1416 = vpop.f32.mrb[0].mxu0
    %v1417 = vadd.f32 %v925, %v1416
    %v1418 = vpop.f32.mrb[0].mxu0
    %v1419 = vadd.f32 %v927, %v1418
    %1420 = vdwg.mxu0
    %s1421 = scalar_lea.vmem %s0, 16
    %v1422 = vld [vmem:[%s1421] sm:$0xf]
    %v1423 = vld [vmem:[%s1421 + $0x4] sm:$0xf]
    %v1426 = vunpack.c.l.b16 %v1422
    %v1427 = vunpack.c.l.b16 %v1423
    %v1428 = vpack.c.b16 %v1427, %v1426
    %1430 = vmatprep.subr.bf16.mxu0 0
    %1431 = vmatpush1.bf16.msra.mxu0 %v187
    %1432 = vmatprep.subr.bf16.mxu0 0
    %1433 = vmatpush1.bf16.msra.mxu0 %v188
    %1434 = vmatprep.subr.bf16.mxu0 0
    %1435 = vmatpush1.bf16.msra.mxu0 %v189
    %1436 = vmatprep.subr.bf16.mxu0 0
    %1437 = vmatpush1.bf16.msra.mxu0 %v190
    %1438 = vmatprep.subr.bf16.mxu0 0
    %1439 = vmatpush1.bf16.msra.mxu0 %v191
    %1440 = vmatprep.subr.bf16.mxu0 0
    %1441 = vmatpush1.bf16.msra.mxu0 %v192
    %1442 = vmatprep.subr.bf16.mxu0 0
    %1443 = vmatpush1.bf16.msra.mxu0 %v193
    %1444 = vmatprep.subr.bf16.mxu0 0
    %1445 = vmatpush1.bf16.msra.mxu0 %v194
    %1446 = vmatprep.subr.bf16.mxu0 0
    %1447 = vmatpush1.bf16.msra.mxu0 0
    %1448 = vmatprep.subr.bf16.mxu0 0
    %1449 = vmatpush1.bf16.msra.mxu0 0
    %1450 = vmatprep.subr.bf16.mxu0 0
    %1451 = vmatpush1.bf16.msra.mxu0 0
    %1452 = vmatprep.subr.bf16.mxu0 0
    %1453 = vmatpush1.bf16.msra.mxu0 0
    %1454 = vmatprep.subr.bf16.mxu0 0
    %1455 = vmatpush1.bf16.msra.mxu0 0
    %1456 = vmatprep.subr.bf16.mxu0 0
    %1457 = vmatpush1.bf16.msra.mxu0 0
    %1458 = vmatprep.subr.bf16.mxu0 0
    %1459 = vmatpush1.bf16.msra.mxu0 0
    %1460 = vmatprep.subr.bf16.mxu0 0
    %1461 = vmatpush1.bf16.msra.mxu0 0
    %1462 = vmatprep.mubr.bf16.mxu0 0
    %1463 = vmatmul.mubr.bf16.gmra.mrb[0].mxu0 %v1428
    %v1464 = vpop.f32.mrb[0].mxu0
    %v1465 = vadd.f32 0.0, %v1464
    %v1466 = vpop.f32.mrb[0].mxu0
    %v1467 = vpop.f32.mrb[0].mxu0
    %v1468 = vadd.f32 0.0, %v1467
    %v1469 = vpop.f32.mrb[0].mxu0
    %1470 = vdwg.mxu0
    %v1471 = vmul.f32 %v1465, %v138
    %v1472 = vmul.f32 %v1468, %v138
    %v1473 = vadd.f32 %v1471, %v145
    %v1474 = vadd.f32 %v1472, %v145
    %v1475 = vmax.f32 %v1473, 0.0
    %v1476 = vmax.f32 %v1474, 0.0
    %v1477 = vpack.c.bf16 %v1476, %v1475
    %s1478 = scalar_lea.vmem [#allocation7], 1024
    %v1479 = vld [vmem:[%s1478] sm:$0xff]
    %v1480 = vld [vmem:[%s1478 + $0x8] sm:$0xff]
    %v1481 = vld [vmem:[%s1478 + $0x10] sm:$0xff]
    %v1482 = vld [vmem:[%s1478 + $0x18] sm:$0xff]
    %v1483 = vld [vmem:[%s1478 + $0x20] sm:$0xff]
    %v1484 = vld [vmem:[%s1478 + $0x28] sm:$0xff]
    %v1485 = vld [vmem:[%s1478 + $0x30] sm:$0xff]
    %v1486 = vld [vmem:[%s1478 + $0x38] sm:$0xff]
    %v1487 = vld [vmem:[%s1478 + $0x40] sm:$0xff]
    %v1488 = vld [vmem:[%s1478 + $0x48] sm:$0xff]
    %v1489 = vld [vmem:[%s1478 + $0x50] sm:$0xff]
    %v1490 = vld [vmem:[%s1478 + $0x58] sm:$0xff]
    %v1491 = vld [vmem:[%s1478 + $0x60] sm:$0xff]
    %v1492 = vld [vmem:[%s1478 + $0x68] sm:$0xff]
    %v1493 = vld [vmem:[%s1478 + $0x70] sm:$0xff]
    %v1494 = vld [vmem:[%s1478 + $0x78] sm:$0xff]
    %v1495 = vld [vmem:[%s1478 + $0x80] sm:$0xff]
    %v1496 = vld [vmem:[%s1478 + $0x88] sm:$0xff]
    %v1497 = vld [vmem:[%s1478 + $0x90] sm:$0xff]
    %v1498 = vld [vmem:[%s1478 + $0x98] sm:$0xff]
    %v1499 = vld [vmem:[%s1478 + $0xa0] sm:$0xff]
    %v1500 = vld [vmem:[%s1478 + $0xa8] sm:$0xff]
    %v1501 = vld [vmem:[%s1478 + $0xb0] sm:$0xff]
    %v1502 = vld [vmem:[%s1478 + $0xb8] sm:$0xff]
    %v1503 = vld [vmem:[%s1478 + $0xc0] sm:$0xff]
    %v1504 = vld [vmem:[%s1478 + $0xc8] sm:$0xff]
    %v1505 = vld [vmem:[%s1478 + $0xd0] sm:$0xff]
    %v1506 = vld [vmem:[%s1478 + $0xd8] sm:$0xff]
    %v1507 = vld [vmem:[%s1478 + $0xe0] sm:$0xff]
    %v1508 = vld [vmem:[%s1478 + $0xe8] sm:$0xff]
    %v1509 = vld [vmem:[%s1478 + $0xf0] sm:$0xff]
    %v1510 = vld [vmem:[%s1478 + $0xf8] sm:$0xff]
    %v1511 = vld [vmem:[%s1478 + $0x100] sm:$0xff]
    %v1512 = vld [vmem:[%s1478 + $0x108] sm:$0xff]
    %v1513 = vld [vmem:[%s1478 + $0x110] sm:$0xff]
    %v1514 = vld [vmem:[%s1478 + $0x118] sm:$0xff]
    %v1515 = vld [vmem:[%s1478 + $0x120] sm:$0xff]
    %v1516 = vld [vmem:[%s1478 + $0x128] sm:$0xff]
    %v1517 = vld [vmem:[%s1478 + $0x130] sm:$0xff]
    %v1518 = vld [vmem:[%s1478 + $0x138] sm:$0xff]
    %v1519 = vld [vmem:[%s1478 + $0x140] sm:$0xff]
    %v1520 = vld [vmem:[%s1478 + $0x148] sm:$0xff]
    %v1521 = vld [vmem:[%s1478 + $0x150] sm:$0xff]
    %v1522 = vld [vmem:[%s1478 + $0x158] sm:$0xff]
    %v1523 = vld [vmem:[%s1478 + $0x160] sm:$0xff]
    %v1524 = vld [vmem:[%s1478 + $0x168] sm:$0xff]
    %v1525 = vld [vmem:[%s1478 + $0x170] sm:$0xff]
    %v1526 = vld [vmem:[%s1478 + $0x178] sm:$0xff]
    %v1527 = vld [vmem:[%s1478 + $0x180] sm:$0xff]
    %v1528 = vld [vmem:[%s1478 + $0x188] sm:$0xff]
    %v1529 = vld [vmem:[%s1478 + $0x190] sm:$0xff]
    %v1530 = vld [vmem:[%s1478 + $0x198] sm:$0xff]
    %v1531 = vld [vmem:[%s1478 + $0x1a0] sm:$0xff]
    %v1532 = vld [vmem:[%s1478 + $0x1a8] sm:$0xff]
    %v1533 = vld [vmem:[%s1478 + $0x1b0] sm:$0xff]
    %v1534 = vld [vmem:[%s1478 + $0x1b8] sm:$0xff]
    %v1535 = vld [vmem:[%s1478 + $0x1c0] sm:$0xff]
    %v1536 = vld [vmem:[%s1478 + $0x1c8] sm:$0xff]
    %v1537 = vld [vmem:[%s1478 + $0x1d0] sm:$0xff]
    %v1538 = vld [vmem:[%s1478 + $0x1d8] sm:$0xff]
    %v1539 = vld [vmem:[%s1478 + $0x1e0] sm:$0xff]
    %v1540 = vld [vmem:[%s1478 + $0x1e8] sm:$0xff]
    %v1541 = vld [vmem:[%s1478 + $0x1f0] sm:$0xff]
    %v1542 = vld [vmem:[%s1478 + $0x1f8] sm:$0xff]
    %v1607 = vunpack.c.l.b16 %v1479
    %v1608 = vunpack.c.h.b16 %v1479
    %v1609 = vunpack.c.l.b16 %v1480
    %v1610 = vunpack.c.h.b16 %v1480
    %v1611 = vunpack.c.l.b16 %v1481
    %v1612 = vunpack.c.h.b16 %v1481
    %v1613 = vunpack.c.l.b16 %v1482
    %v1614 = vunpack.c.h.b16 %v1482
    %v1615 = vunpack.c.l.b16 %v1483
    %v1616 = vunpack.c.h.b16 %v1483
    %v1617 = vunpack.c.l.b16 %v1484
    %v1618 = vunpack.c.h.b16 %v1484
    %v1619 = vunpack.c.l.b16 %v1485
    %v1620 = vunpack.c.h.b16 %v1485
    %v1621 = vunpack.c.l.b16 %v1486
    %v1622 = vunpack.c.h.b16 %v1486
    %v1623 = vunpack.c.l.b16 %v1487
    %v1624 = vunpack.c.h.b16 %v1487
    %v1625 = vunpack.c.l.b16 %v1488
    %v1626 = vunpack.c.h.b16 %v1488
    %v1627 = vunpack.c.l.b16 %v1489
    %v1628 = vunpack.c.h.b16 %v1489
    %v1629 = vunpack.c.l.b16 %v1490
    %v1630 = vunpack.c.h.b16 %v1490
    %v1631 = vunpack.c.l.b16 %v1491
    %v1632 = vunpack.c.h.b16 %v1491
    %v1633 = vunpack.c.l.b16 %v1492
    %v1634 = vunpack.c.h.b16 %v1492
    %v1635 = vunpack.c.l.b16 %v1493
    %v1636 = vunpack.c.h.b16 %v1493
    %v1637 = vunpack.c.l.b16 %v1494
    %v1638 = vunpack.c.h.b16 %v1494
    %v1639 = vunpack.c.l.b16 %v1495
    %v1640 = vunpack.c.h.b16 %v1495
    %v1641 = vunpack.c.l.b16 %v1496
    %v1642 = vunpack.c.h.b16 %v1496
    %v1643 = vunpack.c.l.b16 %v1497
    %v1644 = vunpack.c.h.b16 %v1497
    %v1645 = vunpack.c.l.b16 %v1498
    %v1646 = vunpack.c.h.b16 %v1498
    %v1647 = vunpack.c.l.b16 %v1499
    %v1648 = vunpack.c.h.b16 %v1499
    %v1649 = vunpack.c.l.b16 %v1500
    %v1650 = vunpack.c.h.b16 %v1500
    %v1651 = vunpack.c.l.b16 %v1501
    %v1652 = vunpack.c.h.b16 %v1501
    %v1653 = vunpack.c.l.b16 %v1502
    %v1654 = vunpack.c.h.b16 %v1502
    %v1655 = vunpack.c.l.b16 %v1503
    %v1656 = vunpack.c.h.b16 %v1503
    %v1657 = vunpack.c.l.b16 %v1504
    %v1658 = vunpack.c.h.b16 %v1504
    %v1659 = vunpack.c.l.b16 %v1505
    %v1660 = vunpack.c.h.b16 %v1505
    %v1661 = vunpack.c.l.b16 %v1506
    %v1662 = vunpack.c.h.b16 %v1506
    %v1663 = vunpack.c.l.b16 %v1507
    %v1664 = vunpack.c.h.b16 %v1507
    %v1665 = vunpack.c.l.b16 %v1508
    %v1666 = vunpack.c.h.b16 %v1508
    %v1667 = vunpack.c.l.b16 %v1509
    %v1668 = vunpack.c.h.b16 %v1509
    %v1669 = vunpack.c.l.b16 %v1510
    %v1670 = vunpack.c.h.b16 %v1510
    %v1671 = vunpack.c.l.b16 %v1511
    %v1672 = vunpack.c.h.b16 %v1511
    %v1673 = vunpack.c.l.b16 %v1512
    %v1674 = vunpack.c.h.b16 %v1512
    %v1675 = vunpack.c.l.b16 %v1513
    %v1676 = vunpack.c.h.b16 %v1513
    %v1677 = vunpack.c.l.b16 %v1514
    %v1678 = vunpack.c.h.b16 %v1514
    %v1679 = vunpack.c.l.b16 %v1515
    %v1680 = vunpack.c.h.b16 %v1515
    %v1681 = vunpack.c.l.b16 %v1516
    %v1682 = vunpack.c.h.b16 %v1516
    %v1683 = vunpack.c.l.b16 %v1517
    %v1684 = vunpack.c.h.b16 %v1517
    %v1685 = vunpack.c.l.b16 %v1518
    %v1686 = vunpack.c.h.b16 %v1518
    %v1687 = vunpack.c.l.b16 %v1519
    %v1688 = vunpack.c.h.b16 %v1519
    %v1689 = vunpack.c.l.b16 %v1520
    %v1690 = vunpack.c.h.b16 %v1520
    %v1691 = vunpack.c.l.b16 %v1521
    %v1692 = vunpack.c.h.b16 %v1521
    %v1693 = vunpack.c.l.b16 %v1522
    %v1694 = vunpack.c.h.b16 %v1522
    %v1695 = vunpack.c.l.b16 %v1523
    %v1696 = vunpack.c.h.b16 %v1523
    %v1697 = vunpack.c.l.b16 %v1524
    %v1698 = vunpack.c.h.b16 %v1524
    %v1699 = vunpack.c.l.b16 %v1525
    %v1700 = vunpack.c.h.b16 %v1525
    %v1701 = vunpack.c.l.b16 %v1526
    %v1702 = vunpack.c.h.b16 %v1526
    %v1703 = vunpack.c.l.b16 %v1527
    %v1704 = vunpack.c.h.b16 %v1527
    %v1705 = vunpack.c.l.b16 %v1528
    %v1706 = vunpack.c.h.b16 %v1528
    %v1707 = vunpack.c.l.b16 %v1529
    %v1708 = vunpack.c.h.b16 %v1529
    %v1709 = vunpack.c.l.b16 %v1530
    %v1710 = vunpack.c.h.b16 %v1530
    %v1711 = vunpack.c.l.b16 %v1531
    %v1712 = vunpack.c.h.b16 %v1531
    %v1713 = vunpack.c.l.b16 %v1532
    %v1714 = vunpack.c.h.b16 %v1532
    %v1715 = vunpack.c.l.b16 %v1533
    %v1716 = vunpack.c.h.b16 %v1533
    %v1717 = vunpack.c.l.b16 %v1534
    %v1718 = vunpack.c.h.b16 %v1534
    %v1719 = vunpack.c.l.b16 %v1535
    %v1720 = vunpack.c.h.b16 %v1535
    %v1721 = vunpack.c.l.b16 %v1536
    %v1722 = vunpack.c.h.b16 %v1536
    %v1723 = vunpack.c.l.b16 %v1537
    %v1724 = vunpack.c.h.b16 %v1537
    %v1725 = vunpack.c.l.b16 %v1538
    %v1726 = vunpack.c.h.b16 %v1538
    %v1727 = vunpack.c.l.b16 %v1539
    %v1728 = vunpack.c.h.b16 %v1539
    %v1729 = vunpack.c.l.b16 %v1540
    %v1730 = vunpack.c.h.b16 %v1540
    %v1731 = vunpack.c.l.b16 %v1541
    %v1732 = vunpack.c.h.b16 %v1541
    %v1733 = vunpack.c.l.b16 %v1542
    %v1734 = vunpack.c.h.b16 %v1542
    %v1735 = vpack.c.b16 %v1615, %v1607
    %v1736 = vpack.c.b16 %v1616, %v1608
    %v1737 = vpack.c.b16 %v1617, %v1609
    %v1738 = vpack.c.b16 %v1618, %v1610
    %v1739 = vpack.c.b16 %v1619, %v1611
    %v1740 = vpack.c.b16 %v1620, %v1612
    %v1741 = vpack.c.b16 %v1621, %v1613
    %v1742 = vpack.c.b16 %v1622, %v1614
    %v1743 = vpack.c.b16 %v1631, %v1623
    %v1744 = vpack.c.b16 %v1632, %v1624
    %v1745 = vpack.c.b16 %v1633, %v1625
    %v1746 = vpack.c.b16 %v1634, %v1626
    %v1747 = vpack.c.b16 %v1635, %v1627
    %v1748 = vpack.c.b16 %v1636, %v1628
    %v1749 = vpack.c.b16 %v1637, %v1629
    %v1750 = vpack.c.b16 %v1638, %v1630
    %v1751 = vpack.c.b16 %v1647, %v1639
    %v1752 = vpack.c.b16 %v1648, %v1640
    %v1753 = vpack.c.b16 %v1649, %v1641
    %v1754 = vpack.c.b16 %v1650, %v1642
    %v1755 = vpack.c.b16 %v1651, %v1643
    %v1756 = vpack.c.b16 %v1652, %v1644
    %v1757 = vpack.c.b16 %v1653, %v1645
    %v1758 = vpack.c.b16 %v1654, %v1646
    %v1759 = vpack.c.b16 %v1663, %v1655
    %v1760 = vpack.c.b16 %v1664, %v1656
    %v1761 = vpack.c.b16 %v1665, %v1657
    %v1762 = vpack.c.b16 %v1666, %v1658
    %v1763 = vpack.c.b16 %v1667, %v1659
    %v1764 = vpack.c.b16 %v1668, %v1660
    %v1765 = vpack.c.b16 %v1669, %v1661
    %v1766 = vpack.c.b16 %v1670, %v1662
    %v1767 = vpack.c.b16 %v1679, %v1671
    %v1768 = vpack.c.b16 %v1680, %v1672
    %v1769 = vpack.c.b16 %v1681, %v1673
    %v1770 = vpack.c.b16 %v1682, %v1674
    %v1771 = vpack.c.b16 %v1683, %v1675
    %v1772 = vpack.c.b16 %v1684, %v1676
    %v1773 = vpack.c.b16 %v1685, %v1677
    %v1774 = vpack.c.b16 %v1686, %v1678
    %v1775 = vpack.c.b16 %v1695, %v1687
    %v1776 = vpack.c.b16 %v1696, %v1688
    %v1777 = vpack.c.b16 %v1697, %v1689
    %v1778 = vpack.c.b16 %v1698, %v1690
    %v1779 = vpack.c.b16 %v1699, %v1691
    %v1780 = vpack.c.b16 %v1700, %v1692
    %v1781 = vpack.c.b16 %v1701, %v1693
    %v1782 = vpack.c.b16 %v1702, %v1694
    %v1783 = vpack.c.b16 %v1711, %v1703
    %v1784 = vpack.c.b16 %v1712, %v1704
    %v1785 = vpack.c.b16 %v1713, %v1705
    %v1786 = vpack.c.b16 %v1714, %v1706
    %v1787 = vpack.c.b16 %v1715, %v1707
    %v1788 = vpack.c.b16 %v1716, %v1708
    %v1789 = vpack.c.b16 %v1717, %v1709
    %v1790 = vpack.c.b16 %v1718, %v1710
    %v1791 = vpack.c.b16 %v1727, %v1719
    %v1792 = vpack.c.b16 %v1728, %v1720
    %v1793 = vpack.c.b16 %v1729, %v1721
    %v1794 = vpack.c.b16 %v1730, %v1722
    %v1795 = vpack.c.b16 %v1731, %v1723
    %v1796 = vpack.c.b16 %v1732, %v1724
    %v1797 = vpack.c.b16 %v1733, %v1725
    %v1798 = vpack.c.b16 %v1734, %v1726
    %1863 = vmatprep.subr.bf16.mxu0 %v1736
    %1864 = vmatpush1.bf16.msra.mxu0 %v1735
    %1865 = vmatprep.subr.bf16.mxu0 %v1744
    %1866 = vmatpush1.bf16.msra.mxu0 %v1743
    %1867 = vmatprep.subr.bf16.mxu0 %v1752
    %1868 = vmatpush1.bf16.msra.mxu0 %v1751
    %1869 = vmatprep.subr.bf16.mxu0 %v1760
    %1870 = vmatpush1.bf16.msra.mxu0 %v1759
    %1871 = vmatprep.subr.bf16.mxu0 %v1768
    %1872 = vmatpush1.bf16.msra.mxu0 %v1767
    %1873 = vmatprep.subr.bf16.mxu0 %v1776
    %1874 = vmatpush1.bf16.msra.mxu0 %v1775
    %1875 = vmatprep.subr.bf16.mxu0 %v1784
    %1876 = vmatpush1.bf16.msra.mxu0 %v1783
    %1877 = vmatprep.subr.bf16.mxu0 %v1792
    %1878 = vmatpush1.bf16.msra.mxu0 %v1791
    %1879 = vmatprep.subr.bf16.mxu0 0
    %1880 = vmatpush1.bf16.msra.mxu0 0
    %1881 = vmatprep.subr.bf16.mxu0 0
    %1882 = vmatpush1.bf16.msra.mxu0 0
    %1883 = vmatprep.subr.bf16.mxu0 0
    %1884 = vmatpush1.bf16.msra.mxu0 0
    %1885 = vmatprep.subr.bf16.mxu0 0
    %1886 = vmatpush1.bf16.msra.mxu0 0
    %1887 = vmatprep.subr.bf16.mxu0 0
    %1888 = vmatpush1.bf16.msra.mxu0 0
    %1889 = vmatprep.subr.bf16.mxu0 0
    %1890 = vmatpush1.bf16.msra.mxu0 0
    %1891 = vmatprep.subr.bf16.mxu0 0
    %1892 = vmatpush1.bf16.msra.mxu0 0
    %1893 = vmatprep.subr.bf16.mxu0 0
    %1894 = vmatpush1.bf16.msra.mxu0 0
    %1895 = vmatprep.mubr.bf16.mxu0 0
    %1896 = vmatmul.mubr.bf16.gmra.mrb[0].mxu0 %v1477
    %v1897 = vpop.f32.mrb[0].mxu0
    %v1898 = vadd.f32 0.0, %v1897
    %v1899 = vpop.f32.mrb[0].mxu0
    %v1900 = vadd.f32 0.0, %v1899
    %v1901 = vpop.f32.mrb[0].mxu0
    %v1902 = vadd.f32 0.0, %v1901
    %v1903 = vpop.f32.mrb[0].mxu0
    %v1904 = vadd.f32 0.0, %v1903
    %1905 = vdwg.mxu0
    %1906 = vmatprep.subr.bf16.mxu0 %v1738
    %1907 = vmatpush1.bf16.msra.mxu0 %v1737
    %1908 = vmatprep.subr.bf16.mxu0 %v1746
    %1909 = vmatpush1.bf16.msra.mxu0 %v1745
    %1910 = vmatprep.subr.bf16.mxu0 %v1754
    %1911 = vmatpush1.bf16.msra.mxu0 %v1753
    %1912 = vmatprep.subr.bf16.mxu0 %v1762
    %1913 = vmatpush1.bf16.msra.mxu0 %v1761
    %1914 = vmatprep.subr.bf16.mxu0 %v1770
    %1915 = vmatpush1.bf16.msra.mxu0 %v1769
    %1916 = vmatprep.subr.bf16.mxu0 %v1778
    %1917 = vmatpush1.bf16.msra.mxu0 %v1777
    %1918 = vmatprep.subr.bf16.mxu0 %v1786
    %1919 = vmatpush1.bf16.msra.mxu0 %v1785
    %1920 = vmatprep.subr.bf16.mxu0 %v1794
    %1921 = vmatpush1.bf16.msra.mxu0 %v1793
    %1922 = vmatprep.subr.bf16.mxu0 0
    %1923 = vmatpush1.bf16.msra.mxu0 0
    %1924 = vmatprep.subr.bf16.mxu0 0
    %1925 = vmatpush1.bf16.msra.mxu0 0
    %1926 = vmatprep.subr.bf16.mxu0 0
    %1927 = vmatpush1.bf16.msra.mxu0 0
    %1928 = vmatprep.subr.bf16.mxu0 0
    %1929 = vmatpush1.bf16.msra.mxu0 0
    %1930 = vmatprep.subr.bf16.mxu0 0
    %1931 = vmatpush1.bf16.msra.mxu0 0
    %1932 = vmatprep.subr.bf16.mxu0 0
    %1933 = vmatpush1.bf16.msra.mxu0 0
    %1934 = vmatprep.subr.bf16.mxu0 0
    %1935 = vmatpush1.bf16.msra.mxu0 0
    %1936 = vmatprep.subr.bf16.mxu0 0
    %1937 = vmatpush1.bf16.msra.mxu0 0
    %1938 = vmatprep.mubr.bf16.mxu0 0
    %1939 = vmatmul.mubr.bf16.gmra.mrb[0].mxu0 %v1477
    %v1940 = vpop.f32.mrb[0].mxu0
    %v1941 = vadd.f32 0.0, %v1940
    %v1942 = vpop.f32.mrb[0].mxu0
    %v1943 = vadd.f32 0.0, %v1942
    %v1944 = vpop.f32.mrb[0].mxu0
    %v1945 = vadd.f32 0.0, %v1944
    %v1946 = vpop.f32.mrb[0].mxu0
    %v1947 = vadd.f32 0.0, %v1946
    %1948 = vdwg.mxu0
    %1949 = vmatprep.subr.bf16.mxu0 %v1740
    %1950 = vmatpush1.bf16.msra.mxu0 %v1739
    %1951 = vmatprep.subr.bf16.mxu0 %v1748
    %1952 = vmatpush1.bf16.msra.mxu0 %v1747
    %1953 = vmatprep.subr.bf16.mxu0 %v1756
    %1954 = vmatpush1.bf16.msra.mxu0 %v1755
    %1955 = vmatprep.subr.bf16.mxu0 %v1764
    %1956 = vmatpush1.bf16.msra.mxu0 %v1763
    %1957 = vmatprep.subr.bf16.mxu0 %v1772
    %1958 = vmatpush1.bf16.msra.mxu0 %v1771
    %1959 = vmatprep.subr.bf16.mxu0 %v1780
    %1960 = vmatpush1.bf16.msra.mxu0 %v1779
    %1961 = vmatprep.subr.bf16.mxu0 %v1788
    %1962 = vmatpush1.bf16.msra.mxu0 %v1787
    %1963 = vmatprep.subr.bf16.mxu0 %v1796
    %1964 = vmatpush1.bf16.msra.mxu0 %v1795
    %1965 = vmatprep.subr.bf16.mxu0 0
    %1966 = vmatpush1.bf16.msra.mxu0 0
    %1967 = vmatprep.subr.bf16.mxu0 0
    %1968 = vmatpush1.bf16.msra.mxu0 0
    %1969 = vmatprep.subr.bf16.mxu0 0
    %1970 = vmatpush1.bf16.msra.mxu0 0
    %1971 = vmatprep.subr.bf16.mxu0 0
    %1972 = vmatpush1.bf16.msra.mxu0 0
    %1973 = vmatprep.subr.bf16.mxu0 0
    %1974 = vmatpush1.bf16.msra.mxu0 0
    %1975 = vmatprep.subr.bf16.mxu0 0
    %1976 = vmatpush1.bf16.msra.mxu0 0
    %1977 = vmatprep.subr.bf16.mxu0 0
    %1978 = vmatpush1.bf16.msra.mxu0 0
    %1979 = vmatprep.subr.bf16.mxu0 0
    %1980 = vmatpush1.bf16.msra.mxu0 0
    %1981 = vmatprep.mubr.bf16.mxu0 0
    %1982 = vmatmul.mubr.bf16.gmra.mrb[0].mxu0 %v1477
    %v1983 = vpop.f32.mrb[0].mxu0
    %v1984 = vadd.f32 0.0, %v1983
    %v1985 = vpop.f32.mrb[0].mxu0
    %v1986 = vadd.f32 0.0, %v1985
    %v1987 = vpop.f32.mrb[0].mxu0
    %v1988 = vadd.f32 0.0, %v1987
    %v1989 = vpop.f32.mrb[0].mxu0
    %v1990 = vadd.f32 0.0, %v1989
    %1991 = vdwg.mxu0
    %1992 = vmatprep.subr.bf16.mxu0 %v1742
    %1993 = vmatpush1.bf16.msra.mxu0 %v1741
    %1994 = vmatprep.subr.bf16.mxu0 %v1750
    %1995 = vmatpush1.bf16.msra.mxu0 %v1749
    %1996 = vmatprep.subr.bf16.mxu0 %v1758
    %1997 = vmatpush1.bf16.msra.mxu0 %v1757
    %1998 = vmatprep.subr.bf16.mxu0 %v1766
    %1999 = vmatpush1.bf16.msra.mxu0 %v1765
    %2000 = vmatprep.subr.bf16.mxu0 %v1774
    %2001 = vmatpush1.bf16.msra.mxu0 %v1773
    %2002 = vmatprep.subr.bf16.mxu0 %v1782
    %2003 = vmatpush1.bf16.msra.mxu0 %v1781
    %2004 = vmatprep.subr.bf16.mxu0 %v1790
    %2005 = vmatpush1.bf16.msra.mxu0 %v1789
    %2006 = vmatprep.subr.bf16.mxu0 %v1798
    %2007 = vmatpush1.bf16.msra.mxu0 %v1797
    %2008 = vmatprep.subr.bf16.mxu0 0
    %2009 = vmatpush1.bf16.msra.mxu0 0
    %2010 = vmatprep.subr.bf16.mxu0 0
    %2011 = vmatpush1.bf16.msra.mxu0 0
    %2012 = vmatprep.subr.bf16.mxu0 0
    %2013 = vmatpush1.bf16.msra.mxu0 0
    %2014 = vmatprep.subr.bf16.mxu0 0
    %2015 = vmatpush1.bf16.msra.mxu0 0
    %2016 = vmatprep.subr.bf16.mxu0 0
    %2017 = vmatpush1.bf16.msra.mxu0 0
    %2018 = vmatprep.subr.bf16.mxu0 0
    %2019 = vmatpush1.bf16.msra.mxu0 0
    %2020 = vmatprep.subr.bf16.mxu0 0
    %2021 = vmatpush1.bf16.msra.mxu0 0
    %2022 = vmatprep.subr.bf16.mxu0 0
    %2023 = vmatpush1.bf16.msra.mxu0 0
    %2024 = vmatprep.mubr.bf16.mxu0 0
    %2025 = vmatmul.mubr.bf16.gmra.mrb[0].mxu0 %v1477
    %v2026 = vpop.f32.mrb[0].mxu0
    %v2027 = vadd.f32 0.0, %v2026
    %v2028 = vpop.f32.mrb[0].mxu0
    %v2029 = vadd.f32 0.0, %v2028
    %v2030 = vpop.f32.mrb[0].mxu0
    %v2031 = vadd.f32 0.0, %v2030
    %v2032 = vpop.f32.mrb[0].mxu0
    %v2033 = vadd.f32 0.0, %v2032
    %2034 = vdwg.mxu0
    %v2035 = vadd.f32 %v1284, %v1898
    %v2036 = vadd.f32 %v1286, %v1900
    %v2037 = vadd.f32 %v1327, %v1941
    %v2038 = vadd.f32 %v1329, %v1943
    %v2039 = vadd.f32 %v1370, %v1984
    %v2040 = vadd.f32 %v1372, %v1986
    %v2041 = vadd.f32 %v1413, %v2027
    %v2042 = vadd.f32 %v1415, %v2029
    %v2043 = vadd.f32 %v1288, %v1902
    %v2044 = vadd.f32 %v1290, %v1904
    %v2045 = vadd.f32 %v1331, %v1945
    %v2046 = vadd.f32 %v1333, %v1947
    %v2047 = vadd.f32 %v1374, %v1988
    %v2048 = vadd.f32 %v1376, %v1990
    %v2049 = vadd.f32 %v1417, %v2031
    %v2050 = vadd.f32 %v1419, %v2033
    %s2051 = scalar_lea.vmem %s0, 24
    %v2052 = vld [vmem:[%s2051] sm:$0xf]
    %v2053 = vld [vmem:[%s2051 + $0x4] sm:$0xf]
    %v2056 = vunpack.c.l.b16 %v2052
    %v2057 = vunpack.c.l.b16 %v2053
    %v2058 = vpack.c.b16 %v2057, %v2056
    %2060 = vmatprep.subr.bf16.mxu0 0
    %2061 = vmatpush1.bf16.msra.mxu0 %v187
    %2062 = vmatprep.subr.bf16.mxu0 0
    %2063 = vmatpush1.bf16.msra.mxu0 %v188
    %2064 = vmatprep.subr.bf16.mxu0 0
    %2065 = vmatpush1.bf16.msra.mxu0 %v189
    %2066 = vmatprep.subr.bf16.mxu0 0
    %2067 = vmatpush1.bf16.msra.mxu0 %v190
    %2068 = vmatprep.subr.bf16.mxu0 0
    %2069 = vmatpush1.bf16.msra.mxu0 %v191
    %2070 = vmatprep.subr.bf16.mxu0 0
    %2071 = vmatpush1.bf16.msra.mxu0 %v192
    %2072 = vmatprep.subr.bf16.mxu0 0
    %2073 = vmatpush1.bf16.msra.mxu0 %v193
    %2074 = vmatprep.subr.bf16.mxu0 0
    %2075 = vmatpush1.bf16.msra.mxu0 %v194
    %2076 = vmatprep.subr.bf16.mxu0 0
    %2077 = vmatpush1.bf16.msra.mxu0 0
    %2078 = vmatprep.subr.bf16.mxu0 0
    %2079 = vmatpush1.bf16.msra.mxu0 0
    %2080 = vmatprep.subr.bf16.mxu0 0
    %2081 = vmatpush1.bf16.msra.mxu0 0
    %2082 = vmatprep.subr.bf16.mxu0 0
    %2083 = vmatpush1.bf16.msra.mxu0 0
    %2084 = vmatprep.subr.bf16.mxu0 0
    %2085 = vmatpush1.bf16.msra.mxu0 0
    %2086 = vmatprep.subr.bf16.mxu0 0
    %2087 = vmatpush1.bf16.msra.mxu0 0
    %2088 = vmatprep.subr.bf16.mxu0 0
    %2089 = vmatpush1.bf16.msra.mxu0 0
    %2090 = vmatprep.subr.bf16.mxu0 0
    %2091 = vmatpush1.bf16.msra.mxu0 0
    %2092 = vmatprep.mubr.bf16.mxu0 0
    %2093 = vmatmul.mubr.bf16.gmra.mrb[0].mxu0 %v2058
    %v2094 = vpop.f32.mrb[0].mxu0
    %v2095 = vadd.f32 0.0, %v2094
    %v2096 = vpop.f32.mrb[0].mxu0
    %v2097 = vpop.f32.mrb[0].mxu0
    %v2098 = vadd.f32 0.0, %v2097
    %v2099 = vpop.f32.mrb[0].mxu0
    %2100 = vdwg.mxu0
    %v2101 = vmul.f32 %v2095, %v138
    %v2102 = vmul.f32 %v2098, %v138
    %v2103 = vadd.f32 %v2101, %v145
    %v2104 = vadd.f32 %v2102, %v145
    %v2105 = vmax.f32 %v2103, 0.0
    %v2106 = vmax.f32 %v2104, 0.0
    %v2107 = vpack.c.bf16 %v2106, %v2105
    %s2108 = scalar_lea.vmem [#allocation7], 1536
    %v2109 = vld [vmem:[%s2108] sm:$0xff]
    %v2110 = vld [vmem:[%s2108 + $0x8] sm:$0xff]
    %v2111 = vld [vmem:[%s2108 + $0x10] sm:$0xff]
    %v2112 = vld [vmem:[%s2108 + $0x18] sm:$0xff]
    %v2113 = vld [vmem:[%s2108 + $0x20] sm:$0xff]
    %v2114 = vld [vmem:[%s2108 + $0x28] sm:$0xff]
    %v2115 = vld [vmem:[%s2108 + $0x30] sm:$0xff]
    %v2116 = vld [vmem:[%s2108 + $0x38] sm:$0xff]
    %v2117 = vld [vmem:[%s2108 + $0x40] sm:$0xff]
    %v2118 = vld [vmem:[%s2108 + $0x48] sm:$0xff]
    %v2119 = vld [vmem:[%s2108 + $0x50] sm:$0xff]
    %v2120 = vld [vmem:[%s2108 + $0x58] sm:$0xff]
    %v2121 = vld [vmem:[%s2108 + $0x60] sm:$0xff]
    %v2122 = vld [vmem:[%s2108 + $0x68] sm:$0xff]
    %v2123 = vld [vmem:[%s2108 + $0x70] sm:$0xff]
    %v2124 = vld [vmem:[%s2108 + $0x78] sm:$0xff]
    %v2125 = vld [vmem:[%s2108 + $0x80] sm:$0xff]
    %v2126 = vld [vmem:[%s2108 + $0x88] sm:$0xff]
    %v2127 = vld [vmem:[%s2108 + $0x90] sm:$0xff]
    %v2128 = vld [vmem:[%s2108 + $0x98] sm:$0xff]
    %v2129 = vld [vmem:[%s2108 + $0xa0] sm:$0xff]
    %v2130 = vld [vmem:[%s2108 + $0xa8] sm:$0xff]
    %v2131 = vld [vmem:[%s2108 + $0xb0] sm:$0xff]
    %v2132 = vld [vmem:[%s2108 + $0xb8] sm:$0xff]
    %v2133 = vld [vmem:[%s2108 + $0xc0] sm:$0xff]
    %v2134 = vld [vmem:[%s2108 + $0xc8] sm:$0xff]
    %v2135 = vld [vmem:[%s2108 + $0xd0] sm:$0xff]
    %v2136 = vld [vmem:[%s2108 + $0xd8] sm:$0xff]
    %v2137 = vld [vmem:[%s2108 + $0xe0] sm:$0xff]
    %v2138 = vld [vmem:[%s2108 + $0xe8] sm:$0xff]
    %v2139 = vld [vmem:[%s2108 + $0xf0] sm:$0xff]
    %v2140 = vld [vmem:[%s2108 + $0xf8] sm:$0xff]
    %v2141 = vld [vmem:[%s2108 + $0x100] sm:$0xff]
    %v2142 = vld [vmem:[%s2108 + $0x108] sm:$0xff]
    %v2143 = vld [vmem:[%s2108 + $0x110] sm:$0xff]
    %v2144 = vld [vmem:[%s2108 + $0x118] sm:$0xff]
    %v2145 = vld [vmem:[%s2108 + $0x120] sm:$0xff]
    %v2146 = vld [vmem:[%s2108 + $0x128] sm:$0xff]
    %v2147 = vld [vmem:[%s2108 + $0x130] sm:$0xff]
    %v2148 = vld [vmem:[%s2108 + $0x138] sm:$0xff]
    %v2149 = vld [vmem:[%s2108 + $0x140] sm:$0xff]
    %v2150 = vld [vmem:[%s2108 + $0x148] sm:$0xff]
    %v2151 = vld [vmem:[%s2108 + $0x150] sm:$0xff]
    %v2152 = vld [vmem:[%s2108 + $0x158] sm:$0xff]
    %v2153 = vld [vmem:[%s2108 + $0x160] sm:$0xff]
    %v2154 = vld [vmem:[%s2108 + $0x168] sm:$0xff]
    %v2155 = vld [vmem:[%s2108 + $0x170] sm:$0xff]
    %v2156 = vld [vmem:[%s2108 + $0x178] sm:$0xff]
    %v2157 = vld [vmem:[%s2108 + $0x180] sm:$0xff]
    %v2158 = vld [vmem:[%s2108 + $0x188] sm:$0xff]
    %v2159 = vld [vmem:[%s2108 + $0x190] sm:$0xff]
    %v2160 = vld [vmem:[%s2108 + $0x198] sm:$0xff]
    %v2161 = vld [vmem:[%s2108 + $0x1a0] sm:$0xff]
    %v2162 = vld [vmem:[%s2108 + $0x1a8] sm:$0xff]
    %v2163 = vld [vmem:[%s2108 + $0x1b0] sm:$0xff]
    %v2164 = vld [vmem:[%s2108 + $0x1b8] sm:$0xff]
    %v2165 = vld [vmem:[%s2108 + $0x1c0] sm:$0xff]
    %v2166 = vld [vmem:[%s2108 + $0x1c8] sm:$0xff]
    %v2167 = vld [vmem:[%s2108 + $0x1d0] sm:$0xff]
    %v2168 = vld [vmem:[%s2108 + $0x1d8] sm:$0xff]
    %v2169 = vld [vmem:[%s2108 + $0x1e0] sm:$0xff]
    %v2170 = vld [vmem:[%s2108 + $0x1e8] sm:$0xff]
    %v2171 = vld [vmem:[%s2108 + $0x1f0] sm:$0xff]
    %v2172 = vld [vmem:[%s2108 + $0x1f8] sm:$0xff]
    %v2237 = vunpack.c.l.b16 %v2109
    %v2238 = vunpack.c.h.b16 %v2109
    %v2239 = vunpack.c.l.b16 %v2110
    %v2240 = vunpack.c.h.b16 %v2110
    %v2241 = vunpack.c.l.b16 %v2111
    %v2242 = vunpack.c.h.b16 %v2111
    %v2243 = vunpack.c.l.b16 %v2112
    %v2244 = vunpack.c.h.b16 %v2112
    %v2245 = vunpack.c.l.b16 %v2113
    %v2246 = vunpack.c.h.b16 %v2113
    %v2247 = vunpack.c.l.b16 %v2114
    %v2248 = vunpack.c.h.b16 %v2114
    %v2249 = vunpack.c.l.b16 %v2115
    %v2250 = vunpack.c.h.b16 %v2115
    %v2251 = vunpack.c.l.b16 %v2116
    %v2252 = vunpack.c.h.b16 %v2116
    %v2253 = vunpack.c.l.b16 %v2117
    %v2254 = vunpack.c.h.b16 %v2117
    %v2255 = vunpack.c.l.b16 %v2118
    %v2256 = vunpack.c.h.b16 %v2118
    %v2257 = vunpack.c.l.b16 %v2119
    %v2258 = vunpack.c.h.b16 %v2119
    %v2259 = vunpack.c.l.b16 %v2120
    %v2260 = vunpack.c.h.b16 %v2120
    %v2261 = vunpack.c.l.b16 %v2121
    %v2262 = vunpack.c.h.b16 %v2121
    %v2263 = vunpack.c.l.b16 %v2122
    %v2264 = vunpack.c.h.b16 %v2122
    %v2265 = vunpack.c.l.b16 %v2123
    %v2266 = vunpack.c.h.b16 %v2123
    %v2267 = vunpack.c.l.b16 %v2124
    %v2268 = vunpack.c.h.b16 %v2124
    %v2269 = vunpack.c.l.b16 %v2125
    %v2270 = vunpack.c.h.b16 %v2125
    %v2271 = vunpack.c.l.b16 %v2126
    %v2272 = vunpack.c.h.b16 %v2126
    %v2273 = vunpack.c.l.b16 %v2127
    %v2274 = vunpack.c.h.b16 %v2127
    %v2275 = vunpack.c.l.b16 %v2128
    %v2276 = vunpack.c.h.b16 %v2128
    %v2277 = vunpack.c.l.b16 %v2129
    %v2278 = vunpack.c.h.b16 %v2129
    %v2279 = vunpack.c.l.b16 %v2130
    %v2280 = vunpack.c.h.b16 %v2130
    %v2281 = vunpack.c.l.b16 %v2131
    %v2282 = vunpack.c.h.b16 %v2131
    %v2283 = vunpack.c.l.b16 %v2132
    %v2284 = vunpack.c.h.b16 %v2132
    %v2285 = vunpack.c.l.b16 %v2133
    %v2286 = vunpack.c.h.b16 %v2133
    %v2287 = vunpack.c.l.b16 %v2134
    %v2288 = vunpack.c.h.b16 %v2134
    %v2289 = vunpack.c.l.b16 %v2135
    %v2290 = vunpack.c.h.b16 %v2135
    %v2291 = vunpack.c.l.b16 %v2136
    %v2292 = vunpack.c.h.b16 %v2136
    %v2293 = vunpack.c.l.b16 %v2137
    %v2294 = vunpack.c.h.b16 %v2137
    %v2295 = vunpack.c.l.b16 %v2138
    %v2296 = vunpack.c.h.b16 %v2138
    %v2297 = vunpack.c.l.b16 %v2139
    %v2298 = vunpack.c.h.b16 %v2139
    %v2299 = vunpack.c.l.b16 %v2140
    %v2300 = vunpack.c.h.b16 %v2140
    %v2301 = vunpack.c.l.b16 %v2141
    %v2302 = vunpack.c.h.b16 %v2141
    %v2303 = vunpack.c.l.b16 %v2142
    %v2304 = vunpack.c.h.b16 %v2142
    %v2305 = vunpack.c.l.b16 %v2143
    %v2306 = vunpack.c.h.b16 %v2143
    %v2307 = vunpack.c.l.b16 %v2144
    %v2308 = vunpack.c.h.b16 %v2144
    %v2309 = vunpack.c.l.b16 %v2145
    %v2310 = vunpack.c.h.b16 %v2145
    %v2311 = vunpack.c.l.b16 %v2146
    %v2312 = vunpack.c.h.b16 %v2146
    %v2313 = vunpack.c.l.b16 %v2147
    %v2314 = vunpack.c.h.b16 %v2147
    %v2315 = vunpack.c.l.b16 %v2148
    %v2316 = vunpack.c.h.b16 %v2148
    %v2317 = vunpack.c.l.b16 %v2149
    %v2318 = vunpack.c.h.b16 %v2149
    %v2319 = vunpack.c.l.b16 %v2150
    %v2320 = vunpack.c.h.b16 %v2150
    %v2321 = vunpack.c.l.b16 %v2151
    %v2322 = vunpack.c.h.b16 %v2151
    %v2323 = vunpack.c.l.b16 %v2152
    %v2324 = vunpack.c.h.b16 %v2152
    %v2325 = vunpack.c.l.b16 %v2153
    %v2326 = vunpack.c.h.b16 %v2153
    %v2327 = vunpack.c.l.b16 %v2154
    %v2328 = vunpack.c.h.b16 %v2154
    %v2329 = vunpack.c.l.b16 %v2155
    %v2330 = vunpack.c.h.b16 %v2155
    %v2331 = vunpack.c.l.b16 %v2156
    %v2332 = vunpack.c.h.b16 %v2156
    %v2333 = vunpack.c.l.b16 %v2157
    %v2334 = vunpack.c.h.b16 %v2157
    %v2335 = vunpack.c.l.b16 %v2158
    %v2336 = vunpack.c.h.b16 %v2158
    %v2337 = vunpack.c.l.b16 %v2159
    %v2338 = vunpack.c.h.b16 %v2159
    %v2339 = vunpack.c.l.b16 %v2160
    %v2340 = vunpack.c.h.b16 %v2160
    %v2341 = vunpack.c.l.b16 %v2161
    %v2342 = vunpack.c.h.b16 %v2161
    %v2343 = vunpack.c.l.b16 %v2162
    %v2344 = vunpack.c.h.b16 %v2162
    %v2345 = vunpack.c.l.b16 %v2163
    %v2346 = vunpack.c.h.b16 %v2163
    %v2347 = vunpack.c.l.b16 %v2164
    %v2348 = vunpack.c.h.b16 %v2164
    %v2349 = vunpack.c.l.b16 %v2165
    %v2350 = vunpack.c.h.b16 %v2165
    %v2351 = vunpack.c.l.b16 %v2166
    %v2352 = vunpack.c.h.b16 %v2166
    %v2353 = vunpack.c.l.b16 %v2167
    %v2354 = vunpack.c.h.b16 %v2167
    %v2355 = vunpack.c.l.b16 %v2168
    %v2356 = vunpack.c.h.b16 %v2168
    %v2357 = vunpack.c.l.b16 %v2169
    %v2358 = vunpack.c.h.b16 %v2169
    %v2359 = vunpack.c.l.b16 %v2170
    %v2360 = vunpack.c.h.b16 %v2170
    %v2361 = vunpack.c.l.b16 %v2171
    %v2362 = vunpack.c.h.b16 %v2171
    %v2363 = vunpack.c.l.b16 %v2172
    %v2364 = vunpack.c.h.b16 %v2172
    %v2365 = vpack.c.b16 %v2245, %v2237
    %v2366 = vpack.c.b16 %v2246, %v2238
    %v2367 = vpack.c.b16 %v2247, %v2239
    %v2368 = vpack.c.b16 %v2248, %v2240
    %v2369 = vpack.c.b16 %v2249, %v2241
    %v2370 = vpack.c.b16 %v2250, %v2242
    %v2371 = vpack.c.b16 %v2251, %v2243
    %v2372 = vpack.c.b16 %v2252, %v2244
    %v2373 = vpack.c.b16 %v2261, %v2253
    %v2374 = vpack.c.b16 %v2262, %v2254
    %v2375 = vpack.c.b16 %v2263, %v2255
    %v2376 = vpack.c.b16 %v2264, %v2256
    %v2377 = vpack.c.b16 %v2265, %v2257
    %v2378 = vpack.c.b16 %v2266, %v2258
    %v2379 = vpack.c.b16 %v2267, %v2259
    %v2380 = vpack.c.b16 %v2268, %v2260
    %v2381 = vpack.c.b16 %v2277, %v2269
    %v2382 = vpack.c.b16 %v2278, %v2270
    %v2383 = vpack.c.b16 %v2279, %v2271
    %v2384 = vpack.c.b16 %v2280, %v2272
    %v2385 = vpack.c.b16 %v2281, %v2273
    %v2386 = vpack.c.b16 %v2282, %v2274
    %v2387 = vpack.c.b16 %v2283, %v2275
    %v2388 = vpack.c.b16 %v2284, %v2276
    %v2389 = vpack.c.b16 %v2293, %v2285
    %v2390 = vpack.c.b16 %v2294, %v2286
    %v2391 = vpack.c.b16 %v2295, %v2287
    %v2392 = vpack.c.b16 %v2296, %v2288
    %v2393 = vpack.c.b16 %v2297, %v2289
    %v2394 = vpack.c.b16 %v2298, %v2290
    %v2395 = vpack.c.b16 %v2299, %v2291
    %v2396 = vpack.c.b16 %v2300, %v2292
    %v2397 = vpack.c.b16 %v2309, %v2301
    %v2398 = vpack.c.b16 %v2310, %v2302
    %v2399 = vpack.c.b16 %v2311, %v2303
    %v2400 = vpack.c.b16 %v2312, %v2304
    %v2401 = vpack.c.b16 %v2313, %v2305
    %v2402 = vpack.c.b16 %v2314, %v2306
    %v2403 = vpack.c.b16 %v2315, %v2307
    %v2404 = vpack.c.b16 %v2316, %v2308
    %v2405 = vpack.c.b16 %v2325, %v2317
    %v2406 = vpack.c.b16 %v2326, %v2318
    %v2407 = vpack.c.b16 %v2327, %v2319
    %v2408 = vpack.c.b16 %v2328, %v2320
    %v2409 = vpack.c.b16 %v2329, %v2321
    %v2410 = vpack.c.b16 %v2330, %v2322
    %v2411 = vpack.c.b16 %v2331, %v2323
    %v2412 = vpack.c.b16 %v2332, %v2324
    %v2413 = vpack.c.b16 %v2341, %v2333
    %v2414 = vpack.c.b16 %v2342, %v2334
    %v2415 = vpack.c.b16 %v2343, %v2335
    %v2416 = vpack.c.b16 %v2344, %v2336
    %v2417 = vpack.c.b16 %v2345, %v2337
    %v2418 = vpack.c.b16 %v2346, %v2338
    %v2419 = vpack.c.b16 %v2347, %v2339
    %v2420 = vpack.c.b16 %v2348, %v2340
    %v2421 = vpack.c.b16 %v2357, %v2349
    %v2422 = vpack.c.b16 %v2358, %v2350
    %v2423 = vpack.c.b16 %v2359, %v2351
    %v2424 = vpack.c.b16 %v2360, %v2352
    %v2425 = vpack.c.b16 %v2361, %v2353
    %v2426 = vpack.c.b16 %v2362, %v2354
    %v2427 = vpack.c.b16 %v2363, %v2355
    %v2428 = vpack.c.b16 %v2364, %v2356
    %2493 = vmatprep.subr.bf16.mxu0 %v2366
    %2494 = vmatpush1.bf16.msra.mxu0 %v2365
    %2495 = vmatprep.subr.bf16.mxu0 %v2374
    %2496 = vmatpush1.bf16.msra.mxu0 %v2373
    %2497 = vmatprep.subr.bf16.mxu0 %v2382
    %2498 = vmatpush1.bf16.msra.mxu0 %v2381
    %2499 = vmatprep.subr.bf16.mxu0 %v2390
    %2500 = vmatpush1.bf16.msra.mxu0 %v2389
    %2501 = vmatprep.subr.bf16.mxu0 %v2398
    %2502 = vmatpush1.bf16.msra.mxu0 %v2397
    %2503 = vmatprep.subr.bf16.mxu0 %v2406
    %2504 = vmatpush1.bf16.msra.mxu0 %v2405
    %2505 = vmatprep.subr.bf16.mxu0 %v2414
    %2506 = vmatpush1.bf16.msra.mxu0 %v2413
    %2507 = vmatprep.subr.bf16.mxu0 %v2422
    %2508 = vmatpush1.bf16.msra.mxu0 %v2421
    %2509 = vmatprep.subr.bf16.mxu0 0
    %2510 = vmatpush1.bf16.msra.mxu0 0
    %2511 = vmatprep.subr.bf16.mxu0 0
    %2512 = vmatpush1.bf16.msra.mxu0 0
    %2513 = vmatprep.subr.bf16.mxu0 0
    %2514 = vmatpush1.bf16.msra.mxu0 0
    %2515 = vmatprep.subr.bf16.mxu0 0
    %2516 = vmatpush1.bf16.msra.mxu0 0
    %2517 = vmatprep.subr.bf16.mxu0 0
    %2518 = vmatpush1.bf16.msra.mxu0 0
    %2519 = vmatprep.subr.bf16.mxu0 0
    %2520 = vmatpush1.bf16.msra.mxu0 0
    %2521 = vmatprep.subr.bf16.mxu0 0
    %2522 = vmatpush1.bf16.msra.mxu0 0
    %2523 = vmatprep.subr.bf16.mxu0 0
    %2524 = vmatpush1.bf16.msra.mxu0 0
    %2525 = vmatprep.mubr.bf16.mxu0 0
    %2526 = vmatmul.mubr.bf16.gmra.mrb[0].mxu0 %v2107
    %v2527 = vpop.f32.mrb[0].mxu0
    %v2528 = vadd.f32 0.0, %v2527
    %v2529 = vpop.f32.mrb[0].mxu0
    %v2530 = vadd.f32 0.0, %v2529
    %v2531 = vpop.f32.mrb[0].mxu0
    %v2532 = vadd.f32 0.0, %v2531
    %v2533 = vpop.f32.mrb[0].mxu0
    %v2534 = vadd.f32 0.0, %v2533
    %2535 = vdwg.mxu0
    %2536 = vmatprep.subr.bf16.mxu0 %v2368
    %2537 = vmatpush1.bf16.msra.mxu0 %v2367
    %2538 = vmatprep.subr.bf16.mxu0 %v2376
    %2539 = vmatpush1.bf16.msra.mxu0 %v2375
    %2540 = vmatprep.subr.bf16.mxu0 %v2384
    %2541 = vmatpush1.bf16.msra.mxu0 %v2383
    %2542 = vmatprep.subr.bf16.mxu0 %v2392
    %2543 = vmatpush1.bf16.msra.mxu0 %v2391
    %2544 = vmatprep.subr.bf16.mxu0 %v2400
    %2545 = vmatpush1.bf16.msra.mxu0 %v2399
    %2546 = vmatprep.subr.bf16.mxu0 %v2408
    %2547 = vmatpush1.bf16.msra.mxu0 %v2407
    %2548 = vmatprep.subr.bf16.mxu0 %v2416
    %2549 = vmatpush1.bf16.msra.mxu0 %v2415
    %2550 = vmatprep.subr.bf16.mxu0 %v2424
    %2551 = vmatpush1.bf16.msra.mxu0 %v2423
    %2552 = vmatprep.subr.bf16.mxu0 0
    %2553 = vmatpush1.bf16.msra.mxu0 0
    %2554 = vmatprep.subr.bf16.mxu0 0
    %2555 = vmatpush1.bf16.msra.mxu0 0
    %2556 = vmatprep.subr.bf16.mxu0 0
    %2557 = vmatpush1.bf16.msra.mxu0 0
    %2558 = vmatprep.subr.bf16.mxu0 0
    %2559 = vmatpush1.bf16.msra.mxu0 0
    %2560 = vmatprep.subr.bf16.mxu0 0
    %2561 = vmatpush1.bf16.msra.mxu0 0
    %2562 = vmatprep.subr.bf16.mxu0 0
    %2563 = vmatpush1.bf16.msra.mxu0 0
    %2564 = vmatprep.subr.bf16.mxu0 0
    %2565 = vmatpush1.bf16.msra.mxu0 0
    %2566 = vmatprep.subr.bf16.mxu0 0
    %2567 = vmatpush1.bf16.msra.mxu0 0
    %2568 = vmatprep.mubr.bf16.mxu0 0
    %2569 = vmatmul.mubr.bf16.gmra.mrb[0].mxu0 %v2107
    %v2570 = vpop.f32.mrb[0].mxu0
    %v2571 = vadd.f32 0.0, %v2570
    %v2572 = vpop.f32.mrb[0].mxu0
    %v2573 = vadd.f32 0.0, %v2572
    %v2574 = vpop.f32.mrb[0].mxu0
    %v2575 = vadd.f32 0.0, %v2574
    %v2576 = vpop.f32.mrb[0].mxu0
    %v2577 = vadd.f32 0.0, %v2576
    %2578 = vdwg.mxu0
    %2579 = vmatprep.subr.bf16.mxu0 %v2370
    %2580 = vmatpush1.bf16.msra.mxu0 %v2369
    %2581 = vmatprep.subr.bf16.mxu0 %v2378
    %2582 = vmatpush1.bf16.msra.mxu0 %v2377
    %2583 = vmatprep.subr.bf16.mxu0 %v2386
    %2584 = vmatpush1.bf16.msra.mxu0 %v2385
    %2585 = vmatprep.subr.bf16.mxu0 %v2394
    %2586 = vmatpush1.bf16.msra.mxu0 %v2393
    %2587 = vmatprep.subr.bf16.mxu0 %v2402
    %2588 = vmatpush1.bf16.msra.mxu0 %v2401
    %2589 = vmatprep.subr.bf16.mxu0 %v2410
    %2590 = vmatpush1.bf16.msra.mxu0 %v2409
    %2591 = vmatprep.subr.bf16.mxu0 %v2418
    %2592 = vmatpush1.bf16.msra.mxu0 %v2417
    %2593 = vmatprep.subr.bf16.mxu0 %v2426
    %2594 = vmatpush1.bf16.msra.mxu0 %v2425
    %2595 = vmatprep.subr.bf16.mxu0 0
    %2596 = vmatpush1.bf16.msra.mxu0 0
    %2597 = vmatprep.subr.bf16.mxu0 0
    %2598 = vmatpush1.bf16.msra.mxu0 0
    %2599 = vmatprep.subr.bf16.mxu0 0
    %2600 = vmatpush1.bf16.msra.mxu0 0
    %2601 = vmatprep.subr.bf16.mxu0 0
    %2602 = vmatpush1.bf16.msra.mxu0 0
    %2603 = vmatprep.subr.bf16.mxu0 0
    %2604 = vmatpush1.bf16.msra.mxu0 0
    %2605 = vmatprep.subr.bf16.mxu0 0
    %2606 = vmatpush1.bf16.msra.mxu0 0
    %2607 = vmatprep.subr.bf16.mxu0 0
    %2608 = vmatpush1.bf16.msra.mxu0 0
    %2609 = vmatprep.subr.bf16.mxu0 0
    %2610 = vmatpush1.bf16.msra.mxu0 0
    %2611 = vmatprep.mubr.bf16.mxu0 0
    %2612 = vmatmul.mubr.bf16.gmra.mrb[0].mxu0 %v2107
    %v2613 = vpop.f32.mrb[0].mxu0
    %v2614 = vadd.f32 0.0, %v2613
    %v2615 = vpop.f32.mrb[0].mxu0
    %v2616 = vadd.f32 0.0, %v2615
    %v2617 = vpop.f32.mrb[0].mxu0
    %v2618 = vadd.f32 0.0, %v2617
    %v2619 = vpop.f32.mrb[0].mxu0
    %v2620 = vadd.f32 0.0, %v2619
    %2621 = vdwg.mxu0
    %2622 = vmatprep.subr.bf16.mxu0 %v2372
    %2623 = vmatpush1.bf16.msra.mxu0 %v2371
    %2624 = vmatprep.subr.bf16.mxu0 %v2380
    %2625 = vmatpush1.bf16.msra.mxu0 %v2379
    %2626 = vmatprep.subr.bf16.mxu0 %v2388
    %2627 = vmatpush1.bf16.msra.mxu0 %v2387
    %2628 = vmatprep.subr.bf16.mxu0 %v2396
    %2629 = vmatpush1.bf16.msra.mxu0 %v2395
    %2630 = vmatprep.subr.bf16.mxu0 %v2404
    %2631 = vmatpush1.bf16.msra.mxu0 %v2403
    %2632 = vmatprep.subr.bf16.mxu0 %v2412
    %2633 = vmatpush1.bf16.msra.mxu0 %v2411
    %2634 = vmatprep.subr.bf16.mxu0 %v2420
    %2635 = vmatpush1.bf16.msra.mxu0 %v2419
    %2636 = vmatprep.subr.bf16.mxu0 %v2428
    %2637 = vmatpush1.bf16.msra.mxu0 %v2427
    %2638 = vmatprep.subr.bf16.mxu0 0
    %2639 = vmatpush1.bf16.msra.mxu0 0
    %2640 = vmatprep.subr.bf16.mxu0 0
    %2641 = vmatpush1.bf16.msra.mxu0 0
    %2642 = vmatprep.subr.bf16.mxu0 0
    %2643 = vmatpush1.bf16.msra.mxu0 0
    %2644 = vmatprep.subr.bf16.mxu0 0
    %2645 = vmatpush1.bf16.msra.mxu0 0
    %2646 = vmatprep.subr.bf16.mxu0 0
    %2647 = vmatpush1.bf16.msra.mxu0 0
    %2648 = vmatprep.subr.bf16.mxu0 0
    %2649 = vmatpush1.bf16.msra.mxu0 0
    %2650 = vmatprep.subr.bf16.mxu0 0
    %2651 = vmatpush1.bf16.msra.mxu0 0
    %2652 = vmatprep.subr.bf16.mxu0 0
    %2653 = vmatpush1.bf16.msra.mxu0 0
    %2654 = vmatprep.mubr.bf16.mxu0 0
    %2655 = vmatmul.mubr.bf16.gmra.mrb[0].mxu0 %v2107
    %v2656 = vpop.f32.mrb[0].mxu0
    %v2657 = vadd.f32 0.0, %v2656
    %v2658 = vpop.f32.mrb[0].mxu0
    %v2659 = vadd.f32 0.0, %v2658
    %v2660 = vpop.f32.mrb[0].mxu0
    %v2661 = vadd.f32 0.0, %v2660
    %v2662 = vpop.f32.mrb[0].mxu0
    %v2663 = vadd.f32 0.0, %v2662
    %2664 = vdwg.mxu0
    %v2665 = vadd.f32 %v2035, %v2528
    %v2666 = vadd.f32 %v2036, %v2530
    %v2667 = vadd.f32 %v2037, %v2571
    %v2668 = vadd.f32 %v2038, %v2573
    %v2669 = vadd.f32 %v2039, %v2614
    %v2670 = vadd.f32 %v2040, %v2616
    %v2671 = vadd.f32 %v2041, %v2657
    %v2672 = vadd.f32 %v2042, %v2659
    %v2673 = vadd.f32 %v2043, %v2532
    %v2674 = vadd.f32 %v2044, %v2534
    %v2675 = vadd.f32 %v2045, %v2575
    %v2676 = vadd.f32 %v2046, %v2577
    %v2677 = vadd.f32 %v2047, %v2618
    %v2678 = vadd.f32 %v2048, %v2620
    %v2679 = vadd.f32 %v2049, %v2661
    %v2680 = vadd.f32 %v2050, %v2663
    %s2681 = scalar_lea.vmem %s0, 32
    %v2682 = vld [vmem:[%s2681] sm:$0xf]
    %v2683 = vld [vmem:[%s2681 + $0x4] sm:$0xf]
    %v2686 = vunpack.c.l.b16 %v2682
    %v2687 = vunpack.c.l.b16 %v2683
    %v2688 = vpack.c.b16 %v2687, %v2686
    %2690 = vmatprep.subr.bf16.mxu0 0
    %2691 = vmatpush1.bf16.msra.mxu0 %v187
    %2692 = vmatprep.subr.bf16.mxu0 0
    %2693 = vmatpush1.bf16.msra.mxu0 %v188
    %2694 = vmatprep.subr.bf16.mxu0 0
    %2695 = vmatpush1.bf16.msra.mxu0 %v189
    %2696 = vmatprep.subr.bf16.mxu0 0
    %2697 = vmatpush1.bf16.msra.mxu0 %v190
    %2698 = vmatprep.subr.bf16.mxu0 0
    %2699 = vmatpush1.bf16.msra.mxu0 %v191
    %2700 = vmatprep.subr.bf16.mxu0 0
    %2701 = vmatpush1.bf16.msra.mxu0 %v192
    %2702 = vmatprep.subr.bf16.mxu0 0
    %2703 = vmatpush1.bf16.msra.mxu0 %v193
    %2704 = vmatprep.subr.bf16.mxu0 0
    %2705 = vmatpush1.bf16.msra.mxu0 %v194
    %2706 = vmatprep.subr.bf16.mxu0 0
    %2707 = vmatpush1.bf16.msra.mxu0 0
    %2708 = vmatprep.subr.bf16.mxu0 0
    %2709 = vmatpush1.bf16.msra.mxu0 0
    %2710 = vmatprep.subr.bf16.mxu0 0
    %2711 = vmatpush1.bf16.msra.mxu0 0
    %2712 = vmatprep.subr.bf16.mxu0 0
    %2713 = vmatpush1.bf16.msra.mxu0 0
    %2714 = vmatprep.subr.bf16.mxu0 0
    %2715 = vmatpush1.bf16.msra.mxu0 0
    %2716 = vmatprep.subr.bf16.mxu0 0
    %2717 = vmatpush1.bf16.msra.mxu0 0
    %2718 = vmatprep.subr.bf16.mxu0 0
    %2719 = vmatpush1.bf16.msra.mxu0 0
    %2720 = vmatprep.subr.bf16.mxu0 0
    %2721 = vmatpush1.bf16.msra.mxu0 0
    %2722 = vmatprep.mubr.bf16.mxu0 0
    %2723 = vmatmul.mubr.bf16.gmra.mrb[0].mxu0 %v2688
    %v2724 = vpop.f32.mrb[0].mxu0
    %v2725 = vadd.f32 0.0, %v2724
    %v2726 = vpop.f32.mrb[0].mxu0
    %v2727 = vpop.f32.mrb[0].mxu0
    %v2728 = vadd.f32 0.0, %v2727
    %v2729 = vpop.f32.mrb[0].mxu0
    %2730 = vdwg.mxu0
    %v2731 = vmul.f32 %v2725, %v138
    %v2732 = vmul.f32 %v2728, %v138
    %v2733 = vadd.f32 %v2731, %v145
    %v2734 = vadd.f32 %v2732, %v145
    %v2735 = vmax.f32 %v2733, 0.0
    %v2736 = vmax.f32 %v2734, 0.0
    %v2737 = vpack.c.bf16 %v2736, %v2735
    %s2738 = scalar_lea.vmem [#allocation7], 2048
    %v2739 = vld [vmem:[%s2738] sm:$0xff]
    %v2740 = vld [vmem:[%s2738 + $0x8] sm:$0xff]
    %v2741 = vld [vmem:[%s2738 + $0x10] sm:$0xff]
    %v2742 = vld [vmem:[%s2738 + $0x18] sm:$0xff]
    %v2743 = vld [vmem:[%s2738 + $0x20] sm:$0xff]
    %v2744 = vld [vmem:[%s2738 + $0x28] sm:$0xff]
    %v2745 = vld [vmem:[%s2738 + $0x30] sm:$0xff]
    %v2746 = vld [vmem:[%s2738 + $0x38] sm:$0xff]
    %v2747 = vld [vmem:[%s2738 + $0x40] sm:$0xff]
    %v2748 = vld [vmem:[%s2738 + $0x48] sm:$0xff]
    %v2749 = vld [vmem:[%s2738 + $0x50] sm:$0xff]
    %v2750 = vld [vmem:[%s2738 + $0x58] sm:$0xff]
    %v2751 = vld [vmem:[%s2738 + $0x60] sm:$0xff]
    %v2752 = vld [vmem:[%s2738 + $0x68] sm:$0xff]
    %v2753 = vld [vmem:[%s2738 + $0x70] sm:$0xff]
    %v2754 = vld [vmem:[%s2738 + $0x78] sm:$0xff]
    %v2755 = vld [vmem:[%s2738 + $0x80] sm:$0xff]
    %v2756 = vld [vmem:[%s2738 + $0x88] sm:$0xff]
    %v2757 = vld [vmem:[%s2738 + $0x90] sm:$0xff]
    %v2758 = vld [vmem:[%s2738 + $0x98] sm:$0xff]
    %v2759 = vld [vmem:[%s2738 + $0xa0] sm:$0xff]
    %v2760 = vld [vmem:[%s2738 + $0xa8] sm:$0xff]
    %v2761 = vld [vmem:[%s2738 + $0xb0] sm:$0xff]
    %v2762 = vld [vmem:[%s2738 + $0xb8] sm:$0xff]
    %v2763 = vld [vmem:[%s2738 + $0xc0] sm:$0xff]
    %v2764 = vld [vmem:[%s2738 + $0xc8] sm:$0xff]
    %v2765 = vld [vmem:[%s2738 + $0xd0] sm:$0xff]
    %v2766 = vld [vmem:[%s2738 + $0xd8] sm:$0xff]
    %v2767 = vld [vmem:[%s2738 + $0xe0] sm:$0xff]
    %v2768 = vld [vmem:[%s2738 + $0xe8] sm:$0xff]
    %v2769 = vld [vmem:[%s2738 + $0xf0] sm:$0xff]
    %v2770 = vld [vmem:[%s2738 + $0xf8] sm:$0xff]
    %v2771 = vld [vmem:[%s2738 + $0x100] sm:$0xff]
    %v2772 = vld [vmem:[%s2738 + $0x108] sm:$0xff]
    %v2773 = vld [vmem:[%s2738 + $0x110] sm:$0xff]
    %v2774 = vld [vmem:[%s2738 + $0x118] sm:$0xff]
    %v2775 = vld [vmem:[%s2738 + $0x120] sm:$0xff]
    %v2776 = vld [vmem:[%s2738 + $0x128] sm:$0xff]
    %v2777 = vld [vmem:[%s2738 + $0x130] sm:$0xff]
    %v2778 = vld [vmem:[%s2738 + $0x138] sm:$0xff]
    %v2779 = vld [vmem:[%s2738 + $0x140] sm:$0xff]
    %v2780 = vld [vmem:[%s2738 + $0x148] sm:$0xff]
    %v2781 = vld [vmem:[%s2738 + $0x150] sm:$0xff]
    %v2782 = vld [vmem:[%s2738 + $0x158] sm:$0xff]
    %v2783 = vld [vmem:[%s2738 + $0x160] sm:$0xff]
    %v2784 = vld [vmem:[%s2738 + $0x168] sm:$0xff]
    %v2785 = vld [vmem:[%s2738 + $0x170] sm:$0xff]
    %v2786 = vld [vmem:[%s2738 + $0x178] sm:$0xff]
    %v2787 = vld [vmem:[%s2738 + $0x180] sm:$0xff]
    %v2788 = vld [vmem:[%s2738 + $0x188] sm:$0xff]
    %v2789 = vld [vmem:[%s2738 + $0x190] sm:$0xff]
    %v2790 = vld [vmem:[%s2738 + $0x198] sm:$0xff]
    %v2791 = vld [vmem:[%s2738 + $0x1a0] sm:$0xff]
    %v2792 = vld [vmem:[%s2738 + $0x1a8] sm:$0xff]
    %v2793 = vld [vmem:[%s2738 + $0x1b0] sm:$0xff]
    %v2794 = vld [vmem:[%s2738 + $0x1b8] sm:$0xff]
    %v2795 = vld [vmem:[%s2738 + $0x1c0] sm:$0xff]
    %v2796 = vld [vmem:[%s2738 + $0x1c8] sm:$0xff]
    %v2797 = vld [vmem:[%s2738 + $0x1d0] sm:$0xff]
    %v2798 = vld [vmem:[%s2738 + $0x1d8] sm:$0xff]
    %v2799 = vld [vmem:[%s2738 + $0x1e0] sm:$0xff]
    %v2800 = vld [vmem:[%s2738 + $0x1e8] sm:$0xff]
    %v2801 = vld [vmem:[%s2738 + $0x1f0] sm:$0xff]
    %v2802 = vld [vmem:[%s2738 + $0x1f8] sm:$0xff]
    %v2867 = vunpack.c.l.b16 %v2739
    %v2868 = vunpack.c.h.b16 %v2739
    %v2869 = vunpack.c.l.b16 %v2740
    %v2870 = vunpack.c.h.b16 %v2740
    %v2871 = vunpack.c.l.b16 %v2741
    %v2872 = vunpack.c.h.b16 %v2741
    %v2873 = vunpack.c.l.b16 %v2742
    %v2874 = vunpack.c.h.b16 %v2742
    %v2875 = vunpack.c.l.b16 %v2743
    %v2876 = vunpack.c.h.b16 %v2743
    %v2877 = vunpack.c.l.b16 %v2744
    %v2878 = vunpack.c.h.b16 %v2744
    %v2879 = vunpack.c.l.b16 %v2745
    %v2880 = vunpack.c.h.b16 %v2745
    %v2881 = vunpack.c.l.b16 %v2746
    %v2882 = vunpack.c.h.b16 %v2746
    %v2883 = vunpack.c.l.b16 %v2747
    %v2884 = vunpack.c.h.b16 %v2747
    %v2885 = vunpack.c.l.b16 %v2748
    %v2886 = vunpack.c.h.b16 %v2748
    %v2887 = vunpack.c.l.b16 %v2749
    %v2888 = vunpack.c.h.b16 %v2749
    %v2889 = vunpack.c.l.b16 %v2750
    %v2890 = vunpack.c.h.b16 %v2750
    %v2891 = vunpack.c.l.b16 %v2751
    %v2892 = vunpack.c.h.b16 %v2751
    %v2893 = vunpack.c.l.b16 %v2752
    %v2894 = vunpack.c.h.b16 %v2752
    %v2895 = vunpack.c.l.b16 %v2753
    %v2896 = vunpack.c.h.b16 %v2753
    %v2897 = vunpack.c.l.b16 %v2754
    %v2898 = vunpack.c.h.b16 %v2754
    %v2899 = vunpack.c.l.b16 %v2755
    %v2900 = vunpack.c.h.b16 %v2755
    %v2901 = vunpack.c.l.b16 %v2756
    %v2902 = vunpack.c.h.b16 %v2756
    %v2903 = vunpack.c.l.b16 %v2757
    %v2904 = vunpack.c.h.b16 %v2757
    %v2905 = vunpack.c.l.b16 %v2758
    %v2906 = vunpack.c.h.b16 %v2758
    %v2907 = vunpack.c.l.b16 %v2759
    %v2908 = vunpack.c.h.b16 %v2759
    %v2909 = vunpack.c.l.b16 %v2760
    %v2910 = vunpack.c.h.b16 %v2760
    %v2911 = vunpack.c.l.b16 %v2761
    %v2912 = vunpack.c.h.b16 %v2761
    %v2913 = vunpack.c.l.b16 %v2762
    %v2914 = vunpack.c.h.b16 %v2762
    %v2915 = vunpack.c.l.b16 %v2763
    %v2916 = vunpack.c.h.b16 %v2763
    %v2917 = vunpack.c.l.b16 %v2764
    %v2918 = vunpack.c.h.b16 %v2764
    %v2919 = vunpack.c.l.b16 %v2765
    %v2920 = vunpack.c.h.b16 %v2765
    %v2921 = vunpack.c.l.b16 %v2766
    %v2922 = vunpack.c.h.b16 %v2766
    %v2923 = vunpack.c.l.b16 %v2767
    %v2924 = vunpack.c.h.b16 %v2767
    %v2925 = vunpack.c.l.b16 %v2768
    %v2926 = vunpack.c.h.b16 %v2768
    %v2927 = vunpack.c.l.b16 %v2769
    %v2928 = vunpack.c.h.b16 %v2769
    %v2929 = vunpack.c.l.b16 %v2770
    %v2930 = vunpack.c.h.b16 %v2770
    %v2931 = vunpack.c.l.b16 %v2771
    %v2932 = vunpack.c.h.b16 %v2771
    %v2933 = vunpack.c.l.b16 %v2772
    %v2934 = vunpack.c.h.b16 %v2772
    %v2935 = vunpack.c.l.b16 %v2773
    %v2936 = vunpack.c.h.b16 %v2773
    %v2937 = vunpack.c.l.b16 %v2774
    %v2938 = vunpack.c.h.b16 %v2774
    %v2939 = vunpack.c.l.b16 %v2775
    %v2940 = vunpack.c.h.b16 %v2775
    %v2941 = vunpack.c.l.b16 %v2776
    %v2942 = vunpack.c.h.b16 %v2776
    %v2943 = vunpack.c.l.b16 %v2777
    %v2944 = vunpack.c.h.b16 %v2777
    %v2945 = vunpack.c.l.b16 %v2778
    %v2946 = vunpack.c.h.b16 %v2778
    %v2947 = vunpack.c.l.b16 %v2779
    %v2948 = vunpack.c.h.b16 %v2779
    %v2949 = vunpack.c.l.b16 %v2780
    %v2950 = vunpack.c.h.b16 %v2780
    %v2951 = vunpack.c.l.b16 %v2781
    %v2952 = vunpack.c.h.b16 %v2781
    %v2953 = vunpack.c.l.b16 %v2782
    %v2954 = vunpack.c.h.b16 %v2782
    %v2955 = vunpack.c.l.b16 %v2783
    %v2956 = vunpack.c.h.b16 %v2783
    %v2957 = vunpack.c.l.b16 %v2784
    %v2958 = vunpack.c.h.b16 %v2784
    %v2959 = vunpack.c.l.b16 %v2785
    %v2960 = vunpack.c.h.b16 %v2785
    %v2961 = vunpack.c.l.b16 %v2786
    %v2962 = vunpack.c.h.b16 %v2786
    %v2963 = vunpack.c.l.b16 %v2787
    %v2964 = vunpack.c.h.b16 %v2787
    %v2965 = vunpack.c.l.b16 %v2788
    %v2966 = vunpack.c.h.b16 %v2788
    %v2967 = vunpack.c.l.b16 %v2789
    %v2968 = vunpack.c.h.b16 %v2789
    %v2969 = vunpack.c.l.b16 %v2790
    %v2970 = vunpack.c.h.b16 %v2790
    %v2971 = vunpack.c.l.b16 %v2791
    %v2972 = vunpack.c.h.b16 %v2791
    %v2973 = vunpack.c.l.b16 %v2792
    %v2974 = vunpack.c.h.b16 %v2792
    %v2975 = vunpack.c.l.b16 %v2793
    %v2976 = vunpack.c.h.b16 %v2793
    %v2977 = vunpack.c.l.b16 %v2794
    %v2978 = vunpack.c.h.b16 %v2794
    %v2979 = vunpack.c.l.b16 %v2795
    %v2980 = vunpack.c.h.b16 %v2795
    %v2981 = vunpack.c.l.b16 %v2796
    %v2982 = vunpack.c.h.b16 %v2796
    %v2983 = vunpack.c.l.b16 %v2797
    %v2984 = vunpack.c.h.b16 %v2797
    %v2985 = vunpack.c.l.b16 %v2798
    %v2986 = vunpack.c.h.b16 %v2798
    %v2987 = vunpack.c.l.b16 %v2799
    %v2988 = vunpack.c.h.b16 %v2799
    %v2989 = vunpack.c.l.b16 %v2800
    %v2990 = vunpack.c.h.b16 %v2800
    %v2991 = vunpack.c.l.b16 %v2801
    %v2992 = vunpack.c.h.b16 %v2801
    %v2993 = vunpack.c.l.b16 %v2802
    %v2994 = vunpack.c.h.b16 %v2802
    %v2995 = vpack.c.b16 %v2875, %v2867
    %v2996 = vpack.c.b16 %v2876, %v2868
    %v2997 = vpack.c.b16 %v2877, %v2869
    %v2998 = vpack.c.b16 %v2878, %v2870
    %v2999 = vpack.c.b16 %v2879, %v2871
    %v3000 = vpack.c.b16 %v2880, %v2872
    %v3001 = vpack.c.b16 %v2881, %v2873
    %v3002 = vpack.c.b16 %v2882, %v2874
    %v3003 = vpack.c.b16 %v2891, %v2883
    %v3004 = vpack.c.b16 %v2892, %v2884
    %v3005 = vpack.c.b16 %v2893, %v2885
    %v3006 = vpack.c.b16 %v2894, %v2886
    %v3007 = vpack.c.b16 %v2895, %v2887
    %v3008 = vpack.c.b16 %v2896, %v2888
    %v3009 = vpack.c.b16 %v2897, %v2889
    %v3010 = vpack.c.b16 %v2898, %v2890
    %v3011 = vpack.c.b16 %v2907, %v2899
    %v3012 = vpack.c.b16 %v2908, %v2900
    %v3013 = vpack.c.b16 %v2909, %v2901
    %v3014 = vpack.c.b16 %v2910, %v2902
    %v3015 = vpack.c.b16 %v2911, %v2903
    %v3016 = vpack.c.b16 %v2912, %v2904
    %v3017 = vpack.c.b16 %v2913, %v2905
    %v3018 = vpack.c.b16 %v2914, %v2906
    %v3019 = vpack.c.b16 %v2923, %v2915
    %v3020 = vpack.c.b16 %v2924, %v2916
    %v3021 = vpack.c.b16 %v2925, %v2917
    %v3022 = vpack.c.b16 %v2926, %v2918
    %v3023 = vpack.c.b16 %v2927, %v2919
    %v3024 = vpack.c.b16 %v2928, %v2920
    %v3025 = vpack.c.b16 %v2929, %v2921
    %v3026 = vpack.c.b16 %v2930, %v2922
    %v3027 = vpack.c.b16 %v2939, %v2931
    %v3028 = vpack.c.b16 %v2940, %v2932
    %v3029 = vpack.c.b16 %v2941, %v2933
    %v3030 = vpack.c.b16 %v2942, %v2934
    %v3031 = vpack.c.b16 %v2943, %v2935
    %v3032 = vpack.c.b16 %v2944, %v2936
    %v3033 = vpack.c.b16 %v2945, %v2937
    %v3034 = vpack.c.b16 %v2946, %v2938
    %v3035 = vpack.c.b16 %v2955, %v2947
    %v3036 = vpack.c.b16 %v2956, %v2948
    %v3037 = vpack.c.b16 %v2957, %v2949
    %v3038 = vpack.c.b16 %v2958, %v2950
    %v3039 = vpack.c.b16 %v2959, %v2951
    %v3040 = vpack.c.b16 %v2960, %v2952
    %v3041 = vpack.c.b16 %v2961, %v2953
    %v3042 = vpack.c.b16 %v2962, %v2954
    %v3043 = vpack.c.b16 %v2971, %v2963
    %v3044 = vpack.c.b16 %v2972, %v2964
    %v3045 = vpack.c.b16 %v2973, %v2965
    %v3046 = vpack.c.b16 %v2974, %v2966
    %v3047 = vpack.c.b16 %v2975, %v2967
    %v3048 = vpack.c.b16 %v2976, %v2968
    %v3049 = vpack.c.b16 %v2977, %v2969
    %v3050 = vpack.c.b16 %v2978, %v2970
    %v3051 = vpack.c.b16 %v2987, %v2979
    %v3052 = vpack.c.b16 %v2988, %v2980
    %v3053 = vpack.c.b16 %v2989, %v2981
    %v3054 = vpack.c.b16 %v2990, %v2982
    %v3055 = vpack.c.b16 %v2991, %v2983
    %v3056 = vpack.c.b16 %v2992, %v2984
    %v3057 = vpack.c.b16 %v2993, %v2985
    %v3058 = vpack.c.b16 %v2994, %v2986
    %3123 = vmatprep.subr.bf16.mxu0 %v2996
    %3124 = vmatpush1.bf16.msra.mxu0 %v2995
    %3125 = vmatprep.subr.bf16.mxu0 %v3004
    %3126 = vmatpush1.bf16.msra.mxu0 %v3003
    %3127 = vmatprep.subr.bf16.mxu0 %v3012
    %3128 = vmatpush1.bf16.msra.mxu0 %v3011
    %3129 = vmatprep.subr.bf16.mxu0 %v3020
    %3130 = vmatpush1.bf16.msra.mxu0 %v3019
    %3131 = vmatprep.subr.bf16.mxu0 %v3028
    %3132 = vmatpush1.bf16.msra.mxu0 %v3027
    %3133 = vmatprep.subr.bf16.mxu0 %v3036
    %3134 = vmatpush1.bf16.msra.mxu0 %v3035
    %3135 = vmatprep.subr.bf16.mxu0 %v3044
    %3136 = vmatpush1.bf16.msra.mxu0 %v3043
    %3137 = vmatprep.subr.bf16.mxu0 %v3052
    %3138 = vmatpush1.bf16.msra.mxu0 %v3051
    %3139 = vmatprep.subr.bf16.mxu0 0
    %3140 = vmatpush1.bf16.msra.mxu0 0
    %3141 = vmatprep.subr.bf16.mxu0 0
    %3142 = vmatpush1.bf16.msra.mxu0 0
    %3143 = vmatprep.subr.bf16.mxu0 0
    %3144 = vmatpush1.bf16.msra.mxu0 0
    %3145 = vmatprep.subr.bf16.mxu0 0
    %3146 = vmatpush1.bf16.msra.mxu0 0
    %3147 = vmatprep.subr.bf16.mxu0 0
    %3148 = vmatpush1.bf16.msra.mxu0 0
    %3149 = vmatprep.subr.bf16.mxu0 0
    %3150 = vmatpush1.bf16.msra.mxu0 0
    %3151 = vmatprep.subr.bf16.mxu0 0
    %3152 = vmatpush1.bf16.msra.mxu0 0
    %3153 = vmatprep.subr.bf16.mxu0 0
    %3154 = vmatpush1.bf16.msra.mxu0 0
    %3155 = vmatprep.mubr.bf16.mxu0 0
    %3156 = vmatmul.mubr.bf16.gmra.mrb[0].mxu0 %v2737
    %v3157 = vpop.f32.mrb[0].mxu0
    %v3158 = vadd.f32 0.0, %v3157
    %v3159 = vpop.f32.mrb[0].mxu0
    %v3160 = vadd.f32 0.0, %v3159
    %v3161 = vpop.f32.mrb[0].mxu0
    %v3162 = vadd.f32 0.0, %v3161
    %v3163 = vpop.f32.mrb[0].mxu0
    %v3164 = vadd.f32 0.0, %v3163
    %3165 = vdwg.mxu0
    %3166 = vmatprep.subr.bf16.mxu0 %v2998
    %3167 = vmatpush1.bf16.msra.mxu0 %v2997
    %3168 = vmatprep.subr.bf16.mxu0 %v3006
    %3169 = vmatpush1.bf16.msra.mxu0 %v3005
    %3170 = vmatprep.subr.bf16.mxu0 %v3014
    %3171 = vmatpush1.bf16.msra.mxu0 %v3013
    %3172 = vmatprep.subr.bf16.mxu0 %v3022
    %3173 = vmatpush1.bf16.msra.mxu0 %v3021
    %3174 = vmatprep.subr.bf16.mxu0 %v3030
    %3175 = vmatpush1.bf16.msra.mxu0 %v3029
    %3176 = vmatprep.subr.bf16.mxu0 %v3038
    %3177 = vmatpush1.bf16.msra.mxu0 %v3037
    %3178 = vmatprep.subr.bf16.mxu0 %v3046
    %3179 = vmatpush1.bf16.msra.mxu0 %v3045
    %3180 = vmatprep.subr.bf16.mxu0 %v3054
    %3181 = vmatpush1.bf16.msra.mxu0 %v3053
    %3182 = vmatprep.subr.bf16.mxu0 0
    %3183 = vmatpush1.bf16.msra.mxu0 0
    %3184 = vmatprep.subr.bf16.mxu0 0
    %3185 = vmatpush1.bf16.msra.mxu0 0
    %3186 = vmatprep.subr.bf16.mxu0 0
    %3187 = vmatpush1.bf16.msra.mxu0 0
    %3188 = vmatprep.subr.bf16.mxu0 0
    %3189 = vmatpush1.bf16.msra.mxu0 0
    %3190 = vmatprep.subr.bf16.mxu0 0
    %3191 = vmatpush1.bf16.msra.mxu0 0
    %3192 = vmatprep.subr.bf16.mxu0 0
    %3193 = vmatpush1.bf16.msra.mxu0 0
    %3194 = vmatprep.subr.bf16.mxu0 0
    %3195 = vmatpush1.bf16.msra.mxu0 0
    %3196 = vmatprep.subr.bf16.mxu0 0
    %3197 = vmatpush1.bf16.msra.mxu0 0
    %3198 = vmatprep.mubr.bf16.mxu0 0
    %3199 = vmatmul.mubr.bf16.gmra.mrb[0].mxu0 %v2737
    %v3200 = vpop.f32.mrb[0].mxu0
    %v3201 = vadd.f32 0.0, %v3200
    %v3202 = vpop.f32.mrb[0].mxu0
    %v3203 = vadd.f32 0.0, %v3202
    %v3204 = vpop.f32.mrb[0].mxu0
    %v3205 = vadd.f32 0.0, %v3204
    %v3206 = vpop.f32.mrb[0].mxu0
    %v3207 = vadd.f32 0.0, %v3206
    %3208 = vdwg.mxu0
    %3209 = vmatprep.subr.bf16.mxu0 %v3000
    %3210 = vmatpush1.bf16.msra.mxu0 %v2999
    %3211 = vmatprep.subr.bf16.mxu0 %v3008
    %3212 = vmatpush1.bf16.msra.mxu0 %v3007
    %3213 = vmatprep.subr.bf16.mxu0 %v3016
    %3214 = vmatpush1.bf16.msra.mxu0 %v3015
    %3215 = vmatprep.subr.bf16.mxu0 %v3024
    %3216 = vmatpush1.bf16.msra.mxu0 %v3023
    %3217 = vmatprep.subr.bf16.mxu0 %v3032
    %3218 = vmatpush1.bf16.msra.mxu0 %v3031
    %3219 = vmatprep.subr.bf16.mxu0 %v3040
    %3220 = vmatpush1.bf16.msra.mxu0 %v3039
    %3221 = vmatprep.subr.bf16.mxu0 %v3048
    %3222 = vmatpush1.bf16.msra.mxu0 %v3047
    %3223 = vmatprep.subr.bf16.mxu0 %v3056
    %3224 = vmatpush1.bf16.msra.mxu0 %v3055
    %3225 = vmatprep.subr.bf16.mxu0 0
    %3226 = vmatpush1.bf16.msra.mxu0 0
    %3227 = vmatprep.subr.bf16.mxu0 0
    %3228 = vmatpush1.bf16.msra.mxu0 0
    %3229 = vmatprep.subr.bf16.mxu0 0
    %3230 = vmatpush1.bf16.msra.mxu0 0
    %3231 = vmatprep.subr.bf16.mxu0 0
    %3232 = vmatpush1.bf16.msra.mxu0 0
    %3233 = vmatprep.subr.bf16.mxu0 0
    %3234 = vmatpush1.bf16.msra.mxu0 0
    %3235 = vmatprep.subr.bf16.mxu0 0
    %3236 = vmatpush1.bf16.msra.mxu0 0
    %3237 = vmatprep.subr.bf16.mxu0 0
    %3238 = vmatpush1.bf16.msra.mxu0 0
    %3239 = vmatprep.subr.bf16.mxu0 0
    %3240 = vmatpush1.bf16.msra.mxu0 0
    %3241 = vmatprep.mubr.bf16.mxu0 0
    %3242 = vmatmul.mubr.bf16.gmra.mrb[0].mxu0 %v2737
    %v3243 = vpop.f32.mrb[0].mxu0
    %v3244 = vadd.f32 0.0, %v3243
    %v3245 = vpop.f32.mrb[0].mxu0
    %v3246 = vadd.f32 0.0, %v3245
    %v3247 = vpop.f32.mrb[0].mxu0
    %v3248 = vadd.f32 0.0, %v3247
    %v3249 = vpop.f32.mrb[0].mxu0
    %v3250 = vadd.f32 0.0, %v3249
    %3251 = vdwg.mxu0
    %3252 = vmatprep.subr.bf16.mxu0 %v3002
    %3253 = vmatpush1.bf16.msra.mxu0 %v3001
    %3254 = vmatprep.subr.bf16.mxu0 %v3010
    %3255 = vmatpush1.bf16.msra.mxu0 %v3009
    %3256 = vmatprep.subr.bf16.mxu0 %v3018
    %3257 = vmatpush1.bf16.msra.mxu0 %v3017
    %3258 = vmatprep.subr.bf16.mxu0 %v3026
    %3259 = vmatpush1.bf16.msra.mxu0 %v3025
    %3260 = vmatprep.subr.bf16.mxu0 %v3034
    %3261 = vmatpush1.bf16.msra.mxu0 %v3033
    %3262 = vmatprep.subr.bf16.mxu0 %v3042
    %3263 = vmatpush1.bf16.msra.mxu0 %v3041
    %3264 = vmatprep.subr.bf16.mxu0 %v3050
    %3265 = vmatpush1.bf16.msra.mxu0 %v3049
    %3266 = vmatprep.subr.bf16.mxu0 %v3058
    %3267 = vmatpush1.bf16.msra.mxu0 %v3057
    %3268 = vmatprep.subr.bf16.mxu0 0
    %3269 = vmatpush1.bf16.msra.mxu0 0
    %3270 = vmatprep.subr.bf16.mxu0 0
    %3271 = vmatpush1.bf16.msra.mxu0 0
    %3272 = vmatprep.subr.bf16.mxu0 0
    %3273 = vmatpush1.bf16.msra.mxu0 0
    %3274 = vmatprep.subr.bf16.mxu0 0
    %3275 = vmatpush1.bf16.msra.mxu0 0
    %3276 = vmatprep.subr.bf16.mxu0 0
    %3277 = vmatpush1.bf16.msra.mxu0 0
    %3278 = vmatprep.subr.bf16.mxu0 0
    %3279 = vmatpush1.bf16.msra.mxu0 0
    %3280 = vmatprep.subr.bf16.mxu0 0
    %3281 = vmatpush1.bf16.msra.mxu0 0
    %3282 = vmatprep.subr.bf16.mxu0 0
    %3283 = vmatpush1.bf16.msra.mxu0 0
    %3284 = vmatprep.mubr.bf16.mxu0 0
    %3285 = vmatmul.mubr.bf16.gmra.mrb[0].mxu0 %v2737
    %v3286 = vpop.f32.mrb[0].mxu0
    %v3287 = vadd.f32 0.0, %v3286
    %v3288 = vpop.f32.mrb[0].mxu0
    %v3289 = vadd.f32 0.0, %v3288
    %v3290 = vpop.f32.mrb[0].mxu0
    %v3291 = vadd.f32 0.0, %v3290
    %v3292 = vpop.f32.mrb[0].mxu0
    %v3293 = vadd.f32 0.0, %v3292
    %3294 = vdwg.mxu0
    %v3295 = vadd.f32 %v2665, %v3158
    %v3296 = vadd.f32 %v2666, %v3160
    %v3297 = vadd.f32 %v2667, %v3201
    %v3298 = vadd.f32 %v2668, %v3203
    %v3299 = vadd.f32 %v2669, %v3244
    %v3300 = vadd.f32 %v2670, %v3246
    %v3301 = vadd.f32 %v2671, %v3287
    %v3302 = vadd.f32 %v2672, %v3289
    %v3303 = vadd.f32 %v2673, %v3162
    %v3304 = vadd.f32 %v2674, %v3164
    %v3305 = vadd.f32 %v2675, %v3205
    %v3306 = vadd.f32 %v2676, %v3207
    %v3307 = vadd.f32 %v2677, %v3248
    %v3308 = vadd.f32 %v2678, %v3250
    %v3309 = vadd.f32 %v2679, %v3291
    %v3310 = vadd.f32 %v2680, %v3293
    %s3311 = scalar_lea.vmem %s0, 40
    %v3312 = vld [vmem:[%s3311] sm:$0xf]
    %v3313 = vld [vmem:[%s3311 + $0x4] sm:$0xf]
    %v3316 = vunpack.c.l.b16 %v3312
    %v3317 = vunpack.c.l.b16 %v3313
    %v3318 = vpack.c.b16 %v3317, %v3316
    %3320 = vmatprep.subr.bf16.mxu0 0
    %3321 = vmatpush1.bf16.msra.mxu0 %v187
    %3322 = vmatprep.subr.bf16.mxu0 0
    %3323 = vmatpush1.bf16.msra.mxu0 %v188
    %3324 = vmatprep.subr.bf16.mxu0 0
    %3325 = vmatpush1.bf16.msra.mxu0 %v189
    %3326 = vmatprep.subr.bf16.mxu0 0
    %3327 = vmatpush1.bf16.msra.mxu0 %v190
    %3328 = vmatprep.subr.bf16.mxu0 0
    %3329 = vmatpush1.bf16.msra.mxu0 %v191
    %3330 = vmatprep.subr.bf16.mxu0 0
    %3331 = vmatpush1.bf16.msra.mxu0 %v192
    %3332 = vmatprep.subr.bf16.mxu0 0
    %3333 = vmatpush1.bf16.msra.mxu0 %v193
    %3334 = vmatprep.subr.bf16.mxu0 0
    %3335 = vmatpush1.bf16.msra.mxu0 %v194
    %3336 = vmatprep.subr.bf16.mxu0 0
    %3337 = vmatpush1.bf16.msra.mxu0 0
    %3338 = vmatprep.subr.bf16.mxu0 0
    %3339 = vmatpush1.bf16.msra.mxu0 0
    %3340 = vmatprep.subr.bf16.mxu0 0
    %3341 = vmatpush1.bf16.msra.mxu0 0
    %3342 = vmatprep.subr.bf16.mxu0 0
    %3343 = vmatpush1.bf16.msra.mxu0 0
    %3344 = vmatprep.subr.bf16.mxu0 0
    %3345 = vmatpush1.bf16.msra.mxu0 0
    %3346 = vmatprep.subr.bf16.mxu0 0
    %3347 = vmatpush1.bf16.msra.mxu0 0
    %3348 = vmatprep.subr.bf16.mxu0 0
    %3349 = vmatpush1.bf16.msra.mxu0 0
    %3350 = vmatprep.subr.bf16.mxu0 0
    %3351 = vmatpush1.bf16.msra.mxu0 0
    %3352 = vmatprep.mubr.bf16.mxu0 0
    %3353 = vmatmul.mubr.bf16.gmra.mrb[0].mxu0 %v3318
    %v3354 = vpop.f32.mrb[0].mxu0
    %v3355 = vadd.f32 0.0, %v3354
    %v3356 = vpop.f32.mrb[0].mxu0
    %v3357 = vpop.f32.mrb[0].mxu0
    %v3358 = vadd.f32 0.0, %v3357
    %v3359 = vpop.f32.mrb[0].mxu0
    %3360 = vdwg.mxu0
    %v3361 = vmul.f32 %v3355, %v138
    %v3362 = vmul.f32 %v3358, %v138
    %v3363 = vadd.f32 %v3361, %v145
    %v3364 = vadd.f32 %v3362, %v145
    %v3365 = vmax.f32 %v3363, 0.0
    %v3366 = vmax.f32 %v3364, 0.0
    %v3367 = vpack.c.bf16 %v3366, %v3365
    %s3368 = scalar_lea.vmem [#allocation7], 2560
    %v3369 = vld [vmem:[%s3368] sm:$0xff]
    %v3370 = vld [vmem:[%s3368 + $0x8] sm:$0xff]
    %v3371 = vld [vmem:[%s3368 + $0x10] sm:$0xff]
    %v3372 = vld [vmem:[%s3368 + $0x18] sm:$0xff]
    %v3373 = vld [vmem:[%s3368 + $0x20] sm:$0xff]
    %v3374 = vld [vmem:[%s3368 + $0x28] sm:$0xff]
    %v3375 = vld [vmem:[%s3368 + $0x30] sm:$0xff]
    %v3376 = vld [vmem:[%s3368 + $0x38] sm:$0xff]
    %v3377 = vld [vmem:[%s3368 + $0x40] sm:$0xff]
    %v3378 = vld [vmem:[%s3368 + $0x48] sm:$0xff]
    %v3379 = vld [vmem:[%s3368 + $0x50] sm:$0xff]
    %v3380 = vld [vmem:[%s3368 + $0x58] sm:$0xff]
    %v3381 = vld [vmem:[%s3368 + $0x60] sm:$0xff]
    %v3382 = vld [vmem:[%s3368 + $0x68] sm:$0xff]
    %v3383 = vld [vmem:[%s3368 + $0x70] sm:$0xff]
    %v3384 = vld [vmem:[%s3368 + $0x78] sm:$0xff]
    %v3385 = vld [vmem:[%s3368 + $0x80] sm:$0xff]
    %v3386 = vld [vmem:[%s3368 + $0x88] sm:$0xff]
    %v3387 = vld [vmem:[%s3368 + $0x90] sm:$0xff]
    %v3388 = vld [vmem:[%s3368 + $0x98] sm:$0xff]
    %v3389 = vld [vmem:[%s3368 + $0xa0] sm:$0xff]
    %v3390 = vld [vmem:[%s3368 + $0xa8] sm:$0xff]
    %v3391 = vld [vmem:[%s3368 + $0xb0] sm:$0xff]
    %v3392 = vld [vmem:[%s3368 + $0xb8] sm:$0xff]
    %v3393 = vld [vmem:[%s3368 + $0xc0] sm:$0xff]
    %v3394 = vld [vmem:[%s3368 + $0xc8] sm:$0xff]
    %v3395 = vld [vmem:[%s3368 + $0xd0] sm:$0xff]
    %v3396 = vld [vmem:[%s3368 + $0xd8] sm:$0xff]
    %v3397 = vld [vmem:[%s3368 + $0xe0] sm:$0xff]
    %v3398 = vld [vmem:[%s3368 + $0xe8] sm:$0xff]
    %v3399 = vld [vmem:[%s3368 + $0xf0] sm:$0xff]
    %v3400 = vld [vmem:[%s3368 + $0xf8] sm:$0xff]
    %v3401 = vld [vmem:[%s3368 + $0x100] sm:$0xff]
    %v3402 = vld [vmem:[%s3368 + $0x108] sm:$0xff]
    %v3403 = vld [vmem:[%s3368 + $0x110] sm:$0xff]
    %v3404 = vld [vmem:[%s3368 + $0x118] sm:$0xff]
    %v3405 = vld [vmem:[%s3368 + $0x120] sm:$0xff]
    %v3406 = vld [vmem:[%s3368 + $0x128] sm:$0xff]
    %v3407 = vld [vmem:[%s3368 + $0x130] sm:$0xff]
    %v3408 = vld [vmem:[%s3368 + $0x138] sm:$0xff]
    %v3409 = vld [vmem:[%s3368 + $0x140] sm:$0xff]
    %v3410 = vld [vmem:[%s3368 + $0x148] sm:$0xff]
    %v3411 = vld [vmem:[%s3368 + $0x150] sm:$0xff]
    %v3412 = vld [vmem:[%s3368 + $0x158] sm:$0xff]
    %v3413 = vld [vmem:[%s3368 + $0x160] sm:$0xff]
    %v3414 = vld [vmem:[%s3368 + $0x168] sm:$0xff]
    %v3415 = vld [vmem:[%s3368 + $0x170] sm:$0xff]
    %v3416 = vld [vmem:[%s3368 + $0x178] sm:$0xff]
    %v3417 = vld [vmem:[%s3368 + $0x180] sm:$0xff]
    %v3418 = vld [vmem:[%s3368 + $0x188] sm:$0xff]
    %v3419 = vld [vmem:[%s3368 + $0x190] sm:$0xff]
    %v3420 = vld [vmem:[%s3368 + $0x198] sm:$0xff]
    %v3421 = vld [vmem:[%s3368 + $0x1a0] sm:$0xff]
    %v3422 = vld [vmem:[%s3368 + $0x1a8] sm:$0xff]
    %v3423 = vld [vmem:[%s3368 + $0x1b0] sm:$0xff]
    %v3424 = vld [vmem:[%s3368 + $0x1b8] sm:$0xff]
    %v3425 = vld [vmem:[%s3368 + $0x1c0] sm:$0xff]
    %v3426 = vld [vmem:[%s3368 + $0x1c8] sm:$0xff]
    %v3427 = vld [vmem:[%s3368 + $0x1d0] sm:$0xff]
    %v3428 = vld [vmem:[%s3368 + $0x1d8] sm:$0xff]
    %v3429 = vld [vmem:[%s3368 + $0x1e0] sm:$0xff]
    %v3430 = vld [vmem:[%s3368 + $0x1e8] sm:$0xff]
    %v3431 = vld [vmem:[%s3368 + $0x1f0] sm:$0xff]
    %v3432 = vld [vmem:[%s3368 + $0x1f8] sm:$0xff]
    %v3497 = vunpack.c.l.b16 %v3369
    %v3498 = vunpack.c.h.b16 %v3369
    %v3499 = vunpack.c.l.b16 %v3370
    %v3500 = vunpack.c.h.b16 %v3370
    %v3501 = vunpack.c.l.b16 %v3371
    %v3502 = vunpack.c.h.b16 %v3371
    %v3503 = vunpack.c.l.b16 %v3372
    %v3504 = vunpack.c.h.b16 %v3372
    %v3505 = vunpack.c.l.b16 %v3373
    %v3506 = vunpack.c.h.b16 %v3373
    %v3507 = vunpack.c.l.b16 %v3374
    %v3508 = vunpack.c.h.b16 %v3374
    %v3509 = vunpack.c.l.b16 %v3375
    %v3510 = vunpack.c.h.b16 %v3375
    %v3511 = vunpack.c.l.b16 %v3376
    %v3512 = vunpack.c.h.b16 %v3376
    %v3513 = vunpack.c.l.b16 %v3377
    %v3514 = vunpack.c.h.b16 %v3377
    %v3515 = vunpack.c.l.b16 %v3378
    %v3516 = vunpack.c.h.b16 %v3378
    %v3517 = vunpack.c.l.b16 %v3379
    %v3518 = vunpack.c.h.b16 %v3379
    %v3519 = vunpack.c.l.b16 %v3380
    %v3520 = vunpack.c.h.b16 %v3380
    %v3521 = vunpack.c.l.b16 %v3381
    %v3522 = vunpack.c.h.b16 %v3381
    %v3523 = vunpack.c.l.b16 %v3382
    %v3524 = vunpack.c.h.b16 %v3382
    %v3525 = vunpack.c.l.b16 %v3383
    %v3526 = vunpack.c.h.b16 %v3383
    %v3527 = vunpack.c.l.b16 %v3384
    %v3528 = vunpack.c.h.b16 %v3384
    %v3529 = vunpack.c.l.b16 %v3385
    %v3530 = vunpack.c.h.b16 %v3385
    %v3531 = vunpack.c.l.b16 %v3386
    %v3532 = vunpack.c.h.b16 %v3386
    %v3533 = vunpack.c.l.b16 %v3387
    %v3534 = vunpack.c.h.b16 %v3387
    %v3535 = vunpack.c.l.b16 %v3388
    %v3536 = vunpack.c.h.b16 %v3388
    %v3537 = vunpack.c.l.b16 %v3389
    %v3538 = vunpack.c.h.b16 %v3389
    %v3539 = vunpack.c.l.b16 %v3390
    %v3540 = vunpack.c.h.b16 %v3390
    %v3541 = vunpack.c.l.b16 %v3391
    %v3542 = vunpack.c.h.b16 %v3391
    %v3543 = vunpack.c.l.b16 %v3392
    %v3544 = vunpack.c.h.b16 %v3392
    %v3545 = vunpack.c.l.b16 %v3393
    %v3546 = vunpack.c.h.b16 %v3393
    %v3547 = vunpack.c.l.b16 %v3394
    %v3548 = vunpack.c.h.b16 %v3394
    %v3549 = vunpack.c.l.b16 %v3395
    %v3550 = vunpack.c.h.b16 %v3395
    %v3551 = vunpack.c.l.b16 %v3396
    %v3552 = vunpack.c.h.b16 %v3396
    %v3553 = vunpack.c.l.b16 %v3397
    %v3554 = vunpack.c.h.b16 %v3397
    %v3555 = vunpack.c.l.b16 %v3398
    %v3556 = vunpack.c.h.b16 %v3398
    %v3557 = vunpack.c.l.b16 %v3399
    %v3558 = vunpack.c.h.b16 %v3399
    %v3559 = vunpack.c.l.b16 %v3400
    %v3560 = vunpack.c.h.b16 %v3400
    %v3561 = vunpack.c.l.b16 %v3401
    %v3562 = vunpack.c.h.b16 %v3401
    %v3563 = vunpack.c.l.b16 %v3402
    %v3564 = vunpack.c.h.b16 %v3402
    %v3565 = vunpack.c.l.b16 %v3403
    %v3566 = vunpack.c.h.b16 %v3403
    %v3567 = vunpack.c.l.b16 %v3404
    %v3568 = vunpack.c.h.b16 %v3404
    %v3569 = vunpack.c.l.b16 %v3405
    %v3570 = vunpack.c.h.b16 %v3405
    %v3571 = vunpack.c.l.b16 %v3406
    %v3572 = vunpack.c.h.b16 %v3406
    %v3573 = vunpack.c.l.b16 %v3407
    %v3574 = vunpack.c.h.b16 %v3407
    %v3575 = vunpack.c.l.b16 %v3408
    %v3576 = vunpack.c.h.b16 %v3408
    %v3577 = vunpack.c.l.b16 %v3409
    %v3578 = vunpack.c.h.b16 %v3409
    %v3579 = vunpack.c.l.b16 %v3410
    %v3580 = vunpack.c.h.b16 %v3410
    %v3581 = vunpack.c.l.b16 %v3411
    %v3582 = vunpack.c.h.b16 %v3411
    %v3583 = vunpack.c.l.b16 %v3412
    %v3584 = vunpack.c.h.b16 %v3412
    %v3585 = vunpack.c.l.b16 %v3413
    %v3586 = vunpack.c.h.b16 %v3413
    %v3587 = vunpack.c.l.b16 %v3414
    %v3588 = vunpack.c.h.b16 %v3414
    %v3589 = vunpack.c.l.b16 %v3415
    %v3590 = vunpack.c.h.b16 %v3415
    %v3591 = vunpack.c.l.b16 %v3416
    %v3592 = vunpack.c.h.b16 %v3416
    %v3593 = vunpack.c.l.b16 %v3417
    %v3594 = vunpack.c.h.b16 %v3417
    %v3595 = vunpack.c.l.b16 %v3418
    %v3596 = vunpack.c.h.b16 %v3418
    %v3597 = vunpack.c.l.b16 %v3419
    %v3598 = vunpack.c.h.b16 %v3419
    %v3599 = vunpack.c.l.b16 %v3420
    %v3600 = vunpack.c.h.b16 %v3420
    %v3601 = vunpack.c.l.b16 %v3421
    %v3602 = vunpack.c.h.b16 %v3421
    %v3603 = vunpack.c.l.b16 %v3422
    %v3604 = vunpack.c.h.b16 %v3422
    %v3605 = vunpack.c.l.b16 %v3423
    %v3606 = vunpack.c.h.b16 %v3423
    %v3607 = vunpack.c.l.b16 %v3424
    %v3608 = vunpack.c.h.b16 %v3424
    %v3609 = vunpack.c.l.b16 %v3425
    %v3610 = vunpack.c.h.b16 %v3425
    %v3611 = vunpack.c.l.b16 %v3426
    %v3612 = vunpack.c.h.b16 %v3426
    %v3613 = vunpack.c.l.b16 %v3427
    %v3614 = vunpack.c.h.b16 %v3427
    %v3615 = vunpack.c.l.b16 %v3428
    %v3616 = vunpack.c.h.b16 %v3428
    %v3617 = vunpack.c.l.b16 %v3429
    %v3618 = vunpack.c.h.b16 %v3429
    %v3619 = vunpack.c.l.b16 %v3430
    %v3620 = vunpack.c.h.b16 %v3430
    %v3621 = vunpack.c.l.b16 %v3431
    %v3622 = vunpack.c.h.b16 %v3431
    %v3623 = vunpack.c.l.b16 %v3432
    %v3624 = vunpack.c.h.b16 %v3432
    %v3625 = vpack.c.b16 %v3505, %v3497
    %v3626 = vpack.c.b16 %v3506, %v3498
    %v3627 = vpack.c.b16 %v3507, %v3499
    %v3628 = vpack.c.b16 %v3508, %v3500
    %v3629 = vpack.c.b16 %v3509, %v3501
    %v3630 = vpack.c.b16 %v3510, %v3502
    %v3631 = vpack.c.b16 %v3511, %v3503
    %v3632 = vpack.c.b16 %v3512, %v3504
    %v3633 = vpack.c.b16 %v3521, %v3513
    %v3634 = vpack.c.b16 %v3522, %v3514
    %v3635 = vpack.c.b16 %v3523, %v3515
    %v3636 = vpack.c.b16 %v3524, %v3516
    %v3637 = vpack.c.b16 %v3525, %v3517
    %v3638 = vpack.c.b16 %v3526, %v3518
    %v3639 = vpack.c.b16 %v3527, %v3519
    %v3640 = vpack.c.b16 %v3528, %v3520
    %v3641 = vpack.c.b16 %v3537, %v3529
    %v3642 = vpack.c.b16 %v3538, %v3530
    %v3643 = vpack.c.b16 %v3539, %v3531
    %v3644 = vpack.c.b16 %v3540, %v3532
    %v3645 = vpack.c.b16 %v3541, %v3533
    %v3646 = vpack.c.b16 %v3542, %v3534
    %v3647 = vpack.c.b16 %v3543, %v3535
    %v3648 = vpack.c.b16 %v3544, %v3536
    %v3649 = vpack.c.b16 %v3553, %v3545
    %v3650 = vpack.c.b16 %v3554, %v3546
    %v3651 = vpack.c.b16 %v3555, %v3547
    %v3652 = vpack.c.b16 %v3556, %v3548
    %v3653 = vpack.c.b16 %v3557, %v3549
    %v3654 = vpack.c.b16 %v3558, %v3550
    %v3655 = vpack.c.b16 %v3559, %v3551
    %v3656 = vpack.c.b16 %v3560, %v3552
    %v3657 = vpack.c.b16 %v3569, %v3561
    %v3658 = vpack.c.b16 %v3570, %v3562
    %v3659 = vpack.c.b16 %v3571, %v3563
    %v3660 = vpack.c.b16 %v3572, %v3564
    %v3661 = vpack.c.b16 %v3573, %v3565
    %v3662 = vpack.c.b16 %v3574, %v3566
    %v3663 = vpack.c.b16 %v3575, %v3567
    %v3664 = vpack.c.b16 %v3576, %v3568
    %v3665 = vpack.c.b16 %v3585, %v3577
    %v3666 = vpack.c.b16 %v3586, %v3578
    %v3667 = vpack.c.b16 %v3587, %v3579
    %v3668 = vpack.c.b16 %v3588, %v3580
    %v3669 = vpack.c.b16 %v3589, %v3581
    %v3670 = vpack.c.b16 %v3590, %v3582
    %v3671 = vpack.c.b16 %v3591, %v3583
    %v3672 = vpack.c.b16 %v3592, %v3584
    %v3673 = vpack.c.b16 %v3601, %v3593
    %v3674 = vpack.c.b16 %v3602, %v3594
    %v3675 = vpack.c.b16 %v3603, %v3595
    %v3676 = vpack.c.b16 %v3604, %v3596
    %v3677 = vpack.c.b16 %v3605, %v3597
    %v3678 = vpack.c.b16 %v3606, %v3598
    %v3679 = vpack.c.b16 %v3607, %v3599
    %v3680 = vpack.c.b16 %v3608, %v3600
    %v3681 = vpack.c.b16 %v3617, %v3609
    %v3682 = vpack.c.b16 %v3618, %v3610
    %v3683 = vpack.c.b16 %v3619, %v3611
    %v3684 = vpack.c.b16 %v3620, %v3612
    %v3685 = vpack.c.b16 %v3621, %v3613
    %v3686 = vpack.c.b16 %v3622, %v3614
    %v3687 = vpack.c.b16 %v3623, %v3615
    %v3688 = vpack.c.b16 %v3624, %v3616
    %3753 = vmatprep.subr.bf16.mxu0 %v3626
    %3754 = vmatpush1.bf16.msra.mxu0 %v3625
    %3755 = vmatprep.subr.bf16.mxu0 %v3634
    %3756 = vmatpush1.bf16.msra.mxu0 %v3633
    %3757 = vmatprep.subr.bf16.mxu0 %v3642
    %3758 = vmatpush1.bf16.msra.mxu0 %v3641
    %3759 = vmatprep.subr.bf16.mxu0 %v3650
    %3760 = vmatpush1.bf16.msra.mxu0 %v3649
    %3761 = vmatprep.subr.bf16.mxu0 %v3658
    %3762 = vmatpush1.bf16.msra.mxu0 %v3657
    %3763 = vmatprep.subr.bf16.mxu0 %v3666
    %3764 = vmatpush1.bf16.msra.mxu0 %v3665
    %3765 = vmatprep.subr.bf16.mxu0 %v3674
    %3766 = vmatpush1.bf16.msra.mxu0 %v3673
    %3767 = vmatprep.subr.bf16.mxu0 %v3682
    %3768 = vmatpush1.bf16.msra.mxu0 %v3681
    %3769 = vmatprep.subr.bf16.mxu0 0
    %3770 = vmatpush1.bf16.msra.mxu0 0
    %3771 = vmatprep.subr.bf16.mxu0 0
    %3772 = vmatpush1.bf16.msra.mxu0 0
    %3773 = vmatprep.subr.bf16.mxu0 0
    %3774 = vmatpush1.bf16.msra.mxu0 0
    %3775 = vmatprep.subr.bf16.mxu0 0
    %3776 = vmatpush1.bf16.msra.mxu0 0
    %3777 = vmatprep.subr.bf16.mxu0 0
    %3778 = vmatpush1.bf16.msra.mxu0 0
    %3779 = vmatprep.subr.bf16.mxu0 0
    %3780 = vmatpush1.bf16.msra.mxu0 0
    %3781 = vmatprep.subr.bf16.mxu0 0
    %3782 = vmatpush1.bf16.msra.mxu0 0
    %3783 = vmatprep.subr.bf16.mxu0 0
    %3784 = vmatpush1.bf16.msra.mxu0 0
    %3785 = vmatprep.mubr.bf16.mxu0 0
    %3786 = vmatmul.mubr.bf16.gmra.mrb[0].mxu0 %v3367
    %v3787 = vpop.f32.mrb[0].mxu0
    %v3788 = vadd.f32 0.0, %v3787
    %v3789 = vpop.f32.mrb[0].mxu0
    %v3790 = vadd.f32 0.0, %v3789
    %v3791 = vpop.f32.mrb[0].mxu0
    %v3792 = vadd.f32 0.0, %v3791
    %v3793 = vpop.f32.mrb[0].mxu0
    %v3794 = vadd.f32 0.0, %v3793
    %3795 = vdwg.mxu0
    %3796 = vmatprep.subr.bf16.mxu0 %v3628
    %3797 = vmatpush1.bf16.msra.mxu0 %v3627
    %3798 = vmatprep.subr.bf16.mxu0 %v3636
    %3799 = vmatpush1.bf16.msra.mxu0 %v3635
    %3800 = vmatprep.subr.bf16.mxu0 %v3644
    %3801 = vmatpush1.bf16.msra.mxu0 %v3643
    %3802 = vmatprep.subr.bf16.mxu0 %v3652
    %3803 = vmatpush1.bf16.msra.mxu0 %v3651
    %3804 = vmatprep.subr.bf16.mxu0 %v3660
    %3805 = vmatpush1.bf16.msra.mxu0 %v3659
    %3806 = vmatprep.subr.bf16.mxu0 %v3668
    %3807 = vmatpush1.bf16.msra.mxu0 %v3667
    %3808 = vmatprep.subr.bf16.mxu0 %v3676
    %3809 = vmatpush1.bf16.msra.mxu0 %v3675
    %3810 = vmatprep.subr.bf16.mxu0 %v3684
    %3811 = vmatpush1.bf16.msra.mxu0 %v3683
    %3812 = vmatprep.subr.bf16.mxu0 0
    %3813 = vmatpush1.bf16.msra.mxu0 0
    %3814 = vmatprep.subr.bf16.mxu0 0
    %3815 = vmatpush1.bf16.msra.mxu0 0
    %3816 = vmatprep.subr.bf16.mxu0 0
    %3817 = vmatpush1.bf16.msra.mxu0 0
    %3818 = vmatprep.subr.bf16.mxu0 0
    %3819 = vmatpush1.bf16.msra.mxu0 0
    %3820 = vmatprep.subr.bf16.mxu0 0
    %3821 = vmatpush1.bf16.msra.mxu0 0
    %3822 = vmatprep.subr.bf16.mxu0 0
    %3823 = vmatpush1.bf16.msra.mxu0 0
    %3824 = vmatprep.subr.bf16.mxu0 0
    %3825 = vmatpush1.bf16.msra.mxu0 0
    %3826 = vmatprep.subr.bf16.mxu0 0
    %3827 = vmatpush1.bf16.msra.mxu0 0
    %3828 = vmatprep.mubr.bf16.mxu0 0
    %3829 = vmatmul.mubr.bf16.gmra.mrb[0].mxu0 %v3367
    %v3830 = vpop.f32.mrb[0].mxu0
    %v3831 = vadd.f32 0.0, %v3830
    %v3832 = vpop.f32.mrb[0].mxu0
    %v3833 = vadd.f32 0.0, %v3832
    %v3834 = vpop.f32.mrb[0].mxu0
    %v3835 = vadd.f32 0.0, %v3834
    %v3836 = vpop.f32.mrb[0].mxu0
    %v3837 = vadd.f32 0.0, %v3836
    %3838 = vdwg.mxu0
    %3839 = vmatprep.subr.bf16.mxu0 %v3630
    %3840 = vmatpush1.bf16.msra.mxu0 %v3629
    %3841 = vmatprep.subr.bf16.mxu0 %v3638
    %3842 = vmatpush1.bf16.msra.mxu0 %v3637
    %3843 = vmatprep.subr.bf16.mxu0 %v3646
    %3844 = vmatpush1.bf16.msra.mxu0 %v3645
    %3845 = vmatprep.subr.bf16.mxu0 %v3654
    %3846 = vmatpush1.bf16.msra.mxu0 %v3653
    %3847 = vmatprep.subr.bf16.mxu0 %v3662
    %3848 = vmatpush1.bf16.msra.mxu0 %v3661
    %3849 = vmatprep.subr.bf16.mxu0 %v3670
    %3850 = vmatpush1.bf16.msra.mxu0 %v3669
    %3851 = vmatprep.subr.bf16.mxu0 %v3678
    %3852 = vmatpush1.bf16.msra.mxu0 %v3677
    %3853 = vmatprep.subr.bf16.mxu0 %v3686
    %3854 = vmatpush1.bf16.msra.mxu0 %v3685
    %3855 = vmatprep.subr.bf16.mxu0 0
    %3856 = vmatpush1.bf16.msra.mxu0 0
    %3857 = vmatprep.subr.bf16.mxu0 0
    %3858 = vmatpush1.bf16.msra.mxu0 0
    %3859 = vmatprep.subr.bf16.mxu0 0
    %3860 = vmatpush1.bf16.msra.mxu0 0
    %3861 = vmatprep.subr.bf16.mxu0 0
    %3862 = vmatpush1.bf16.msra.mxu0 0
    %3863 = vmatprep.subr.bf16.mxu0 0
    %3864 = vmatpush1.bf16.msra.mxu0 0
    %3865 = vmatprep.subr.bf16.mxu0 0
    %3866 = vmatpush1.bf16.msra.mxu0 0
    %3867 = vmatprep.subr.bf16.mxu0 0
    %3868 = vmatpush1.bf16.msra.mxu0 0
    %3869 = vmatprep.subr.bf16.mxu0 0
    %3870 = vmatpush1.bf16.msra.mxu0 0
    %3871 = vmatprep.mubr.bf16.mxu0 0
    %3872 = vmatmul.mubr.bf16.gmra.mrb[0].mxu0 %v3367
    %v3873 = vpop.f32.mrb[0].mxu0
    %v3874 = vadd.f32 0.0, %v3873
    %v3875 = vpop.f32.mrb[0].mxu0
    %v3876 = vadd.f32 0.0, %v3875
    %v3877 = vpop.f32.mrb[0].mxu0
    %v3878 = vadd.f32 0.0, %v3877
    %v3879 = vpop.f32.mrb[0].mxu0
    %v3880 = vadd.f32 0.0, %v3879
    %3881 = vdwg.mxu0
    %3882 = vmatprep.subr.bf16.mxu0 %v3632
    %3883 = vmatpush1.bf16.msra.mxu0 %v3631
    %3884 = vmatprep.subr.bf16.mxu0 %v3640
    %3885 = vmatpush1.bf16.msra.mxu0 %v3639
    %3886 = vmatprep.subr.bf16.mxu0 %v3648
    %3887 = vmatpush1.bf16.msra.mxu0 %v3647
    %3888 = vmatprep.subr.bf16.mxu0 %v3656
    %3889 = vmatpush1.bf16.msra.mxu0 %v3655
    %3890 = vmatprep.subr.bf16.mxu0 %v3664
    %3891 = vmatpush1.bf16.msra.mxu0 %v3663
    %3892 = vmatprep.subr.bf16.mxu0 %v3672
    %3893 = vmatpush1.bf16.msra.mxu0 %v3671
    %3894 = vmatprep.subr.bf16.mxu0 %v3680
    %3895 = vmatpush1.bf16.msra.mxu0 %v3679
    %3896 = vmatprep.subr.bf16.mxu0 %v3688
    %3897 = vmatpush1.bf16.msra.mxu0 %v3687
    %3898 = vmatprep.subr.bf16.mxu0 0
    %3899 = vmatpush1.bf16.msra.mxu0 0
    %3900 = vmatprep.subr.bf16.mxu0 0
    %3901 = vmatpush1.bf16.msra.mxu0 0
    %3902 = vmatprep.subr.bf16.mxu0 0
    %3903 = vmatpush1.bf16.msra.mxu0 0
    %3904 = vmatprep.subr.bf16.mxu0 0
    %3905 = vmatpush1.bf16.msra.mxu0 0
    %3906 = vmatprep.subr.bf16.mxu0 0
    %3907 = vmatpush1.bf16.msra.mxu0 0
    %3908 = vmatprep.subr.bf16.mxu0 0
    %3909 = vmatpush1.bf16.msra.mxu0 0
    %3910 = vmatprep.subr.bf16.mxu0 0
    %3911 = vmatpush1.bf16.msra.mxu0 0
    %3912 = vmatprep.subr.bf16.mxu0 0
    %3913 = vmatpush1.bf16.msra.mxu0 0
    %3914 = vmatprep.mubr.bf16.mxu0 0
    %3915 = vmatmul.mubr.bf16.gmra.mrb[0].mxu0 %v3367
    %v3916 = vpop.f32.mrb[0].mxu0
    %v3917 = vadd.f32 0.0, %v3916
    %v3918 = vpop.f32.mrb[0].mxu0
    %v3919 = vadd.f32 0.0, %v3918
    %v3920 = vpop.f32.mrb[0].mxu0
    %v3921 = vadd.f32 0.0, %v3920
    %v3922 = vpop.f32.mrb[0].mxu0
    %v3923 = vadd.f32 0.0, %v3922
    %3924 = vdwg.mxu0
    %v3925 = vadd.f32 %v3295, %v3788
    %v3926 = vadd.f32 %v3296, %v3790
    %v3927 = vadd.f32 %v3297, %v3831
    %v3928 = vadd.f32 %v3298, %v3833
    %v3929 = vadd.f32 %v3299, %v3874
    %v3930 = vadd.f32 %v3300, %v3876
    %v3931 = vadd.f32 %v3301, %v3917
    %v3932 = vadd.f32 %v3302, %v3919
    %v3933 = vadd.f32 %v3303, %v3792
    %v3934 = vadd.f32 %v3304, %v3794
    %v3935 = vadd.f32 %v3305, %v3835
    %v3936 = vadd.f32 %v3306, %v3837
    %v3937 = vadd.f32 %v3307, %v3878
    %v3938 = vadd.f32 %v3308, %v3880
    %v3939 = vadd.f32 %v3309, %v3921
    %v3940 = vadd.f32 %v3310, %v3923
    %s3941 = scalar_lea.vmem %s0, 48
    %v3942 = vld [vmem:[%s3941] sm:$0xf]
    %v3943 = vld [vmem:[%s3941 + $0x4] sm:$0xf]
    %v3946 = vunpack.c.l.b16 %v3942
    %v3947 = vunpack.c.l.b16 %v3943
    %v3948 = vpack.c.b16 %v3947, %v3946
    %3950 = vmatprep.subr.bf16.mxu0 0
    %3951 = vmatpush1.bf16.msra.mxu0 %v187
    %3952 = vmatprep.subr.bf16.mxu0 0
    %3953 = vmatpush1.bf16.msra.mxu0 %v188
    %3954 = vmatprep.subr.bf16.mxu0 0
    %3955 = vmatpush1.bf16.msra.mxu0 %v189
    %3956 = vmatprep.subr.bf16.mxu0 0
    %3957 = vmatpush1.bf16.msra.mxu0 %v190
    %3958 = vmatprep.subr.bf16.mxu0 0
    %3959 = vmatpush1.bf16.msra.mxu0 %v191
    %3960 = vmatprep.subr.bf16.mxu0 0
    %3961 = vmatpush1.bf16.msra.mxu0 %v192
    %3962 = vmatprep.subr.bf16.mxu0 0
    %3963 = vmatpush1.bf16.msra.mxu0 %v193
    %3964 = vmatprep.subr.bf16.mxu0 0
    %3965 = vmatpush1.bf16.msra.mxu0 %v194
    %3966 = vmatprep.subr.bf16.mxu0 0
    %3967 = vmatpush1.bf16.msra.mxu0 0
    %3968 = vmatprep.subr.bf16.mxu0 0
    %3969 = vmatpush1.bf16.msra.mxu0 0
    %3970 = vmatprep.subr.bf16.mxu0 0
    %3971 = vmatpush1.bf16.msra.mxu0 0
    %3972 = vmatprep.subr.bf16.mxu0 0
    %3973 = vmatpush1.bf16.msra.mxu0 0
    %3974 = vmatprep.subr.bf16.mxu0 0
    %3975 = vmatpush1.bf16.msra.mxu0 0
    %3976 = vmatprep.subr.bf16.mxu0 0
    %3977 = vmatpush1.bf16.msra.mxu0 0
    %3978 = vmatprep.subr.bf16.mxu0 0
    %3979 = vmatpush1.bf16.msra.mxu0 0
    %3980 = vmatprep.subr.bf16.mxu0 0
    %3981 = vmatpush1.bf16.msra.mxu0 0
    %3982 = vmatprep.mubr.bf16.mxu0 0
    %3983 = vmatmul.mubr.bf16.gmra.mrb[0].mxu0 %v3948
    %v3984 = vpop.f32.mrb[0].mxu0
    %v3985 = vadd.f32 0.0, %v3984
    %v3986 = vpop.f32.mrb[0].mxu0
    %v3987 = vpop.f32.mrb[0].mxu0
    %v3988 = vadd.f32 0.0, %v3987
    %v3989 = vpop.f32.mrb[0].mxu0
    %3990 = vdwg.mxu0
    %v3991 = vmul.f32 %v3985, %v138
    %v3992 = vmul.f32 %v3988, %v138
    %v3993 = vadd.f32 %v3991, %v145
    %v3994 = vadd.f32 %v3992, %v145
    %v3995 = vmax.f32 %v3993, 0.0
    %v3996 = vmax.f32 %v3994, 0.0
    %v3997 = vpack.c.bf16 %v3996, %v3995
    %s3998 = scalar_lea.vmem [#allocation7], 3072
    %v3999 = vld [vmem:[%s3998] sm:$0xff]
    %v4000 = vld [vmem:[%s3998 + $0x8] sm:$0xff]
    %v4001 = vld [vmem:[%s3998 + $0x10] sm:$0xff]
    %v4002 = vld [vmem:[%s3998 + $0x18] sm:$0xff]
    %v4003 = vld [vmem:[%s3998 + $0x20] sm:$0xff]
    %v4004 = vld [vmem:[%s3998 + $0x28] sm:$0xff]
    %v4005 = vld [vmem:[%s3998 + $0x30] sm:$0xff]
    %v4006 = vld [vmem:[%s3998 + $0x38] sm:$0xff]
    %v4007 = vld [vmem:[%s3998 + $0x40] sm:$0xff]
    %v4008 = vld [vmem:[%s3998 + $0x48] sm:$0xff]
    %v4009 = vld [vmem:[%s3998 + $0x50] sm:$0xff]
    %v4010 = vld [vmem:[%s3998 + $0x58] sm:$0xff]
    %v4011 = vld [vmem:[%s3998 + $0x60] sm:$0xff]
    %v4012 = vld [vmem:[%s3998 + $0x68] sm:$0xff]
    %v4013 = vld [vmem:[%s3998 + $0x70] sm:$0xff]
    %v4014 = vld [vmem:[%s3998 + $0x78] sm:$0xff]
    %v4015 = vld [vmem:[%s3998 + $0x80] sm:$0xff]
    %v4016 = vld [vmem:[%s3998 + $0x88] sm:$0xff]
    %v4017 = vld [vmem:[%s3998 + $0x90] sm:$0xff]
    %v4018 = vld [vmem:[%s3998 + $0x98] sm:$0xff]
    %v4019 = vld [vmem:[%s3998 + $0xa0] sm:$0xff]
    %v4020 = vld [vmem:[%s3998 + $0xa8] sm:$0xff]
    %v4021 = vld [vmem:[%s3998 + $0xb0] sm:$0xff]
    %v4022 = vld [vmem:[%s3998 + $0xb8] sm:$0xff]
    %v4023 = vld [vmem:[%s3998 + $0xc0] sm:$0xff]
    %v4024 = vld [vmem:[%s3998 + $0xc8] sm:$0xff]
    %v4025 = vld [vmem:[%s3998 + $0xd0] sm:$0xff]
    %v4026 = vld [vmem:[%s3998 + $0xd8] sm:$0xff]
    %v4027 = vld [vmem:[%s3998 + $0xe0] sm:$0xff]
    %v4028 = vld [vmem:[%s3998 + $0xe8] sm:$0xff]
    %v4029 = vld [vmem:[%s3998 + $0xf0] sm:$0xff]
    %v4030 = vld [vmem:[%s3998 + $0xf8] sm:$0xff]
    %v4031 = vld [vmem:[%s3998 + $0x100] sm:$0xff]
    %v4032 = vld [vmem:[%s3998 + $0x108] sm:$0xff]
    %v4033 = vld [vmem:[%s3998 + $0x110] sm:$0xff]
    %v4034 = vld [vmem:[%s3998 + $0x118] sm:$0xff]
    %v4035 = vld [vmem:[%s3998 + $0x120] sm:$0xff]
    %v4036 = vld [vmem:[%s3998 + $0x128] sm:$0xff]
    %v4037 = vld [vmem:[%s3998 + $0x130] sm:$0xff]
    %v4038 = vld [vmem:[%s3998 + $0x138] sm:$0xff]
    %v4039 = vld [vmem:[%s3998 + $0x140] sm:$0xff]
    %v4040 = vld [vmem:[%s3998 + $0x148] sm:$0xff]
    %v4041 = vld [vmem:[%s3998 + $0x150] sm:$0xff]
    %v4042 = vld [vmem:[%s3998 + $0x158] sm:$0xff]
    %v4043 = vld [vmem:[%s3998 + $0x160] sm:$0xff]
    %v4044 = vld [vmem:[%s3998 + $0x168] sm:$0xff]
    %v4045 = vld [vmem:[%s3998 + $0x170] sm:$0xff]
    %v4046 = vld [vmem:[%s3998 + $0x178] sm:$0xff]
    %v4047 = vld [vmem:[%s3998 + $0x180] sm:$0xff]
    %v4048 = vld [vmem:[%s3998 + $0x188] sm:$0xff]
    %v4049 = vld [vmem:[%s3998 + $0x190] sm:$0xff]
    %v4050 = vld [vmem:[%s3998 + $0x198] sm:$0xff]
    %v4051 = vld [vmem:[%s3998 + $0x1a0] sm:$0xff]
    %v4052 = vld [vmem:[%s3998 + $0x1a8] sm:$0xff]
    %v4053 = vld [vmem:[%s3998 + $0x1b0] sm:$0xff]
    %v4054 = vld [vmem:[%s3998 + $0x1b8] sm:$0xff]
    %v4055 = vld [vmem:[%s3998 + $0x1c0] sm:$0xff]
    %v4056 = vld [vmem:[%s3998 + $0x1c8] sm:$0xff]
    %v4057 = vld [vmem:[%s3998 + $0x1d0] sm:$0xff]
    %v4058 = vld [vmem:[%s3998 + $0x1d8] sm:$0xff]
    %v4059 = vld [vmem:[%s3998 + $0x1e0] sm:$0xff]
    %v4060 = vld [vmem:[%s3998 + $0x1e8] sm:$0xff]
    %v4061 = vld [vmem:[%s3998 + $0x1f0] sm:$0xff]
    %v4062 = vld [vmem:[%s3998 + $0x1f8] sm:$0xff]
    %v4127 = vunpack.c.l.b16 %v3999
    %v4128 = vunpack.c.h.b16 %v3999
    %v4129 = vunpack.c.l.b16 %v4000
    %v4130 = vunpack.c.h.b16 %v4000
    %v4131 = vunpack.c.l.b16 %v4001
    %v4132 = vunpack.c.h.b16 %v4001
    %v4133 = vunpack.c.l.b16 %v4002
    %v4134 = vunpack.c.h.b16 %v4002
    %v4135 = vunpack.c.l.b16 %v4003
    %v4136 = vunpack.c.h.b16 %v4003
    %v4137 = vunpack.c.l.b16 %v4004
    %v4138 = vunpack.c.h.b16 %v4004
    %v4139 = vunpack.c.l.b16 %v4005
    %v4140 = vunpack.c.h.b16 %v4005
    %v4141 = vunpack.c.l.b16 %v4006
    %v4142 = vunpack.c.h.b16 %v4006
    %v4143 = vunpack.c.l.b16 %v4007
    %v4144 = vunpack.c.h.b16 %v4007
    %v4145 = vunpack.c.l.b16 %v4008
    %v4146 = vunpack.c.h.b16 %v4008
    %v4147 = vunpack.c.l.b16 %v4009
    %v4148 = vunpack.c.h.b16 %v4009
    %v4149 = vunpack.c.l.b16 %v4010
    %v4150 = vunpack.c.h.b16 %v4010
    %v4151 = vunpack.c.l.b16 %v4011
    %v4152 = vunpack.c.h.b16 %v4011
    %v4153 = vunpack.c.l.b16 %v4012
    %v4154 = vunpack.c.h.b16 %v4012
    %v4155 = vunpack.c.l.b16 %v4013
    %v4156 = vunpack.c.h.b16 %v4013
    %v4157 = vunpack.c.l.b16 %v4014
    %v4158 = vunpack.c.h.b16 %v4014
    %v4159 = vunpack.c.l.b16 %v4015
    %v4160 = vunpack.c.h.b16 %v4015
    %v4161 = vunpack.c.l.b16 %v4016
    %v4162 = vunpack.c.h.b16 %v4016
    %v4163 = vunpack.c.l.b16 %v4017
    %v4164 = vunpack.c.h.b16 %v4017
    %v4165 = vunpack.c.l.b16 %v4018
    %v4166 = vunpack.c.h.b16 %v4018
    %v4167 = vunpack.c.l.b16 %v4019
    %v4168 = vunpack.c.h.b16 %v4019
    %v4169 = vunpack.c.l.b16 %v4020
    %v4170 = vunpack.c.h.b16 %v4020
    %v4171 = vunpack.c.l.b16 %v4021
    %v4172 = vunpack.c.h.b16 %v4021
    %v4173 = vunpack.c.l.b16 %v4022
    %v4174 = vunpack.c.h.b16 %v4022
    %v4175 = vunpack.c.l.b16 %v4023
    %v4176 = vunpack.c.h.b16 %v4023
    %v4177 = vunpack.c.l.b16 %v4024
    %v4178 = vunpack.c.h.b16 %v4024
    %v4179 = vunpack.c.l.b16 %v4025
    %v4180 = vunpack.c.h.b16 %v4025
    %v4181 = vunpack.c.l.b16 %v4026
    %v4182 = vunpack.c.h.b16 %v4026
    %v4183 = vunpack.c.l.b16 %v4027
    %v4184 = vunpack.c.h.b16 %v4027
    %v4185 = vunpack.c.l.b16 %v4028
    %v4186 = vunpack.c.h.b16 %v4028
    %v4187 = vunpack.c.l.b16 %v4029
    %v4188 = vunpack.c.h.b16 %v4029
    %v4189 = vunpack.c.l.b16 %v4030
    %v4190 = vunpack.c.h.b16 %v4030
    %v4191 = vunpack.c.l.b16 %v4031
    %v4192 = vunpack.c.h.b16 %v4031
    %v4193 = vunpack.c.l.b16 %v4032
    %v4194 = vunpack.c.h.b16 %v4032
    %v4195 = vunpack.c.l.b16 %v4033
    %v4196 = vunpack.c.h.b16 %v4033
    %v4197 = vunpack.c.l.b16 %v4034
    %v4198 = vunpack.c.h.b16 %v4034
    %v4199 = vunpack.c.l.b16 %v4035
    %v4200 = vunpack.c.h.b16 %v4035
    %v4201 = vunpack.c.l.b16 %v4036
    %v4202 = vunpack.c.h.b16 %v4036
    %v4203 = vunpack.c.l.b16 %v4037
    %v4204 = vunpack.c.h.b16 %v4037
    %v4205 = vunpack.c.l.b16 %v4038
    %v4206 = vunpack.c.h.b16 %v4038
    %v4207 = vunpack.c.l.b16 %v4039
    %v4208 = vunpack.c.h.b16 %v4039
    %v4209 = vunpack.c.l.b16 %v4040
    %v4210 = vunpack.c.h.b16 %v4040
    %v4211 = vunpack.c.l.b16 %v4041
    %v4212 = vunpack.c.h.b16 %v4041
    %v4213 = vunpack.c.l.b16 %v4042
    %v4214 = vunpack.c.h.b16 %v4042
    %v4215 = vunpack.c.l.b16 %v4043
    %v4216 = vunpack.c.h.b16 %v4043
    %v4217 = vunpack.c.l.b16 %v4044
    %v4218 = vunpack.c.h.b16 %v4044
    %v4219 = vunpack.c.l.b16 %v4045
    %v4220 = vunpack.c.h.b16 %v4045
    %v4221 = vunpack.c.l.b16 %v4046
    %v4222 = vunpack.c.h.b16 %v4046
    %v4223 = vunpack.c.l.b16 %v4047
    %v4224 = vunpack.c.h.b16 %v4047
    %v4225 = vunpack.c.l.b16 %v4048
    %v4226 = vunpack.c.h.b16 %v4048
    %v4227 = vunpack.c.l.b16 %v4049
    %v4228 = vunpack.c.h.b16 %v4049
    %v4229 = vunpack.c.l.b16 %v4050
    %v4230 = vunpack.c.h.b16 %v4050
    %v4231 = vunpack.c.l.b16 %v4051
    %v4232 = vunpack.c.h.b16 %v4051
    %v4233 = vunpack.c.l.b16 %v4052
    %v4234 = vunpack.c.h.b16 %v4052
    %v4235 = vunpack.c.l.b16 %v4053
    %v4236 = vunpack.c.h.b16 %v4053
    %v4237 = vunpack.c.l.b16 %v4054
    %v4238 = vunpack.c.h.b16 %v4054
    %v4239 = vunpack.c.l.b16 %v4055
    %v4240 = vunpack.c.h.b16 %v4055
    %v4241 = vunpack.c.l.b16 %v4056
    %v4242 = vunpack.c.h.b16 %v4056
    %v4243 = vunpack.c.l.b16 %v4057
    %v4244 = vunpack.c.h.b16 %v4057
    %v4245 = vunpack.c.l.b16 %v4058
    %v4246 = vunpack.c.h.b16 %v4058
    %v4247 = vunpack.c.l.b16 %v4059
    %v4248 = vunpack.c.h.b16 %v4059
    %v4249 = vunpack.c.l.b16 %v4060
    %v4250 = vunpack.c.h.b16 %v4060
    %v4251 = vunpack.c.l.b16 %v4061
    %v4252 = vunpack.c.h.b16 %v4061
    %v4253 = vunpack.c.l.b16 %v4062
    %v4254 = vunpack.c.h.b16 %v4062
    %v4255 = vpack.c.b16 %v4135, %v4127
    %v4256 = vpack.c.b16 %v4136, %v4128
    %v4257 = vpack.c.b16 %v4137, %v4129
    %v4258 = vpack.c.b16 %v4138, %v4130
    %v4259 = vpack.c.b16 %v4139, %v4131
    %v4260 = vpack.c.b16 %v4140, %v4132
    %v4261 = vpack.c.b16 %v4141, %v4133
    %v4262 = vpack.c.b16 %v4142, %v4134
    %v4263 = vpack.c.b16 %v4151, %v4143
    %v4264 = vpack.c.b16 %v4152, %v4144
    %v4265 = vpack.c.b16 %v4153, %v4145
    %v4266 = vpack.c.b16 %v4154, %v4146
    %v4267 = vpack.c.b16 %v4155, %v4147
    %v4268 = vpack.c.b16 %v4156, %v4148
    %v4269 = vpack.c.b16 %v4157, %v4149
    %v4270 = vpack.c.b16 %v4158, %v4150
    %v4271 = vpack.c.b16 %v4167, %v4159
    %v4272 = vpack.c.b16 %v4168, %v4160
    %v4273 = vpack.c.b16 %v4169, %v4161
    %v4274 = vpack.c.b16 %v4170, %v4162
    %v4275 = vpack.c.b16 %v4171, %v4163
    %v4276 = vpack.c.b16 %v4172, %v4164
    %v4277 = vpack.c.b16 %v4173, %v4165
    %v4278 = vpack.c.b16 %v4174, %v4166
    %v4279 = vpack.c.b16 %v4183, %v4175
    %v4280 = vpack.c.b16 %v4184, %v4176
    %v4281 = vpack.c.b16 %v4185, %v4177
    %v4282 = vpack.c.b16 %v4186, %v4178
    %v4283 = vpack.c.b16 %v4187, %v4179
    %v4284 = vpack.c.b16 %v4188, %v4180
    %v4285 = vpack.c.b16 %v4189, %v4181
    %v4286 = vpack.c.b16 %v4190, %v4182
    %v4287 = vpack.c.b16 %v4199, %v4191
    %v4288 = vpack.c.b16 %v4200, %v4192
    %v4289 = vpack.c.b16 %v4201, %v4193
    %v4290 = vpack.c.b16 %v4202, %v4194
    %v4291 = vpack.c.b16 %v4203, %v4195
    %v4292 = vpack.c.b16 %v4204, %v4196
    %v4293 = vpack.c.b16 %v4205, %v4197
    %v4294 = vpack.c.b16 %v4206, %v4198
    %v4295 = vpack.c.b16 %v4215, %v4207
    %v4296 = vpack.c.b16 %v4216, %v4208
    %v4297 = vpack.c.b16 %v4217, %v4209
    %v4298 = vpack.c.b16 %v4218, %v4210
    %v4299 = vpack.c.b16 %v4219, %v4211
    %v4300 = vpack.c.b16 %v4220, %v4212
    %v4301 = vpack.c.b16 %v4221, %v4213
    %v4302 = vpack.c.b16 %v4222, %v4214
    %v4303 = vpack.c.b16 %v4231, %v4223
    %v4304 = vpack.c.b16 %v4232, %v4224
    %v4305 = vpack.c.b16 %v4233, %v4225
    %v4306 = vpack.c.b16 %v4234, %v4226
    %v4307 = vpack.c.b16 %v4235, %v4227
    %v4308 = vpack.c.b16 %v4236, %v4228
    %v4309 = vpack.c.b16 %v4237, %v4229
    %v4310 = vpack.c.b16 %v4238, %v4230
    %v4311 = vpack.c.b16 %v4247, %v4239
    %v4312 = vpack.c.b16 %v4248, %v4240
    %v4313 = vpack.c.b16 %v4249, %v4241
    %v4314 = vpack.c.b16 %v4250, %v4242
    %v4315 = vpack.c.b16 %v4251, %v4243
    %v4316 = vpack.c.b16 %v4252, %v4244
    %v4317 = vpack.c.b16 %v4253, %v4245
    %v4318 = vpack.c.b16 %v4254, %v4246
    %4383 = vmatprep.subr.bf16.mxu0 %v4256
    %4384 = vmatpush1.bf16.msra.mxu0 %v4255
    %4385 = vmatprep.subr.bf16.mxu0 %v4264
    %4386 = vmatpush1.bf16.msra.mxu0 %v4263
    %4387 = vmatprep.subr.bf16.mxu0 %v4272
    %4388 = vmatpush1.bf16.msra.mxu0 %v4271
    %4389 = vmatprep.subr.bf16.mxu0 %v4280
    %4390 = vmatpush1.bf16.msra.mxu0 %v4279
    %4391 = vmatprep.subr.bf16.mxu0 %v4288
    %4392 = vmatpush1.bf16.msra.mxu0 %v4287
    %4393 = vmatprep.subr.bf16.mxu0 %v4296
    %4394 = vmatpush1.bf16.msra.mxu0 %v4295
    %4395 = vmatprep.subr.bf16.mxu0 %v4304
    %4396 = vmatpush1.bf16.msra.mxu0 %v4303
    %4397 = vmatprep.subr.bf16.mxu0 %v4312
    %4398 = vmatpush1.bf16.msra.mxu0 %v4311
    %4399 = vmatprep.subr.bf16.mxu0 0
    %4400 = vmatpush1.bf16.msra.mxu0 0
    %4401 = vmatprep.subr.bf16.mxu0 0
    %4402 = vmatpush1.bf16.msra.mxu0 0
    %4403 = vmatprep.subr.bf16.mxu0 0
    %4404 = vmatpush1.bf16.msra.mxu0 0
    %4405 = vmatprep.subr.bf16.mxu0 0
    %4406 = vmatpush1.bf16.msra.mxu0 0
    %4407 = vmatprep.subr.bf16.mxu0 0
    %4408 = vmatpush1.bf16.msra.mxu0 0
    %4409 = vmatprep.subr.bf16.mxu0 0
    %4410 = vmatpush1.bf16.msra.mxu0 0
    %4411 = vmatprep.subr.bf16.mxu0 0
    %4412 = vmatpush1.bf16.msra.mxu0 0
    %4413 = vmatprep.subr.bf16.mxu0 0
    %4414 = vmatpush1.bf16.msra.mxu0 0
    %4415 = vmatprep.mubr.bf16.mxu0 0
    %4416 = vmatmul.mubr.bf16.gmra.mrb[0].mxu0 %v3997
    %v4417 = vpop.f32.mrb[0].mxu0
    %v4418 = vadd.f32 0.0, %v4417
    %v4419 = vpop.f32.mrb[0].mxu0
    %v4420 = vadd.f32 0.0, %v4419
    %v4421 = vpop.f32.mrb[0].mxu0
    %v4422 = vadd.f32 0.0, %v4421
    %v4423 = vpop.f32.mrb[0].mxu0
    %v4424 = vadd.f32 0.0, %v4423
    %4425 = vdwg.mxu0
    %4426 = vmatprep.subr.bf16.mxu0 %v4258
    %4427 = vmatpush1.bf16.msra.mxu0 %v4257
    %4428 = vmatprep.subr.bf16.mxu0 %v4266
    %4429 = vmatpush1.bf16.msra.mxu0 %v4265
    %4430 = vmatprep.subr.bf16.mxu0 %v4274
    %4431 = vmatpush1.bf16.msra.mxu0 %v4273
    %4432 = vmatprep.subr.bf16.mxu0 %v4282
    %4433 = vmatpush1.bf16.msra.mxu0 %v4281
    %4434 = vmatprep.subr.bf16.mxu0 %v4290
    %4435 = vmatpush1.bf16.msra.mxu0 %v4289
    %4436 = vmatprep.subr.bf16.mxu0 %v4298
    %4437 = vmatpush1.bf16.msra.mxu0 %v4297
    %4438 = vmatprep.subr.bf16.mxu0 %v4306
    %4439 = vmatpush1.bf16.msra.mxu0 %v4305
    %4440 = vmatprep.subr.bf16.mxu0 %v4314
    %4441 = vmatpush1.bf16.msra.mxu0 %v4313
    %4442 = vmatprep.subr.bf16.mxu0 0
    %4443 = vmatpush1.bf16.msra.mxu0 0
    %4444 = vmatprep.subr.bf16.mxu0 0
    %4445 = vmatpush1.bf16.msra.mxu0 0
    %4446 = vmatprep.subr.bf16.mxu0 0
    %4447 = vmatpush1.bf16.msra.mxu0 0
    %4448 = vmatprep.subr.bf16.mxu0 0
    %4449 = vmatpush1.bf16.msra.mxu0 0
    %4450 = vmatprep.subr.bf16.mxu0 0
    %4451 = vmatpush1.bf16.msra.mxu0 0
    %4452 = vmatprep.subr.bf16.mxu0 0
    %4453 = vmatpush1.bf16.msra.mxu0 0
    %4454 = vmatprep.subr.bf16.mxu0 0
    %4455 = vmatpush1.bf16.msra.mxu0 0
    %4456 = vmatprep.subr.bf16.mxu0 0
    %4457 = vmatpush1.bf16.msra.mxu0 0
    %4458 = vmatprep.mubr.bf16.mxu0 0
    %4459 = vmatmul.mubr.bf16.gmra.mrb[0].mxu0 %v3997
    %v4460 = vpop.f32.mrb[0].mxu0
    %v4461 = vadd.f32 0.0, %v4460
    %v4462 = vpop.f32.mrb[0].mxu0
    %v4463 = vadd.f32 0.0, %v4462
    %v4464 = vpop.f32.mrb[0].mxu0
    %v4465 = vadd.f32 0.0, %v4464
    %v4466 = vpop.f32.mrb[0].mxu0
    %v4467 = vadd.f32 0.0, %v4466
    %4468 = vdwg.mxu0
    %4469 = vmatprep.subr.bf16.mxu0 %v4260
    %4470 = vmatpush1.bf16.msra.mxu0 %v4259
    %4471 = vmatprep.subr.bf16.mxu0 %v4268
    %4472 = vmatpush1.bf16.msra.mxu0 %v4267
    %4473 = vmatprep.subr.bf16.mxu0 %v4276
    %4474 = vmatpush1.bf16.msra.mxu0 %v4275
    %4475 = vmatprep.subr.bf16.mxu0 %v4284
    %4476 = vmatpush1.bf16.msra.mxu0 %v4283
    %4477 = vmatprep.subr.bf16.mxu0 %v4292
    %4478 = vmatpush1.bf16.msra.mxu0 %v4291
    %4479 = vmatprep.subr.bf16.mxu0 %v4300
    %4480 = vmatpush1.bf16.msra.mxu0 %v4299
    %4481 = vmatprep.subr.bf16.mxu0 %v4308
    %4482 = vmatpush1.bf16.msra.mxu0 %v4307
    %4483 = vmatprep.subr.bf16.mxu0 %v4316
    %4484 = vmatpush1.bf16.msra.mxu0 %v4315
    %4485 = vmatprep.subr.bf16.mxu0 0
    %4486 = vmatpush1.bf16.msra.mxu0 0
    %4487 = vmatprep.subr.bf16.mxu0 0
    %4488 = vmatpush1.bf16.msra.mxu0 0
    %4489 = vmatprep.subr.bf16.mxu0 0
    %4490 = vmatpush1.bf16.msra.mxu0 0
    %4491 = vmatprep.subr.bf16.mxu0 0
    %4492 = vmatpush1.bf16.msra.mxu0 0
    %4493 = vmatprep.subr.bf16.mxu0 0
    %4494 = vmatpush1.bf16.msra.mxu0 0
    %4495 = vmatprep.subr.bf16.mxu0 0
    %4496 = vmatpush1.bf16.msra.mxu0 0
    %4497 = vmatprep.subr.bf16.mxu0 0
    %4498 = vmatpush1.bf16.msra.mxu0 0
    %4499 = vmatprep.subr.bf16.mxu0 0
    %4500 = vmatpush1.bf16.msra.mxu0 0
    %4501 = vmatprep.mubr.bf16.mxu0 0
    %4502 = vmatmul.mubr.bf16.gmra.mrb[0].mxu0 %v3997
    %v4503 = vpop.f32.mrb[0].mxu0
    %v4504 = vadd.f32 0.0, %v4503
    %v4505 = vpop.f32.mrb[0].mxu0
    %v4506 = vadd.f32 0.0, %v4505
    %v4507 = vpop.f32.mrb[0].mxu0
    %v4508 = vadd.f32 0.0, %v4507
    %v4509 = vpop.f32.mrb[0].mxu0
    %v4510 = vadd.f32 0.0, %v4509
    %4511 = vdwg.mxu0
    %4512 = vmatprep.subr.bf16.mxu0 %v4262
    %4513 = vmatpush1.bf16.msra.mxu0 %v4261
    %4514 = vmatprep.subr.bf16.mxu0 %v4270
    %4515 = vmatpush1.bf16.msra.mxu0 %v4269
    %4516 = vmatprep.subr.bf16.mxu0 %v4278
    %4517 = vmatpush1.bf16.msra.mxu0 %v4277
    %4518 = vmatprep.subr.bf16.mxu0 %v4286
    %4519 = vmatpush1.bf16.msra.mxu0 %v4285
    %4520 = vmatprep.subr.bf16.mxu0 %v4294
    %4521 = vmatpush1.bf16.msra.mxu0 %v4293
    %4522 = vmatprep.subr.bf16.mxu0 %v4302
    %4523 = vmatpush1.bf16.msra.mxu0 %v4301
    %4524 = vmatprep.subr.bf16.mxu0 %v4310
    %4525 = vmatpush1.bf16.msra.mxu0 %v4309
    %4526 = vmatprep.subr.bf16.mxu0 %v4318
    %4527 = vmatpush1.bf16.msra.mxu0 %v4317
    %4528 = vmatprep.subr.bf16.mxu0 0
    %4529 = vmatpush1.bf16.msra.mxu0 0
    %4530 = vmatprep.subr.bf16.mxu0 0
    %4531 = vmatpush1.bf16.msra.mxu0 0
    %4532 = vmatprep.subr.bf16.mxu0 0
    %4533 = vmatpush1.bf16.msra.mxu0 0
    %4534 = vmatprep.subr.bf16.mxu0 0
    %4535 = vmatpush1.bf16.msra.mxu0 0
    %4536 = vmatprep.subr.bf16.mxu0 0
    %4537 = vmatpush1.bf16.msra.mxu0 0
    %4538 = vmatprep.subr.bf16.mxu0 0
    %4539 = vmatpush1.bf16.msra.mxu0 0
    %4540 = vmatprep.subr.bf16.mxu0 0
    %4541 = vmatpush1.bf16.msra.mxu0 0
    %4542 = vmatprep.subr.bf16.mxu0 0
    %4543 = vmatpush1.bf16.msra.mxu0 0
    %4544 = vmatprep.mubr.bf16.mxu0 0
    %4545 = vmatmul.mubr.bf16.gmra.mrb[0].mxu0 %v3997
    %v4546 = vpop.f32.mrb[0].mxu0
    %v4547 = vadd.f32 0.0, %v4546
    %v4548 = vpop.f32.mrb[0].mxu0
    %v4549 = vadd.f32 0.0, %v4548
    %v4550 = vpop.f32.mrb[0].mxu0
    %v4551 = vadd.f32 0.0, %v4550
    %v4552 = vpop.f32.mrb[0].mxu0
    %v4553 = vadd.f32 0.0, %v4552
    %4554 = vdwg.mxu0
    %v4555 = vadd.f32 %v3925, %v4418
    %v4556 = vadd.f32 %v3926, %v4420
    %v4557 = vadd.f32 %v3927, %v4461
    %v4558 = vadd.f32 %v3928, %v4463
    %v4559 = vadd.f32 %v3929, %v4504
    %v4560 = vadd.f32 %v3930, %v4506
    %v4561 = vadd.f32 %v3931, %v4547
    %v4562 = vadd.f32 %v3932, %v4549
    %v4563 = vadd.f32 %v3933, %v4422
    %v4564 = vadd.f32 %v3934, %v4424
    %v4565 = vadd.f32 %v3935, %v4465
    %v4566 = vadd.f32 %v3936, %v4467
    %v4567 = vadd.f32 %v3937, %v4508
    %v4568 = vadd.f32 %v3938, %v4510
    %v4569 = vadd.f32 %v3939, %v4551
    %v4570 = vadd.f32 %v3940, %v4553
    %s4571 = scalar_lea.vmem %s0, 56
    %v4572 = vld [vmem:[%s4571] sm:$0xf]
    %v4573 = vld [vmem:[%s4571 + $0x4] sm:$0xf]
    %v4576 = vunpack.c.l.b16 %v4572
    %v4577 = vunpack.c.l.b16 %v4573
    %v4578 = vpack.c.b16 %v4577, %v4576
    %4580 = vmatprep.subr.bf16.mxu0 0
    %4581 = vmatpush1.bf16.msra.mxu0 %v187
    %4582 = vmatprep.subr.bf16.mxu0 0
    %4583 = vmatpush1.bf16.msra.mxu0 %v188
    %4584 = vmatprep.subr.bf16.mxu0 0
    %4585 = vmatpush1.bf16.msra.mxu0 %v189
    %4586 = vmatprep.subr.bf16.mxu0 0
    %4587 = vmatpush1.bf16.msra.mxu0 %v190
    %4588 = vmatprep.subr.bf16.mxu0 0
    %4589 = vmatpush1.bf16.msra.mxu0 %v191
    %4590 = vmatprep.subr.bf16.mxu0 0
    %4591 = vmatpush1.bf16.msra.mxu0 %v192
    %4592 = vmatprep.subr.bf16.mxu0 0
    %4593 = vmatpush1.bf16.msra.mxu0 %v193
    %4594 = vmatprep.subr.bf16.mxu0 0
    %4595 = vmatpush1.bf16.msra.mxu0 %v194
    %4596 = vmatprep.subr.bf16.mxu0 0
    %4597 = vmatpush1.bf16.msra.mxu0 0
    %4598 = vmatprep.subr.bf16.mxu0 0
    %4599 = vmatpush1.bf16.msra.mxu0 0
    %4600 = vmatprep.subr.bf16.mxu0 0
    %4601 = vmatpush1.bf16.msra.mxu0 0
    %4602 = vmatprep.subr.bf16.mxu0 0
    %4603 = vmatpush1.bf16.msra.mxu0 0
    %4604 = vmatprep.subr.bf16.mxu0 0
    %4605 = vmatpush1.bf16.msra.mxu0 0
    %4606 = vmatprep.subr.bf16.mxu0 0
    %4607 = vmatpush1.bf16.msra.mxu0 0
    %4608 = vmatprep.subr.bf16.mxu0 0
    %4609 = vmatpush1.bf16.msra.mxu0 0
    %4610 = vmatprep.subr.bf16.mxu0 0
    %4611 = vmatpush1.bf16.msra.mxu0 0
    %4612 = vmatprep.mubr.bf16.mxu0 0
    %4613 = vmatmul.mubr.bf16.gmra.mrb[0].mxu0 %v4578
    %v4614 = vpop.f32.mrb[0].mxu0
    %v4615 = vadd.f32 0.0, %v4614
    %v4616 = vpop.f32.mrb[0].mxu0
    %v4617 = vpop.f32.mrb[0].mxu0
    %v4618 = vadd.f32 0.0, %v4617
    %v4619 = vpop.f32.mrb[0].mxu0
    %4620 = vdwg.mxu0
    %v4621 = vmul.f32 %v4615, %v138
    %v4622 = vmul.f32 %v4618, %v138
    %v4623 = vadd.f32 %v4621, %v145
    %v4624 = vadd.f32 %v4622, %v145
    %v4625 = vmax.f32 %v4623, 0.0
    %v4626 = vmax.f32 %v4624, 0.0
    %v4627 = vpack.c.bf16 %v4626, %v4625
    %s4628 = scalar_lea.vmem [#allocation7], 3584
    %v4629 = vld [vmem:[%s4628] sm:$0xff]
    %v4630 = vld [vmem:[%s4628 + $0x8] sm:$0xff]
    %v4631 = vld [vmem:[%s4628 + $0x10] sm:$0xff]
    %v4632 = vld [vmem:[%s4628 + $0x18] sm:$0xff]
    %v4633 = vld [vmem:[%s4628 + $0x20] sm:$0xff]
    %v4634 = vld [vmem:[%s4628 + $0x28] sm:$0xff]
    %v4635 = vld [vmem:[%s4628 + $0x30] sm:$0xff]
    %v4636 = vld [vmem:[%s4628 + $0x38] sm:$0xff]
    %v4637 = vld [vmem:[%s4628 + $0x40] sm:$0xff]
    %v4638 = vld [vmem:[%s4628 + $0x48] sm:$0xff]
    %v4639 = vld [vmem:[%s4628 + $0x50] sm:$0xff]
    %v4640 = vld [vmem:[%s4628 + $0x58] sm:$0xff]
    %v4641 = vld [vmem:[%s4628 + $0x60] sm:$0xff]
    %v4642 = vld [vmem:[%s4628 + $0x68] sm:$0xff]
    %v4643 = vld [vmem:[%s4628 + $0x70] sm:$0xff]
    %v4644 = vld [vmem:[%s4628 + $0x78] sm:$0xff]
    %v4645 = vld [vmem:[%s4628 + $0x80] sm:$0xff]
    %v4646 = vld [vmem:[%s4628 + $0x88] sm:$0xff]
    %v4647 = vld [vmem:[%s4628 + $0x90] sm:$0xff]
    %v4648 = vld [vmem:[%s4628 + $0x98] sm:$0xff]
    %v4649 = vld [vmem:[%s4628 + $0xa0] sm:$0xff]
    %v4650 = vld [vmem:[%s4628 + $0xa8] sm:$0xff]
    %v4651 = vld [vmem:[%s4628 + $0xb0] sm:$0xff]
    %v4652 = vld [vmem:[%s4628 + $0xb8] sm:$0xff]
    %v4653 = vld [vmem:[%s4628 + $0xc0] sm:$0xff]
    %v4654 = vld [vmem:[%s4628 + $0xc8] sm:$0xff]
    %v4655 = vld [vmem:[%s4628 + $0xd0] sm:$0xff]
    %v4656 = vld [vmem:[%s4628 + $0xd8] sm:$0xff]
    %v4657 = vld [vmem:[%s4628 + $0xe0] sm:$0xff]
    %v4658 = vld [vmem:[%s4628 + $0xe8] sm:$0xff]
    %v4659 = vld [vmem:[%s4628 + $0xf0] sm:$0xff]
    %v4660 = vld [vmem:[%s4628 + $0xf8] sm:$0xff]
    %v4661 = vld [vmem:[%s4628 + $0x100] sm:$0xff]
    %v4662 = vld [vmem:[%s4628 + $0x108] sm:$0xff]
    %v4663 = vld [vmem:[%s4628 + $0x110] sm:$0xff]
    %v4664 = vld [vmem:[%s4628 + $0x118] sm:$0xff]
    %v4665 = vld [vmem:[%s4628 + $0x120] sm:$0xff]
    %v4666 = vld [vmem:[%s4628 + $0x128] sm:$0xff]
    %v4667 = vld [vmem:[%s4628 + $0x130] sm:$0xff]
    %v4668 = vld [vmem:[%s4628 + $0x138] sm:$0xff]
    %v4669 = vld [vmem:[%s4628 + $0x140] sm:$0xff]
    %v4670 = vld [vmem:[%s4628 + $0x148] sm:$0xff]
    %v4671 = vld [vmem:[%s4628 + $0x150] sm:$0xff]
    %v4672 = vld [vmem:[%s4628 + $0x158] sm:$0xff]
    %v4673 = vld [vmem:[%s4628 + $0x160] sm:$0xff]
    %v4674 = vld [vmem:[%s4628 + $0x168] sm:$0xff]
    %v4675 = vld [vmem:[%s4628 + $0x170] sm:$0xff]
    %v4676 = vld [vmem:[%s4628 + $0x178] sm:$0xff]
    %v4677 = vld [vmem:[%s4628 + $0x180] sm:$0xff]
    %v4678 = vld [vmem:[%s4628 + $0x188] sm:$0xff]
    %v4679 = vld [vmem:[%s4628 + $0x190] sm:$0xff]
    %v4680 = vld [vmem:[%s4628 + $0x198] sm:$0xff]
    %v4681 = vld [vmem:[%s4628 + $0x1a0] sm:$0xff]
    %v4682 = vld [vmem:[%s4628 + $0x1a8] sm:$0xff]
    %v4683 = vld [vmem:[%s4628 + $0x1b0] sm:$0xff]
    %v4684 = vld [vmem:[%s4628 + $0x1b8] sm:$0xff]
    %v4685 = vld [vmem:[%s4628 + $0x1c0] sm:$0xff]
    %v4686 = vld [vmem:[%s4628 + $0x1c8] sm:$0xff]
    %v4687 = vld [vmem:[%s4628 + $0x1d0] sm:$0xff]
    %v4688 = vld [vmem:[%s4628 + $0x1d8] sm:$0xff]
    %v4689 = vld [vmem:[%s4628 + $0x1e0] sm:$0xff]
    %v4690 = vld [vmem:[%s4628 + $0x1e8] sm:$0xff]
    %v4691 = vld [vmem:[%s4628 + $0x1f0] sm:$0xff]
    %v4692 = vld [vmem:[%s4628 + $0x1f8] sm:$0xff]
    %v4757 = vunpack.c.l.b16 %v4629
    %v4758 = vunpack.c.h.b16 %v4629
    %v4759 = vunpack.c.l.b16 %v4630
    %v4760 = vunpack.c.h.b16 %v4630
    %v4761 = vunpack.c.l.b16 %v4631
    %v4762 = vunpack.c.h.b16 %v4631
    %v4763 = vunpack.c.l.b16 %v4632
    %v4764 = vunpack.c.h.b16 %v4632
    %v4765 = vunpack.c.l.b16 %v4633
    %v4766 = vunpack.c.h.b16 %v4633
    %v4767 = vunpack.c.l.b16 %v4634
    %v4768 = vunpack.c.h.b16 %v4634
    %v4769 = vunpack.c.l.b16 %v4635
    %v4770 = vunpack.c.h.b16 %v4635
    %v4771 = vunpack.c.l.b16 %v4636
    %v4772 = vunpack.c.h.b16 %v4636
    %v4773 = vunpack.c.l.b16 %v4637
    %v4774 = vunpack.c.h.b16 %v4637
    %v4775 = vunpack.c.l.b16 %v4638
    %v4776 = vunpack.c.h.b16 %v4638
    %v4777 = vunpack.c.l.b16 %v4639
    %v4778 = vunpack.c.h.b16 %v4639
    %v4779 = vunpack.c.l.b16 %v4640
    %v4780 = vunpack.c.h.b16 %v4640
    %v4781 = vunpack.c.l.b16 %v4641
    %v4782 = vunpack.c.h.b16 %v4641
    %v4783 = vunpack.c.l.b16 %v4642
    %v4784 = vunpack.c.h.b16 %v4642
    %v4785 = vunpack.c.l.b16 %v4643
    %v4786 = vunpack.c.h.b16 %v4643
    %v4787 = vunpack.c.l.b16 %v4644
    %v4788 = vunpack.c.h.b16 %v4644
    %v4789 = vunpack.c.l.b16 %v4645
    %v4790 = vunpack.c.h.b16 %v4645
    %v4791 = vunpack.c.l.b16 %v4646
    %v4792 = vunpack.c.h.b16 %v4646
    %v4793 = vunpack.c.l.b16 %v4647
    %v4794 = vunpack.c.h.b16 %v4647
    %v4795 = vunpack.c.l.b16 %v4648
    %v4796 = vunpack.c.h.b16 %v4648
    %v4797 = vunpack.c.l.b16 %v4649
    %v4798 = vunpack.c.h.b16 %v4649
    %v4799 = vunpack.c.l.b16 %v4650
    %v4800 = vunpack.c.h.b16 %v4650
    %v4801 = vunpack.c.l.b16 %v4651
    %v4802 = vunpack.c.h.b16 %v4651
    %v4803 = vunpack.c.l.b16 %v4652
    %v4804 = vunpack.c.h.b16 %v4652
    %v4805 = vunpack.c.l.b16 %v4653
    %v4806 = vunpack.c.h.b16 %v4653
    %v4807 = vunpack.c.l.b16 %v4654
    %v4808 = vunpack.c.h.b16 %v4654
    %v4809 = vunpack.c.l.b16 %v4655
    %v4810 = vunpack.c.h.b16 %v4655
    %v4811 = vunpack.c.l.b16 %v4656
    %v4812 = vunpack.c.h.b16 %v4656
    %v4813 = vunpack.c.l.b16 %v4657
    %v4814 = vunpack.c.h.b16 %v4657
    %v4815 = vunpack.c.l.b16 %v4658
    %v4816 = vunpack.c.h.b16 %v4658
    %v4817 = vunpack.c.l.b16 %v4659
    %v4818 = vunpack.c.h.b16 %v4659
    %v4819 = vunpack.c.l.b16 %v4660
    %v4820 = vunpack.c.h.b16 %v4660
    %v4821 = vunpack.c.l.b16 %v4661
    %v4822 = vunpack.c.h.b16 %v4661
    %v4823 = vunpack.c.l.b16 %v4662
    %v4824 = vunpack.c.h.b16 %v4662
    %v4825 = vunpack.c.l.b16 %v4663
    %v4826 = vunpack.c.h.b16 %v4663
    %v4827 = vunpack.c.l.b16 %v4664
    %v4828 = vunpack.c.h.b16 %v4664
    %v4829 = vunpack.c.l.b16 %v4665
    %v4830 = vunpack.c.h.b16 %v4665
    %v4831 = vunpack.c.l.b16 %v4666
    %v4832 = vunpack.c.h.b16 %v4666
    %v4833 = vunpack.c.l.b16 %v4667
    %v4834 = vunpack.c.h.b16 %v4667
    %v4835 = vunpack.c.l.b16 %v4668
    %v4836 = vunpack.c.h.b16 %v4668
    %v4837 = vunpack.c.l.b16 %v4669
    %v4838 = vunpack.c.h.b16 %v4669
    %v4839 = vunpack.c.l.b16 %v4670
    %v4840 = vunpack.c.h.b16 %v4670
    %v4841 = vunpack.c.l.b16 %v4671
    %v4842 = vunpack.c.h.b16 %v4671
    %v4843 = vunpack.c.l.b16 %v4672
    %v4844 = vunpack.c.h.b16 %v4672
    %v4845 = vunpack.c.l.b16 %v4673
    %v4846 = vunpack.c.h.b16 %v4673
    %v4847 = vunpack.c.l.b16 %v4674
    %v4848 = vunpack.c.h.b16 %v4674
    %v4849 = vunpack.c.l.b16 %v4675
    %v4850 = vunpack.c.h.b16 %v4675
    %v4851 = vunpack.c.l.b16 %v4676
    %v4852 = vunpack.c.h.b16 %v4676
    %v4853 = vunpack.c.l.b16 %v4677
    %v4854 = vunpack.c.h.b16 %v4677
    %v4855 = vunpack.c.l.b16 %v4678
    %v4856 = vunpack.c.h.b16 %v4678
    %v4857 = vunpack.c.l.b16 %v4679
    %v4858 = vunpack.c.h.b16 %v4679
    %v4859 = vunpack.c.l.b16 %v4680
    %v4860 = vunpack.c.h.b16 %v4680
    %v4861 = vunpack.c.l.b16 %v4681
    %v4862 = vunpack.c.h.b16 %v4681
    %v4863 = vunpack.c.l.b16 %v4682
    %v4864 = vunpack.c.h.b16 %v4682
    %v4865 = vunpack.c.l.b16 %v4683
    %v4866 = vunpack.c.h.b16 %v4683
    %v4867 = vunpack.c.l.b16 %v4684
    %v4868 = vunpack.c.h.b16 %v4684
    %v4869 = vunpack.c.l.b16 %v4685
    %v4870 = vunpack.c.h.b16 %v4685
    %v4871 = vunpack.c.l.b16 %v4686
    %v4872 = vunpack.c.h.b16 %v4686
    %v4873 = vunpack.c.l.b16 %v4687
    %v4874 = vunpack.c.h.b16 %v4687
    %v4875 = vunpack.c.l.b16 %v4688
    %v4876 = vunpack.c.h.b16 %v4688
    %v4877 = vunpack.c.l.b16 %v4689
    %v4878 = vunpack.c.h.b16 %v4689
    %v4879 = vunpack.c.l.b16 %v4690
    %v4880 = vunpack.c.h.b16 %v4690
    %v4881 = vunpack.c.l.b16 %v4691
    %v4882 = vunpack.c.h.b16 %v4691
    %v4883 = vunpack.c.l.b16 %v4692
    %v4884 = vunpack.c.h.b16 %v4692
    %v4885 = vpack.c.b16 %v4765, %v4757
    %v4886 = vpack.c.b16 %v4766, %v4758
    %v4887 = vpack.c.b16 %v4767, %v4759
    %v4888 = vpack.c.b16 %v4768, %v4760
    %v4889 = vpack.c.b16 %v4769, %v4761
    %v4890 = vpack.c.b16 %v4770, %v4762
    %v4891 = vpack.c.b16 %v4771, %v4763
    %v4892 = vpack.c.b16 %v4772, %v4764
    %v4893 = vpack.c.b16 %v4781, %v4773
    %v4894 = vpack.c.b16 %v4782, %v4774
    %v4895 = vpack.c.b16 %v4783, %v4775
    %v4896 = vpack.c.b16 %v4784, %v4776
    %v4897 = vpack.c.b16 %v4785, %v4777
    %v4898 = vpack.c.b16 %v4786, %v4778
    %v4899 = vpack.c.b16 %v4787, %v4779
    %v4900 = vpack.c.b16 %v4788, %v4780
    %v4901 = vpack.c.b16 %v4797, %v4789
    %v4902 = vpack.c.b16 %v4798, %v4790
    %v4903 = vpack.c.b16 %v4799, %v4791
    %v4904 = vpack.c.b16 %v4800, %v4792
    %v4905 = vpack.c.b16 %v4801, %v4793
    %v4906 = vpack.c.b16 %v4802, %v4794
    %v4907 = vpack.c.b16 %v4803, %v4795
    %v4908 = vpack.c.b16 %v4804, %v4796
    %v4909 = vpack.c.b16 %v4813, %v4805
    %v4910 = vpack.c.b16 %v4814, %v4806
    %v4911 = vpack.c.b16 %v4815, %v4807
    %v4912 = vpack.c.b16 %v4816, %v4808
    %v4913 = vpack.c.b16 %v4817, %v4809
    %v4914 = vpack.c.b16 %v4818, %v4810
    %v4915 = vpack.c.b16 %v4819, %v4811
    %v4916 = vpack.c.b16 %v4820, %v4812
    %v4917 = vpack.c.b16 %v4829, %v4821
    %v4918 = vpack.c.b16 %v4830, %v4822
    %v4919 = vpack.c.b16 %v4831, %v4823
    %v4920 = vpack.c.b16 %v4832, %v4824
    %v4921 = vpack.c.b16 %v4833, %v4825
    %v4922 = vpack.c.b16 %v4834, %v4826
    %v4923 = vpack.c.b16 %v4835, %v4827
    %v4924 = vpack.c.b16 %v4836, %v4828
    %v4925 = vpack.c.b16 %v4845, %v4837
    %v4926 = vpack.c.b16 %v4846, %v4838
    %v4927 = vpack.c.b16 %v4847, %v4839
    %v4928 = vpack.c.b16 %v4848, %v4840
    %v4929 = vpack.c.b16 %v4849, %v4841
    %v4930 = vpack.c.b16 %v4850, %v4842
    %v4931 = vpack.c.b16 %v4851, %v4843
    %v4932 = vpack.c.b16 %v4852, %v4844
    %v4933 = vpack.c.b16 %v4861, %v4853
    %v4934 = vpack.c.b16 %v4862, %v4854
    %v4935 = vpack.c.b16 %v4863, %v4855
    %v4936 = vpack.c.b16 %v4864, %v4856
    %v4937 = vpack.c.b16 %v4865, %v4857
    %v4938 = vpack.c.b16 %v4866, %v4858
    %v4939 = vpack.c.b16 %v4867, %v4859
    %v4940 = vpack.c.b16 %v4868, %v4860
    %v4941 = vpack.c.b16 %v4877, %v4869
    %v4942 = vpack.c.b16 %v4878, %v4870
    %v4943 = vpack.c.b16 %v4879, %v4871
    %v4944 = vpack.c.b16 %v4880, %v4872
    %v4945 = vpack.c.b16 %v4881, %v4873
    %v4946 = vpack.c.b16 %v4882, %v4874
    %v4947 = vpack.c.b16 %v4883, %v4875
    %v4948 = vpack.c.b16 %v4884, %v4876
    %5013 = vmatprep.subr.bf16.mxu0 %v4886
    %5014 = vmatpush1.bf16.msra.mxu0 %v4885
    %5015 = vmatprep.subr.bf16.mxu0 %v4894
    %5016 = vmatpush1.bf16.msra.mxu0 %v4893
    %5017 = vmatprep.subr.bf16.mxu0 %v4902
    %5018 = vmatpush1.bf16.msra.mxu0 %v4901
    %5019 = vmatprep.subr.bf16.mxu0 %v4910
    %5020 = vmatpush1.bf16.msra.mxu0 %v4909
    %5021 = vmatprep.subr.bf16.mxu0 %v4918
    %5022 = vmatpush1.bf16.msra.mxu0 %v4917
    %5023 = vmatprep.subr.bf16.mxu0 %v4926
    %5024 = vmatpush1.bf16.msra.mxu0 %v4925
    %5025 = vmatprep.subr.bf16.mxu0 %v4934
    %5026 = vmatpush1.bf16.msra.mxu0 %v4933
    %5027 = vmatprep.subr.bf16.mxu0 %v4942
    %5028 = vmatpush1.bf16.msra.mxu0 %v4941
    %5029 = vmatprep.subr.bf16.mxu0 0
    %5030 = vmatpush1.bf16.msra.mxu0 0
    %5031 = vmatprep.subr.bf16.mxu0 0
    %5032 = vmatpush1.bf16.msra.mxu0 0
    %5033 = vmatprep.subr.bf16.mxu0 0
    %5034 = vmatpush1.bf16.msra.mxu0 0
    %5035 = vmatprep.subr.bf16.mxu0 0
    %5036 = vmatpush1.bf16.msra.mxu0 0
    %5037 = vmatprep.subr.bf16.mxu0 0
    %5038 = vmatpush1.bf16.msra.mxu0 0
    %5039 = vmatprep.subr.bf16.mxu0 0
    %5040 = vmatpush1.bf16.msra.mxu0 0
    %5041 = vmatprep.subr.bf16.mxu0 0
    %5042 = vmatpush1.bf16.msra.mxu0 0
    %5043 = vmatprep.subr.bf16.mxu0 0
    %5044 = vmatpush1.bf16.msra.mxu0 0
    %5045 = vmatprep.mubr.bf16.mxu0 0
    %5046 = vmatmul.mubr.bf16.gmra.mrb[0].mxu0 %v4627
    %v5047 = vpop.f32.mrb[0].mxu0
    %v5048 = vadd.f32 0.0, %v5047
    %v5049 = vpop.f32.mrb[0].mxu0
    %v5050 = vadd.f32 0.0, %v5049
    %v5051 = vpop.f32.mrb[0].mxu0
    %v5052 = vadd.f32 0.0, %v5051
    %v5053 = vpop.f32.mrb[0].mxu0
    %v5054 = vadd.f32 0.0, %v5053
    %5055 = vdwg.mxu0
    %5056 = vmatprep.subr.bf16.mxu0 %v4888
    %5057 = vmatpush1.bf16.msra.mxu0 %v4887
    %5058 = vmatprep.subr.bf16.mxu0 %v4896
    %5059 = vmatpush1.bf16.msra.mxu0 %v4895
    %5060 = vmatprep.subr.bf16.mxu0 %v4904
    %5061 = vmatpush1.bf16.msra.mxu0 %v4903
    %5062 = vmatprep.subr.bf16.mxu0 %v4912
    %5063 = vmatpush1.bf16.msra.mxu0 %v4911
    %5064 = vmatprep.subr.bf16.mxu0 %v4920
    %5065 = vmatpush1.bf16.msra.mxu0 %v4919
    %5066 = vmatprep.subr.bf16.mxu0 %v4928
    %5067 = vmatpush1.bf16.msra.mxu0 %v4927
    %5068 = vmatprep.subr.bf16.mxu0 %v4936
    %5069 = vmatpush1.bf16.msra.mxu0 %v4935
    %5070 = vmatprep.subr.bf16.mxu0 %v4944
    %5071 = vmatpush1.bf16.msra.mxu0 %v4943
    %5072 = vmatprep.subr.bf16.mxu0 0
    %5073 = vmatpush1.bf16.msra.mxu0 0
    %5074 = vmatprep.subr.bf16.mxu0 0
    %5075 = vmatpush1.bf16.msra.mxu0 0
    %5076 = vmatprep.subr.bf16.mxu0 0
    %5077 = vmatpush1.bf16.msra.mxu0 0
    %5078 = vmatprep.subr.bf16.mxu0 0
    %5079 = vmatpush1.bf16.msra.mxu0 0
    %5080 = vmatprep.subr.bf16.mxu0 0
    %5081 = vmatpush1.bf16.msra.mxu0 0
    %5082 = vmatprep.subr.bf16.mxu0 0
    %5083 = vmatpush1.bf16.msra.mxu0 0
    %5084 = vmatprep.subr.bf16.mxu0 0
    %5085 = vmatpush1.bf16.msra.mxu0 0
    %5086 = vmatprep.subr.bf16.mxu0 0
    %5087 = vmatpush1.bf16.msra.mxu0 0
    %5088 = vmatprep.mubr.bf16.mxu0 0
    %5089 = vmatmul.mubr.bf16.gmra.mrb[0].mxu0 %v4627
    %v5090 = vpop.f32.mrb[0].mxu0
    %v5091 = vadd.f32 0.0, %v5090
    %v5092 = vpop.f32.mrb[0].mxu0
    %v5093 = vadd.f32 0.0, %v5092
    %v5094 = vpop.f32.mrb[0].mxu0
    %v5095 = vadd.f32 0.0, %v5094
    %v5096 = vpop.f32.mrb[0].mxu0
    %v5097 = vadd.f32 0.0, %v5096
    %5098 = vdwg.mxu0
    %5099 = vmatprep.subr.bf16.mxu0 %v4890
    %5100 = vmatpush1.bf16.msra.mxu0 %v4889
    %5101 = vmatprep.subr.bf16.mxu0 %v4898
    %5102 = vmatpush1.bf16.msra.mxu0 %v4897
    %5103 = vmatprep.subr.bf16.mxu0 %v4906
    %5104 = vmatpush1.bf16.msra.mxu0 %v4905
    %5105 = vmatprep.subr.bf16.mxu0 %v4914
    %5106 = vmatpush1.bf16.msra.mxu0 %v4913
    %5107 = vmatprep.subr.bf16.mxu0 %v4922
    %5108 = vmatpush1.bf16.msra.mxu0 %v4921
    %5109 = vmatprep.subr.bf16.mxu0 %v4930
    %5110 = vmatpush1.bf16.msra.mxu0 %v4929
    %5111 = vmatprep.subr.bf16.mxu0 %v4938
    %5112 = vmatpush1.bf16.msra.mxu0 %v4937
    %5113 = vmatprep.subr.bf16.mxu0 %v4946
    %5114 = vmatpush1.bf16.msra.mxu0 %v4945
    %5115 = vmatprep.subr.bf16.mxu0 0
    %5116 = vmatpush1.bf16.msra.mxu0 0
    %5117 = vmatprep.subr.bf16.mxu0 0
    %5118 = vmatpush1.bf16.msra.mxu0 0
    %5119 = vmatprep.subr.bf16.mxu0 0
    %5120 = vmatpush1.bf16.msra.mxu0 0
    %5121 = vmatprep.subr.bf16.mxu0 0
    %5122 = vmatpush1.bf16.msra.mxu0 0
    %5123 = vmatprep.subr.bf16.mxu0 0
    %5124 = vmatpush1.bf16.msra.mxu0 0
    %5125 = vmatprep.subr.bf16.mxu0 0
    %5126 = vmatpush1.bf16.msra.mxu0 0
    %5127 = vmatprep.subr.bf16.mxu0 0
    %5128 = vmatpush1.bf16.msra.mxu0 0
    %5129 = vmatprep.subr.bf16.mxu0 0
    %5130 = vmatpush1.bf16.msra.mxu0 0
    %5131 = vmatprep.mubr.bf16.mxu0 0
    %5132 = vmatmul.mubr.bf16.gmra.mrb[0].mxu0 %v4627
    %v5133 = vpop.f32.mrb[0].mxu0
    %v5134 = vadd.f32 0.0, %v5133
    %v5135 = vpop.f32.mrb[0].mxu0
    %v5136 = vadd.f32 0.0, %v5135
    %v5137 = vpop.f32.mrb[0].mxu0
    %v5138 = vadd.f32 0.0, %v5137
    %v5139 = vpop.f32.mrb[0].mxu0
    %v5140 = vadd.f32 0.0, %v5139
    %5141 = vdwg.mxu0
    %5142 = vmatprep.subr.bf16.mxu0 %v4892
    %5143 = vmatpush1.bf16.msra.mxu0 %v4891
    %5144 = vmatprep.subr.bf16.mxu0 %v4900
    %5145 = vmatpush1.bf16.msra.mxu0 %v4899
    %5146 = vmatprep.subr.bf16.mxu0 %v4908
    %5147 = vmatpush1.bf16.msra.mxu0 %v4907
    %5148 = vmatprep.subr.bf16.mxu0 %v4916
    %5149 = vmatpush1.bf16.msra.mxu0 %v4915
    %5150 = vmatprep.subr.bf16.mxu0 %v4924
    %5151 = vmatpush1.bf16.msra.mxu0 %v4923
    %5152 = vmatprep.subr.bf16.mxu0 %v4932
    %5153 = vmatpush1.bf16.msra.mxu0 %v4931
    %5154 = vmatprep.subr.bf16.mxu0 %v4940
    %5155 = vmatpush1.bf16.msra.mxu0 %v4939
    %5156 = vmatprep.subr.bf16.mxu0 %v4948
    %5157 = vmatpush1.bf16.msra.mxu0 %v4947
    %5158 = vmatprep.subr.bf16.mxu0 0
    %5159 = vmatpush1.bf16.msra.mxu0 0
    %5160 = vmatprep.subr.bf16.mxu0 0
    %5161 = vmatpush1.bf16.msra.mxu0 0
    %5162 = vmatprep.subr.bf16.mxu0 0
    %5163 = vmatpush1.bf16.msra.mxu0 0
    %5164 = vmatprep.subr.bf16.mxu0 0
    %5165 = vmatpush1.bf16.msra.mxu0 0
    %5166 = vmatprep.subr.bf16.mxu0 0
    %5167 = vmatpush1.bf16.msra.mxu0 0
    %5168 = vmatprep.subr.bf16.mxu0 0
    %5169 = vmatpush1.bf16.msra.mxu0 0
    %5170 = vmatprep.subr.bf16.mxu0 0
    %5171 = vmatpush1.bf16.msra.mxu0 0
    %5172 = vmatprep.subr.bf16.mxu0 0
    %5173 = vmatpush1.bf16.msra.mxu0 0
    %5174 = vmatprep.mubr.bf16.mxu0 0
    %5175 = vmatmul.mubr.bf16.gmra.mrb[0].mxu0 %v4627
    %v5176 = vpop.f32.mrb[0].mxu0
    %v5177 = vadd.f32 0.0, %v5176
    %v5178 = vpop.f32.mrb[0].mxu0
    %v5179 = vadd.f32 0.0, %v5178
    %v5180 = vpop.f32.mrb[0].mxu0
    %v5181 = vadd.f32 0.0, %v5180
    %v5182 = vpop.f32.mrb[0].mxu0
    %v5183 = vadd.f32 0.0, %v5182
    %5184 = vdwg.mxu0
    %v5185 = vadd.f32 %v4555, %v5048
    %v5186 = vadd.f32 %v4556, %v5050
    %v5187 = vadd.f32 %v4557, %v5091
    %v5188 = vadd.f32 %v4558, %v5093
    %v5189 = vadd.f32 %v4559, %v5134
    %v5190 = vadd.f32 %v4560, %v5136
    %v5191 = vadd.f32 %v4561, %v5177
    %v5192 = vadd.f32 %v4562, %v5179
    %v5193 = vadd.f32 %v4563, %v5052
    %v5194 = vadd.f32 %v4564, %v5054
    %v5195 = vadd.f32 %v4565, %v5095
    %v5196 = vadd.f32 %v4566, %v5097
    %v5197 = vadd.f32 %v4567, %v5138
    %v5198 = vadd.f32 %v4568, %v5140
    %v5199 = vadd.f32 %v4569, %v5181
    %v5200 = vadd.f32 %v4570, %v5183
    %s5201 = scalar_lea.vmem %s0, 64
    %v5202 = vld [vmem:[%s5201] sm:$0xf]
    %v5203 = vld [vmem:[%s5201 + $0x4] sm:$0xf]
    %v5206 = vunpack.c.l.b16 %v5202
    %v5207 = vunpack.c.l.b16 %v5203
    %v5208 = vpack.c.b16 %v5207, %v5206
    %5210 = vmatprep.subr.bf16.mxu0 0
    %5211 = vmatpush1.bf16.msra.mxu0 %v187
    %5212 = vmatprep.subr.bf16.mxu0 0
    %5213 = vmatpush1.bf16.msra.mxu0 %v188
    %5214 = vmatprep.subr.bf16.mxu0 0
    %5215 = vmatpush1.bf16.msra.mxu0 %v189
    %5216 = vmatprep.subr.bf16.mxu0 0
    %5217 = vmatpush1.bf16.msra.mxu0 %v190
    %5218 = vmatprep.subr.bf16.mxu0 0
    %5219 = vmatpush1.bf16.msra.mxu0 %v191
    %5220 = vmatprep.subr.bf16.mxu0 0
    %5221 = vmatpush1.bf16.msra.mxu0 %v192
    %5222 = vmatprep.subr.bf16.mxu0 0
    %5223 = vmatpush1.bf16.msra.mxu0 %v193
    %5224 = vmatprep.subr.bf16.mxu0 0
    %5225 = vmatpush1.bf16.msra.mxu0 %v194
    %5226 = vmatprep.subr.bf16.mxu0 0
    %5227 = vmatpush1.bf16.msra.mxu0 0
    %5228 = vmatprep.subr.bf16.mxu0 0
    %5229 = vmatpush1.bf16.msra.mxu0 0
    %5230 = vmatprep.subr.bf16.mxu0 0
    %5231 = vmatpush1.bf16.msra.mxu0 0
    %5232 = vmatprep.subr.bf16.mxu0 0
    %5233 = vmatpush1.bf16.msra.mxu0 0
    %5234 = vmatprep.subr.bf16.mxu0 0
    %5235 = vmatpush1.bf16.msra.mxu0 0
    %5236 = vmatprep.subr.bf16.mxu0 0
    %5237 = vmatpush1.bf16.msra.mxu0 0
    %5238 = vmatprep.subr.bf16.mxu0 0
    %5239 = vmatpush1.bf16.msra.mxu0 0
    %5240 = vmatprep.subr.bf16.mxu0 0
    %5241 = vmatpush1.bf16.msra.mxu0 0
    %5242 = vmatprep.mubr.bf16.mxu0 0
    %5243 = vmatmul.mubr.bf16.gmra.mrb[0].mxu0 %v5208
    %v5244 = vpop.f32.mrb[0].mxu0
    %v5245 = vadd.f32 0.0, %v5244
    %v5246 = vpop.f32.mrb[0].mxu0
    %v5247 = vpop.f32.mrb[0].mxu0
    %v5248 = vadd.f32 0.0, %v5247
    %v5249 = vpop.f32.mrb[0].mxu0
    %5250 = vdwg.mxu0
    %v5251 = vmul.f32 %v5245, %v138
    %v5252 = vmul.f32 %v5248, %v138
    %v5253 = vadd.f32 %v5251, %v145
    %v5254 = vadd.f32 %v5252, %v145
    %v5255 = vmax.f32 %v5253, 0.0
    %v5256 = vmax.f32 %v5254, 0.0
    %v5257 = vpack.c.bf16 %v5256, %v5255
    %s5258 = scalar_lea.vmem [#allocation7], 4096
    %v5259 = vld [vmem:[%s5258] sm:$0xff]
    %v5260 = vld [vmem:[%s5258 + $0x8] sm:$0xff]
    %v5261 = vld [vmem:[%s5258 + $0x10] sm:$0xff]
    %v5262 = vld [vmem:[%s5258 + $0x18] sm:$0xff]
    %v5263 = vld [vmem:[%s5258 + $0x20] sm:$0xff]
    %v5264 = vld [vmem:[%s5258 + $0x28] sm:$0xff]
    %v5265 = vld [vmem:[%s5258 + $0x30] sm:$0xff]
    %v5266 = vld [vmem:[%s5258 + $0x38] sm:$0xff]
    %v5267 = vld [vmem:[%s5258 + $0x40] sm:$0xff]
    %v5268 = vld [vmem:[%s5258 + $0x48] sm:$0xff]
    %v5269 = vld [vmem:[%s5258 + $0x50] sm:$0xff]
    %v5270 = vld [vmem:[%s5258 + $0x58] sm:$0xff]
    %v5271 = vld [vmem:[%s5258 + $0x60] sm:$0xff]
    %v5272 = vld [vmem:[%s5258 + $0x68] sm:$0xff]
    %v5273 = vld [vmem:[%s5258 + $0x70] sm:$0xff]
    %v5274 = vld [vmem:[%s5258 + $0x78] sm:$0xff]
    %v5275 = vld [vmem:[%s5258 + $0x80] sm:$0xff]
    %v5276 = vld [vmem:[%s5258 + $0x88] sm:$0xff]
    %v5277 = vld [vmem:[%s5258 + $0x90] sm:$0xff]
    %v5278 = vld [vmem:[%s5258 + $0x98] sm:$0xff]
    %v5279 = vld [vmem:[%s5258 + $0xa0] sm:$0xff]
    %v5280 = vld [vmem:[%s5258 + $0xa8] sm:$0xff]
    %v5281 = vld [vmem:[%s5258 + $0xb0] sm:$0xff]
    %v5282 = vld [vmem:[%s5258 + $0xb8] sm:$0xff]
    %v5283 = vld [vmem:[%s5258 + $0xc0] sm:$0xff]
    %v5284 = vld [vmem:[%s5258 + $0xc8] sm:$0xff]
    %v5285 = vld [vmem:[%s5258 + $0xd0] sm:$0xff]
    %v5286 = vld [vmem:[%s5258 + $0xd8] sm:$0xff]
    %v5287 = vld [vmem:[%s5258 + $0xe0] sm:$0xff]
    %v5288 = vld [vmem:[%s5258 + $0xe8] sm:$0xff]
    %v5289 = vld [vmem:[%s5258 + $0xf0] sm:$0xff]
    %v5290 = vld [vmem:[%s5258 + $0xf8] sm:$0xff]
    %v5291 = vld [vmem:[%s5258 + $0x100] sm:$0xff]
    %v5292 = vld [vmem:[%s5258 + $0x108] sm:$0xff]
    %v5293 = vld [vmem:[%s5258 + $0x110] sm:$0xff]
    %v5294 = vld [vmem:[%s5258 + $0x118] sm:$0xff]
    %v5295 = vld [vmem:[%s5258 + $0x120] sm:$0xff]
    %v5296 = vld [vmem:[%s5258 + $0x128] sm:$0xff]
    %v5297 = vld [vmem:[%s5258 + $0x130] sm:$0xff]
    %v5298 = vld [vmem:[%s5258 + $0x138] sm:$0xff]
    %v5299 = vld [vmem:[%s5258 + $0x140] sm:$0xff]
    %v5300 = vld [vmem:[%s5258 + $0x148] sm:$0xff]
    %v5301 = vld [vmem:[%s5258 + $0x150] sm:$0xff]
    %v5302 = vld [vmem:[%s5258 + $0x158] sm:$0xff]
    %v5303 = vld [vmem:[%s5258 + $0x160] sm:$0xff]
    %v5304 = vld [vmem:[%s5258 + $0x168] sm:$0xff]
    %v5305 = vld [vmem:[%s5258 + $0x170] sm:$0xff]
    %v5306 = vld [vmem:[%s5258 + $0x178] sm:$0xff]
    %v5307 = vld [vmem:[%s5258 + $0x180] sm:$0xff]
    %v5308 = vld [vmem:[%s5258 + $0x188] sm:$0xff]
    %v5309 = vld [vmem:[%s5258 + $0x190] sm:$0xff]
    %v5310 = vld [vmem:[%s5258 + $0x198] sm:$0xff]
    %v5311 = vld [vmem:[%s5258 + $0x1a0] sm:$0xff]
    %v5312 = vld [vmem:[%s5258 + $0x1a8] sm:$0xff]
    %v5313 = vld [vmem:[%s5258 + $0x1b0] sm:$0xff]
    %v5314 = vld [vmem:[%s5258 + $0x1b8] sm:$0xff]
    %v5315 = vld [vmem:[%s5258 + $0x1c0] sm:$0xff]
    %v5316 = vld [vmem:[%s5258 + $0x1c8] sm:$0xff]
    %v5317 = vld [vmem:[%s5258 + $0x1d0] sm:$0xff]
    %v5318 = vld [vmem:[%s5258 + $0x1d8] sm:$0xff]
    %v5319 = vld [vmem:[%s5258 + $0x1e0] sm:$0xff]
    %v5320 = vld [vmem:[%s5258 + $0x1e8] sm:$0xff]
    %v5321 = vld [vmem:[%s5258 + $0x1f0] sm:$0xff]
    %v5322 = vld [vmem:[%s5258 + $0x1f8] sm:$0xff]
    %v5387 = vunpack.c.l.b16 %v5259
    %v5388 = vunpack.c.h.b16 %v5259
    %v5389 = vunpack.c.l.b16 %v5260
    %v5390 = vunpack.c.h.b16 %v5260
    %v5391 = vunpack.c.l.b16 %v5261
    %v5392 = vunpack.c.h.b16 %v5261
    %v5393 = vunpack.c.l.b16 %v5262
    %v5394 = vunpack.c.h.b16 %v5262
    %v5395 = vunpack.c.l.b16 %v5263
    %v5396 = vunpack.c.h.b16 %v5263
    %v5397 = vunpack.c.l.b16 %v5264
    %v5398 = vunpack.c.h.b16 %v5264
    %v5399 = vunpack.c.l.b16 %v5265
    %v5400 = vunpack.c.h.b16 %v5265
    %v5401 = vunpack.c.l.b16 %v5266
    %v5402 = vunpack.c.h.b16 %v5266
    %v5403 = vunpack.c.l.b16 %v5267
    %v5404 = vunpack.c.h.b16 %v5267
    %v5405 = vunpack.c.l.b16 %v5268
    %v5406 = vunpack.c.h.b16 %v5268
    %v5407 = vunpack.c.l.b16 %v5269
    %v5408 = vunpack.c.h.b16 %v5269
    %v5409 = vunpack.c.l.b16 %v5270
    %v5410 = vunpack.c.h.b16 %v5270
    %v5411 = vunpack.c.l.b16 %v5271
    %v5412 = vunpack.c.h.b16 %v5271
    %v5413 = vunpack.c.l.b16 %v5272
    %v5414 = vunpack.c.h.b16 %v5272
    %v5415 = vunpack.c.l.b16 %v5273
    %v5416 = vunpack.c.h.b16 %v5273
    %v5417 = vunpack.c.l.b16 %v5274
    %v5418 = vunpack.c.h.b16 %v5274
    %v5419 = vunpack.c.l.b16 %v5275
    %v5420 = vunpack.c.h.b16 %v5275
    %v5421 = vunpack.c.l.b16 %v5276
    %v5422 = vunpack.c.h.b16 %v5276
    %v5423 = vunpack.c.l.b16 %v5277
    %v5424 = vunpack.c.h.b16 %v5277
    %v5425 = vunpack.c.l.b16 %v5278
    %v5426 = vunpack.c.h.b16 %v5278
    %v5427 = vunpack.c.l.b16 %v5279
    %v5428 = vunpack.c.h.b16 %v5279
    %v5429 = vunpack.c.l.b16 %v5280
    %v5430 = vunpack.c.h.b16 %v5280
    %v5431 = vunpack.c.l.b16 %v5281
    %v5432 = vunpack.c.h.b16 %v5281
    %v5433 = vunpack.c.l.b16 %v5282
    %v5434 = vunpack.c.h.b16 %v5282
    %v5435 = vunpack.c.l.b16 %v5283
    %v5436 = vunpack.c.h.b16 %v5283
    %v5437 = vunpack.c.l.b16 %v5284
    %v5438 = vunpack.c.h.b16 %v5284
    %v5439 = vunpack.c.l.b16 %v5285
    %v5440 = vunpack.c.h.b16 %v5285
    %v5441 = vunpack.c.l.b16 %v5286
    %v5442 = vunpack.c.h.b16 %v5286
    %v5443 = vunpack.c.l.b16 %v5287
    %v5444 = vunpack.c.h.b16 %v5287
    %v5445 = vunpack.c.l.b16 %v5288
    %v5446 = vunpack.c.h.b16 %v5288
    %v5447 = vunpack.c.l.b16 %v5289
    %v5448 = vunpack.c.h.b16 %v5289
    %v5449 = vunpack.c.l.b16 %v5290
    %v5450 = vunpack.c.h.b16 %v5290
    %v5451 = vunpack.c.l.b16 %v5291
    %v5452 = vunpack.c.h.b16 %v5291
    %v5453 = vunpack.c.l.b16 %v5292
    %v5454 = vunpack.c.h.b16 %v5292
    %v5455 = vunpack.c.l.b16 %v5293
    %v5456 = vunpack.c.h.b16 %v5293
    %v5457 = vunpack.c.l.b16 %v5294
    %v5458 = vunpack.c.h.b16 %v5294
    %v5459 = vunpack.c.l.b16 %v5295
    %v5460 = vunpack.c.h.b16 %v5295
    %v5461 = vunpack.c.l.b16 %v5296
    %v5462 = vunpack.c.h.b16 %v5296
    %v5463 = vunpack.c.l.b16 %v5297
    %v5464 = vunpack.c.h.b16 %v5297
    %v5465 = vunpack.c.l.b16 %v5298
    %v5466 = vunpack.c.h.b16 %v5298
    %v5467 = vunpack.c.l.b16 %v5299
    %v5468 = vunpack.c.h.b16 %v5299
    %v5469 = vunpack.c.l.b16 %v5300
    %v5470 = vunpack.c.h.b16 %v5300
    %v5471 = vunpack.c.l.b16 %v5301
    %v5472 = vunpack.c.h.b16 %v5301
    %v5473 = vunpack.c.l.b16 %v5302
    %v5474 = vunpack.c.h.b16 %v5302
    %v5475 = vunpack.c.l.b16 %v5303
    %v5476 = vunpack.c.h.b16 %v5303
    %v5477 = vunpack.c.l.b16 %v5304
    %v5478 = vunpack.c.h.b16 %v5304
    %v5479 = vunpack.c.l.b16 %v5305
    %v5480 = vunpack.c.h.b16 %v5305
    %v5481 = vunpack.c.l.b16 %v5306
    %v5482 = vunpack.c.h.b16 %v5306
    %v5483 = vunpack.c.l.b16 %v5307
    %v5484 = vunpack.c.h.b16 %v5307
    %v5485 = vunpack.c.l.b16 %v5308
    %v5486 = vunpack.c.h.b16 %v5308
    %v5487 = vunpack.c.l.b16 %v5309
    %v5488 = vunpack.c.h.b16 %v5309
    %v5489 = vunpack.c.l.b16 %v5310
    %v5490 = vunpack.c.h.b16 %v5310
    %v5491 = vunpack.c.l.b16 %v5311
    %v5492 = vunpack.c.h.b16 %v5311
    %v5493 = vunpack.c.l.b16 %v5312
    %v5494 = vunpack.c.h.b16 %v5312
    %v5495 = vunpack.c.l.b16 %v5313
    %v5496 = vunpack.c.h.b16 %v5313
    %v5497 = vunpack.c.l.b16 %v5314
    %v5498 = vunpack.c.h.b16 %v5314
    %v5499 = vunpack.c.l.b16 %v5315
    %v5500 = vunpack.c.h.b16 %v5315
    %v5501 = vunpack.c.l.b16 %v5316
    %v5502 = vunpack.c.h.b16 %v5316
    %v5503 = vunpack.c.l.b16 %v5317
    %v5504 = vunpack.c.h.b16 %v5317
    %v5505 = vunpack.c.l.b16 %v5318
    %v5506 = vunpack.c.h.b16 %v5318
    %v5507 = vunpack.c.l.b16 %v5319
    %v5508 = vunpack.c.h.b16 %v5319
    %v5509 = vunpack.c.l.b16 %v5320
    %v5510 = vunpack.c.h.b16 %v5320
    %v5511 = vunpack.c.l.b16 %v5321
    %v5512 = vunpack.c.h.b16 %v5321
    %v5513 = vunpack.c.l.b16 %v5322
    %v5514 = vunpack.c.h.b16 %v5322
    %v5515 = vpack.c.b16 %v5395, %v5387
    %v5516 = vpack.c.b16 %v5396, %v5388
    %v5517 = vpack.c.b16 %v5397, %v5389
    %v5518 = vpack.c.b16 %v5398, %v5390
    %v5519 = vpack.c.b16 %v5399, %v5391
    %v5520 = vpack.c.b16 %v5400, %v5392
    %v5521 = vpack.c.b16 %v5401, %v5393
    %v5522 = vpack.c.b16 %v5402, %v5394
    %v5523 = vpack.c.b16 %v5411, %v5403
    %v5524 = vpack.c.b16 %v5412, %v5404
    %v5525 = vpack.c.b16 %v5413, %v5405
    %v5526 = vpack.c.b16 %v5414, %v5406
    %v5527 = vpack.c.b16 %v5415, %v5407
    %v5528 = vpack.c.b16 %v5416, %v5408
    %v5529 = vpack.c.b16 %v5417, %v5409
    %v5530 = vpack.c.b16 %v5418, %v5410
    %v5531 = vpack.c.b16 %v5427, %v5419
    %v5532 = vpack.c.b16 %v5428, %v5420
    %v5533 = vpack.c.b16 %v5429, %v5421
    %v5534 = vpack.c.b16 %v5430, %v5422
    %v5535 = vpack.c.b16 %v5431, %v5423
    %v5536 = vpack.c.b16 %v5432, %v5424
    %v5537 = vpack.c.b16 %v5433, %v5425
    %v5538 = vpack.c.b16 %v5434, %v5426
    %v5539 = vpack.c.b16 %v5443, %v5435
    %v5540 = vpack.c.b16 %v5444, %v5436
    %v5541 = vpack.c.b16 %v5445, %v5437
    %v5542 = vpack.c.b16 %v5446, %v5438
    %v5543 = vpack.c.b16 %v5447, %v5439
    %v5544 = vpack.c.b16 %v5448, %v5440
    %v5545 = vpack.c.b16 %v5449, %v5441
    %v5546 = vpack.c.b16 %v5450, %v5442
    %v5547 = vpack.c.b16 %v5459, %v5451
    %v5548 = vpack.c.b16 %v5460, %v5452
    %v5549 = vpack.c.b16 %v5461, %v5453
    %v5550 = vpack.c.b16 %v5462, %v5454
    %v5551 = vpack.c.b16 %v5463, %v5455
    %v5552 = vpack.c.b16 %v5464, %v5456
    %v5553 = vpack.c.b16 %v5465, %v5457
    %v5554 = vpack.c.b16 %v5466, %v5458
    %v5555 = vpack.c.b16 %v5475, %v5467
    %v5556 = vpack.c.b16 %v5476, %v5468
    %v5557 = vpack.c.b16 %v5477, %v5469
    %v5558 = vpack.c.b16 %v5478, %v5470
    %v5559 = vpack.c.b16 %v5479, %v5471
    %v5560 = vpack.c.b16 %v5480, %v5472
    %v5561 = vpack.c.b16 %v5481, %v5473
    %v5562 = vpack.c.b16 %v5482, %v5474
    %v5563 = vpack.c.b16 %v5491, %v5483
    %v5564 = vpack.c.b16 %v5492, %v5484
    %v5565 = vpack.c.b16 %v5493, %v5485
    %v5566 = vpack.c.b16 %v5494, %v5486
    %v5567 = vpack.c.b16 %v5495, %v5487
    %v5568 = vpack.c.b16 %v5496, %v5488
    %v5569 = vpack.c.b16 %v5497, %v5489
    %v5570 = vpack.c.b16 %v5498, %v5490
    %v5571 = vpack.c.b16 %v5507, %v5499
    %v5572 = vpack.c.b16 %v5508, %v5500
    %v5573 = vpack.c.b16 %v5509, %v5501
    %v5574 = vpack.c.b16 %v5510, %v5502
    %v5575 = vpack.c.b16 %v5511, %v5503
    %v5576 = vpack.c.b16 %v5512, %v5504
    %v5577 = vpack.c.b16 %v5513, %v5505
    %v5578 = vpack.c.b16 %v5514, %v5506
    %5643 = vmatprep.subr.bf16.mxu0 %v5516
    %5644 = vmatpush1.bf16.msra.mxu0 %v5515
    %5645 = vmatprep.subr.bf16.mxu0 %v5524
    %5646 = vmatpush1.bf16.msra.mxu0 %v5523
    %5647 = vmatprep.subr.bf16.mxu0 %v5532
    %5648 = vmatpush1.bf16.msra.mxu0 %v5531
    %5649 = vmatprep.subr.bf16.mxu0 %v5540
    %5650 = vmatpush1.bf16.msra.mxu0 %v5539
    %5651 = vmatprep.subr.bf16.mxu0 %v5548
    %5652 = vmatpush1.bf16.msra.mxu0 %v5547
    %5653 = vmatprep.subr.bf16.mxu0 %v5556
    %5654 = vmatpush1.bf16.msra.mxu0 %v5555
    %5655 = vmatprep.subr.bf16.mxu0 %v5564
    %5656 = vmatpush1.bf16.msra.mxu0 %v5563
    %5657 = vmatprep.subr.bf16.mxu0 %v5572
    %5658 = vmatpush1.bf16.msra.mxu0 %v5571
    %5659 = vmatprep.subr.bf16.mxu0 0
    %5660 = vmatpush1.bf16.msra.mxu0 0
    %5661 = vmatprep.subr.bf16.mxu0 0
    %5662 = vmatpush1.bf16.msra.mxu0 0
    %5663 = vmatprep.subr.bf16.mxu0 0
    %5664 = vmatpush1.bf16.msra.mxu0 0
    %5665 = vmatprep.subr.bf16.mxu0 0
    %5666 = vmatpush1.bf16.msra.mxu0 0
    %5667 = vmatprep.subr.bf16.mxu0 0
    %5668 = vmatpush1.bf16.msra.mxu0 0
    %5669 = vmatprep.subr.bf16.mxu0 0
    %5670 = vmatpush1.bf16.msra.mxu0 0
    %5671 = vmatprep.subr.bf16.mxu0 0
    %5672 = vmatpush1.bf16.msra.mxu0 0
    %5673 = vmatprep.subr.bf16.mxu0 0
    %5674 = vmatpush1.bf16.msra.mxu0 0
    %5675 = vmatprep.mubr.bf16.mxu0 0
    %5676 = vmatmul.mubr.bf16.gmra.mrb[0].mxu0 %v5257
    %v5677 = vpop.f32.mrb[0].mxu0
    %v5678 = vadd.f32 0.0, %v5677
    %v5679 = vpop.f32.mrb[0].mxu0
    %v5680 = vadd.f32 0.0, %v5679
    %v5681 = vpop.f32.mrb[0].mxu0
    %v5682 = vadd.f32 0.0, %v5681
    %v5683 = vpop.f32.mrb[0].mxu0
    %v5684 = vadd.f32 0.0, %v5683
    %5685 = vdwg.mxu0
    %5686 = vmatprep.subr.bf16.mxu0 %v5518
    %5687 = vmatpush1.bf16.msra.mxu0 %v5517
    %5688 = vmatprep.subr.bf16.mxu0 %v5526
    %5689 = vmatpush1.bf16.msra.mxu0 %v5525
    %5690 = vmatprep.subr.bf16.mxu0 %v5534
    %5691 = vmatpush1.bf16.msra.mxu0 %v5533
    %5692 = vmatprep.subr.bf16.mxu0 %v5542
    %5693 = vmatpush1.bf16.msra.mxu0 %v5541
    %5694 = vmatprep.subr.bf16.mxu0 %v5550
    %5695 = vmatpush1.bf16.msra.mxu0 %v5549
    %5696 = vmatprep.subr.bf16.mxu0 %v5558
    %5697 = vmatpush1.bf16.msra.mxu0 %v5557
    %5698 = vmatprep.subr.bf16.mxu0 %v5566
    %5699 = vmatpush1.bf16.msra.mxu0 %v5565
    %5700 = vmatprep.subr.bf16.mxu0 %v5574
    %5701 = vmatpush1.bf16.msra.mxu0 %v5573
    %5702 = vmatprep.subr.bf16.mxu0 0
    %5703 = vmatpush1.bf16.msra.mxu0 0
    %5704 = vmatprep.subr.bf16.mxu0 0
    %5705 = vmatpush1.bf16.msra.mxu0 0
    %5706 = vmatprep.subr.bf16.mxu0 0
    %5707 = vmatpush1.bf16.msra.mxu0 0
    %5708 = vmatprep.subr.bf16.mxu0 0
    %5709 = vmatpush1.bf16.msra.mxu0 0
    %5710 = vmatprep.subr.bf16.mxu0 0
    %5711 = vmatpush1.bf16.msra.mxu0 0
    %5712 = vmatprep.subr.bf16.mxu0 0
    %5713 = vmatpush1.bf16.msra.mxu0 0
    %5714 = vmatprep.subr.bf16.mxu0 0
    %5715 = vmatpush1.bf16.msra.mxu0 0
    %5716 = vmatprep.subr.bf16.mxu0 0
    %5717 = vmatpush1.bf16.msra.mxu0 0
    %5718 = vmatprep.mubr.bf16.mxu0 0
    %5719 = vmatmul.mubr.bf16.gmra.mrb[0].mxu0 %v5257
    %v5720 = vpop.f32.mrb[0].mxu0
    %v5721 = vadd.f32 0.0, %v5720
    %v5722 = vpop.f32.mrb[0].mxu0
    %v5723 = vadd.f32 0.0, %v5722
    %v5724 = vpop.f32.mrb[0].mxu0
    %v5725 = vadd.f32 0.0, %v5724
    %v5726 = vpop.f32.mrb[0].mxu0
    %v5727 = vadd.f32 0.0, %v5726
    %5728 = vdwg.mxu0
    %5729 = vmatprep.subr.bf16.mxu0 %v5520
    %5730 = vmatpush1.bf16.msra.mxu0 %v5519
    %5731 = vmatprep.subr.bf16.mxu0 %v5528
    %5732 = vmatpush1.bf16.msra.mxu0 %v5527
    %5733 = vmatprep.subr.bf16.mxu0 %v5536
    %5734 = vmatpush1.bf16.msra.mxu0 %v5535
    %5735 = vmatprep.subr.bf16.mxu0 %v5544
    %5736 = vmatpush1.bf16.msra.mxu0 %v5543
    %5737 = vmatprep.subr.bf16.mxu0 %v5552
    %5738 = vmatpush1.bf16.msra.mxu0 %v5551
    %5739 = vmatprep.subr.bf16.mxu0 %v5560
    %5740 = vmatpush1.bf16.msra.mxu0 %v5559
    %5741 = vmatprep.subr.bf16.mxu0 %v5568
    %5742 = vmatpush1.bf16.msra.mxu0 %v5567
    %5743 = vmatprep.subr.bf16.mxu0 %v5576
    %5744 = vmatpush1.bf16.msra.mxu0 %v5575
    %5745 = vmatprep.subr.bf16.mxu0 0
    %5746 = vmatpush1.bf16.msra.mxu0 0
    %5747 = vmatprep.subr.bf16.mxu0 0
    %5748 = vmatpush1.bf16.msra.mxu0 0
    %5749 = vmatprep.subr.bf16.mxu0 0
    %5750 = vmatpush1.bf16.msra.mxu0 0
    %5751 = vmatprep.subr.bf16.mxu0 0
    %5752 = vmatpush1.bf16.msra.mxu0 0
    %5753 = vmatprep.subr.bf16.mxu0 0
    %5754 = vmatpush1.bf16.msra.mxu0 0
    %5755 = vmatprep.subr.bf16.mxu0 0
    %5756 = vmatpush1.bf16.msra.mxu0 0
    %5757 = vmatprep.subr.bf16.mxu0 0
    %5758 = vmatpush1.bf16.msra.mxu0 0
    %5759 = vmatprep.subr.bf16.mxu0 0
    %5760 = vmatpush1.bf16.msra.mxu0 0
    %5761 = vmatprep.mubr.bf16.mxu0 0
    %5762 = vmatmul.mubr.bf16.gmra.mrb[0].mxu0 %v5257
    %v5763 = vpop.f32.mrb[0].mxu0
    %v5764 = vadd.f32 0.0, %v5763
    %v5765 = vpop.f32.mrb[0].mxu0
    %v5766 = vadd.f32 0.0, %v5765
    %v5767 = vpop.f32.mrb[0].mxu0
    %v5768 = vadd.f32 0.0, %v5767
    %v5769 = vpop.f32.mrb[0].mxu0
    %v5770 = vadd.f32 0.0, %v5769
    %5771 = vdwg.mxu0
    %5772 = vmatprep.subr.bf16.mxu0 %v5522
    %5773 = vmatpush1.bf16.msra.mxu0 %v5521
    %5774 = vmatprep.subr.bf16.mxu0 %v5530
    %5775 = vmatpush1.bf16.msra.mxu0 %v5529
    %5776 = vmatprep.subr.bf16.mxu0 %v5538
    %5777 = vmatpush1.bf16.msra.mxu0 %v5537
    %5778 = vmatprep.subr.bf16.mxu0 %v5546
    %5779 = vmatpush1.bf16.msra.mxu0 %v5545
    %5780 = vmatprep.subr.bf16.mxu0 %v5554
    %5781 = vmatpush1.bf16.msra.mxu0 %v5553
    %5782 = vmatprep.subr.bf16.mxu0 %v5562
    %5783 = vmatpush1.bf16.msra.mxu0 %v5561
    %5784 = vmatprep.subr.bf16.mxu0 %v5570
    %5785 = vmatpush1.bf16.msra.mxu0 %v5569
    %5786 = vmatprep.subr.bf16.mxu0 %v5578
    %5787 = vmatpush1.bf16.msra.mxu0 %v5577
    %5788 = vmatprep.subr.bf16.mxu0 0
    %5789 = vmatpush1.bf16.msra.mxu0 0
    %5790 = vmatprep.subr.bf16.mxu0 0
    %5791 = vmatpush1.bf16.msra.mxu0 0
    %5792 = vmatprep.subr.bf16.mxu0 0
    %5793 = vmatpush1.bf16.msra.mxu0 0
    %5794 = vmatprep.subr.bf16.mxu0 0
    %5795 = vmatpush1.bf16.msra.mxu0 0
    %5796 = vmatprep.subr.bf16.mxu0 0
    %5797 = vmatpush1.bf16.msra.mxu0 0
    %5798 = vmatprep.subr.bf16.mxu0 0
    %5799 = vmatpush1.bf16.msra.mxu0 0
    %5800 = vmatprep.subr.bf16.mxu0 0
    %5801 = vmatpush1.bf16.msra.mxu0 0
    %5802 = vmatprep.subr.bf16.mxu0 0
    %5803 = vmatpush1.bf16.msra.mxu0 0
    %5804 = vmatprep.mubr.bf16.mxu0 0
    %5805 = vmatmul.mubr.bf16.gmra.mrb[0].mxu0 %v5257
    %v5806 = vpop.f32.mrb[0].mxu0
    %v5807 = vadd.f32 0.0, %v5806
    %v5808 = vpop.f32.mrb[0].mxu0
    %v5809 = vadd.f32 0.0, %v5808
    %v5810 = vpop.f32.mrb[0].mxu0
    %v5811 = vadd.f32 0.0, %v5810
    %v5812 = vpop.f32.mrb[0].mxu0
    %v5813 = vadd.f32 0.0, %v5812
    %5814 = vdwg.mxu0
    %v5815 = vadd.f32 %v5185, %v5678
    %v5816 = vadd.f32 %v5186, %v5680
    %v5817 = vadd.f32 %v5187, %v5721
    %v5818 = vadd.f32 %v5188, %v5723
    %v5819 = vadd.f32 %v5189, %v5764
    %v5820 = vadd.f32 %v5190, %v5766
    %v5821 = vadd.f32 %v5191, %v5807
    %v5822 = vadd.f32 %v5192, %v5809
    %v5823 = vadd.f32 %v5193, %v5682
    %v5824 = vadd.f32 %v5194, %v5684
    %v5825 = vadd.f32 %v5195, %v5725
    %v5826 = vadd.f32 %v5196, %v5727
    %v5827 = vadd.f32 %v5197, %v5768
    %v5828 = vadd.f32 %v5198, %v5770
    %v5829 = vadd.f32 %v5199, %v5811
    %v5830 = vadd.f32 %v5200, %v5813
    %s5831 = scalar_lea.vmem %s0, 72
    %v5832 = vld [vmem:[%s5831] sm:$0xf]
    %v5833 = vld [vmem:[%s5831 + $0x4] sm:$0xf]
    %v5836 = vunpack.c.l.b16 %v5832
    %v5837 = vunpack.c.l.b16 %v5833
    %v5838 = vpack.c.b16 %v5837, %v5836
    %5840 = vmatprep.subr.bf16.mxu0 0
    %5841 = vmatpush1.bf16.msra.mxu0 %v187
    %5842 = vmatprep.subr.bf16.mxu0 0
    %5843 = vmatpush1.bf16.msra.mxu0 %v188
    %5844 = vmatprep.subr.bf16.mxu0 0
    %5845 = vmatpush1.bf16.msra.mxu0 %v189
    %5846 = vmatprep.subr.bf16.mxu0 0
    %5847 = vmatpush1.bf16.msra.mxu0 %v190
    %5848 = vmatprep.subr.bf16.mxu0 0
    %5849 = vmatpush1.bf16.msra.mxu0 %v191
    %5850 = vmatprep.subr.bf16.mxu0 0
    %5851 = vmatpush1.bf16.msra.mxu0 %v192
    %5852 = vmatprep.subr.bf16.mxu0 0
    %5853 = vmatpush1.bf16.msra.mxu0 %v193
    %5854 = vmatprep.subr.bf16.mxu0 0
    %5855 = vmatpush1.bf16.msra.mxu0 %v194
    %5856 = vmatprep.subr.bf16.mxu0 0
    %5857 = vmatpush1.bf16.msra.mxu0 0
    %5858 = vmatprep.subr.bf16.mxu0 0
    %5859 = vmatpush1.bf16.msra.mxu0 0
    %5860 = vmatprep.subr.bf16.mxu0 0
    %5861 = vmatpush1.bf16.msra.mxu0 0
    %5862 = vmatprep.subr.bf16.mxu0 0
    %5863 = vmatpush1.bf16.msra.mxu0 0
    %5864 = vmatprep.subr.bf16.mxu0 0
    %5865 = vmatpush1.bf16.msra.mxu0 0
    %5866 = vmatprep.subr.bf16.mxu0 0
    %5867 = vmatpush1.bf16.msra.mxu0 0
    %5868 = vmatprep.subr.bf16.mxu0 0
    %5869 = vmatpush1.bf16.msra.mxu0 0
    %5870 = vmatprep.subr.bf16.mxu0 0
    %5871 = vmatpush1.bf16.msra.mxu0 0
    %5872 = vmatprep.mubr.bf16.mxu0 0
    %5873 = vmatmul.mubr.bf16.gmra.mrb[0].mxu0 %v5838
    %v5874 = vpop.f32.mrb[0].mxu0
    %v5875 = vadd.f32 0.0, %v5874
    %v5876 = vpop.f32.mrb[0].mxu0
    %v5877 = vpop.f32.mrb[0].mxu0
    %v5878 = vadd.f32 0.0, %v5877
    %v5879 = vpop.f32.mrb[0].mxu0
    %5880 = vdwg.mxu0
    %v5881 = vmul.f32 %v5875, %v138
    %v5882 = vmul.f32 %v5878, %v138
    %v5883 = vadd.f32 %v5881, %v145
    %v5884 = vadd.f32 %v5882, %v145
    %v5885 = vmax.f32 %v5883, 0.0
    %v5886 = vmax.f32 %v5884, 0.0
    %v5887 = vpack.c.bf16 %v5886, %v5885
    %s5888 = scalar_lea.vmem [#allocation7], 4608
    %v5889 = vld [vmem:[%s5888] sm:$0xff]
    %v5890 = vld [vmem:[%s5888 + $0x8] sm:$0xff]
    %v5891 = vld [vmem:[%s5888 + $0x10] sm:$0xff]
    %v5892 = vld [vmem:[%s5888 + $0x18] sm:$0xff]
    %v5893 = vld [vmem:[%s5888 + $0x20] sm:$0xff]
    %v5894 = vld [vmem:[%s5888 + $0x28] sm:$0xff]
    %v5895 = vld [vmem:[%s5888 + $0x30] sm:$0xff]
    %v5896 = vld [vmem:[%s5888 + $0x38] sm:$0xff]
    %v5897 = vld [vmem:[%s5888 + $0x40] sm:$0xff]
    %v5898 = vld [vmem:[%s5888 + $0x48] sm:$0xff]
    %v5899 = vld [vmem:[%s5888 + $0x50] sm:$0xff]
    %v5900 = vld [vmem:[%s5888 + $0x58] sm:$0xff]
    %v5901 = vld [vmem:[%s5888 + $0x60] sm:$0xff]
    %v5902 = vld [vmem:[%s5888 + $0x68] sm:$0xff]
    %v5903 = vld [vmem:[%s5888 + $0x70] sm:$0xff]
    %v5904 = vld [vmem:[%s5888 + $0x78] sm:$0xff]
    %v5905 = vld [vmem:[%s5888 + $0x80] sm:$0xff]
    %v5906 = vld [vmem:[%s5888 + $0x88] sm:$0xff]
    %v5907 = vld [vmem:[%s5888 + $0x90] sm:$0xff]
    %v5908 = vld [vmem:[%s5888 + $0x98] sm:$0xff]
    %v5909 = vld [vmem:[%s5888 + $0xa0] sm:$0xff]
    %v5910 = vld [vmem:[%s5888 + $0xa8] sm:$0xff]
    %v5911 = vld [vmem:[%s5888 + $0xb0] sm:$0xff]
    %v5912 = vld [vmem:[%s5888 + $0xb8] sm:$0xff]
    %v5913 = vld [vmem:[%s5888 + $0xc0] sm:$0xff]
    %v5914 = vld [vmem:[%s5888 + $0xc8] sm:$0xff]
    %v5915 = vld [vmem:[%s5888 + $0xd0] sm:$0xff]
    %v5916 = vld [vmem:[%s5888 + $0xd8] sm:$0xff]
    %v5917 = vld [vmem:[%s5888 + $0xe0] sm:$0xff]
    %v5918 = vld [vmem:[%s5888 + $0xe8] sm:$0xff]
    %v5919 = vld [vmem:[%s5888 + $0xf0] sm:$0xff]
    %v5920 = vld [vmem:[%s5888 + $0xf8] sm:$0xff]
    %v5921 = vld [vmem:[%s5888 + $0x100] sm:$0xff]
    %v5922 = vld [vmem:[%s5888 + $0x108] sm:$0xff]
    %v5923 = vld [vmem:[%s5888 + $0x110] sm:$0xff]
    %v5924 = vld [vmem:[%s5888 + $0x118] sm:$0xff]
    %v5925 = vld [vmem:[%s5888 + $0x120] sm:$0xff]
    %v5926 = vld [vmem:[%s5888 + $0x128] sm:$0xff]
    %v5927 = vld [vmem:[%s5888 + $0x130] sm:$0xff]
    %v5928 = vld [vmem:[%s5888 + $0x138] sm:$0xff]
    %v5929 = vld [vmem:[%s5888 + $0x140] sm:$0xff]
    %v5930 = vld [vmem:[%s5888 + $0x148] sm:$0xff]
    %v5931 = vld [vmem:[%s5888 + $0x150] sm:$0xff]
    %v5932 = vld [vmem:[%s5888 + $0x158] sm:$0xff]
    %v5933 = vld [vmem:[%s5888 + $0x160] sm:$0xff]
    %v5934 = vld [vmem:[%s5888 + $0x168] sm:$0xff]
    %v5935 = vld [vmem:[%s5888 + $0x170] sm:$0xff]
    %v5936 = vld [vmem:[%s5888 + $0x178] sm:$0xff]
    %v5937 = vld [vmem:[%s5888 + $0x180] sm:$0xff]
    %v5938 = vld [vmem:[%s5888 + $0x188] sm:$0xff]
    %v5939 = vld [vmem:[%s5888 + $0x190] sm:$0xff]
    %v5940 = vld [vmem:[%s5888 + $0x198] sm:$0xff]
    %v5941 = vld [vmem:[%s5888 + $0x1a0] sm:$0xff]
    %v5942 = vld [vmem:[%s5888 + $0x1a8] sm:$0xff]
    %v5943 = vld [vmem:[%s5888 + $0x1b0] sm:$0xff]
    %v5944 = vld [vmem:[%s5888 + $0x1b8] sm:$0xff]
    %v5945 = vld [vmem:[%s5888 + $0x1c0] sm:$0xff]
    %v5946 = vld [vmem:[%s5888 + $0x1c8] sm:$0xff]
    %v5947 = vld [vmem:[%s5888 + $0x1d0] sm:$0xff]
    %v5948 = vld [vmem:[%s5888 + $0x1d8] sm:$0xff]
    %v5949 = vld [vmem:[%s5888 + $0x1e0] sm:$0xff]
    %v5950 = vld [vmem:[%s5888 + $0x1e8] sm:$0xff]
    %v5951 = vld [vmem:[%s5888 + $0x1f0] sm:$0xff]
    %v5952 = vld [vmem:[%s5888 + $0x1f8] sm:$0xff]
    %v6017 = vunpack.c.l.b16 %v5889
    %v6018 = vunpack.c.h.b16 %v5889
    %v6019 = vunpack.c.l.b16 %v5890
    %v6020 = vunpack.c.h.b16 %v5890
    %v6021 = vunpack.c.l.b16 %v5891
    %v6022 = vunpack.c.h.b16 %v5891
    %v6023 = vunpack.c.l.b16 %v5892
    %v6024 = vunpack.c.h.b16 %v5892
    %v6025 = vunpack.c.l.b16 %v5893
    %v6026 = vunpack.c.h.b16 %v5893
    %v6027 = vunpack.c.l.b16 %v5894
    %v6028 = vunpack.c.h.b16 %v5894
    %v6029 = vunpack.c.l.b16 %v5895
    %v6030 = vunpack.c.h.b16 %v5895
    %v6031 = vunpack.c.l.b16 %v5896
    %v6032 = vunpack.c.h.b16 %v5896
    %v6033 = vunpack.c.l.b16 %v5897
    %v6034 = vunpack.c.h.b16 %v5897
    %v6035 = vunpack.c.l.b16 %v5898
    %v6036 = vunpack.c.h.b16 %v5898
    %v6037 = vunpack.c.l.b16 %v5899
    %v6038 = vunpack.c.h.b16 %v5899
    %v6039 = vunpack.c.l.b16 %v5900
    %v6040 = vunpack.c.h.b16 %v5900
    %v6041 = vunpack.c.l.b16 %v5901
    %v6042 = vunpack.c.h.b16 %v5901
    %v6043 = vunpack.c.l.b16 %v5902
    %v6044 = vunpack.c.h.b16 %v5902
    %v6045 = vunpack.c.l.b16 %v5903
    %v6046 = vunpack.c.h.b16 %v5903
    %v6047 = vunpack.c.l.b16 %v5904
    %v6048 = vunpack.c.h.b16 %v5904
    %v6049 = vunpack.c.l.b16 %v5905
    %v6050 = vunpack.c.h.b16 %v5905
    %v6051 = vunpack.c.l.b16 %v5906
    %v6052 = vunpack.c.h.b16 %v5906
    %v6053 = vunpack.c.l.b16 %v5907
    %v6054 = vunpack.c.h.b16 %v5907
    %v6055 = vunpack.c.l.b16 %v5908
    %v6056 = vunpack.c.h.b16 %v5908
    %v6057 = vunpack.c.l.b16 %v5909
    %v6058 = vunpack.c.h.b16 %v5909
    %v6059 = vunpack.c.l.b16 %v5910
    %v6060 = vunpack.c.h.b16 %v5910
    %v6061 = vunpack.c.l.b16 %v5911
    %v6062 = vunpack.c.h.b16 %v5911
    %v6063 = vunpack.c.l.b16 %v5912
    %v6064 = vunpack.c.h.b16 %v5912
    %v6065 = vunpack.c.l.b16 %v5913
    %v6066 = vunpack.c.h.b16 %v5913
    %v6067 = vunpack.c.l.b16 %v5914
    %v6068 = vunpack.c.h.b16 %v5914
    %v6069 = vunpack.c.l.b16 %v5915
    %v6070 = vunpack.c.h.b16 %v5915
    %v6071 = vunpack.c.l.b16 %v5916
    %v6072 = vunpack.c.h.b16 %v5916
    %v6073 = vunpack.c.l.b16 %v5917
    %v6074 = vunpack.c.h.b16 %v5917
    %v6075 = vunpack.c.l.b16 %v5918
    %v6076 = vunpack.c.h.b16 %v5918
    %v6077 = vunpack.c.l.b16 %v5919
    %v6078 = vunpack.c.h.b16 %v5919
    %v6079 = vunpack.c.l.b16 %v5920
    %v6080 = vunpack.c.h.b16 %v5920
    %v6081 = vunpack.c.l.b16 %v5921
    %v6082 = vunpack.c.h.b16 %v5921
    %v6083 = vunpack.c.l.b16 %v5922
    %v6084 = vunpack.c.h.b16 %v5922
    %v6085 = vunpack.c.l.b16 %v5923
    %v6086 = vunpack.c.h.b16 %v5923
    %v6087 = vunpack.c.l.b16 %v5924
    %v6088 = vunpack.c.h.b16 %v5924
    %v6089 = vunpack.c.l.b16 %v5925
    %v6090 = vunpack.c.h.b16 %v5925
    %v6091 = vunpack.c.l.b16 %v5926
    %v6092 = vunpack.c.h.b16 %v5926
    %v6093 = vunpack.c.l.b16 %v5927
    %v6094 = vunpack.c.h.b16 %v5927
    %v6095 = vunpack.c.l.b16 %v5928
    %v6096 = vunpack.c.h.b16 %v5928
    %v6097 = vunpack.c.l.b16 %v5929
    %v6098 = vunpack.c.h.b16 %v5929
    %v6099 = vunpack.c.l.b16 %v5930
    %v6100 = vunpack.c.h.b16 %v5930
    %v6101 = vunpack.c.l.b16 %v5931
    %v6102 = vunpack.c.h.b16 %v5931
    %v6103 = vunpack.c.l.b16 %v5932
    %v6104 = vunpack.c.h.b16 %v5932
    %v6105 = vunpack.c.l.b16 %v5933
    %v6106 = vunpack.c.h.b16 %v5933
    %v6107 = vunpack.c.l.b16 %v5934
    %v6108 = vunpack.c.h.b16 %v5934
    %v6109 = vunpack.c.l.b16 %v5935
    %v6110 = vunpack.c.h.b16 %v5935
    %v6111 = vunpack.c.l.b16 %v5936
    %v6112 = vunpack.c.h.b16 %v5936
    %v6113 = vunpack.c.l.b16 %v5937
    %v6114 = vunpack.c.h.b16 %v5937
    %v6115 = vunpack.c.l.b16 %v5938
    %v6116 = vunpack.c.h.b16 %v5938
    %v6117 = vunpack.c.l.b16 %v5939
    %v6118 = vunpack.c.h.b16 %v5939
    %v6119 = vunpack.c.l.b16 %v5940
    %v6120 = vunpack.c.h.b16 %v5940
    %v6121 = vunpack.c.l.b16 %v5941
    %v6122 = vunpack.c.h.b16 %v5941
    %v6123 = vunpack.c.l.b16 %v5942
    %v6124 = vunpack.c.h.b16 %v5942
    %v6125 = vunpack.c.l.b16 %v5943
    %v6126 = vunpack.c.h.b16 %v5943
    %v6127 = vunpack.c.l.b16 %v5944
    %v6128 = vunpack.c.h.b16 %v5944
    %v6129 = vunpack.c.l.b16 %v5945
    %v6130 = vunpack.c.h.b16 %v5945
    %v6131 = vunpack.c.l.b16 %v5946
    %v6132 = vunpack.c.h.b16 %v5946
    %v6133 = vunpack.c.l.b16 %v5947
    %v6134 = vunpack.c.h.b16 %v5947
    %v6135 = vunpack.c.l.b16 %v5948
    %v6136 = vunpack.c.h.b16 %v5948
    %v6137 = vunpack.c.l.b16 %v5949
    %v6138 = vunpack.c.h.b16 %v5949
    %v6139 = vunpack.c.l.b16 %v5950
    %v6140 = vunpack.c.h.b16 %v5950
    %v6141 = vunpack.c.l.b16 %v5951
    %v6142 = vunpack.c.h.b16 %v5951
    %v6143 = vunpack.c.l.b16 %v5952
    %v6144 = vunpack.c.h.b16 %v5952
    %v6145 = vpack.c.b16 %v6025, %v6017
    %v6146 = vpack.c.b16 %v6026, %v6018
    %v6147 = vpack.c.b16 %v6027, %v6019
    %v6148 = vpack.c.b16 %v6028, %v6020
    %v6149 = vpack.c.b16 %v6029, %v6021
    %v6150 = vpack.c.b16 %v6030, %v6022
    %v6151 = vpack.c.b16 %v6031, %v6023
    %v6152 = vpack.c.b16 %v6032, %v6024
    %v6153 = vpack.c.b16 %v6041, %v6033
    %v6154 = vpack.c.b16 %v6042, %v6034
    %v6155 = vpack.c.b16 %v6043, %v6035
    %v6156 = vpack.c.b16 %v6044, %v6036
    %v6157 = vpack.c.b16 %v6045, %v6037
    %v6158 = vpack.c.b16 %v6046, %v6038
    %v6159 = vpack.c.b16 %v6047, %v6039
    %v6160 = vpack.c.b16 %v6048, %v6040
    %v6161 = vpack.c.b16 %v6057, %v6049
    %v6162 = vpack.c.b16 %v6058, %v6050
    %v6163 = vpack.c.b16 %v6059, %v6051
    %v6164 = vpack.c.b16 %v6060, %v6052
    %v6165 = vpack.c.b16 %v6061, %v6053
    %v6166 = vpack.c.b16 %v6062, %v6054
    %v6167 = vpack.c.b16 %v6063, %v6055
    %v6168 = vpack.c.b16 %v6064, %v6056
    %v6169 = vpack.c.b16 %v6073, %v6065
    %v6170 = vpack.c.b16 %v6074, %v6066
    %v6171 = vpack.c.b16 %v6075, %v6067
    %v6172 = vpack.c.b16 %v6076, %v6068
    %v6173 = vpack.c.b16 %v6077, %v6069
    %v6174 = vpack.c.b16 %v6078, %v6070
    %v6175 = vpack.c.b16 %v6079, %v6071
    %v6176 = vpack.c.b16 %v6080, %v6072
    %v6177 = vpack.c.b16 %v6089, %v6081
    %v6178 = vpack.c.b16 %v6090, %v6082
    %v6179 = vpack.c.b16 %v6091, %v6083
    %v6180 = vpack.c.b16 %v6092, %v6084
    %v6181 = vpack.c.b16 %v6093, %v6085
    %v6182 = vpack.c.b16 %v6094, %v6086
    %v6183 = vpack.c.b16 %v6095, %v6087
    %v6184 = vpack.c.b16 %v6096, %v6088
    %v6185 = vpack.c.b16 %v6105, %v6097
    %v6186 = vpack.c.b16 %v6106, %v6098
    %v6187 = vpack.c.b16 %v6107, %v6099
    %v6188 = vpack.c.b16 %v6108, %v6100
    %v6189 = vpack.c.b16 %v6109, %v6101
    %v6190 = vpack.c.b16 %v6110, %v6102
    %v6191 = vpack.c.b16 %v6111, %v6103
    %v6192 = vpack.c.b16 %v6112, %v6104
    %v6193 = vpack.c.b16 %v6121, %v6113
    %v6194 = vpack.c.b16 %v6122, %v6114
    %v6195 = vpack.c.b16 %v6123, %v6115
    %v6196 = vpack.c.b16 %v6124, %v6116
    %v6197 = vpack.c.b16 %v6125, %v6117
    %v6198 = vpack.c.b16 %v6126, %v6118
    %v6199 = vpack.c.b16 %v6127, %v6119
    %v6200 = vpack.c.b16 %v6128, %v6120
    %v6201 = vpack.c.b16 %v6137, %v6129
    %v6202 = vpack.c.b16 %v6138, %v6130
    %v6203 = vpack.c.b16 %v6139, %v6131
    %v6204 = vpack.c.b16 %v6140, %v6132
    %v6205 = vpack.c.b16 %v6141, %v6133
    %v6206 = vpack.c.b16 %v6142, %v6134
    %v6207 = vpack.c.b16 %v6143, %v6135
    %v6208 = vpack.c.b16 %v6144, %v6136
    %6273 = vmatprep.subr.bf16.mxu0 %v6146
    %6274 = vmatpush1.bf16.msra.mxu0 %v6145
    %6275 = vmatprep.subr.bf16.mxu0 %v6154
    %6276 = vmatpush1.bf16.msra.mxu0 %v6153
    %6277 = vmatprep.subr.bf16.mxu0 %v6162
    %6278 = vmatpush1.bf16.msra.mxu0 %v6161
    %6279 = vmatprep.subr.bf16.mxu0 %v6170
    %6280 = vmatpush1.bf16.msra.mxu0 %v6169
    %6281 = vmatprep.subr.bf16.mxu0 %v6178
    %6282 = vmatpush1.bf16.msra.mxu0 %v6177
    %6283 = vmatprep.subr.bf16.mxu0 %v6186
    %6284 = vmatpush1.bf16.msra.mxu0 %v6185
    %6285 = vmatprep.subr.bf16.mxu0 %v6194
    %6286 = vmatpush1.bf16.msra.mxu0 %v6193
    %6287 = vmatprep.subr.bf16.mxu0 %v6202
    %6288 = vmatpush1.bf16.msra.mxu0 %v6201
    %6289 = vmatprep.subr.bf16.mxu0 0
    %6290 = vmatpush1.bf16.msra.mxu0 0
    %6291 = vmatprep.subr.bf16.mxu0 0
    %6292 = vmatpush1.bf16.msra.mxu0 0
    %6293 = vmatprep.subr.bf16.mxu0 0
    %6294 = vmatpush1.bf16.msra.mxu0 0
    %6295 = vmatprep.subr.bf16.mxu0 0
    %6296 = vmatpush1.bf16.msra.mxu0 0
    %6297 = vmatprep.subr.bf16.mxu0 0
    %6298 = vmatpush1.bf16.msra.mxu0 0
    %6299 = vmatprep.subr.bf16.mxu0 0
    %6300 = vmatpush1.bf16.msra.mxu0 0
    %6301 = vmatprep.subr.bf16.mxu0 0
    %6302 = vmatpush1.bf16.msra.mxu0 0
    %6303 = vmatprep.subr.bf16.mxu0 0
    %6304 = vmatpush1.bf16.msra.mxu0 0
    %6305 = vmatprep.mubr.bf16.mxu0 0
    %6306 = vmatmul.mubr.bf16.gmra.mrb[0].mxu0 %v5887
    %v6307 = vpop.f32.mrb[0].mxu0
    %v6308 = vadd.f32 0.0, %v6307
    %v6309 = vpop.f32.mrb[0].mxu0
    %v6310 = vadd.f32 0.0, %v6309
    %v6311 = vpop.f32.mrb[0].mxu0
    %v6312 = vadd.f32 0.0, %v6311
    %v6313 = vpop.f32.mrb[0].mxu0
    %v6314 = vadd.f32 0.0, %v6313
    %6315 = vdwg.mxu0
    %6316 = vmatprep.subr.bf16.mxu0 %v6148
    %6317 = vmatpush1.bf16.msra.mxu0 %v6147
    %6318 = vmatprep.subr.bf16.mxu0 %v6156
    %6319 = vmatpush1.bf16.msra.mxu0 %v6155
    %6320 = vmatprep.subr.bf16.mxu0 %v6164
    %6321 = vmatpush1.bf16.msra.mxu0 %v6163
    %6322 = vmatprep.subr.bf16.mxu0 %v6172
    %6323 = vmatpush1.bf16.msra.mxu0 %v6171
    %6324 = vmatprep.subr.bf16.mxu0 %v6180
    %6325 = vmatpush1.bf16.msra.mxu0 %v6179
    %6326 = vmatprep.subr.bf16.mxu0 %v6188
    %6327 = vmatpush1.bf16.msra.mxu0 %v6187
    %6328 = vmatprep.subr.bf16.mxu0 %v6196
    %6329 = vmatpush1.bf16.msra.mxu0 %v6195
    %6330 = vmatprep.subr.bf16.mxu0 %v6204
    %6331 = vmatpush1.bf16.msra.mxu0 %v6203
    %6332 = vmatprep.subr.bf16.mxu0 0
    %6333 = vmatpush1.bf16.msra.mxu0 0
    %6334 = vmatprep.subr.bf16.mxu0 0
    %6335 = vmatpush1.bf16.msra.mxu0 0
    %6336 = vmatprep.subr.bf16.mxu0 0
    %6337 = vmatpush1.bf16.msra.mxu0 0
    %6338 = vmatprep.subr.bf16.mxu0 0
    %6339 = vmatpush1.bf16.msra.mxu0 0
    %6340 = vmatprep.subr.bf16.mxu0 0
    %6341 = vmatpush1.bf16.msra.mxu0 0
    %6342 = vmatprep.subr.bf16.mxu0 0
    %6343 = vmatpush1.bf16.msra.mxu0 0
    %6344 = vmatprep.subr.bf16.mxu0 0
    %6345 = vmatpush1.bf16.msra.mxu0 0
    %6346 = vmatprep.subr.bf16.mxu0 0
    %6347 = vmatpush1.bf16.msra.mxu0 0
    %6348 = vmatprep.mubr.bf16.mxu0 0
    %6349 = vmatmul.mubr.bf16.gmra.mrb[0].mxu0 %v5887
    %v6350 = vpop.f32.mrb[0].mxu0
    %v6351 = vadd.f32 0.0, %v6350
    %v6352 = vpop.f32.mrb[0].mxu0
    %v6353 = vadd.f32 0.0, %v6352
    %v6354 = vpop.f32.mrb[0].mxu0
    %v6355 = vadd.f32 0.0, %v6354
    %v6356 = vpop.f32.mrb[0].mxu0
    %v6357 = vadd.f32 0.0, %v6356
    %6358 = vdwg.mxu0
    %6359 = vmatprep.subr.bf16.mxu0 %v6150
    %6360 = vmatpush1.bf16.msra.mxu0 %v6149
    %6361 = vmatprep.subr.bf16.mxu0 %v6158
    %6362 = vmatpush1.bf16.msra.mxu0 %v6157
    %6363 = vmatprep.subr.bf16.mxu0 %v6166
    %6364 = vmatpush1.bf16.msra.mxu0 %v6165
    %6365 = vmatprep.subr.bf16.mxu0 %v6174
    %6366 = vmatpush1.bf16.msra.mxu0 %v6173
    %6367 = vmatprep.subr.bf16.mxu0 %v6182
    %6368 = vmatpush1.bf16.msra.mxu0 %v6181
    %6369 = vmatprep.subr.bf16.mxu0 %v6190
    %6370 = vmatpush1.bf16.msra.mxu0 %v6189
    %6371 = vmatprep.subr.bf16.mxu0 %v6198
    %6372 = vmatpush1.bf16.msra.mxu0 %v6197
    %6373 = vmatprep.subr.bf16.mxu0 %v6206
    %6374 = vmatpush1.bf16.msra.mxu0 %v6205
    %6375 = vmatprep.subr.bf16.mxu0 0
    %6376 = vmatpush1.bf16.msra.mxu0 0
    %6377 = vmatprep.subr.bf16.mxu0 0
    %6378 = vmatpush1.bf16.msra.mxu0 0
    %6379 = vmatprep.subr.bf16.mxu0 0
    %6380 = vmatpush1.bf16.msra.mxu0 0
    %6381 = vmatprep.subr.bf16.mxu0 0
    %6382 = vmatpush1.bf16.msra.mxu0 0
    %6383 = vmatprep.subr.bf16.mxu0 0
    %6384 = vmatpush1.bf16.msra.mxu0 0
    %6385 = vmatprep.subr.bf16.mxu0 0
    %6386 = vmatpush1.bf16.msra.mxu0 0
    %6387 = vmatprep.subr.bf16.mxu0 0
    %6388 = vmatpush1.bf16.msra.mxu0 0
    %6389 = vmatprep.subr.bf16.mxu0 0
    %6390 = vmatpush1.bf16.msra.mxu0 0
    %6391 = vmatprep.mubr.bf16.mxu0 0
    %6392 = vmatmul.mubr.bf16.gmra.mrb[0].mxu0 %v5887
    %v6393 = vpop.f32.mrb[0].mxu0
    %v6394 = vadd.f32 0.0, %v6393
    %v6395 = vpop.f32.mrb[0].mxu0
    %v6396 = vadd.f32 0.0, %v6395
    %v6397 = vpop.f32.mrb[0].mxu0
    %v6398 = vadd.f32 0.0, %v6397
    %v6399 = vpop.f32.mrb[0].mxu0
    %v6400 = vadd.f32 0.0, %v6399
    %6401 = vdwg.mxu0
    %6402 = vmatprep.subr.bf16.mxu0 %v6152
    %6403 = vmatpush1.bf16.msra.mxu0 %v6151
    %6404 = vmatprep.subr.bf16.mxu0 %v6160
    %6405 = vmatpush1.bf16.msra.mxu0 %v6159
    %6406 = vmatprep.subr.bf16.mxu0 %v6168
    %6407 = vmatpush1.bf16.msra.mxu0 %v6167
    %6408 = vmatprep.subr.bf16.mxu0 %v6176
    %6409 = vmatpush1.bf16.msra.mxu0 %v6175
    %6410 = vmatprep.subr.bf16.mxu0 %v6184
    %6411 = vmatpush1.bf16.msra.mxu0 %v6183
    %6412 = vmatprep.subr.bf16.mxu0 %v6192
    %6413 = vmatpush1.bf16.msra.mxu0 %v6191
    %6414 = vmatprep.subr.bf16.mxu0 %v6200
    %6415 = vmatpush1.bf16.msra.mxu0 %v6199
    %6416 = vmatprep.subr.bf16.mxu0 %v6208
    %6417 = vmatpush1.bf16.msra.mxu0 %v6207
    %6418 = vmatprep.subr.bf16.mxu0 0
    %6419 = vmatpush1.bf16.msra.mxu0 0
    %6420 = vmatprep.subr.bf16.mxu0 0
    %6421 = vmatpush1.bf16.msra.mxu0 0
    %6422 = vmatprep.subr.bf16.mxu0 0
    %6423 = vmatpush1.bf16.msra.mxu0 0
    %6424 = vmatprep.subr.bf16.mxu0 0
    %6425 = vmatpush1.bf16.msra.mxu0 0
    %6426 = vmatprep.subr.bf16.mxu0 0
    %6427 = vmatpush1.bf16.msra.mxu0 0
    %6428 = vmatprep.subr.bf16.mxu0 0
    %6429 = vmatpush1.bf16.msra.mxu0 0
    %6430 = vmatprep.subr.bf16.mxu0 0
    %6431 = vmatpush1.bf16.msra.mxu0 0
    %6432 = vmatprep.subr.bf16.mxu0 0
    %6433 = vmatpush1.bf16.msra.mxu0 0
    %6434 = vmatprep.mubr.bf16.mxu0 0
    %6435 = vmatmul.mubr.bf16.gmra.mrb[0].mxu0 %v5887
    %v6436 = vpop.f32.mrb[0].mxu0
    %v6437 = vadd.f32 0.0, %v6436
    %v6438 = vpop.f32.mrb[0].mxu0
    %v6439 = vadd.f32 0.0, %v6438
    %v6440 = vpop.f32.mrb[0].mxu0
    %v6441 = vadd.f32 0.0, %v6440
    %v6442 = vpop.f32.mrb[0].mxu0
    %v6443 = vadd.f32 0.0, %v6442
    %6444 = vdwg.mxu0
    %v6445 = vadd.f32 %v5815, %v6308
    %v6446 = vadd.f32 %v5816, %v6310
    %v6447 = vadd.f32 %v5817, %v6351
    %v6448 = vadd.f32 %v5818, %v6353
    %v6449 = vadd.f32 %v5819, %v6394
    %v6450 = vadd.f32 %v5820, %v6396
    %v6451 = vadd.f32 %v5821, %v6437
    %v6452 = vadd.f32 %v5822, %v6439
    %v6453 = vadd.f32 %v5823, %v6312
    %v6454 = vadd.f32 %v5824, %v6314
    %v6455 = vadd.f32 %v5825, %v6355
    %v6456 = vadd.f32 %v5826, %v6357
    %v6457 = vadd.f32 %v5827, %v6398
    %v6458 = vadd.f32 %v5828, %v6400
    %v6459 = vadd.f32 %v5829, %v6441
    %v6460 = vadd.f32 %v5830, %v6443
    %s6461 = scalar_lea.vmem %s0, 80
    %v6462 = vld [vmem:[%s6461] sm:$0xf]
    %v6463 = vld [vmem:[%s6461 + $0x4] sm:$0xf]
    %v6466 = vunpack.c.l.b16 %v6462
    %v6467 = vunpack.c.l.b16 %v6463
    %v6468 = vpack.c.b16 %v6467, %v6466
    %6470 = vmatprep.subr.bf16.mxu0 0
    %6471 = vmatpush1.bf16.msra.mxu0 %v187
    %6472 = vmatprep.subr.bf16.mxu0 0
    %6473 = vmatpush1.bf16.msra.mxu0 %v188
    %6474 = vmatprep.subr.bf16.mxu0 0
    %6475 = vmatpush1.bf16.msra.mxu0 %v189
    %6476 = vmatprep.subr.bf16.mxu0 0
    %6477 = vmatpush1.bf16.msra.mxu0 %v190
    %6478 = vmatprep.subr.bf16.mxu0 0
    %6479 = vmatpush1.bf16.msra.mxu0 %v191
    %6480 = vmatprep.subr.bf16.mxu0 0
    %6481 = vmatpush1.bf16.msra.mxu0 %v192
    %6482 = vmatprep.subr.bf16.mxu0 0
    %6483 = vmatpush1.bf16.msra.mxu0 %v193
    %6484 = vmatprep.subr.bf16.mxu0 0
    %6485 = vmatpush1.bf16.msra.mxu0 %v194
    %6486 = vmatprep.subr.bf16.mxu0 0
    %6487 = vmatpush1.bf16.msra.mxu0 0
    %6488 = vmatprep.subr.bf16.mxu0 0
    %6489 = vmatpush1.bf16.msra.mxu0 0
    %6490 = vmatprep.subr.bf16.mxu0 0
    %6491 = vmatpush1.bf16.msra.mxu0 0
    %6492 = vmatprep.subr.bf16.mxu0 0
    %6493 = vmatpush1.bf16.msra.mxu0 0
    %6494 = vmatprep.subr.bf16.mxu0 0
    %6495 = vmatpush1.bf16.msra.mxu0 0
    %6496 = vmatprep.subr.bf16.mxu0 0
    %6497 = vmatpush1.bf16.msra.mxu0 0
    %6498 = vmatprep.subr.bf16.mxu0 0
    %6499 = vmatpush1.bf16.msra.mxu0 0
    %6500 = vmatprep.subr.bf16.mxu0 0
    %6501 = vmatpush1.bf16.msra.mxu0 0
    %6502 = vmatprep.mubr.bf16.mxu0 0
    %6503 = vmatmul.mubr.bf16.gmra.mrb[0].mxu0 %v6468
    %v6504 = vpop.f32.mrb[0].mxu0
    %v6505 = vadd.f32 0.0, %v6504
    %v6506 = vpop.f32.mrb[0].mxu0
    %v6507 = vpop.f32.mrb[0].mxu0
    %v6508 = vadd.f32 0.0, %v6507
    %v6509 = vpop.f32.mrb[0].mxu0
    %6510 = vdwg.mxu0
    %v6511 = vmul.f32 %v6505, %v138
    %v6512 = vmul.f32 %v6508, %v138
    %v6513 = vadd.f32 %v6511, %v145
    %v6514 = vadd.f32 %v6512, %v145
    %v6515 = vmax.f32 %v6513, 0.0
    %v6516 = vmax.f32 %v6514, 0.0
    %v6517 = vpack.c.bf16 %v6516, %v6515
    %s6518 = scalar_lea.vmem [#allocation7], 5120
    %v6519 = vld [vmem:[%s6518] sm:$0xff]
    %v6520 = vld [vmem:[%s6518 + $0x8] sm:$0xff]
    %v6521 = vld [vmem:[%s6518 + $0x10] sm:$0xff]
    %v6522 = vld [vmem:[%s6518 + $0x18] sm:$0xff]
    %v6523 = vld [vmem:[%s6518 + $0x20] sm:$0xff]
    %v6524 = vld [vmem:[%s6518 + $0x28] sm:$0xff]
    %v6525 = vld [vmem:[%s6518 + $0x30] sm:$0xff]
    %v6526 = vld [vmem:[%s6518 + $0x38] sm:$0xff]
    %v6527 = vld [vmem:[%s6518 + $0x40] sm:$0xff]
    %v6528 = vld [vmem:[%s6518 + $0x48] sm:$0xff]
    %v6529 = vld [vmem:[%s6518 + $0x50] sm:$0xff]
    %v6530 = vld [vmem:[%s6518 + $0x58] sm:$0xff]
    %v6531 = vld [vmem:[%s6518 + $0x60] sm:$0xff]
    %v6532 = vld [vmem:[%s6518 + $0x68] sm:$0xff]
    %v6533 = vld [vmem:[%s6518 + $0x70] sm:$0xff]
    %v6534 = vld [vmem:[%s6518 + $0x78] sm:$0xff]
    %v6535 = vld [vmem:[%s6518 + $0x80] sm:$0xff]
    %v6536 = vld [vmem:[%s6518 + $0x88] sm:$0xff]
    %v6537 = vld [vmem:[%s6518 + $0x90] sm:$0xff]
    %v6538 = vld [vmem:[%s6518 + $0x98] sm:$0xff]
    %v6539 = vld [vmem:[%s6518 + $0xa0] sm:$0xff]
    %v6540 = vld [vmem:[%s6518 + $0xa8] sm:$0xff]
    %v6541 = vld [vmem:[%s6518 + $0xb0] sm:$0xff]
    %v6542 = vld [vmem:[%s6518 + $0xb8] sm:$0xff]
    %v6543 = vld [vmem:[%s6518 + $0xc0] sm:$0xff]
    %v6544 = vld [vmem:[%s6518 + $0xc8] sm:$0xff]
    %v6545 = vld [vmem:[%s6518 + $0xd0] sm:$0xff]
    %v6546 = vld [vmem:[%s6518 + $0xd8] sm:$0xff]
    %v6547 = vld [vmem:[%s6518 + $0xe0] sm:$0xff]
    %v6548 = vld [vmem:[%s6518 + $0xe8] sm:$0xff]
    %v6549 = vld [vmem:[%s6518 + $0xf0] sm:$0xff]
    %v6550 = vld [vmem:[%s6518 + $0xf8] sm:$0xff]
    %v6551 = vld [vmem:[%s6518 + $0x100] sm:$0xff]
    %v6552 = vld [vmem:[%s6518 + $0x108] sm:$0xff]
    %v6553 = vld [vmem:[%s6518 + $0x110] sm:$0xff]
    %v6554 = vld [vmem:[%s6518 + $0x118] sm:$0xff]
    %v6555 = vld [vmem:[%s6518 + $0x120] sm:$0xff]
    %v6556 = vld [vmem:[%s6518 + $0x128] sm:$0xff]
    %v6557 = vld [vmem:[%s6518 + $0x130] sm:$0xff]
    %v6558 = vld [vmem:[%s6518 + $0x138] sm:$0xff]
    %v6559 = vld [vmem:[%s6518 + $0x140] sm:$0xff]
    %v6560 = vld [vmem:[%s6518 + $0x148] sm:$0xff]
    %v6561 = vld [vmem:[%s6518 + $0x150] sm:$0xff]
    %v6562 = vld [vmem:[%s6518 + $0x158] sm:$0xff]
    %v6563 = vld [vmem:[%s6518 + $0x160] sm:$0xff]
    %v6564 = vld [vmem:[%s6518 + $0x168] sm:$0xff]
    %v6565 = vld [vmem:[%s6518 + $0x170] sm:$0xff]
    %v6566 = vld [vmem:[%s6518 + $0x178] sm:$0xff]
    %v6567 = vld [vmem:[%s6518 + $0x180] sm:$0xff]
    %v6568 = vld [vmem:[%s6518 + $0x188] sm:$0xff]
    %v6569 = vld [vmem:[%s6518 + $0x190] sm:$0xff]
    %v6570 = vld [vmem:[%s6518 + $0x198] sm:$0xff]
    %v6571 = vld [vmem:[%s6518 + $0x1a0] sm:$0xff]
    %v6572 = vld [vmem:[%s6518 + $0x1a8] sm:$0xff]
    %v6573 = vld [vmem:[%s6518 + $0x1b0] sm:$0xff]
    %v6574 = vld [vmem:[%s6518 + $0x1b8] sm:$0xff]
    %v6575 = vld [vmem:[%s6518 + $0x1c0] sm:$0xff]
    %v6576 = vld [vmem:[%s6518 + $0x1c8] sm:$0xff]
    %v6577 = vld [vmem:[%s6518 + $0x1d0] sm:$0xff]
    %v6578 = vld [vmem:[%s6518 + $0x1d8] sm:$0xff]
    %v6579 = vld [vmem:[%s6518 + $0x1e0] sm:$0xff]
    %v6580 = vld [vmem:[%s6518 + $0x1e8] sm:$0xff]
    %v6581 = vld [vmem:[%s6518 + $0x1f0] sm:$0xff]
    %v6582 = vld [vmem:[%s6518 + $0x1f8] sm:$0xff]
    %v6647 = vunpack.c.l.b16 %v6519
    %v6648 = vunpack.c.h.b16 %v6519
    %v6649 = vunpack.c.l.b16 %v6520
    %v6650 = vunpack.c.h.b16 %v6520
    %v6651 = vunpack.c.l.b16 %v6521
    %v6652 = vunpack.c.h.b16 %v6521
    %v6653 = vunpack.c.l.b16 %v6522
    %v6654 = vunpack.c.h.b16 %v6522
    %v6655 = vunpack.c.l.b16 %v6523
    %v6656 = vunpack.c.h.b16 %v6523
    %v6657 = vunpack.c.l.b16 %v6524
    %v6658 = vunpack.c.h.b16 %v6524
    %v6659 = vunpack.c.l.b16 %v6525
    %v6660 = vunpack.c.h.b16 %v6525
    %v6661 = vunpack.c.l.b16 %v6526
    %v6662 = vunpack.c.h.b16 %v6526
    %v6663 = vunpack.c.l.b16 %v6527
    %v6664 = vunpack.c.h.b16 %v6527
    %v6665 = vunpack.c.l.b16 %v6528
    %v6666 = vunpack.c.h.b16 %v6528
    %v6667 = vunpack.c.l.b16 %v6529
    %v6668 = vunpack.c.h.b16 %v6529
    %v6669 = vunpack.c.l.b16 %v6530
    %v6670 = vunpack.c.h.b16 %v6530
    %v6671 = vunpack.c.l.b16 %v6531
    %v6672 = vunpack.c.h.b16 %v6531
    %v6673 = vunpack.c.l.b16 %v6532
    %v6674 = vunpack.c.h.b16 %v6532
    %v6675 = vunpack.c.l.b16 %v6533
    %v6676 = vunpack.c.h.b16 %v6533
    %v6677 = vunpack.c.l.b16 %v6534
    %v6678 = vunpack.c.h.b16 %v6534
    %v6679 = vunpack.c.l.b16 %v6535
    %v6680 = vunpack.c.h.b16 %v6535
    %v6681 = vunpack.c.l.b16 %v6536
    %v6682 = vunpack.c.h.b16 %v6536
    %v6683 = vunpack.c.l.b16 %v6537
    %v6684 = vunpack.c.h.b16 %v6537
    %v6685 = vunpack.c.l.b16 %v6538
    %v6686 = vunpack.c.h.b16 %v6538
    %v6687 = vunpack.c.l.b16 %v6539
    %v6688 = vunpack.c.h.b16 %v6539
    %v6689 = vunpack.c.l.b16 %v6540
    %v6690 = vunpack.c.h.b16 %v6540
    %v6691 = vunpack.c.l.b16 %v6541
    %v6692 = vunpack.c.h.b16 %v6541
    %v6693 = vunpack.c.l.b16 %v6542
    %v6694 = vunpack.c.h.b16 %v6542
    %v6695 = vunpack.c.l.b16 %v6543
    %v6696 = vunpack.c.h.b16 %v6543
    %v6697 = vunpack.c.l.b16 %v6544
    %v6698 = vunpack.c.h.b16 %v6544
    %v6699 = vunpack.c.l.b16 %v6545
    %v6700 = vunpack.c.h.b16 %v6545
    %v6701 = vunpack.c.l.b16 %v6546
    %v6702 = vunpack.c.h.b16 %v6546
    %v6703 = vunpack.c.l.b16 %v6547
    %v6704 = vunpack.c.h.b16 %v6547
    %v6705 = vunpack.c.l.b16 %v6548
    %v6706 = vunpack.c.h.b16 %v6548
    %v6707 = vunpack.c.l.b16 %v6549
    %v6708 = vunpack.c.h.b16 %v6549
    %v6709 = vunpack.c.l.b16 %v6550
    %v6710 = vunpack.c.h.b16 %v6550
    %v6711 = vunpack.c.l.b16 %v6551
    %v6712 = vunpack.c.h.b16 %v6551
    %v6713 = vunpack.c.l.b16 %v6552
    %v6714 = vunpack.c.h.b16 %v6552
    %v6715 = vunpack.c.l.b16 %v6553
    %v6716 = vunpack.c.h.b16 %v6553
    %v6717 = vunpack.c.l.b16 %v6554
    %v6718 = vunpack.c.h.b16 %v6554
    %v6719 = vunpack.c.l.b16 %v6555
    %v6720 = vunpack.c.h.b16 %v6555
    %v6721 = vunpack.c.l.b16 %v6556
    %v6722 = vunpack.c.h.b16 %v6556
    %v6723 = vunpack.c.l.b16 %v6557
    %v6724 = vunpack.c.h.b16 %v6557
    %v6725 = vunpack.c.l.b16 %v6558
    %v6726 = vunpack.c.h.b16 %v6558
    %v6727 = vunpack.c.l.b16 %v6559
    %v6728 = vunpack.c.h.b16 %v6559
    %v6729 = vunpack.c.l.b16 %v6560
    %v6730 = vunpack.c.h.b16 %v6560
    %v6731 = vunpack.c.l.b16 %v6561
    %v6732 = vunpack.c.h.b16 %v6561
    %v6733 = vunpack.c.l.b16 %v6562
    %v6734 = vunpack.c.h.b16 %v6562
    %v6735 = vunpack.c.l.b16 %v6563
    %v6736 = vunpack.c.h.b16 %v6563
    %v6737 = vunpack.c.l.b16 %v6564
    %v6738 = vunpack.c.h.b16 %v6564
    %v6739 = vunpack.c.l.b16 %v6565
    %v6740 = vunpack.c.h.b16 %v6565
    %v6741 = vunpack.c.l.b16 %v6566
    %v6742 = vunpack.c.h.b16 %v6566
    %v6743 = vunpack.c.l.b16 %v6567
    %v6744 = vunpack.c.h.b16 %v6567
    %v6745 = vunpack.c.l.b16 %v6568
    %v6746 = vunpack.c.h.b16 %v6568
    %v6747 = vunpack.c.l.b16 %v6569
    %v6748 = vunpack.c.h.b16 %v6569
    %v6749 = vunpack.c.l.b16 %v6570
    %v6750 = vunpack.c.h.b16 %v6570
    %v6751 = vunpack.c.l.b16 %v6571
    %v6752 = vunpack.c.h.b16 %v6571
    %v6753 = vunpack.c.l.b16 %v6572
    %v6754 = vunpack.c.h.b16 %v6572
    %v6755 = vunpack.c.l.b16 %v6573
    %v6756 = vunpack.c.h.b16 %v6573
    %v6757 = vunpack.c.l.b16 %v6574
    %v6758 = vunpack.c.h.b16 %v6574
    %v6759 = vunpack.c.l.b16 %v6575
    %v6760 = vunpack.c.h.b16 %v6575
    %v6761 = vunpack.c.l.b16 %v6576
    %v6762 = vunpack.c.h.b16 %v6576
    %v6763 = vunpack.c.l.b16 %v6577
    %v6764 = vunpack.c.h.b16 %v6577
    %v6765 = vunpack.c.l.b16 %v6578
    %v6766 = vunpack.c.h.b16 %v6578
    %v6767 = vunpack.c.l.b16 %v6579
    %v6768 = vunpack.c.h.b16 %v6579
    %v6769 = vunpack.c.l.b16 %v6580
    %v6770 = vunpack.c.h.b16 %v6580
    %v6771 = vunpack.c.l.b16 %v6581
    %v6772 = vunpack.c.h.b16 %v6581
    %v6773 = vunpack.c.l.b16 %v6582
    %v6774 = vunpack.c.h.b16 %v6582
    %v6775 = vpack.c.b16 %v6655, %v6647
    %v6776 = vpack.c.b16 %v6656, %v6648
    %v6777 = vpack.c.b16 %v6657, %v6649
    %v6778 = vpack.c.b16 %v6658, %v6650
    %v6779 = vpack.c.b16 %v6659, %v6651
    %v6780 = vpack.c.b16 %v6660, %v6652
    %v6781 = vpack.c.b16 %v6661, %v6653
    %v6782 = vpack.c.b16 %v6662, %v6654
    %v6783 = vpack.c.b16 %v6671, %v6663
    %v6784 = vpack.c.b16 %v6672, %v6664
    %v6785 = vpack.c.b16 %v6673, %v6665
    %v6786 = vpack.c.b16 %v6674, %v6666
    %v6787 = vpack.c.b16 %v6675, %v6667
    %v6788 = vpack.c.b16 %v6676, %v6668
    %v6789 = vpack.c.b16 %v6677, %v6669
    %v6790 = vpack.c.b16 %v6678, %v6670
    %v6791 = vpack.c.b16 %v6687, %v6679
    %v6792 = vpack.c.b16 %v6688, %v6680
    %v6793 = vpack.c.b16 %v6689, %v6681
    %v6794 = vpack.c.b16 %v6690, %v6682
    %v6795 = vpack.c.b16 %v6691, %v6683
    %v6796 = vpack.c.b16 %v6692, %v6684
    %v6797 = vpack.c.b16 %v6693, %v6685
    %v6798 = vpack.c.b16 %v6694, %v6686
    %v6799 = vpack.c.b16 %v6703, %v6695
    %v6800 = vpack.c.b16 %v6704, %v6696
    %v6801 = vpack.c.b16 %v6705, %v6697
    %v6802 = vpack.c.b16 %v6706, %v6698
    %v6803 = vpack.c.b16 %v6707, %v6699
    %v6804 = vpack.c.b16 %v6708, %v6700
    %v6805 = vpack.c.b16 %v6709, %v6701
    %v6806 = vpack.c.b16 %v6710, %v6702
    %v6807 = vpack.c.b16 %v6719, %v6711
    %v6808 = vpack.c.b16 %v6720, %v6712
    %v6809 = vpack.c.b16 %v6721, %v6713
    %v6810 = vpack.c.b16 %v6722, %v6714
    %v6811 = vpack.c.b16 %v6723, %v6715
    %v6812 = vpack.c.b16 %v6724, %v6716
    %v6813 = vpack.c.b16 %v6725, %v6717
    %v6814 = vpack.c.b16 %v6726, %v6718
    %v6815 = vpack.c.b16 %v6735, %v6727
    %v6816 = vpack.c.b16 %v6736, %v6728
    %v6817 = vpack.c.b16 %v6737, %v6729
    %v6818 = vpack.c.b16 %v6738, %v6730
    %v6819 = vpack.c.b16 %v6739, %v6731
    %v6820 = vpack.c.b16 %v6740, %v6732
    %v6821 = vpack.c.b16 %v6741, %v6733
    %v6822 = vpack.c.b16 %v6742, %v6734
    %v6823 = vpack.c.b16 %v6751, %v6743
    %v6824 = vpack.c.b16 %v6752, %v6744
    %v6825 = vpack.c.b16 %v6753, %v6745
    %v6826 = vpack.c.b16 %v6754, %v6746
    %v6827 = vpack.c.b16 %v6755, %v6747
    %v6828 = vpack.c.b16 %v6756, %v6748
    %v6829 = vpack.c.b16 %v6757, %v6749
    %v6830 = vpack.c.b16 %v6758, %v6750
    %v6831 = vpack.c.b16 %v6767, %v6759
    %v6832 = vpack.c.b16 %v6768, %v6760
    %v6833 = vpack.c.b16 %v6769, %v6761
    %v6834 = vpack.c.b16 %v6770, %v6762
    %v6835 = vpack.c.b16 %v6771, %v6763
    %v6836 = vpack.c.b16 %v6772, %v6764
    %v6837 = vpack.c.b16 %v6773, %v6765
    %v6838 = vpack.c.b16 %v6774, %v6766
    %6903 = vmatprep.subr.bf16.mxu0 %v6776
    %6904 = vmatpush1.bf16.msra.mxu0 %v6775
    %6905 = vmatprep.subr.bf16.mxu0 %v6784
    %6906 = vmatpush1.bf16.msra.mxu0 %v6783
    %6907 = vmatprep.subr.bf16.mxu0 %v6792
    %6908 = vmatpush1.bf16.msra.mxu0 %v6791
    %6909 = vmatprep.subr.bf16.mxu0 %v6800
    %6910 = vmatpush1.bf16.msra.mxu0 %v6799
    %6911 = vmatprep.subr.bf16.mxu0 %v6808
    %6912 = vmatpush1.bf16.msra.mxu0 %v6807
    %6913 = vmatprep.subr.bf16.mxu0 %v6816
    %6914 = vmatpush1.bf16.msra.mxu0 %v6815
    %6915 = vmatprep.subr.bf16.mxu0 %v6824
    %6916 = vmatpush1.bf16.msra.mxu0 %v6823
    %6917 = vmatprep.subr.bf16.mxu0 %v6832
    %6918 = vmatpush1.bf16.msra.mxu0 %v6831
    %6919 = vmatprep.subr.bf16.mxu0 0
    %6920 = vmatpush1.bf16.msra.mxu0 0
    %6921 = vmatprep.subr.bf16.mxu0 0
    %6922 = vmatpush1.bf16.msra.mxu0 0
    %6923 = vmatprep.subr.bf16.mxu0 0
    %6924 = vmatpush1.bf16.msra.mxu0 0
    %6925 = vmatprep.subr.bf16.mxu0 0
    %6926 = vmatpush1.bf16.msra.mxu0 0
    %6927 = vmatprep.subr.bf16.mxu0 0
    %6928 = vmatpush1.bf16.msra.mxu0 0
    %6929 = vmatprep.subr.bf16.mxu0 0
    %6930 = vmatpush1.bf16.msra.mxu0 0
    %6931 = vmatprep.subr.bf16.mxu0 0
    %6932 = vmatpush1.bf16.msra.mxu0 0
    %6933 = vmatprep.subr.bf16.mxu0 0
    %6934 = vmatpush1.bf16.msra.mxu0 0
    %6935 = vmatprep.mubr.bf16.mxu0 0
    %6936 = vmatmul.mubr.bf16.gmra.mrb[0].mxu0 %v6517
    %v6937 = vpop.f32.mrb[0].mxu0
    %v6938 = vadd.f32 0.0, %v6937
    %v6939 = vpop.f32.mrb[0].mxu0
    %v6940 = vadd.f32 0.0, %v6939
    %v6941 = vpop.f32.mrb[0].mxu0
    %v6942 = vadd.f32 0.0, %v6941
    %v6943 = vpop.f32.mrb[0].mxu0
    %v6944 = vadd.f32 0.0, %v6943
    %6945 = vdwg.mxu0
    %6946 = vmatprep.subr.bf16.mxu0 %v6778
    %6947 = vmatpush1.bf16.msra.mxu0 %v6777
    %6948 = vmatprep.subr.bf16.mxu0 %v6786
    %6949 = vmatpush1.bf16.msra.mxu0 %v6785
    %6950 = vmatprep.subr.bf16.mxu0 %v6794
    %6951 = vmatpush1.bf16.msra.mxu0 %v6793
    %6952 = vmatprep.subr.bf16.mxu0 %v6802
    %6953 = vmatpush1.bf16.msra.mxu0 %v6801
    %6954 = vmatprep.subr.bf16.mxu0 %v6810
    %6955 = vmatpush1.bf16.msra.mxu0 %v6809
    %6956 = vmatprep.subr.bf16.mxu0 %v6818
    %6957 = vmatpush1.bf16.msra.mxu0 %v6817
    %6958 = vmatprep.subr.bf16.mxu0 %v6826
    %6959 = vmatpush1.bf16.msra.mxu0 %v6825
    %6960 = vmatprep.subr.bf16.mxu0 %v6834
    %6961 = vmatpush1.bf16.msra.mxu0 %v6833
    %6962 = vmatprep.subr.bf16.mxu0 0
    %6963 = vmatpush1.bf16.msra.mxu0 0
    %6964 = vmatprep.subr.bf16.mxu0 0
    %6965 = vmatpush1.bf16.msra.mxu0 0
    %6966 = vmatprep.subr.bf16.mxu0 0
    %6967 = vmatpush1.bf16.msra.mxu0 0
    %6968 = vmatprep.subr.bf16.mxu0 0
    %6969 = vmatpush1.bf16.msra.mxu0 0
    %6970 = vmatprep.subr.bf16.mxu0 0
    %6971 = vmatpush1.bf16.msra.mxu0 0
    %6972 = vmatprep.subr.bf16.mxu0 0
    %6973 = vmatpush1.bf16.msra.mxu0 0
    %6974 = vmatprep.subr.bf16.mxu0 0
    %6975 = vmatpush1.bf16.msra.mxu0 0
    %6976 = vmatprep.subr.bf16.mxu0 0
    %6977 = vmatpush1.bf16.msra.mxu0 0
    %6978 = vmatprep.mubr.bf16.mxu0 0
    %6979 = vmatmul.mubr.bf16.gmra.mrb[0].mxu0 %v6517
    %v6980 = vpop.f32.mrb[0].mxu0
    %v6981 = vadd.f32 0.0, %v6980
    %v6982 = vpop.f32.mrb[0].mxu0
    %v6983 = vadd.f32 0.0, %v6982
    %v6984 = vpop.f32.mrb[0].mxu0
    %v6985 = vadd.f32 0.0, %v6984
    %v6986 = vpop.f32.mrb[0].mxu0
    %v6987 = vadd.f32 0.0, %v6986
    %6988 = vdwg.mxu0
    %6989 = vmatprep.subr.bf16.mxu0 %v6780
    %6990 = vmatpush1.bf16.msra.mxu0 %v6779
    %6991 = vmatprep.subr.bf16.mxu0 %v6788
    %6992 = vmatpush1.bf16.msra.mxu0 %v6787
    %6993 = vmatprep.subr.bf16.mxu0 %v6796
    %6994 = vmatpush1.bf16.msra.mxu0 %v6795
    %6995 = vmatprep.subr.bf16.mxu0 %v6804
    %6996 = vmatpush1.bf16.msra.mxu0 %v6803
    %6997 = vmatprep.subr.bf16.mxu0 %v6812
    %6998 = vmatpush1.bf16.msra.mxu0 %v6811
    %6999 = vmatprep.subr.bf16.mxu0 %v6820
    %7000 = vmatpush1.bf16.msra.mxu0 %v6819
    %7001 = vmatprep.subr.bf16.mxu0 %v6828
    %7002 = vmatpush1.bf16.msra.mxu0 %v6827
    %7003 = vmatprep.subr.bf16.mxu0 %v6836
    %7004 = vmatpush1.bf16.msra.mxu0 %v6835
    %7005 = vmatprep.subr.bf16.mxu0 0
    %7006 = vmatpush1.bf16.msra.mxu0 0
    %7007 = vmatprep.subr.bf16.mxu0 0
    %7008 = vmatpush1.bf16.msra.mxu0 0
    %7009 = vmatprep.subr.bf16.mxu0 0
    %7010 = vmatpush1.bf16.msra.mxu0 0
    %7011 = vmatprep.subr.bf16.mxu0 0
    %7012 = vmatpush1.bf16.msra.mxu0 0
    %7013 = vmatprep.subr.bf16.mxu0 0
    %7014 = vmatpush1.bf16.msra.mxu0 0
    %7015 = vmatprep.subr.bf16.mxu0 0
    %7016 = vmatpush1.bf16.msra.mxu0 0
    %7017 = vmatprep.subr.bf16.mxu0 0
    %7018 = vmatpush1.bf16.msra.mxu0 0
    %7019 = vmatprep.subr.bf16.mxu0 0
    %7020 = vmatpush1.bf16.msra.mxu0 0
    %7021 = vmatprep.mubr.bf16.mxu0 0
    %7022 = vmatmul.mubr.bf16.gmra.mrb[0].mxu0 %v6517
    %v7023 = vpop.f32.mrb[0].mxu0
    %v7024 = vadd.f32 0.0, %v7023
    %v7025 = vpop.f32.mrb[0].mxu0
    %v7026 = vadd.f32 0.0, %v7025
    %v7027 = vpop.f32.mrb[0].mxu0
    %v7028 = vadd.f32 0.0, %v7027
    %v7029 = vpop.f32.mrb[0].mxu0
    %v7030 = vadd.f32 0.0, %v7029
    %7031 = vdwg.mxu0
    %7032 = vmatprep.subr.bf16.mxu0 %v6782
    %7033 = vmatpush1.bf16.msra.mxu0 %v6781
    %7034 = vmatprep.subr.bf16.mxu0 %v6790
    %7035 = vmatpush1.bf16.msra.mxu0 %v6789
    %7036 = vmatprep.subr.bf16.mxu0 %v6798
    %7037 = vmatpush1.bf16.msra.mxu0 %v6797
    %7038 = vmatprep.subr.bf16.mxu0 %v6806
    %7039 = vmatpush1.bf16.msra.mxu0 %v6805
    %7040 = vmatprep.subr.bf16.mxu0 %v6814
    %7041 = vmatpush1.bf16.msra.mxu0 %v6813
    %7042 = vmatprep.subr.bf16.mxu0 %v6822
    %7043 = vmatpush1.bf16.msra.mxu0 %v6821
    %7044 = vmatprep.subr.bf16.mxu0 %v6830
    %7045 = vmatpush1.bf16.msra.mxu0 %v6829
    %7046 = vmatprep.subr.bf16.mxu0 %v6838
    %7047 = vmatpush1.bf16.msra.mxu0 %v6837
    %7048 = vmatprep.subr.bf16.mxu0 0
    %7049 = vmatpush1.bf16.msra.mxu0 0
    %7050 = vmatprep.subr.bf16.mxu0 0
    %7051 = vmatpush1.bf16.msra.mxu0 0
    %7052 = vmatprep.subr.bf16.mxu0 0
    %7053 = vmatpush1.bf16.msra.mxu0 0
    %7054 = vmatprep.subr.bf16.mxu0 0
    %7055 = vmatpush1.bf16.msra.mxu0 0
    %7056 = vmatprep.subr.bf16.mxu0 0
    %7057 = vmatpush1.bf16.msra.mxu0 0
    %7058 = vmatprep.subr.bf16.mxu0 0
    %7059 = vmatpush1.bf16.msra.mxu0 0
    %7060 = vmatprep.subr.bf16.mxu0 0
    %7061 = vmatpush1.bf16.msra.mxu0 0
    %7062 = vmatprep.subr.bf16.mxu0 0
    %7063 = vmatpush1.bf16.msra.mxu0 0
    %7064 = vmatprep.mubr.bf16.mxu0 0
    %7065 = vmatmul.mubr.bf16.gmra.mrb[0].mxu0 %v6517
    %v7066 = vpop.f32.mrb[0].mxu0
    %v7067 = vadd.f32 0.0, %v7066
    %v7068 = vpop.f32.mrb[0].mxu0
    %v7069 = vadd.f32 0.0, %v7068
    %v7070 = vpop.f32.mrb[0].mxu0
    %v7071 = vadd.f32 0.0, %v7070
    %v7072 = vpop.f32.mrb[0].mxu0
    %v7073 = vadd.f32 0.0, %v7072
    %7074 = vdwg.mxu0
    %v7075 = vadd.f32 %v6445, %v6938
    %v7076 = vadd.f32 %v6446, %v6940
    %v7077 = vadd.f32 %v6447, %v6981
    %v7078 = vadd.f32 %v6448, %v6983
    %v7079 = vadd.f32 %v6449, %v7024
    %v7080 = vadd.f32 %v6450, %v7026
    %v7081 = vadd.f32 %v6451, %v7067
    %v7082 = vadd.f32 %v6452, %v7069
    %v7083 = vadd.f32 %v6453, %v6942
    %v7084 = vadd.f32 %v6454, %v6944
    %v7085 = vadd.f32 %v6455, %v6985
    %v7086 = vadd.f32 %v6456, %v6987
    %v7087 = vadd.f32 %v6457, %v7028
    %v7088 = vadd.f32 %v6458, %v7030
    %v7089 = vadd.f32 %v6459, %v7071
    %v7090 = vadd.f32 %v6460, %v7073
    %s7091 = scalar_lea.vmem %s0, 88
    %v7092 = vld [vmem:[%s7091] sm:$0xf]
    %v7093 = vld [vmem:[%s7091 + $0x4] sm:$0xf]
    %v7096 = vunpack.c.l.b16 %v7092
    %v7097 = vunpack.c.l.b16 %v7093
    %v7098 = vpack.c.b16 %v7097, %v7096
    %7100 = vmatprep.subr.bf16.mxu0 0
    %7101 = vmatpush1.bf16.msra.mxu0 %v187
    %7102 = vmatprep.subr.bf16.mxu0 0
    %7103 = vmatpush1.bf16.msra.mxu0 %v188
    %7104 = vmatprep.subr.bf16.mxu0 0
    %7105 = vmatpush1.bf16.msra.mxu0 %v189
    %7106 = vmatprep.subr.bf16.mxu0 0
    %7107 = vmatpush1.bf16.msra.mxu0 %v190
    %7108 = vmatprep.subr.bf16.mxu0 0
    %7109 = vmatpush1.bf16.msra.mxu0 %v191
    %7110 = vmatprep.subr.bf16.mxu0 0
    %7111 = vmatpush1.bf16.msra.mxu0 %v192
    %7112 = vmatprep.subr.bf16.mxu0 0
    %7113 = vmatpush1.bf16.msra.mxu0 %v193
    %7114 = vmatprep.subr.bf16.mxu0 0
    %7115 = vmatpush1.bf16.msra.mxu0 %v194
    %7116 = vmatprep.subr.bf16.mxu0 0
    %7117 = vmatpush1.bf16.msra.mxu0 0
    %7118 = vmatprep.subr.bf16.mxu0 0
    %7119 = vmatpush1.bf16.msra.mxu0 0
    %7120 = vmatprep.subr.bf16.mxu0 0
    %7121 = vmatpush1.bf16.msra.mxu0 0
    %7122 = vmatprep.subr.bf16.mxu0 0
    %7123 = vmatpush1.bf16.msra.mxu0 0
    %7124 = vmatprep.subr.bf16.mxu0 0
    %7125 = vmatpush1.bf16.msra.mxu0 0
    %7126 = vmatprep.subr.bf16.mxu0 0
    %7127 = vmatpush1.bf16.msra.mxu0 0
    %7128 = vmatprep.subr.bf16.mxu0 0
    %7129 = vmatpush1.bf16.msra.mxu0 0
    %7130 = vmatprep.subr.bf16.mxu0 0
    %7131 = vmatpush1.bf16.msra.mxu0 0
    %7132 = vmatprep.mubr.bf16.mxu0 0
    %7133 = vmatmul.mubr.bf16.gmra.mrb[0].mxu0 %v7098
    %v7134 = vpop.f32.mrb[0].mxu0
    %v7135 = vadd.f32 0.0, %v7134
    %v7136 = vpop.f32.mrb[0].mxu0
    %v7137 = vpop.f32.mrb[0].mxu0
    %v7138 = vadd.f32 0.0, %v7137
    %v7139 = vpop.f32.mrb[0].mxu0
    %7140 = vdwg.mxu0
    %v7141 = vmul.f32 %v7135, %v138
    %v7142 = vmul.f32 %v7138, %v138
    %v7143 = vadd.f32 %v7141, %v145
    %v7144 = vadd.f32 %v7142, %v145
    %v7145 = vmax.f32 %v7143, 0.0
    %v7146 = vmax.f32 %v7144, 0.0
    %v7147 = vpack.c.bf16 %v7146, %v7145
    %s7148 = scalar_lea.vmem [#allocation7], 5632
    %v7149 = vld [vmem:[%s7148] sm:$0xff]
    %v7150 = vld [vmem:[%s7148 + $0x8] sm:$0xff]
    %v7151 = vld [vmem:[%s7148 + $0x10] sm:$0xff]
    %v7152 = vld [vmem:[%s7148 + $0x18] sm:$0xff]
    %v7153 = vld [vmem:[%s7148 + $0x20] sm:$0xff]
    %v7154 = vld [vmem:[%s7148 + $0x28] sm:$0xff]
    %v7155 = vld [vmem:[%s7148 + $0x30] sm:$0xff]
    %v7156 = vld [vmem:[%s7148 + $0x38] sm:$0xff]
    %v7157 = vld [vmem:[%s7148 + $0x40] sm:$0xff]
    %v7158 = vld [vmem:[%s7148 + $0x48] sm:$0xff]
    %v7159 = vld [vmem:[%s7148 + $0x50] sm:$0xff]
    %v7160 = vld [vmem:[%s7148 + $0x58] sm:$0xff]
    %v7161 = vld [vmem:[%s7148 + $0x60] sm:$0xff]
    %v7162 = vld [vmem:[%s7148 + $0x68] sm:$0xff]
    %v7163 = vld [vmem:[%s7148 + $0x70] sm:$0xff]
    %v7164 = vld [vmem:[%s7148 + $0x78] sm:$0xff]
    %v7165 = vld [vmem:[%s7148 + $0x80] sm:$0xff]
    %v7166 = vld [vmem:[%s7148 + $0x88] sm:$0xff]
    %v7167 = vld [vmem:[%s7148 + $0x90] sm:$0xff]
    %v7168 = vld [vmem:[%s7148 + $0x98] sm:$0xff]
    %v7169 = vld [vmem:[%s7148 + $0xa0] sm:$0xff]
    %v7170 = vld [vmem:[%s7148 + $0xa8] sm:$0xff]
    %v7171 = vld [vmem:[%s7148 + $0xb0] sm:$0xff]
    %v7172 = vld [vmem:[%s7148 + $0xb8] sm:$0xff]
    %v7173 = vld [vmem:[%s7148 + $0xc0] sm:$0xff]
    %v7174 = vld [vmem:[%s7148 + $0xc8] sm:$0xff]
    %v7175 = vld [vmem:[%s7148 + $0xd0] sm:$0xff]
    %v7176 = vld [vmem:[%s7148 + $0xd8] sm:$0xff]
    %v7177 = vld [vmem:[%s7148 + $0xe0] sm:$0xff]
    %v7178 = vld [vmem:[%s7148 + $0xe8] sm:$0xff]
    %v7179 = vld [vmem:[%s7148 + $0xf0] sm:$0xff]
    %v7180 = vld [vmem:[%s7148 + $0xf8] sm:$0xff]
    %v7181 = vld [vmem:[%s7148 + $0x100] sm:$0xff]
    %v7182 = vld [vmem:[%s7148 + $0x108] sm:$0xff]
    %v7183 = vld [vmem:[%s7148 + $0x110] sm:$0xff]
    %v7184 = vld [vmem:[%s7148 + $0x118] sm:$0xff]
    %v7185 = vld [vmem:[%s7148 + $0x120] sm:$0xff]
    %v7186 = vld [vmem:[%s7148 + $0x128] sm:$0xff]
    %v7187 = vld [vmem:[%s7148 + $0x130] sm:$0xff]
    %v7188 = vld [vmem:[%s7148 + $0x138] sm:$0xff]
    %v7189 = vld [vmem:[%s7148 + $0x140] sm:$0xff]
    %v7190 = vld [vmem:[%s7148 + $0x148] sm:$0xff]
    %v7191 = vld [vmem:[%s7148 + $0x150] sm:$0xff]
    %v7192 = vld [vmem:[%s7148 + $0x158] sm:$0xff]
    %v7193 = vld [vmem:[%s7148 + $0x160] sm:$0xff]
    %v7194 = vld [vmem:[%s7148 + $0x168] sm:$0xff]
    %v7195 = vld [vmem:[%s7148 + $0x170] sm:$0xff]
    %v7196 = vld [vmem:[%s7148 + $0x178] sm:$0xff]
    %v7197 = vld [vmem:[%s7148 + $0x180] sm:$0xff]
    %v7198 = vld [vmem:[%s7148 + $0x188] sm:$0xff]
    %v7199 = vld [vmem:[%s7148 + $0x190] sm:$0xff]
    %v7200 = vld [vmem:[%s7148 + $0x198] sm:$0xff]
    %v7201 = vld [vmem:[%s7148 + $0x1a0] sm:$0xff]
    %v7202 = vld [vmem:[%s7148 + $0x1a8] sm:$0xff]
    %v7203 = vld [vmem:[%s7148 + $0x1b0] sm:$0xff]
    %v7204 = vld [vmem:[%s7148 + $0x1b8] sm:$0xff]
    %v7205 = vld [vmem:[%s7148 + $0x1c0] sm:$0xff]
    %v7206 = vld [vmem:[%s7148 + $0x1c8] sm:$0xff]
    %v7207 = vld [vmem:[%s7148 + $0x1d0] sm:$0xff]
    %v7208 = vld [vmem:[%s7148 + $0x1d8] sm:$0xff]
    %v7209 = vld [vmem:[%s7148 + $0x1e0] sm:$0xff]
    %v7210 = vld [vmem:[%s7148 + $0x1e8] sm:$0xff]
    %v7211 = vld [vmem:[%s7148 + $0x1f0] sm:$0xff]
    %v7212 = vld [vmem:[%s7148 + $0x1f8] sm:$0xff]
    %v7277 = vunpack.c.l.b16 %v7149
    %v7278 = vunpack.c.h.b16 %v7149
    %v7279 = vunpack.c.l.b16 %v7150
    %v7280 = vunpack.c.h.b16 %v7150
    %v7281 = vunpack.c.l.b16 %v7151
    %v7282 = vunpack.c.h.b16 %v7151
    %v7283 = vunpack.c.l.b16 %v7152
    %v7284 = vunpack.c.h.b16 %v7152
    %v7285 = vunpack.c.l.b16 %v7153
    %v7286 = vunpack.c.h.b16 %v7153
    %v7287 = vunpack.c.l.b16 %v7154
    %v7288 = vunpack.c.h.b16 %v7154
    %v7289 = vunpack.c.l.b16 %v7155
    %v7290 = vunpack.c.h.b16 %v7155
    %v7291 = vunpack.c.l.b16 %v7156
    %v7292 = vunpack.c.h.b16 %v7156
    %v7293 = vunpack.c.l.b16 %v7157
    %v7294 = vunpack.c.h.b16 %v7157
    %v7295 = vunpack.c.l.b16 %v7158
    %v7296 = vunpack.c.h.b16 %v7158
    %v7297 = vunpack.c.l.b16 %v7159
    %v7298 = vunpack.c.h.b16 %v7159
    %v7299 = vunpack.c.l.b16 %v7160
    %v7300 = vunpack.c.h.b16 %v7160
    %v7301 = vunpack.c.l.b16 %v7161
    %v7302 = vunpack.c.h.b16 %v7161
    %v7303 = vunpack.c.l.b16 %v7162
    %v7304 = vunpack.c.h.b16 %v7162
    %v7305 = vunpack.c.l.b16 %v7163
    %v7306 = vunpack.c.h.b16 %v7163
    %v7307 = vunpack.c.l.b16 %v7164
    %v7308 = vunpack.c.h.b16 %v7164
    %v7309 = vunpack.c.l.b16 %v7165
    %v7310 = vunpack.c.h.b16 %v7165
    %v7311 = vunpack.c.l.b16 %v7166
    %v7312 = vunpack.c.h.b16 %v7166
    %v7313 = vunpack.c.l.b16 %v7167
    %v7314 = vunpack.c.h.b16 %v7167
    %v7315 = vunpack.c.l.b16 %v7168
    %v7316 = vunpack.c.h.b16 %v7168
    %v7317 = vunpack.c.l.b16 %v7169
    %v7318 = vunpack.c.h.b16 %v7169
    %v7319 = vunpack.c.l.b16 %v7170
    %v7320 = vunpack.c.h.b16 %v7170
    %v7321 = vunpack.c.l.b16 %v7171
    %v7322 = vunpack.c.h.b16 %v7171
    %v7323 = vunpack.c.l.b16 %v7172
    %v7324 = vunpack.c.h.b16 %v7172
    %v7325 = vunpack.c.l.b16 %v7173
    %v7326 = vunpack.c.h.b16 %v7173
    %v7327 = vunpack.c.l.b16 %v7174
    %v7328 = vunpack.c.h.b16 %v7174
    %v7329 = vunpack.c.l.b16 %v7175
    %v7330 = vunpack.c.h.b16 %v7175
    %v7331 = vunpack.c.l.b16 %v7176
    %v7332 = vunpack.c.h.b16 %v7176
    %v7333 = vunpack.c.l.b16 %v7177
    %v7334 = vunpack.c.h.b16 %v7177
    %v7335 = vunpack.c.l.b16 %v7178
    %v7336 = vunpack.c.h.b16 %v7178
    %v7337 = vunpack.c.l.b16 %v7179
    %v7338 = vunpack.c.h.b16 %v7179
    %v7339 = vunpack.c.l.b16 %v7180
    %v7340 = vunpack.c.h.b16 %v7180
    %v7341 = vunpack.c.l.b16 %v7181
    %v7342 = vunpack.c.h.b16 %v7181
    %v7343 = vunpack.c.l.b16 %v7182
    %v7344 = vunpack.c.h.b16 %v7182
    %v7345 = vunpack.c.l.b16 %v7183
    %v7346 = vunpack.c.h.b16 %v7183
    %v7347 = vunpack.c.l.b16 %v7184
    %v7348 = vunpack.c.h.b16 %v7184
    %v7349 = vunpack.c.l.b16 %v7185
    %v7350 = vunpack.c.h.b16 %v7185
    %v7351 = vunpack.c.l.b16 %v7186
    %v7352 = vunpack.c.h.b16 %v7186
    %v7353 = vunpack.c.l.b16 %v7187
    %v7354 = vunpack.c.h.b16 %v7187
    %v7355 = vunpack.c.l.b16 %v7188
    %v7356 = vunpack.c.h.b16 %v7188
    %v7357 = vunpack.c.l.b16 %v7189
    %v7358 = vunpack.c.h.b16 %v7189
    %v7359 = vunpack.c.l.b16 %v7190
    %v7360 = vunpack.c.h.b16 %v7190
    %v7361 = vunpack.c.l.b16 %v7191
    %v7362 = vunpack.c.h.b16 %v7191
    %v7363 = vunpack.c.l.b16 %v7192
    %v7364 = vunpack.c.h.b16 %v7192
    %v7365 = vunpack.c.l.b16 %v7193
    %v7366 = vunpack.c.h.b16 %v7193
    %v7367 = vunpack.c.l.b16 %v7194
    %v7368 = vunpack.c.h.b16 %v7194
    %v7369 = vunpack.c.l.b16 %v7195
    %v7370 = vunpack.c.h.b16 %v7195
    %v7371 = vunpack.c.l.b16 %v7196
    %v7372 = vunpack.c.h.b16 %v7196
    %v7373 = vunpack.c.l.b16 %v7197
    %v7374 = vunpack.c.h.b16 %v7197
    %v7375 = vunpack.c.l.b16 %v7198
    %v7376 = vunpack.c.h.b16 %v7198
    %v7377 = vunpack.c.l.b16 %v7199
    %v7378 = vunpack.c.h.b16 %v7199
    %v7379 = vunpack.c.l.b16 %v7200
    %v7380 = vunpack.c.h.b16 %v7200
    %v7381 = vunpack.c.l.b16 %v7201
    %v7382 = vunpack.c.h.b16 %v7201
    %v7383 = vunpack.c.l.b16 %v7202
    %v7384 = vunpack.c.h.b16 %v7202
    %v7385 = vunpack.c.l.b16 %v7203
    %v7386 = vunpack.c.h.b16 %v7203
    %v7387 = vunpack.c.l.b16 %v7204
    %v7388 = vunpack.c.h.b16 %v7204
    %v7389 = vunpack.c.l.b16 %v7205
    %v7390 = vunpack.c.h.b16 %v7205
    %v7391 = vunpack.c.l.b16 %v7206
    %v7392 = vunpack.c.h.b16 %v7206
    %v7393 = vunpack.c.l.b16 %v7207
    %v7394 = vunpack.c.h.b16 %v7207
    %v7395 = vunpack.c.l.b16 %v7208
    %v7396 = vunpack.c.h.b16 %v7208
    %v7397 = vunpack.c.l.b16 %v7209
    %v7398 = vunpack.c.h.b16 %v7209
    %v7399 = vunpack.c.l.b16 %v7210
    %v7400 = vunpack.c.h.b16 %v7210
    %v7401 = vunpack.c.l.b16 %v7211
    %v7402 = vunpack.c.h.b16 %v7211
    %v7403 = vunpack.c.l.b16 %v7212
    %v7404 = vunpack.c.h.b16 %v7212
    %v7405 = vpack.c.b16 %v7285, %v7277
    %v7406 = vpack.c.b16 %v7286, %v7278
    %v7407 = vpack.c.b16 %v7287, %v7279
    %v7408 = vpack.c.b16 %v7288, %v7280
    %v7409 = vpack.c.b16 %v7289, %v7281
    %v7410 = vpack.c.b16 %v7290, %v7282
    %v7411 = vpack.c.b16 %v7291, %v7283
    %v7412 = vpack.c.b16 %v7292, %v7284
    %v7413 = vpack.c.b16 %v7301, %v7293
    %v7414 = vpack.c.b16 %v7302, %v7294
    %v7415 = vpack.c.b16 %v7303, %v7295
    %v7416 = vpack.c.b16 %v7304, %v7296
    %v7417 = vpack.c.b16 %v7305, %v7297
    %v7418 = vpack.c.b16 %v7306, %v7298
    %v7419 = vpack.c.b16 %v7307, %v7299
    %v7420 = vpack.c.b16 %v7308, %v7300
    %v7421 = vpack.c.b16 %v7317, %v7309
    %v7422 = vpack.c.b16 %v7318, %v7310
    %v7423 = vpack.c.b16 %v7319, %v7311
    %v7424 = vpack.c.b16 %v7320, %v7312
    %v7425 = vpack.c.b16 %v7321, %v7313
    %v7426 = vpack.c.b16 %v7322, %v7314
    %v7427 = vpack.c.b16 %v7323, %v7315
    %v7428 = vpack.c.b16 %v7324, %v7316
    %v7429 = vpack.c.b16 %v7333, %v7325
    %v7430 = vpack.c.b16 %v7334, %v7326
    %v7431 = vpack.c.b16 %v7335, %v7327
    %v7432 = vpack.c.b16 %v7336, %v7328
    %v7433 = vpack.c.b16 %v7337, %v7329
    %v7434 = vpack.c.b16 %v7338, %v7330
    %v7435 = vpack.c.b16 %v7339, %v7331
    %v7436 = vpack.c.b16 %v7340, %v7332
    %v7437 = vpack.c.b16 %v7349, %v7341
    %v7438 = vpack.c.b16 %v7350, %v7342
    %v7439 = vpack.c.b16 %v7351, %v7343
    %v7440 = vpack.c.b16 %v7352, %v7344
    %v7441 = vpack.c.b16 %v7353, %v7345
    %v7442 = vpack.c.b16 %v7354, %v7346
    %v7443 = vpack.c.b16 %v7355, %v7347
    %v7444 = vpack.c.b16 %v7356, %v7348
    %v7445 = vpack.c.b16 %v7365, %v7357
    %v7446 = vpack.c.b16 %v7366, %v7358
    %v7447 = vpack.c.b16 %v7367, %v7359
    %v7448 = vpack.c.b16 %v7368, %v7360
    %v7449 = vpack.c.b16 %v7369, %v7361
    %v7450 = vpack.c.b16 %v7370, %v7362
    %v7451 = vpack.c.b16 %v7371, %v7363
    %v7452 = vpack.c.b16 %v7372, %v7364
    %v7453 = vpack.c.b16 %v7381, %v7373
    %v7454 = vpack.c.b16 %v7382, %v7374
    %v7455 = vpack.c.b16 %v7383, %v7375
    %v7456 = vpack.c.b16 %v7384, %v7376
    %v7457 = vpack.c.b16 %v7385, %v7377
    %v7458 = vpack.c.b16 %v7386, %v7378
    %v7459 = vpack.c.b16 %v7387, %v7379
    %v7460 = vpack.c.b16 %v7388, %v7380
    %v7461 = vpack.c.b16 %v7397, %v7389
    %v7462 = vpack.c.b16 %v7398, %v7390
    %v7463 = vpack.c.b16 %v7399, %v7391
    %v7464 = vpack.c.b16 %v7400, %v7392
    %v7465 = vpack.c.b16 %v7401, %v7393
    %v7466 = vpack.c.b16 %v7402, %v7394
    %v7467 = vpack.c.b16 %v7403, %v7395
    %v7468 = vpack.c.b16 %v7404, %v7396
    %7533 = vmatprep.subr.bf16.mxu0 %v7406
    %7534 = vmatpush1.bf16.msra.mxu0 %v7405
    %7535 = vmatprep.subr.bf16.mxu0 %v7414
    %7536 = vmatpush1.bf16.msra.mxu0 %v7413
    %7537 = vmatprep.subr.bf16.mxu0 %v7422
    %7538 = vmatpush1.bf16.msra.mxu0 %v7421
    %7539 = vmatprep.subr.bf16.mxu0 %v7430
    %7540 = vmatpush1.bf16.msra.mxu0 %v7429
    %7541 = vmatprep.subr.bf16.mxu0 %v7438
    %7542 = vmatpush1.bf16.msra.mxu0 %v7437
    %7543 = vmatprep.subr.bf16.mxu0 %v7446
    %7544 = vmatpush1.bf16.msra.mxu0 %v7445
    %7545 = vmatprep.subr.bf16.mxu0 %v7454
    %7546 = vmatpush1.bf16.msra.mxu0 %v7453
    %7547 = vmatprep.subr.bf16.mxu0 %v7462
    %7548 = vmatpush1.bf16.msra.mxu0 %v7461
    %7549 = vmatprep.subr.bf16.mxu0 0
    %7550 = vmatpush1.bf16.msra.mxu0 0
    %7551 = vmatprep.subr.bf16.mxu0 0
    %7552 = vmatpush1.bf16.msra.mxu0 0
    %7553 = vmatprep.subr.bf16.mxu0 0
    %7554 = vmatpush1.bf16.msra.mxu0 0
    %7555 = vmatprep.subr.bf16.mxu0 0
    %7556 = vmatpush1.bf16.msra.mxu0 0
    %7557 = vmatprep.subr.bf16.mxu0 0
    %7558 = vmatpush1.bf16.msra.mxu0 0
    %7559 = vmatprep.subr.bf16.mxu0 0
    %7560 = vmatpush1.bf16.msra.mxu0 0
    %7561 = vmatprep.subr.bf16.mxu0 0
    %7562 = vmatpush1.bf16.msra.mxu0 0
    %7563 = vmatprep.subr.bf16.mxu0 0
    %7564 = vmatpush1.bf16.msra.mxu0 0
    %7565 = vmatprep.mubr.bf16.mxu0 0
    %7566 = vmatmul.mubr.bf16.gmra.mrb[0].mxu0 %v7147
    %v7567 = vpop.f32.mrb[0].mxu0
    %v7568 = vadd.f32 0.0, %v7567
    %v7569 = vpop.f32.mrb[0].mxu0
    %v7570 = vadd.f32 0.0, %v7569
    %v7571 = vpop.f32.mrb[0].mxu0
    %v7572 = vadd.f32 0.0, %v7571
    %v7573 = vpop.f32.mrb[0].mxu0
    %v7574 = vadd.f32 0.0, %v7573
    %7575 = vdwg.mxu0
    %7576 = vmatprep.subr.bf16.mxu0 %v7408
    %7577 = vmatpush1.bf16.msra.mxu0 %v7407
    %7578 = vmatprep.subr.bf16.mxu0 %v7416
    %7579 = vmatpush1.bf16.msra.mxu0 %v7415
    %7580 = vmatprep.subr.bf16.mxu0 %v7424
    %7581 = vmatpush1.bf16.msra.mxu0 %v7423
    %7582 = vmatprep.subr.bf16.mxu0 %v7432
    %7583 = vmatpush1.bf16.msra.mxu0 %v7431
    %7584 = vmatprep.subr.bf16.mxu0 %v7440
    %7585 = vmatpush1.bf16.msra.mxu0 %v7439
    %7586 = vmatprep.subr.bf16.mxu0 %v7448
    %7587 = vmatpush1.bf16.msra.mxu0 %v7447
    %7588 = vmatprep.subr.bf16.mxu0 %v7456
    %7589 = vmatpush1.bf16.msra.mxu0 %v7455
    %7590 = vmatprep.subr.bf16.mxu0 %v7464
    %7591 = vmatpush1.bf16.msra.mxu0 %v7463
    %7592 = vmatprep.subr.bf16.mxu0 0
    %7593 = vmatpush1.bf16.msra.mxu0 0
    %7594 = vmatprep.subr.bf16.mxu0 0
    %7595 = vmatpush1.bf16.msra.mxu0 0
    %7596 = vmatprep.subr.bf16.mxu0 0
    %7597 = vmatpush1.bf16.msra.mxu0 0
    %7598 = vmatprep.subr.bf16.mxu0 0
    %7599 = vmatpush1.bf16.msra.mxu0 0
    %7600 = vmatprep.subr.bf16.mxu0 0
    %7601 = vmatpush1.bf16.msra.mxu0 0
    %7602 = vmatprep.subr.bf16.mxu0 0
    %7603 = vmatpush1.bf16.msra.mxu0 0
    %7604 = vmatprep.subr.bf16.mxu0 0
    %7605 = vmatpush1.bf16.msra.mxu0 0
    %7606 = vmatprep.subr.bf16.mxu0 0
    %7607 = vmatpush1.bf16.msra.mxu0 0
    %7608 = vmatprep.mubr.bf16.mxu0 0
    %7609 = vmatmul.mubr.bf16.gmra.mrb[0].mxu0 %v7147
    %v7610 = vpop.f32.mrb[0].mxu0
    %v7611 = vadd.f32 0.0, %v7610
    %v7612 = vpop.f32.mrb[0].mxu0
    %v7613 = vadd.f32 0.0, %v7612
    %v7614 = vpop.f32.mrb[0].mxu0
    %v7615 = vadd.f32 0.0, %v7614
    %v7616 = vpop.f32.mrb[0].mxu0
    %v7617 = vadd.f32 0.0, %v7616
    %7618 = vdwg.mxu0
    %7619 = vmatprep.subr.bf16.mxu0 %v7410
    %7620 = vmatpush1.bf16.msra.mxu0 %v7409
    %7621 = vmatprep.subr.bf16.mxu0 %v7418
    %7622 = vmatpush1.bf16.msra.mxu0 %v7417
    %7623 = vmatprep.subr.bf16.mxu0 %v7426
    %7624 = vmatpush1.bf16.msra.mxu0 %v7425
    %7625 = vmatprep.subr.bf16.mxu0 %v7434
    %7626 = vmatpush1.bf16.msra.mxu0 %v7433
    %7627 = vmatprep.subr.bf16.mxu0 %v7442
    %7628 = vmatpush1.bf16.msra.mxu0 %v7441
    %7629 = vmatprep.subr.bf16.mxu0 %v7450
    %7630 = vmatpush1.bf16.msra.mxu0 %v7449
    %7631 = vmatprep.subr.bf16.mxu0 %v7458
    %7632 = vmatpush1.bf16.msra.mxu0 %v7457
    %7633 = vmatprep.subr.bf16.mxu0 %v7466
    %7634 = vmatpush1.bf16.msra.mxu0 %v7465
    %7635 = vmatprep.subr.bf16.mxu0 0
    %7636 = vmatpush1.bf16.msra.mxu0 0
    %7637 = vmatprep.subr.bf16.mxu0 0
    %7638 = vmatpush1.bf16.msra.mxu0 0
    %7639 = vmatprep.subr.bf16.mxu0 0
    %7640 = vmatpush1.bf16.msra.mxu0 0
    %7641 = vmatprep.subr.bf16.mxu0 0
    %7642 = vmatpush1.bf16.msra.mxu0 0
    %7643 = vmatprep.subr.bf16.mxu0 0
    %7644 = vmatpush1.bf16.msra.mxu0 0
    %7645 = vmatprep.subr.bf16.mxu0 0
    %7646 = vmatpush1.bf16.msra.mxu0 0
    %7647 = vmatprep.subr.bf16.mxu0 0
    %7648 = vmatpush1.bf16.msra.mxu0 0
    %7649 = vmatprep.subr.bf16.mxu0 0
    %7650 = vmatpush1.bf16.msra.mxu0 0
    %7651 = vmatprep.mubr.bf16.mxu0 0
    %7652 = vmatmul.mubr.bf16.gmra.mrb[0].mxu0 %v7147
    %v7653 = vpop.f32.mrb[0].mxu0
    %v7654 = vadd.f32 0.0, %v7653
    %v7655 = vpop.f32.mrb[0].mxu0
    %v7656 = vadd.f32 0.0, %v7655
    %v7657 = vpop.f32.mrb[0].mxu0
    %v7658 = vadd.f32 0.0, %v7657
    %v7659 = vpop.f32.mrb[0].mxu0
    %v7660 = vadd.f32 0.0, %v7659
    %7661 = vdwg.mxu0
    %7662 = vmatprep.subr.bf16.mxu0 %v7412
    %7663 = vmatpush1.bf16.msra.mxu0 %v7411
    %7664 = vmatprep.subr.bf16.mxu0 %v7420
    %7665 = vmatpush1.bf16.msra.mxu0 %v7419
    %7666 = vmatprep.subr.bf16.mxu0 %v7428
    %7667 = vmatpush1.bf16.msra.mxu0 %v7427
    %7668 = vmatprep.subr.bf16.mxu0 %v7436
    %7669 = vmatpush1.bf16.msra.mxu0 %v7435
    %7670 = vmatprep.subr.bf16.mxu0 %v7444
    %7671 = vmatpush1.bf16.msra.mxu0 %v7443
    %7672 = vmatprep.subr.bf16.mxu0 %v7452
    %7673 = vmatpush1.bf16.msra.mxu0 %v7451
    %7674 = vmatprep.subr.bf16.mxu0 %v7460
    %7675 = vmatpush1.bf16.msra.mxu0 %v7459
    %7676 = vmatprep.subr.bf16.mxu0 %v7468
    %7677 = vmatpush1.bf16.msra.mxu0 %v7467
    %7678 = vmatprep.subr.bf16.mxu0 0
    %7679 = vmatpush1.bf16.msra.mxu0 0
    %7680 = vmatprep.subr.bf16.mxu0 0
    %7681 = vmatpush1.bf16.msra.mxu0 0
    %7682 = vmatprep.subr.bf16.mxu0 0
    %7683 = vmatpush1.bf16.msra.mxu0 0
    %7684 = vmatprep.subr.bf16.mxu0 0
    %7685 = vmatpush1.bf16.msra.mxu0 0
    %7686 = vmatprep.subr.bf16.mxu0 0
    %7687 = vmatpush1.bf16.msra.mxu0 0
    %7688 = vmatprep.subr.bf16.mxu0 0
    %7689 = vmatpush1.bf16.msra.mxu0 0
    %7690 = vmatprep.subr.bf16.mxu0 0
    %7691 = vmatpush1.bf16.msra.mxu0 0
    %7692 = vmatprep.subr.bf16.mxu0 0
    %7693 = vmatpush1.bf16.msra.mxu0 0
    %7694 = vmatprep.mubr.bf16.mxu0 0
    %7695 = vmatmul.mubr.bf16.gmra.mrb[0].mxu0 %v7147
    %v7696 = vpop.f32.mrb[0].mxu0
    %v7697 = vadd.f32 0.0, %v7696
    %v7698 = vpop.f32.mrb[0].mxu0
    %v7699 = vadd.f32 0.0, %v7698
    %v7700 = vpop.f32.mrb[0].mxu0
    %v7701 = vadd.f32 0.0, %v7700
    %v7702 = vpop.f32.mrb[0].mxu0
    %v7703 = vadd.f32 0.0, %v7702
    %7704 = vdwg.mxu0
    %v7705 = vadd.f32 %v7075, %v7568
    %v7706 = vadd.f32 %v7076, %v7570
    %v7707 = vadd.f32 %v7077, %v7611
    %v7708 = vadd.f32 %v7078, %v7613
    %v7709 = vadd.f32 %v7079, %v7654
    %v7710 = vadd.f32 %v7080, %v7656
    %v7711 = vadd.f32 %v7081, %v7697
    %v7712 = vadd.f32 %v7082, %v7699
    %v7713 = vadd.f32 %v7083, %v7572
    %v7714 = vadd.f32 %v7084, %v7574
    %v7715 = vadd.f32 %v7085, %v7615
    %v7716 = vadd.f32 %v7086, %v7617
    %v7717 = vadd.f32 %v7087, %v7658
    %v7718 = vadd.f32 %v7088, %v7660
    %v7719 = vadd.f32 %v7089, %v7701
    %v7720 = vadd.f32 %v7090, %v7703
    %s7721 = scalar_lea.vmem %s0, 96
    %v7722 = vld [vmem:[%s7721] sm:$0xf]
    %v7723 = vld [vmem:[%s7721 + $0x4] sm:$0xf]
    %v7726 = vunpack.c.l.b16 %v7722
    %v7727 = vunpack.c.l.b16 %v7723
    %v7728 = vpack.c.b16 %v7727, %v7726
    %7730 = vmatprep.subr.bf16.mxu0 0
    %7731 = vmatpush1.bf16.msra.mxu0 %v187
    %7732 = vmatprep.subr.bf16.mxu0 0
    %7733 = vmatpush1.bf16.msra.mxu0 %v188
    %7734 = vmatprep.subr.bf16.mxu0 0
    %7735 = vmatpush1.bf16.msra.mxu0 %v189
    %7736 = vmatprep.subr.bf16.mxu0 0
    %7737 = vmatpush1.bf16.msra.mxu0 %v190
    %7738 = vmatprep.subr.bf16.mxu0 0
    %7739 = vmatpush1.bf16.msra.mxu0 %v191
    %7740 = vmatprep.subr.bf16.mxu0 0
    %7741 = vmatpush1.bf16.msra.mxu0 %v192
    %7742 = vmatprep.subr.bf16.mxu0 0
    %7743 = vmatpush1.bf16.msra.mxu0 %v193
    %7744 = vmatprep.subr.bf16.mxu0 0
    %7745 = vmatpush1.bf16.msra.mxu0 %v194
    %7746 = vmatprep.subr.bf16.mxu0 0
    %7747 = vmatpush1.bf16.msra.mxu0 0
    %7748 = vmatprep.subr.bf16.mxu0 0
    %7749 = vmatpush1.bf16.msra.mxu0 0
    %7750 = vmatprep.subr.bf16.mxu0 0
    %7751 = vmatpush1.bf16.msra.mxu0 0
    %7752 = vmatprep.subr.bf16.mxu0 0
    %7753 = vmatpush1.bf16.msra.mxu0 0
    %7754 = vmatprep.subr.bf16.mxu0 0
    %7755 = vmatpush1.bf16.msra.mxu0 0
    %7756 = vmatprep.subr.bf16.mxu0 0
    %7757 = vmatpush1.bf16.msra.mxu0 0
    %7758 = vmatprep.subr.bf16.mxu0 0
    %7759 = vmatpush1.bf16.msra.mxu0 0
    %7760 = vmatprep.subr.bf16.mxu0 0
    %7761 = vmatpush1.bf16.msra.mxu0 0
    %7762 = vmatprep.mubr.bf16.mxu0 0
    %7763 = vmatmul.mubr.bf16.gmra.mrb[0].mxu0 %v7728
    %v7764 = vpop.f32.mrb[0].mxu0
    %v7765 = vadd.f32 0.0, %v7764
    %v7766 = vpop.f32.mrb[0].mxu0
    %v7767 = vpop.f32.mrb[0].mxu0
    %v7768 = vadd.f32 0.0, %v7767
    %v7769 = vpop.f32.mrb[0].mxu0
    %7770 = vdwg.mxu0
    %v7771 = vmul.f32 %v7765, %v138
    %v7772 = vmul.f32 %v7768, %v138
    %v7773 = vadd.f32 %v7771, %v145
    %v7774 = vadd.f32 %v7772, %v145
    %v7775 = vmax.f32 %v7773, 0.0
    %v7776 = vmax.f32 %v7774, 0.0
    %v7777 = vpack.c.bf16 %v7776, %v7775
    %s7778 = scalar_lea.vmem [#allocation7], 6144
    %v7779 = vld [vmem:[%s7778] sm:$0xff]
    %v7780 = vld [vmem:[%s7778 + $0x8] sm:$0xff]
    %v7781 = vld [vmem:[%s7778 + $0x10] sm:$0xff]
    %v7782 = vld [vmem:[%s7778 + $0x18] sm:$0xff]
    %v7783 = vld [vmem:[%s7778 + $0x20] sm:$0xff]
    %v7784 = vld [vmem:[%s7778 + $0x28] sm:$0xff]
    %v7785 = vld [vmem:[%s7778 + $0x30] sm:$0xff]
    %v7786 = vld [vmem:[%s7778 + $0x38] sm:$0xff]
    %v7787 = vld [vmem:[%s7778 + $0x40] sm:$0xff]
    %v7788 = vld [vmem:[%s7778 + $0x48] sm:$0xff]
    %v7789 = vld [vmem:[%s7778 + $0x50] sm:$0xff]
    %v7790 = vld [vmem:[%s7778 + $0x58] sm:$0xff]
    %v7791 = vld [vmem:[%s7778 + $0x60] sm:$0xff]
    %v7792 = vld [vmem:[%s7778 + $0x68] sm:$0xff]
    %v7793 = vld [vmem:[%s7778 + $0x70] sm:$0xff]
    %v7794 = vld [vmem:[%s7778 + $0x78] sm:$0xff]
    %v7795 = vld [vmem:[%s7778 + $0x80] sm:$0xff]
    %v7796 = vld [vmem:[%s7778 + $0x88] sm:$0xff]
    %v7797 = vld [vmem:[%s7778 + $0x90] sm:$0xff]
    %v7798 = vld [vmem:[%s7778 + $0x98] sm:$0xff]
    %v7799 = vld [vmem:[%s7778 + $0xa0] sm:$0xff]
    %v7800 = vld [vmem:[%s7778 + $0xa8] sm:$0xff]
    %v7801 = vld [vmem:[%s7778 + $0xb0] sm:$0xff]
    %v7802 = vld [vmem:[%s7778 + $0xb8] sm:$0xff]
    %v7803 = vld [vmem:[%s7778 + $0xc0] sm:$0xff]
    %v7804 = vld [vmem:[%s7778 + $0xc8] sm:$0xff]
    %v7805 = vld [vmem:[%s7778 + $0xd0] sm:$0xff]
    %v7806 = vld [vmem:[%s7778 + $0xd8] sm:$0xff]
    %v7807 = vld [vmem:[%s7778 + $0xe0] sm:$0xff]
    %v7808 = vld [vmem:[%s7778 + $0xe8] sm:$0xff]
    %v7809 = vld [vmem:[%s7778 + $0xf0] sm:$0xff]
    %v7810 = vld [vmem:[%s7778 + $0xf8] sm:$0xff]
    %v7811 = vld [vmem:[%s7778 + $0x100] sm:$0xff]
    %v7812 = vld [vmem:[%s7778 + $0x108] sm:$0xff]
    %v7813 = vld [vmem:[%s7778 + $0x110] sm:$0xff]
    %v7814 = vld [vmem:[%s7778 + $0x118] sm:$0xff]
    %v7815 = vld [vmem:[%s7778 + $0x120] sm:$0xff]
    %v7816 = vld [vmem:[%s7778 + $0x128] sm:$0xff]
    %v7817 = vld [vmem:[%s7778 + $0x130] sm:$0xff]
    %v7818 = vld [vmem:[%s7778 + $0x138] sm:$0xff]
    %v7819 = vld [vmem:[%s7778 + $0x140] sm:$0xff]
    %v7820 = vld [vmem:[%s7778 + $0x148] sm:$0xff]
    %v7821 = vld [vmem:[%s7778 + $0x150] sm:$0xff]
    %v7822 = vld [vmem:[%s7778 + $0x158] sm:$0xff]
    %v7823 = vld [vmem:[%s7778 + $0x160] sm:$0xff]
    %v7824 = vld [vmem:[%s7778 + $0x168] sm:$0xff]
    %v7825 = vld [vmem:[%s7778 + $0x170] sm:$0xff]
    %v7826 = vld [vmem:[%s7778 + $0x178] sm:$0xff]
    %v7827 = vld [vmem:[%s7778 + $0x180] sm:$0xff]
    %v7828 = vld [vmem:[%s7778 + $0x188] sm:$0xff]
    %v7829 = vld [vmem:[%s7778 + $0x190] sm:$0xff]
    %v7830 = vld [vmem:[%s7778 + $0x198] sm:$0xff]
    %v7831 = vld [vmem:[%s7778 + $0x1a0] sm:$0xff]
    %v7832 = vld [vmem:[%s7778 + $0x1a8] sm:$0xff]
    %v7833 = vld [vmem:[%s7778 + $0x1b0] sm:$0xff]
    %v7834 = vld [vmem:[%s7778 + $0x1b8] sm:$0xff]
    %v7835 = vld [vmem:[%s7778 + $0x1c0] sm:$0xff]
    %v7836 = vld [vmem:[%s7778 + $0x1c8] sm:$0xff]
    %v7837 = vld [vmem:[%s7778 + $0x1d0] sm:$0xff]
    %v7838 = vld [vmem:[%s7778 + $0x1d8] sm:$0xff]
    %v7839 = vld [vmem:[%s7778 + $0x1e0] sm:$0xff]
    %v7840 = vld [vmem:[%s7778 + $0x1e8] sm:$0xff]
    %v7841 = vld [vmem:[%s7778 + $0x1f0] sm:$0xff]
    %v7842 = vld [vmem:[%s7778 + $0x1f8] sm:$0xff]
    %v7907 = vunpack.c.l.b16 %v7779
    %v7908 = vunpack.c.h.b16 %v7779
    %v7909 = vunpack.c.l.b16 %v7780
    %v7910 = vunpack.c.h.b16 %v7780
    %v7911 = vunpack.c.l.b16 %v7781
    %v7912 = vunpack.c.h.b16 %v7781
    %v7913 = vunpack.c.l.b16 %v7782
    %v7914 = vunpack.c.h.b16 %v7782
    %v7915 = vunpack.c.l.b16 %v7783
    %v7916 = vunpack.c.h.b16 %v7783
    %v7917 = vunpack.c.l.b16 %v7784
    %v7918 = vunpack.c.h.b16 %v7784
    %v7919 = vunpack.c.l.b16 %v7785
    %v7920 = vunpack.c.h.b16 %v7785
    %v7921 = vunpack.c.l.b16 %v7786
    %v7922 = vunpack.c.h.b16 %v7786
    %v7923 = vunpack.c.l.b16 %v7787
    %v7924 = vunpack.c.h.b16 %v7787
    %v7925 = vunpack.c.l.b16 %v7788
    %v7926 = vunpack.c.h.b16 %v7788
    %v7927 = vunpack.c.l.b16 %v7789
    %v7928 = vunpack.c.h.b16 %v7789
    %v7929 = vunpack.c.l.b16 %v7790
    %v7930 = vunpack.c.h.b16 %v7790
    %v7931 = vunpack.c.l.b16 %v7791
    %v7932 = vunpack.c.h.b16 %v7791
    %v7933 = vunpack.c.l.b16 %v7792
    %v7934 = vunpack.c.h.b16 %v7792
    %v7935 = vunpack.c.l.b16 %v7793
    %v7936 = vunpack.c.h.b16 %v7793
    %v7937 = vunpack.c.l.b16 %v7794
    %v7938 = vunpack.c.h.b16 %v7794
    %v7939 = vunpack.c.l.b16 %v7795
    %v7940 = vunpack.c.h.b16 %v7795
    %v7941 = vunpack.c.l.b16 %v7796
    %v7942 = vunpack.c.h.b16 %v7796
    %v7943 = vunpack.c.l.b16 %v7797
    %v7944 = vunpack.c.h.b16 %v7797
    %v7945 = vunpack.c.l.b16 %v7798
    %v7946 = vunpack.c.h.b16 %v7798
    %v7947 = vunpack.c.l.b16 %v7799
    %v7948 = vunpack.c.h.b16 %v7799
    %v7949 = vunpack.c.l.b16 %v7800
    %v7950 = vunpack.c.h.b16 %v7800
    %v7951 = vunpack.c.l.b16 %v7801
    %v7952 = vunpack.c.h.b16 %v7801
    %v7953 = vunpack.c.l.b16 %v7802
    %v7954 = vunpack.c.h.b16 %v7802
    %v7955 = vunpack.c.l.b16 %v7803
    %v7956 = vunpack.c.h.b16 %v7803
    %v7957 = vunpack.c.l.b16 %v7804
    %v7958 = vunpack.c.h.b16 %v7804
    %v7959 = vunpack.c.l.b16 %v7805
    %v7960 = vunpack.c.h.b16 %v7805
    %v7961 = vunpack.c.l.b16 %v7806
    %v7962 = vunpack.c.h.b16 %v7806
    %v7963 = vunpack.c.l.b16 %v7807
    %v7964 = vunpack.c.h.b16 %v7807
    %v7965 = vunpack.c.l.b16 %v7808
    %v7966 = vunpack.c.h.b16 %v7808
    %v7967 = vunpack.c.l.b16 %v7809
    %v7968 = vunpack.c.h.b16 %v7809
    %v7969 = vunpack.c.l.b16 %v7810
    %v7970 = vunpack.c.h.b16 %v7810
    %v7971 = vunpack.c.l.b16 %v7811
    %v7972 = vunpack.c.h.b16 %v7811
    %v7973 = vunpack.c.l.b16 %v7812
    %v7974 = vunpack.c.h.b16 %v7812
    %v7975 = vunpack.c.l.b16 %v7813
    %v7976 = vunpack.c.h.b16 %v7813
    %v7977 = vunpack.c.l.b16 %v7814
    %v7978 = vunpack.c.h.b16 %v7814
    %v7979 = vunpack.c.l.b16 %v7815
    %v7980 = vunpack.c.h.b16 %v7815
    %v7981 = vunpack.c.l.b16 %v7816
    %v7982 = vunpack.c.h.b16 %v7816
    %v7983 = vunpack.c.l.b16 %v7817
    %v7984 = vunpack.c.h.b16 %v7817
    %v7985 = vunpack.c.l.b16 %v7818
    %v7986 = vunpack.c.h.b16 %v7818
    %v7987 = vunpack.c.l.b16 %v7819
    %v7988 = vunpack.c.h.b16 %v7819
    %v7989 = vunpack.c.l.b16 %v7820
    %v7990 = vunpack.c.h.b16 %v7820
    %v7991 = vunpack.c.l.b16 %v7821
    %v7992 = vunpack.c.h.b16 %v7821
    %v7993 = vunpack.c.l.b16 %v7822
    %v7994 = vunpack.c.h.b16 %v7822
    %v7995 = vunpack.c.l.b16 %v7823
    %v7996 = vunpack.c.h.b16 %v7823
    %v7997 = vunpack.c.l.b16 %v7824
    %v7998 = vunpack.c.h.b16 %v7824
    %v7999 = vunpack.c.l.b16 %v7825
    %v8000 = vunpack.c.h.b16 %v7825
    %v8001 = vunpack.c.l.b16 %v7826
    %v8002 = vunpack.c.h.b16 %v7826
    %v8003 = vunpack.c.l.b16 %v7827
    %v8004 = vunpack.c.h.b16 %v7827
    %v8005 = vunpack.c.l.b16 %v7828
    %v8006 = vunpack.c.h.b16 %v7828
    %v8007 = vunpack.c.l.b16 %v7829
    %v8008 = vunpack.c.h.b16 %v7829
    %v8009 = vunpack.c.l.b16 %v7830
    %v8010 = vunpack.c.h.b16 %v7830
    %v8011 = vunpack.c.l.b16 %v7831
    %v8012 = vunpack.c.h.b16 %v7831
    %v8013 = vunpack.c.l.b16 %v7832
    %v8014 = vunpack.c.h.b16 %v7832
    %v8015 = vunpack.c.l.b16 %v7833
    %v8016 = vunpack.c.h.b16 %v7833
    %v8017 = vunpack.c.l.b16 %v7834
    %v8018 = vunpack.c.h.b16 %v7834
    %v8019 = vunpack.c.l.b16 %v7835
    %v8020 = vunpack.c.h.b16 %v7835
    %v8021 = vunpack.c.l.b16 %v7836
    %v8022 = vunpack.c.h.b16 %v7836
    %v8023 = vunpack.c.l.b16 %v7837
    %v8024 = vunpack.c.h.b16 %v7837
    %v8025 = vunpack.c.l.b16 %v7838
    %v8026 = vunpack.c.h.b16 %v7838
    %v8027 = vunpack.c.l.b16 %v7839
    %v8028 = vunpack.c.h.b16 %v7839
    %v8029 = vunpack.c.l.b16 %v7840
    %v8030 = vunpack.c.h.b16 %v7840
    %v8031 = vunpack.c.l.b16 %v7841
    %v8032 = vunpack.c.h.b16 %v7841
    %v8033 = vunpack.c.l.b16 %v7842
    %v8034 = vunpack.c.h.b16 %v7842
    %v8035 = vpack.c.b16 %v7915, %v7907
    %v8036 = vpack.c.b16 %v7916, %v7908
    %v8037 = vpack.c.b16 %v7917, %v7909
    %v8038 = vpack.c.b16 %v7918, %v7910
    %v8039 = vpack.c.b16 %v7919, %v7911
    %v8040 = vpack.c.b16 %v7920, %v7912
    %v8041 = vpack.c.b16 %v7921, %v7913
    %v8042 = vpack.c.b16 %v7922, %v7914
    %v8043 = vpack.c.b16 %v7931, %v7923
    %v8044 = vpack.c.b16 %v7932, %v7924
    %v8045 = vpack.c.b16 %v7933, %v7925
    %v8046 = vpack.c.b16 %v7934, %v7926
    %v8047 = vpack.c.b16 %v7935, %v7927
    %v8048 = vpack.c.b16 %v7936, %v7928
    %v8049 = vpack.c.b16 %v7937, %v7929
    %v8050 = vpack.c.b16 %v7938, %v7930
    %v8051 = vpack.c.b16 %v7947, %v7939
    %v8052 = vpack.c.b16 %v7948, %v7940
    %v8053 = vpack.c.b16 %v7949, %v7941
    %v8054 = vpack.c.b16 %v7950, %v7942
    %v8055 = vpack.c.b16 %v7951, %v7943
    %v8056 = vpack.c.b16 %v7952, %v7944
    %v8057 = vpack.c.b16 %v7953, %v7945
    %v8058 = vpack.c.b16 %v7954, %v7946
    %v8059 = vpack.c.b16 %v7963, %v7955
    %v8060 = vpack.c.b16 %v7964, %v7956
    %v8061 = vpack.c.b16 %v7965, %v7957
    %v8062 = vpack.c.b16 %v7966, %v7958
    %v8063 = vpack.c.b16 %v7967, %v7959
    %v8064 = vpack.c.b16 %v7968, %v7960
    %v8065 = vpack.c.b16 %v7969, %v7961
    %v8066 = vpack.c.b16 %v7970, %v7962
    %v8067 = vpack.c.b16 %v7979, %v7971
    %v8068 = vpack.c.b16 %v7980, %v7972
    %v8069 = vpack.c.b16 %v7981, %v7973
    %v8070 = vpack.c.b16 %v7982, %v7974
    %v8071 = vpack.c.b16 %v7983, %v7975
    %v8072 = vpack.c.b16 %v7984, %v7976
    %v8073 = vpack.c.b16 %v7985, %v7977
    %v8074 = vpack.c.b16 %v7986, %v7978
    %v8075 = vpack.c.b16 %v7995, %v7987
    %v8076 = vpack.c.b16 %v7996, %v7988
    %v8077 = vpack.c.b16 %v7997, %v7989
    %v8078 = vpack.c.b16 %v7998, %v7990
    %v8079 = vpack.c.b16 %v7999, %v7991
    %v8080 = vpack.c.b16 %v8000, %v7992
    %v8081 = vpack.c.b16 %v8001, %v7993
    %v8082 = vpack.c.b16 %v8002, %v7994
    %v8083 = vpack.c.b16 %v8011, %v8003
    %v8084 = vpack.c.b16 %v8012, %v8004
    %v8085 = vpack.c.b16 %v8013, %v8005
    %v8086 = vpack.c.b16 %v8014, %v8006
    %v8087 = vpack.c.b16 %v8015, %v8007
    %v8088 = vpack.c.b16 %v8016, %v8008
    %v8089 = vpack.c.b16 %v8017, %v8009
    %v8090 = vpack.c.b16 %v8018, %v8010
    %v8091 = vpack.c.b16 %v8027, %v8019
    %v8092 = vpack.c.b16 %v8028, %v8020
    %v8093 = vpack.c.b16 %v8029, %v8021
    %v8094 = vpack.c.b16 %v8030, %v8022
    %v8095 = vpack.c.b16 %v8031, %v8023
    %v8096 = vpack.c.b16 %v8032, %v8024
    %v8097 = vpack.c.b16 %v8033, %v8025
    %v8098 = vpack.c.b16 %v8034, %v8026
    %8163 = vmatprep.subr.bf16.mxu0 %v8036
    %8164 = vmatpush1.bf16.msra.mxu0 %v8035
    %8165 = vmatprep.subr.bf16.mxu0 %v8044
    %8166 = vmatpush1.bf16.msra.mxu0 %v8043
    %8167 = vmatprep.subr.bf16.mxu0 %v8052
    %8168 = vmatpush1.bf16.msra.mxu0 %v8051
    %8169 = vmatprep.subr.bf16.mxu0 %v8060
    %8170 = vmatpush1.bf16.msra.mxu0 %v8059
    %8171 = vmatprep.subr.bf16.mxu0 %v8068
    %8172 = vmatpush1.bf16.msra.mxu0 %v8067
    %8173 = vmatprep.subr.bf16.mxu0 %v8076
    %8174 = vmatpush1.bf16.msra.mxu0 %v8075
    %8175 = vmatprep.subr.bf16.mxu0 %v8084
    %8176 = vmatpush1.bf16.msra.mxu0 %v8083
    %8177 = vmatprep.subr.bf16.mxu0 %v8092
    %8178 = vmatpush1.bf16.msra.mxu0 %v8091
    %8179 = vmatprep.subr.bf16.mxu0 0
    %8180 = vmatpush1.bf16.msra.mxu0 0
    %8181 = vmatprep.subr.bf16.mxu0 0
    %8182 = vmatpush1.bf16.msra.mxu0 0
    %8183 = vmatprep.subr.bf16.mxu0 0
    %8184 = vmatpush1.bf16.msra.mxu0 0
    %8185 = vmatprep.subr.bf16.mxu0 0
    %8186 = vmatpush1.bf16.msra.mxu0 0
    %8187 = vmatprep.subr.bf16.mxu0 0
    %8188 = vmatpush1.bf16.msra.mxu0 0
    %8189 = vmatprep.subr.bf16.mxu0 0
    %8190 = vmatpush1.bf16.msra.mxu0 0
    %8191 = vmatprep.subr.bf16.mxu0 0
    %8192 = vmatpush1.bf16.msra.mxu0 0
    %8193 = vmatprep.subr.bf16.mxu0 0
    %8194 = vmatpush1.bf16.msra.mxu0 0
    %8195 = vmatprep.mubr.bf16.mxu0 0
    %8196 = vmatmul.mubr.bf16.gmra.mrb[0].mxu0 %v7777
    %v8197 = vpop.f32.mrb[0].mxu0
    %v8198 = vadd.f32 0.0, %v8197
    %v8199 = vpop.f32.mrb[0].mxu0
    %v8200 = vadd.f32 0.0, %v8199
    %v8201 = vpop.f32.mrb[0].mxu0
    %v8202 = vadd.f32 0.0, %v8201
    %v8203 = vpop.f32.mrb[0].mxu0
    %v8204 = vadd.f32 0.0, %v8203
    %8205 = vdwg.mxu0
    %8206 = vmatprep.subr.bf16.mxu0 %v8038
    %8207 = vmatpush1.bf16.msra.mxu0 %v8037
    %8208 = vmatprep.subr.bf16.mxu0 %v8046
    %8209 = vmatpush1.bf16.msra.mxu0 %v8045
    %8210 = vmatprep.subr.bf16.mxu0 %v8054
    %8211 = vmatpush1.bf16.msra.mxu0 %v8053
    %8212 = vmatprep.subr.bf16.mxu0 %v8062
    %8213 = vmatpush1.bf16.msra.mxu0 %v8061
    %8214 = vmatprep.subr.bf16.mxu0 %v8070
    %8215 = vmatpush1.bf16.msra.mxu0 %v8069
    %8216 = vmatprep.subr.bf16.mxu0 %v8078
    %8217 = vmatpush1.bf16.msra.mxu0 %v8077
    %8218 = vmatprep.subr.bf16.mxu0 %v8086
    %8219 = vmatpush1.bf16.msra.mxu0 %v8085
    %8220 = vmatprep.subr.bf16.mxu0 %v8094
    %8221 = vmatpush1.bf16.msra.mxu0 %v8093
    %8222 = vmatprep.subr.bf16.mxu0 0
    %8223 = vmatpush1.bf16.msra.mxu0 0
    %8224 = vmatprep.subr.bf16.mxu0 0
    %8225 = vmatpush1.bf16.msra.mxu0 0
    %8226 = vmatprep.subr.bf16.mxu0 0
    %8227 = vmatpush1.bf16.msra.mxu0 0
    %8228 = vmatprep.subr.bf16.mxu0 0
    %8229 = vmatpush1.bf16.msra.mxu0 0
    %8230 = vmatprep.subr.bf16.mxu0 0
    %8231 = vmatpush1.bf16.msra.mxu0 0
    %8232 = vmatprep.subr.bf16.mxu0 0
    %8233 = vmatpush1.bf16.msra.mxu0 0
    %8234 = vmatprep.subr.bf16.mxu0 0
    %8235 = vmatpush1.bf16.msra.mxu0 0
    %8236 = vmatprep.subr.bf16.mxu0 0
    %8237 = vmatpush1.bf16.msra.mxu0 0
    %8238 = vmatprep.mubr.bf16.mxu0 0
    %8239 = vmatmul.mubr.bf16.gmra.mrb[0].mxu0 %v7777
    %v8240 = vpop.f32.mrb[0].mxu0
    %v8241 = vadd.f32 0.0, %v8240
    %v8242 = vpop.f32.mrb[0].mxu0
    %v8243 = vadd.f32 0.0, %v8242
    %v8244 = vpop.f32.mrb[0].mxu0
    %v8245 = vadd.f32 0.0, %v8244
    %v8246 = vpop.f32.mrb[0].mxu0
    %v8247 = vadd.f32 0.0, %v8246
    %8248 = vdwg.mxu0
    %8249 = vmatprep.subr.bf16.mxu0 %v8040
    %8250 = vmatpush1.bf16.msra.mxu0 %v8039
    %8251 = vmatprep.subr.bf16.mxu0 %v8048
    %8252 = vmatpush1.bf16.msra.mxu0 %v8047
    %8253 = vmatprep.subr.bf16.mxu0 %v8056
    %8254 = vmatpush1.bf16.msra.mxu0 %v8055
    %8255 = vmatprep.subr.bf16.mxu0 %v8064
    %8256 = vmatpush1.bf16.msra.mxu0 %v8063
    %8257 = vmatprep.subr.bf16.mxu0 %v8072
    %8258 = vmatpush1.bf16.msra.mxu0 %v8071
    %8259 = vmatprep.subr.bf16.mxu0 %v8080
    %8260 = vmatpush1.bf16.msra.mxu0 %v8079
    %8261 = vmatprep.subr.bf16.mxu0 %v8088
    %8262 = vmatpush1.bf16.msra.mxu0 %v8087
    %8263 = vmatprep.subr.bf16.mxu0 %v8096
    %8264 = vmatpush1.bf16.msra.mxu0 %v8095
    %8265 = vmatprep.subr.bf16.mxu0 0
    %8266 = vmatpush1.bf16.msra.mxu0 0
    %8267 = vmatprep.subr.bf16.mxu0 0
    %8268 = vmatpush1.bf16.msra.mxu0 0
    %8269 = vmatprep.subr.bf16.mxu0 0
    %8270 = vmatpush1.bf16.msra.mxu0 0
    %8271 = vmatprep.subr.bf16.mxu0 0
    %8272 = vmatpush1.bf16.msra.mxu0 0
    %8273 = vmatprep.subr.bf16.mxu0 0
    %8274 = vmatpush1.bf16.msra.mxu0 0
    %8275 = vmatprep.subr.bf16.mxu0 0
    %8276 = vmatpush1.bf16.msra.mxu0 0
    %8277 = vmatprep.subr.bf16.mxu0 0
    %8278 = vmatpush1.bf16.msra.mxu0 0
    %8279 = vmatprep.subr.bf16.mxu0 0
    %8280 = vmatpush1.bf16.msra.mxu0 0
    %8281 = vmatprep.mubr.bf16.mxu0 0
    %8282 = vmatmul.mubr.bf16.gmra.mrb[0].mxu0 %v7777
    %v8283 = vpop.f32.mrb[0].mxu0
    %v8284 = vadd.f32 0.0, %v8283
    %v8285 = vpop.f32.mrb[0].mxu0
    %v8286 = vadd.f32 0.0, %v8285
    %v8287 = vpop.f32.mrb[0].mxu0
    %v8288 = vadd.f32 0.0, %v8287
    %v8289 = vpop.f32.mrb[0].mxu0
    %v8290 = vadd.f32 0.0, %v8289
    %8291 = vdwg.mxu0
    %8292 = vmatprep.subr.bf16.mxu0 %v8042
    %8293 = vmatpush1.bf16.msra.mxu0 %v8041
    %8294 = vmatprep.subr.bf16.mxu0 %v8050
    %8295 = vmatpush1.bf16.msra.mxu0 %v8049
    %8296 = vmatprep.subr.bf16.mxu0 %v8058
    %8297 = vmatpush1.bf16.msra.mxu0 %v8057
    %8298 = vmatprep.subr.bf16.mxu0 %v8066
    %8299 = vmatpush1.bf16.msra.mxu0 %v8065
    %8300 = vmatprep.subr.bf16.mxu0 %v8074
    %8301 = vmatpush1.bf16.msra.mxu0 %v8073
    %8302 = vmatprep.subr.bf16.mxu0 %v8082
    %8303 = vmatpush1.bf16.msra.mxu0 %v8081
    %8304 = vmatprep.subr.bf16.mxu0 %v8090
    %8305 = vmatpush1.bf16.msra.mxu0 %v8089
    %8306 = vmatprep.subr.bf16.mxu0 %v8098
    %8307 = vmatpush1.bf16.msra.mxu0 %v8097
    %8308 = vmatprep.subr.bf16.mxu0 0
    %8309 = vmatpush1.bf16.msra.mxu0 0
    %8310 = vmatprep.subr.bf16.mxu0 0
    %8311 = vmatpush1.bf16.msra.mxu0 0
    %8312 = vmatprep.subr.bf16.mxu0 0
    %8313 = vmatpush1.bf16.msra.mxu0 0
    %8314 = vmatprep.subr.bf16.mxu0 0
    %8315 = vmatpush1.bf16.msra.mxu0 0
    %8316 = vmatprep.subr.bf16.mxu0 0
    %8317 = vmatpush1.bf16.msra.mxu0 0
    %8318 = vmatprep.subr.bf16.mxu0 0
    %8319 = vmatpush1.bf16.msra.mxu0 0
    %8320 = vmatprep.subr.bf16.mxu0 0
    %8321 = vmatpush1.bf16.msra.mxu0 0
    %8322 = vmatprep.subr.bf16.mxu0 0
    %8323 = vmatpush1.bf16.msra.mxu0 0
    %8324 = vmatprep.mubr.bf16.mxu0 0
    %8325 = vmatmul.mubr.bf16.gmra.mrb[0].mxu0 %v7777
    %v8326 = vpop.f32.mrb[0].mxu0
    %v8327 = vadd.f32 0.0, %v8326
    %v8328 = vpop.f32.mrb[0].mxu0
    %v8329 = vadd.f32 0.0, %v8328
    %v8330 = vpop.f32.mrb[0].mxu0
    %v8331 = vadd.f32 0.0, %v8330
    %v8332 = vpop.f32.mrb[0].mxu0
    %v8333 = vadd.f32 0.0, %v8332
    %8334 = vdwg.mxu0
    %v8335 = vadd.f32 %v7705, %v8198
    %v8336 = vadd.f32 %v7706, %v8200
    %v8337 = vadd.f32 %v7707, %v8241
    %v8338 = vadd.f32 %v7708, %v8243
    %v8339 = vadd.f32 %v7709, %v8284
    %v8340 = vadd.f32 %v7710, %v8286
    %v8341 = vadd.f32 %v7711, %v8327
    %v8342 = vadd.f32 %v7712, %v8329
    %v8343 = vadd.f32 %v7713, %v8202
    %v8344 = vadd.f32 %v7714, %v8204
    %v8345 = vadd.f32 %v7715, %v8245
    %v8346 = vadd.f32 %v7716, %v8247
    %v8347 = vadd.f32 %v7717, %v8288
    %v8348 = vadd.f32 %v7718, %v8290
    %v8349 = vadd.f32 %v7719, %v8331
    %v8350 = vadd.f32 %v7720, %v8333
    %s8351 = scalar_lea.vmem %s0, 104
    %v8352 = vld [vmem:[%s8351] sm:$0xf]
    %v8353 = vld [vmem:[%s8351 + $0x4] sm:$0xf]
    %v8356 = vunpack.c.l.b16 %v8352
    %v8357 = vunpack.c.l.b16 %v8353
    %v8358 = vpack.c.b16 %v8357, %v8356
    %8360 = vmatprep.subr.bf16.mxu0 0
    %8361 = vmatpush1.bf16.msra.mxu0 %v187
    %8362 = vmatprep.subr.bf16.mxu0 0
    %8363 = vmatpush1.bf16.msra.mxu0 %v188
    %8364 = vmatprep.subr.bf16.mxu0 0
    %8365 = vmatpush1.bf16.msra.mxu0 %v189
    %8366 = vmatprep.subr.bf16.mxu0 0
    %8367 = vmatpush1.bf16.msra.mxu0 %v190
    %8368 = vmatprep.subr.bf16.mxu0 0
    %8369 = vmatpush1.bf16.msra.mxu0 %v191
    %8370 = vmatprep.subr.bf16.mxu0 0
    %8371 = vmatpush1.bf16.msra.mxu0 %v192
    %8372 = vmatprep.subr.bf16.mxu0 0
    %8373 = vmatpush1.bf16.msra.mxu0 %v193
    %8374 = vmatprep.subr.bf16.mxu0 0
    %8375 = vmatpush1.bf16.msra.mxu0 %v194
    %8376 = vmatprep.subr.bf16.mxu0 0
    %8377 = vmatpush1.bf16.msra.mxu0 0
    %8378 = vmatprep.subr.bf16.mxu0 0
    %8379 = vmatpush1.bf16.msra.mxu0 0
    %8380 = vmatprep.subr.bf16.mxu0 0
    %8381 = vmatpush1.bf16.msra.mxu0 0
    %8382 = vmatprep.subr.bf16.mxu0 0
    %8383 = vmatpush1.bf16.msra.mxu0 0
    %8384 = vmatprep.subr.bf16.mxu0 0
    %8385 = vmatpush1.bf16.msra.mxu0 0
    %8386 = vmatprep.subr.bf16.mxu0 0
    %8387 = vmatpush1.bf16.msra.mxu0 0
    %8388 = vmatprep.subr.bf16.mxu0 0
    %8389 = vmatpush1.bf16.msra.mxu0 0
    %8390 = vmatprep.subr.bf16.mxu0 0
    %8391 = vmatpush1.bf16.msra.mxu0 0
    %8392 = vmatprep.mubr.bf16.mxu0 0
    %8393 = vmatmul.mubr.bf16.gmra.mrb[0].mxu0 %v8358
    %v8394 = vpop.f32.mrb[0].mxu0
    %v8395 = vadd.f32 0.0, %v8394
    %v8396 = vpop.f32.mrb[0].mxu0
    %v8397 = vpop.f32.mrb[0].mxu0
    %v8398 = vadd.f32 0.0, %v8397
    %v8399 = vpop.f32.mrb[0].mxu0
    %8400 = vdwg.mxu0
    %v8401 = vmul.f32 %v8395, %v138
    %v8402 = vmul.f32 %v8398, %v138
    %v8403 = vadd.f32 %v8401, %v145
    %v8404 = vadd.f32 %v8402, %v145
    %v8405 = vmax.f32 %v8403, 0.0
    %v8406 = vmax.f32 %v8404, 0.0
    %v8407 = vpack.c.bf16 %v8406, %v8405
    %s8408 = scalar_lea.vmem [#allocation7], 6656
    %v8409 = vld [vmem:[%s8408] sm:$0xff]
    %v8410 = vld [vmem:[%s8408 + $0x8] sm:$0xff]
    %v8411 = vld [vmem:[%s8408 + $0x10] sm:$0xff]
    %v8412 = vld [vmem:[%s8408 + $0x18] sm:$0xff]
    %v8413 = vld [vmem:[%s8408 + $0x20] sm:$0xff]
    %v8414 = vld [vmem:[%s8408 + $0x28] sm:$0xff]
    %v8415 = vld [vmem:[%s8408 + $0x30] sm:$0xff]
    %v8416 = vld [vmem:[%s8408 + $0x38] sm:$0xff]
    %v8417 = vld [vmem:[%s8408 + $0x40] sm:$0xff]
    %v8418 = vld [vmem:[%s8408 + $0x48] sm:$0xff]
    %v8419 = vld [vmem:[%s8408 + $0x50] sm:$0xff]
    %v8420 = vld [vmem:[%s8408 + $0x58] sm:$0xff]
    %v8421 = vld [vmem:[%s8408 + $0x60] sm:$0xff]
    %v8422 = vld [vmem:[%s8408 + $0x68] sm:$0xff]
    %v8423 = vld [vmem:[%s8408 + $0x70] sm:$0xff]
    %v8424 = vld [vmem:[%s8408 + $0x78] sm:$0xff]
    %v8425 = vld [vmem:[%s8408 + $0x80] sm:$0xff]
    %v8426 = vld [vmem:[%s8408 + $0x88] sm:$0xff]
    %v8427 = vld [vmem:[%s8408 + $0x90] sm:$0xff]
    %v8428 = vld [vmem:[%s8408 + $0x98] sm:$0xff]
    %v8429 = vld [vmem:[%s8408 + $0xa0] sm:$0xff]
    %v8430 = vld [vmem:[%s8408 + $0xa8] sm:$0xff]
    %v8431 = vld [vmem:[%s8408 + $0xb0] sm:$0xff]
    %v8432 = vld [vmem:[%s8408 + $0xb8] sm:$0xff]
    %v8433 = vld [vmem:[%s8408 + $0xc0] sm:$0xff]
    %v8434 = vld [vmem:[%s8408 + $0xc8] sm:$0xff]
    %v8435 = vld [vmem:[%s8408 + $0xd0] sm:$0xff]
    %v8436 = vld [vmem:[%s8408 + $0xd8] sm:$0xff]
    %v8437 = vld [vmem:[%s8408 + $0xe0] sm:$0xff]
    %v8438 = vld [vmem:[%s8408 + $0xe8] sm:$0xff]
    %v8439 = vld [vmem:[%s8408 + $0xf0] sm:$0xff]
    %v8440 = vld [vmem:[%s8408 + $0xf8] sm:$0xff]
    %v8441 = vld [vmem:[%s8408 + $0x100] sm:$0xff]
    %v8442 = vld [vmem:[%s8408 + $0x108] sm:$0xff]
    %v8443 = vld [vmem:[%s8408 + $0x110] sm:$0xff]
    %v8444 = vld [vmem:[%s8408 + $0x118] sm:$0xff]
    %v8445 = vld [vmem:[%s8408 + $0x120] sm:$0xff]
    %v8446 = vld [vmem:[%s8408 + $0x128] sm:$0xff]
    %v8447 = vld [vmem:[%s8408 + $0x130] sm:$0xff]
    %v8448 = vld [vmem:[%s8408 + $0x138] sm:$0xff]
    %v8449 = vld [vmem:[%s8408 + $0x140] sm:$0xff]
    %v8450 = vld [vmem:[%s8408 + $0x148] sm:$0xff]
    %v8451 = vld [vmem:[%s8408 + $0x150] sm:$0xff]
    %v8452 = vld [vmem:[%s8408 + $0x158] sm:$0xff]
    %v8453 = vld [vmem:[%s8408 + $0x160] sm:$0xff]
    %v8454 = vld [vmem:[%s8408 + $0x168] sm:$0xff]
    %v8455 = vld [vmem:[%s8408 + $0x170] sm:$0xff]
    %v8456 = vld [vmem:[%s8408 + $0x178] sm:$0xff]
    %v8457 = vld [vmem:[%s8408 + $0x180] sm:$0xff]
    %v8458 = vld [vmem:[%s8408 + $0x188] sm:$0xff]
    %v8459 = vld [vmem:[%s8408 + $0x190] sm:$0xff]
    %v8460 = vld [vmem:[%s8408 + $0x198] sm:$0xff]
    %v8461 = vld [vmem:[%s8408 + $0x1a0] sm:$0xff]
    %v8462 = vld [vmem:[%s8408 + $0x1a8] sm:$0xff]
    %v8463 = vld [vmem:[%s8408 + $0x1b0] sm:$0xff]
    %v8464 = vld [vmem:[%s8408 + $0x1b8] sm:$0xff]
    %v8465 = vld [vmem:[%s8408 + $0x1c0] sm:$0xff]
    %v8466 = vld [vmem:[%s8408 + $0x1c8] sm:$0xff]
    %v8467 = vld [vmem:[%s8408 + $0x1d0] sm:$0xff]
    %v8468 = vld [vmem:[%s8408 + $0x1d8] sm:$0xff]
    %v8469 = vld [vmem:[%s8408 + $0x1e0] sm:$0xff]
    %v8470 = vld [vmem:[%s8408 + $0x1e8] sm:$0xff]
    %v8471 = vld [vmem:[%s8408 + $0x1f0] sm:$0xff]
    %v8472 = vld [vmem:[%s8408 + $0x1f8] sm:$0xff]
    %v8537 = vunpack.c.l.b16 %v8409
    %v8538 = vunpack.c.h.b16 %v8409
    %v8539 = vunpack.c.l.b16 %v8410
    %v8540 = vunpack.c.h.b16 %v8410
    %v8541 = vunpack.c.l.b16 %v8411
    %v8542 = vunpack.c.h.b16 %v8411
    %v8543 = vunpack.c.l.b16 %v8412
    %v8544 = vunpack.c.h.b16 %v8412
    %v8545 = vunpack.c.l.b16 %v8413
    %v8546 = vunpack.c.h.b16 %v8413
    %v8547 = vunpack.c.l.b16 %v8414
    %v8548 = vunpack.c.h.b16 %v8414
    %v8549 = vunpack.c.l.b16 %v8415
    %v8550 = vunpack.c.h.b16 %v8415
    %v8551 = vunpack.c.l.b16 %v8416
    %v8552 = vunpack.c.h.b16 %v8416
    %v8553 = vunpack.c.l.b16 %v8417
    %v8554 = vunpack.c.h.b16 %v8417
    %v8555 = vunpack.c.l.b16 %v8418
    %v8556 = vunpack.c.h.b16 %v8418
    %v8557 = vunpack.c.l.b16 %v8419
    %v8558 = vunpack.c.h.b16 %v8419
    %v8559 = vunpack.c.l.b16 %v8420
    %v8560 = vunpack.c.h.b16 %v8420
    %v8561 = vunpack.c.l.b16 %v8421
    %v8562 = vunpack.c.h.b16 %v8421
    %v8563 = vunpack.c.l.b16 %v8422
    %v8564 = vunpack.c.h.b16 %v8422
    %v8565 = vunpack.c.l.b16 %v8423
    %v8566 = vunpack.c.h.b16 %v8423
    %v8567 = vunpack.c.l.b16 %v8424
    %v8568 = vunpack.c.h.b16 %v8424
    %v8569 = vunpack.c.l.b16 %v8425
    %v8570 = vunpack.c.h.b16 %v8425
    %v8571 = vunpack.c.l.b16 %v8426
    %v8572 = vunpack.c.h.b16 %v8426
    %v8573 = vunpack.c.l.b16 %v8427
    %v8574 = vunpack.c.h.b16 %v8427
    %v8575 = vunpack.c.l.b16 %v8428
    %v8576 = vunpack.c.h.b16 %v8428
    %v8577 = vunpack.c.l.b16 %v8429
    %v8578 = vunpack.c.h.b16 %v8429
    %v8579 = vunpack.c.l.b16 %v8430
    %v8580 = vunpack.c.h.b16 %v8430
    %v8581 = vunpack.c.l.b16 %v8431
    %v8582 = vunpack.c.h.b16 %v8431
    %v8583 = vunpack.c.l.b16 %v8432
    %v8584 = vunpack.c.h.b16 %v8432
    %v8585 = vunpack.c.l.b16 %v8433
    %v8586 = vunpack.c.h.b16 %v8433
    %v8587 = vunpack.c.l.b16 %v8434
    %v8588 = vunpack.c.h.b16 %v8434
    %v8589 = vunpack.c.l.b16 %v8435
    %v8590 = vunpack.c.h.b16 %v8435
    %v8591 = vunpack.c.l.b16 %v8436
    %v8592 = vunpack.c.h.b16 %v8436
    %v8593 = vunpack.c.l.b16 %v8437
    %v8594 = vunpack.c.h.b16 %v8437
    %v8595 = vunpack.c.l.b16 %v8438
    %v8596 = vunpack.c.h.b16 %v8438
    %v8597 = vunpack.c.l.b16 %v8439
    %v8598 = vunpack.c.h.b16 %v8439
    %v8599 = vunpack.c.l.b16 %v8440
    %v8600 = vunpack.c.h.b16 %v8440
    %v8601 = vunpack.c.l.b16 %v8441
    %v8602 = vunpack.c.h.b16 %v8441
    %v8603 = vunpack.c.l.b16 %v8442
    %v8604 = vunpack.c.h.b16 %v8442
    %v8605 = vunpack.c.l.b16 %v8443
    %v8606 = vunpack.c.h.b16 %v8443
    %v8607 = vunpack.c.l.b16 %v8444
    %v8608 = vunpack.c.h.b16 %v8444
    %v8609 = vunpack.c.l.b16 %v8445
    %v8610 = vunpack.c.h.b16 %v8445
    %v8611 = vunpack.c.l.b16 %v8446
    %v8612 = vunpack.c.h.b16 %v8446
    %v8613 = vunpack.c.l.b16 %v8447
    %v8614 = vunpack.c.h.b16 %v8447
    %v8615 = vunpack.c.l.b16 %v8448
    %v8616 = vunpack.c.h.b16 %v8448
    %v8617 = vunpack.c.l.b16 %v8449
    %v8618 = vunpack.c.h.b16 %v8449
    %v8619 = vunpack.c.l.b16 %v8450
    %v8620 = vunpack.c.h.b16 %v8450
    %v8621 = vunpack.c.l.b16 %v8451
    %v8622 = vunpack.c.h.b16 %v8451
    %v8623 = vunpack.c.l.b16 %v8452
    %v8624 = vunpack.c.h.b16 %v8452
    %v8625 = vunpack.c.l.b16 %v8453
    %v8626 = vunpack.c.h.b16 %v8453
    %v8627 = vunpack.c.l.b16 %v8454
    %v8628 = vunpack.c.h.b16 %v8454
    %v8629 = vunpack.c.l.b16 %v8455
    %v8630 = vunpack.c.h.b16 %v8455
    %v8631 = vunpack.c.l.b16 %v8456
    %v8632 = vunpack.c.h.b16 %v8456
    %v8633 = vunpack.c.l.b16 %v8457
    %v8634 = vunpack.c.h.b16 %v8457
    %v8635 = vunpack.c.l.b16 %v8458
    %v8636 = vunpack.c.h.b16 %v8458
    %v8637 = vunpack.c.l.b16 %v8459
    %v8638 = vunpack.c.h.b16 %v8459
    %v8639 = vunpack.c.l.b16 %v8460
    %v8640 = vunpack.c.h.b16 %v8460
    %v8641 = vunpack.c.l.b16 %v8461
    %v8642 = vunpack.c.h.b16 %v8461
    %v8643 = vunpack.c.l.b16 %v8462
    %v8644 = vunpack.c.h.b16 %v8462
    %v8645 = vunpack.c.l.b16 %v8463
    %v8646 = vunpack.c.h.b16 %v8463
    %v8647 = vunpack.c.l.b16 %v8464
    %v8648 = vunpack.c.h.b16 %v8464
    %v8649 = vunpack.c.l.b16 %v8465
    %v8650 = vunpack.c.h.b16 %v8465
    %v8651 = vunpack.c.l.b16 %v8466
    %v8652 = vunpack.c.h.b16 %v8466
    %v8653 = vunpack.c.l.b16 %v8467
    %v8654 = vunpack.c.h.b16 %v8467
    %v8655 = vunpack.c.l.b16 %v8468
    %v8656 = vunpack.c.h.b16 %v8468
    %v8657 = vunpack.c.l.b16 %v8469
    %v8658 = vunpack.c.h.b16 %v8469
    %v8659 = vunpack.c.l.b16 %v8470
    %v8660 = vunpack.c.h.b16 %v8470
    %v8661 = vunpack.c.l.b16 %v8471
    %v8662 = vunpack.c.h.b16 %v8471
    %v8663 = vunpack.c.l.b16 %v8472
    %v8664 = vunpack.c.h.b16 %v8472
    %v8665 = vpack.c.b16 %v8545, %v8537
    %v8666 = vpack.c.b16 %v8546, %v8538
    %v8667 = vpack.c.b16 %v8547, %v8539
    %v8668 = vpack.c.b16 %v8548, %v8540
    %v8669 = vpack.c.b16 %v8549, %v8541
    %v8670 = vpack.c.b16 %v8550, %v8542
    %v8671 = vpack.c.b16 %v8551, %v8543
    %v8672 = vpack.c.b16 %v8552, %v8544
    %v8673 = vpack.c.b16 %v8561, %v8553
    %v8674 = vpack.c.b16 %v8562, %v8554
    %v8675 = vpack.c.b16 %v8563, %v8555
    %v8676 = vpack.c.b16 %v8564, %v8556
    %v8677 = vpack.c.b16 %v8565, %v8557
    %v8678 = vpack.c.b16 %v8566, %v8558
    %v8679 = vpack.c.b16 %v8567, %v8559
    %v8680 = vpack.c.b16 %v8568, %v8560
    %v8681 = vpack.c.b16 %v8577, %v8569
    %v8682 = vpack.c.b16 %v8578, %v8570
    %v8683 = vpack.c.b16 %v8579, %v8571
    %v8684 = vpack.c.b16 %v8580, %v8572
    %v8685 = vpack.c.b16 %v8581, %v8573
    %v8686 = vpack.c.b16 %v8582, %v8574
    %v8687 = vpack.c.b16 %v8583, %v8575
    %v8688 = vpack.c.b16 %v8584, %v8576
    %v8689 = vpack.c.b16 %v8593, %v8585
    %v8690 = vpack.c.b16 %v8594, %v8586
    %v8691 = vpack.c.b16 %v8595, %v8587
    %v8692 = vpack.c.b16 %v8596, %v8588
    %v8693 = vpack.c.b16 %v8597, %v8589
    %v8694 = vpack.c.b16 %v8598, %v8590
    %v8695 = vpack.c.b16 %v8599, %v8591
    %v8696 = vpack.c.b16 %v8600, %v8592
    %v8697 = vpack.c.b16 %v8609, %v8601
    %v8698 = vpack.c.b16 %v8610, %v8602
    %v8699 = vpack.c.b16 %v8611, %v8603
    %v8700 = vpack.c.b16 %v8612, %v8604
    %v8701 = vpack.c.b16 %v8613, %v8605
    %v8702 = vpack.c.b16 %v8614, %v8606
    %v8703 = vpack.c.b16 %v8615, %v8607
    %v8704 = vpack.c.b16 %v8616, %v8608
    %v8705 = vpack.c.b16 %v8625, %v8617
    %v8706 = vpack.c.b16 %v8626, %v8618
    %v8707 = vpack.c.b16 %v8627, %v8619
    %v8708 = vpack.c.b16 %v8628, %v8620
    %v8709 = vpack.c.b16 %v8629, %v8621
    %v8710 = vpack.c.b16 %v8630, %v8622
    %v8711 = vpack.c.b16 %v8631, %v8623
    %v8712 = vpack.c.b16 %v8632, %v8624
    %v8713 = vpack.c.b16 %v8641, %v8633
    %v8714 = vpack.c.b16 %v8642, %v8634
    %v8715 = vpack.c.b16 %v8643, %v8635
    %v8716 = vpack.c.b16 %v8644, %v8636
    %v8717 = vpack.c.b16 %v8645, %v8637
    %v8718 = vpack.c.b16 %v8646, %v8638
    %v8719 = vpack.c.b16 %v8647, %v8639
    %v8720 = vpack.c.b16 %v8648, %v8640
    %v8721 = vpack.c.b16 %v8657, %v8649
    %v8722 = vpack.c.b16 %v8658, %v8650
    %v8723 = vpack.c.b16 %v8659, %v8651
    %v8724 = vpack.c.b16 %v8660, %v8652
    %v8725 = vpack.c.b16 %v8661, %v8653
    %v8726 = vpack.c.b16 %v8662, %v8654
    %v8727 = vpack.c.b16 %v8663, %v8655
    %v8728 = vpack.c.b16 %v8664, %v8656
    %8793 = vmatprep.subr.bf16.mxu0 %v8666
    %8794 = vmatpush1.bf16.msra.mxu0 %v8665
    %8795 = vmatprep.subr.bf16.mxu0 %v8674
    %8796 = vmatpush1.bf16.msra.mxu0 %v8673
    %8797 = vmatprep.subr.bf16.mxu0 %v8682
    %8798 = vmatpush1.bf16.msra.mxu0 %v8681
    %8799 = vmatprep.subr.bf16.mxu0 %v8690
    %8800 = vmatpush1.bf16.msra.mxu0 %v8689
    %8801 = vmatprep.subr.bf16.mxu0 %v8698
    %8802 = vmatpush1.bf16.msra.mxu0 %v8697
    %8803 = vmatprep.subr.bf16.mxu0 %v8706
    %8804 = vmatpush1.bf16.msra.mxu0 %v8705
    %8805 = vmatprep.subr.bf16.mxu0 %v8714
    %8806 = vmatpush1.bf16.msra.mxu0 %v8713
    %8807 = vmatprep.subr.bf16.mxu0 %v8722
    %8808 = vmatpush1.bf16.msra.mxu0 %v8721
    %8809 = vmatprep.subr.bf16.mxu0 0
    %8810 = vmatpush1.bf16.msra.mxu0 0
    %8811 = vmatprep.subr.bf16.mxu0 0
    %8812 = vmatpush1.bf16.msra.mxu0 0
    %8813 = vmatprep.subr.bf16.mxu0 0
    %8814 = vmatpush1.bf16.msra.mxu0 0
    %8815 = vmatprep.subr.bf16.mxu0 0
    %8816 = vmatpush1.bf16.msra.mxu0 0
    %8817 = vmatprep.subr.bf16.mxu0 0
    %8818 = vmatpush1.bf16.msra.mxu0 0
    %8819 = vmatprep.subr.bf16.mxu0 0
    %8820 = vmatpush1.bf16.msra.mxu0 0
    %8821 = vmatprep.subr.bf16.mxu0 0
    %8822 = vmatpush1.bf16.msra.mxu0 0
    %8823 = vmatprep.subr.bf16.mxu0 0
    %8824 = vmatpush1.bf16.msra.mxu0 0
    %8825 = vmatprep.mubr.bf16.mxu0 0
    %8826 = vmatmul.mubr.bf16.gmra.mrb[0].mxu0 %v8407
    %v8827 = vpop.f32.mrb[0].mxu0
    %v8828 = vadd.f32 0.0, %v8827
    %v8829 = vpop.f32.mrb[0].mxu0
    %v8830 = vadd.f32 0.0, %v8829
    %v8831 = vpop.f32.mrb[0].mxu0
    %v8832 = vadd.f32 0.0, %v8831
    %v8833 = vpop.f32.mrb[0].mxu0
    %v8834 = vadd.f32 0.0, %v8833
    %8835 = vdwg.mxu0
    %8836 = vmatprep.subr.bf16.mxu0 %v8668
    %8837 = vmatpush1.bf16.msra.mxu0 %v8667
    %8838 = vmatprep.subr.bf16.mxu0 %v8676
    %8839 = vmatpush1.bf16.msra.mxu0 %v8675
    %8840 = vmatprep.subr.bf16.mxu0 %v8684
    %8841 = vmatpush1.bf16.msra.mxu0 %v8683
    %8842 = vmatprep.subr.bf16.mxu0 %v8692
    %8843 = vmatpush1.bf16.msra.mxu0 %v8691
    %8844 = vmatprep.subr.bf16.mxu0 %v8700
    %8845 = vmatpush1.bf16.msra.mxu0 %v8699
    %8846 = vmatprep.subr.bf16.mxu0 %v8708
    %8847 = vmatpush1.bf16.msra.mxu0 %v8707
    %8848 = vmatprep.subr.bf16.mxu0 %v8716
    %8849 = vmatpush1.bf16.msra.mxu0 %v8715
    %8850 = vmatprep.subr.bf16.mxu0 %v8724
    %8851 = vmatpush1.bf16.msra.mxu0 %v8723
    %8852 = vmatprep.subr.bf16.mxu0 0
    %8853 = vmatpush1.bf16.msra.mxu0 0
    %8854 = vmatprep.subr.bf16.mxu0 0
    %8855 = vmatpush1.bf16.msra.mxu0 0
    %8856 = vmatprep.subr.bf16.mxu0 0
    %8857 = vmatpush1.bf16.msra.mxu0 0
    %8858 = vmatprep.subr.bf16.mxu0 0
    %8859 = vmatpush1.bf16.msra.mxu0 0
    %8860 = vmatprep.subr.bf16.mxu0 0
    %8861 = vmatpush1.bf16.msra.mxu0 0
    %8862 = vmatprep.subr.bf16.mxu0 0
    %8863 = vmatpush1.bf16.msra.mxu0 0
    %8864 = vmatprep.subr.bf16.mxu0 0
    %8865 = vmatpush1.bf16.msra.mxu0 0
    %8866 = vmatprep.subr.bf16.mxu0 0
    %8867 = vmatpush1.bf16.msra.mxu0 0
    %8868 = vmatprep.mubr.bf16.mxu0 0
    %8869 = vmatmul.mubr.bf16.gmra.mrb[0].mxu0 %v8407
    %v8870 = vpop.f32.mrb[0].mxu0
    %v8871 = vadd.f32 0.0, %v8870
    %v8872 = vpop.f32.mrb[0].mxu0
    %v8873 = vadd.f32 0.0, %v8872
    %v8874 = vpop.f32.mrb[0].mxu0
    %v8875 = vadd.f32 0.0, %v8874
    %v8876 = vpop.f32.mrb[0].mxu0
    %v8877 = vadd.f32 0.0, %v8876
    %8878 = vdwg.mxu0
    %8879 = vmatprep.subr.bf16.mxu0 %v8670
    %8880 = vmatpush1.bf16.msra.mxu0 %v8669
    %8881 = vmatprep.subr.bf16.mxu0 %v8678
    %8882 = vmatpush1.bf16.msra.mxu0 %v8677
    %8883 = vmatprep.subr.bf16.mxu0 %v8686
    %8884 = vmatpush1.bf16.msra.mxu0 %v8685
    %8885 = vmatprep.subr.bf16.mxu0 %v8694
    %8886 = vmatpush1.bf16.msra.mxu0 %v8693
    %8887 = vmatprep.subr.bf16.mxu0 %v8702
    %8888 = vmatpush1.bf16.msra.mxu0 %v8701
    %8889 = vmatprep.subr.bf16.mxu0 %v8710
    %8890 = vmatpush1.bf16.msra.mxu0 %v8709
    %8891 = vmatprep.subr.bf16.mxu0 %v8718
    %8892 = vmatpush1.bf16.msra.mxu0 %v8717
    %8893 = vmatprep.subr.bf16.mxu0 %v8726
    %8894 = vmatpush1.bf16.msra.mxu0 %v8725
    %8895 = vmatprep.subr.bf16.mxu0 0
    %8896 = vmatpush1.bf16.msra.mxu0 0
    %8897 = vmatprep.subr.bf16.mxu0 0
    %8898 = vmatpush1.bf16.msra.mxu0 0
    %8899 = vmatprep.subr.bf16.mxu0 0
    %8900 = vmatpush1.bf16.msra.mxu0 0
    %8901 = vmatprep.subr.bf16.mxu0 0
    %8902 = vmatpush1.bf16.msra.mxu0 0
    %8903 = vmatprep.subr.bf16.mxu0 0
    %8904 = vmatpush1.bf16.msra.mxu0 0
    %8905 = vmatprep.subr.bf16.mxu0 0
    %8906 = vmatpush1.bf16.msra.mxu0 0
    %8907 = vmatprep.subr.bf16.mxu0 0
    %8908 = vmatpush1.bf16.msra.mxu0 0
    %8909 = vmatprep.subr.bf16.mxu0 0
    %8910 = vmatpush1.bf16.msra.mxu0 0
    %8911 = vmatprep.mubr.bf16.mxu0 0
    %8912 = vmatmul.mubr.bf16.gmra.mrb[0].mxu0 %v8407
    %v8913 = vpop.f32.mrb[0].mxu0
    %v8914 = vadd.f32 0.0, %v8913
    %v8915 = vpop.f32.mrb[0].mxu0
    %v8916 = vadd.f32 0.0, %v8915
    %v8917 = vpop.f32.mrb[0].mxu0
    %v8918 = vadd.f32 0.0, %v8917
    %v8919 = vpop.f32.mrb[0].mxu0
    %v8920 = vadd.f32 0.0, %v8919
    %8921 = vdwg.mxu0
    %8922 = vmatprep.subr.bf16.mxu0 %v8672
    %8923 = vmatpush1.bf16.msra.mxu0 %v8671
    %8924 = vmatprep.subr.bf16.mxu0 %v8680
    %8925 = vmatpush1.bf16.msra.mxu0 %v8679
    %8926 = vmatprep.subr.bf16.mxu0 %v8688
    %8927 = vmatpush1.bf16.msra.mxu0 %v8687
    %8928 = vmatprep.subr.bf16.mxu0 %v8696
    %8929 = vmatpush1.bf16.msra.mxu0 %v8695
    %8930 = vmatprep.subr.bf16.mxu0 %v8704
    %8931 = vmatpush1.bf16.msra.mxu0 %v8703
    %8932 = vmatprep.subr.bf16.mxu0 %v8712
    %8933 = vmatpush1.bf16.msra.mxu0 %v8711
    %8934 = vmatprep.subr.bf16.mxu0 %v8720
    %8935 = vmatpush1.bf16.msra.mxu0 %v8719
    %8936 = vmatprep.subr.bf16.mxu0 %v8728
    %8937 = vmatpush1.bf16.msra.mxu0 %v8727
    %8938 = vmatprep.subr.bf16.mxu0 0
    %8939 = vmatpush1.bf16.msra.mxu0 0
    %8940 = vmatprep.subr.bf16.mxu0 0
    %8941 = vmatpush1.bf16.msra.mxu0 0
    %8942 = vmatprep.subr.bf16.mxu0 0
    %8943 = vmatpush1.bf16.msra.mxu0 0
    %8944 = vmatprep.subr.bf16.mxu0 0
    %8945 = vmatpush1.bf16.msra.mxu0 0
    %8946 = vmatprep.subr.bf16.mxu0 0
    %8947 = vmatpush1.bf16.msra.mxu0 0
    %8948 = vmatprep.subr.bf16.mxu0 0
    %8949 = vmatpush1.bf16.msra.mxu0 0
    %8950 = vmatprep.subr.bf16.mxu0 0
    %8951 = vmatpush1.bf16.msra.mxu0 0
    %8952 = vmatprep.subr.bf16.mxu0 0
    %8953 = vmatpush1.bf16.msra.mxu0 0
    %8954 = vmatprep.mubr.bf16.mxu0 0
    %8955 = vmatmul.mubr.bf16.gmra.mrb[0].mxu0 %v8407
    %v8956 = vpop.f32.mrb[0].mxu0
    %v8957 = vadd.f32 0.0, %v8956
    %v8958 = vpop.f32.mrb[0].mxu0
    %v8959 = vadd.f32 0.0, %v8958
    %v8960 = vpop.f32.mrb[0].mxu0
    %v8961 = vadd.f32 0.0, %v8960
    %v8962 = vpop.f32.mrb[0].mxu0
    %v8963 = vadd.f32 0.0, %v8962
    %8964 = vdwg.mxu0
    %v8965 = vadd.f32 %v8335, %v8828
    %v8966 = vadd.f32 %v8336, %v8830
    %v8967 = vadd.f32 %v8337, %v8871
    %v8968 = vadd.f32 %v8338, %v8873
    %v8969 = vadd.f32 %v8339, %v8914
    %v8970 = vadd.f32 %v8340, %v8916
    %v8971 = vadd.f32 %v8341, %v8957
    %v8972 = vadd.f32 %v8342, %v8959
    %v8973 = vadd.f32 %v8343, %v8832
    %v8974 = vadd.f32 %v8344, %v8834
    %v8975 = vadd.f32 %v8345, %v8875
    %v8976 = vadd.f32 %v8346, %v8877
    %v8977 = vadd.f32 %v8347, %v8918
    %v8978 = vadd.f32 %v8348, %v8920
    %v8979 = vadd.f32 %v8349, %v8961
    %v8980 = vadd.f32 %v8350, %v8963
    %s8981 = scalar_lea.vmem %s0, 112
    %v8982 = vld [vmem:[%s8981] sm:$0xf]
    %v8983 = vld [vmem:[%s8981 + $0x4] sm:$0xf]
    %v8986 = vunpack.c.l.b16 %v8982
    %v8987 = vunpack.c.l.b16 %v8983
    %v8988 = vpack.c.b16 %v8987, %v8986
    %8990 = vmatprep.subr.bf16.mxu0 0
    %8991 = vmatpush1.bf16.msra.mxu0 %v187
    %8992 = vmatprep.subr.bf16.mxu0 0
    %8993 = vmatpush1.bf16.msra.mxu0 %v188
    %8994 = vmatprep.subr.bf16.mxu0 0
    %8995 = vmatpush1.bf16.msra.mxu0 %v189
    %8996 = vmatprep.subr.bf16.mxu0 0
    %8997 = vmatpush1.bf16.msra.mxu0 %v190
    %8998 = vmatprep.subr.bf16.mxu0 0
    %8999 = vmatpush1.bf16.msra.mxu0 %v191
    %9000 = vmatprep.subr.bf16.mxu0 0
    %9001 = vmatpush1.bf16.msra.mxu0 %v192
    %9002 = vmatprep.subr.bf16.mxu0 0
    %9003 = vmatpush1.bf16.msra.mxu0 %v193
    %9004 = vmatprep.subr.bf16.mxu0 0
    %9005 = vmatpush1.bf16.msra.mxu0 %v194
    %9006 = vmatprep.subr.bf16.mxu0 0
    %9007 = vmatpush1.bf16.msra.mxu0 0
    %9008 = vmatprep.subr.bf16.mxu0 0
    %9009 = vmatpush1.bf16.msra.mxu0 0
    %9010 = vmatprep.subr.bf16.mxu0 0
    %9011 = vmatpush1.bf16.msra.mxu0 0
    %9012 = vmatprep.subr.bf16.mxu0 0
    %9013 = vmatpush1.bf16.msra.mxu0 0
    %9014 = vmatprep.subr.bf16.mxu0 0
    %9015 = vmatpush1.bf16.msra.mxu0 0
    %9016 = vmatprep.subr.bf16.mxu0 0
    %9017 = vmatpush1.bf16.msra.mxu0 0
    %9018 = vmatprep.subr.bf16.mxu0 0
    %9019 = vmatpush1.bf16.msra.mxu0 0
    %9020 = vmatprep.subr.bf16.mxu0 0
    %9021 = vmatpush1.bf16.msra.mxu0 0
    %9022 = vmatprep.mubr.bf16.mxu0 0
    %9023 = vmatmul.mubr.bf16.gmra.mrb[0].mxu0 %v8988
    %v9024 = vpop.f32.mrb[0].mxu0
    %v9025 = vadd.f32 0.0, %v9024
    %v9026 = vpop.f32.mrb[0].mxu0
    %v9027 = vpop.f32.mrb[0].mxu0
    %v9028 = vadd.f32 0.0, %v9027
    %v9029 = vpop.f32.mrb[0].mxu0
    %9030 = vdwg.mxu0
    %v9031 = vmul.f32 %v9025, %v138
    %v9032 = vmul.f32 %v9028, %v138
    %v9033 = vadd.f32 %v9031, %v145
    %v9034 = vadd.f32 %v9032, %v145
    %v9035 = vmax.f32 %v9033, 0.0
    %v9036 = vmax.f32 %v9034, 0.0
    %v9037 = vpack.c.bf16 %v9036, %v9035
    %s9038 = scalar_lea.vmem [#allocation7], 7168
    %v9039 = vld [vmem:[%s9038] sm:$0xff]
    %v9040 = vld [vmem:[%s9038 + $0x8] sm:$0xff]
    %v9041 = vld [vmem:[%s9038 + $0x10] sm:$0xff]
    %v9042 = vld [vmem:[%s9038 + $0x18] sm:$0xff]
    %v9043 = vld [vmem:[%s9038 + $0x20] sm:$0xff]
    %v9044 = vld [vmem:[%s9038 + $0x28] sm:$0xff]
    %v9045 = vld [vmem:[%s9038 + $0x30] sm:$0xff]
    %v9046 = vld [vmem:[%s9038 + $0x38] sm:$0xff]
    %v9047 = vld [vmem:[%s9038 + $0x40] sm:$0xff]
    %v9048 = vld [vmem:[%s9038 + $0x48] sm:$0xff]
    %v9049 = vld [vmem:[%s9038 + $0x50] sm:$0xff]
    %v9050 = vld [vmem:[%s9038 + $0x58] sm:$0xff]
    %v9051 = vld [vmem:[%s9038 + $0x60] sm:$0xff]
    %v9052 = vld [vmem:[%s9038 + $0x68] sm:$0xff]
    %v9053 = vld [vmem:[%s9038 + $0x70] sm:$0xff]
    %v9054 = vld [vmem:[%s9038 + $0x78] sm:$0xff]
    %v9055 = vld [vmem:[%s9038 + $0x80] sm:$0xff]
    %v9056 = vld [vmem:[%s9038 + $0x88] sm:$0xff]
    %v9057 = vld [vmem:[%s9038 + $0x90] sm:$0xff]
    %v9058 = vld [vmem:[%s9038 + $0x98] sm:$0xff]
    %v9059 = vld [vmem:[%s9038 + $0xa0] sm:$0xff]
    %v9060 = vld [vmem:[%s9038 + $0xa8] sm:$0xff]
    %v9061 = vld [vmem:[%s9038 + $0xb0] sm:$0xff]
    %v9062 = vld [vmem:[%s9038 + $0xb8] sm:$0xff]
    %v9063 = vld [vmem:[%s9038 + $0xc0] sm:$0xff]
    %v9064 = vld [vmem:[%s9038 + $0xc8] sm:$0xff]
    %v9065 = vld [vmem:[%s9038 + $0xd0] sm:$0xff]
    %v9066 = vld [vmem:[%s9038 + $0xd8] sm:$0xff]
    %v9067 = vld [vmem:[%s9038 + $0xe0] sm:$0xff]
    %v9068 = vld [vmem:[%s9038 + $0xe8] sm:$0xff]
    %v9069 = vld [vmem:[%s9038 + $0xf0] sm:$0xff]
    %v9070 = vld [vmem:[%s9038 + $0xf8] sm:$0xff]
    %v9071 = vld [vmem:[%s9038 + $0x100] sm:$0xff]
    %v9072 = vld [vmem:[%s9038 + $0x108] sm:$0xff]
    %v9073 = vld [vmem:[%s9038 + $0x110] sm:$0xff]
    %v9074 = vld [vmem:[%s9038 + $0x118] sm:$0xff]
    %v9075 = vld [vmem:[%s9038 + $0x120] sm:$0xff]
    %v9076 = vld [vmem:[%s9038 + $0x128] sm:$0xff]
    %v9077 = vld [vmem:[%s9038 + $0x130] sm:$0xff]
    %v9078 = vld [vmem:[%s9038 + $0x138] sm:$0xff]
    %v9079 = vld [vmem:[%s9038 + $0x140] sm:$0xff]
    %v9080 = vld [vmem:[%s9038 + $0x148] sm:$0xff]
    %v9081 = vld [vmem:[%s9038 + $0x150] sm:$0xff]
    %v9082 = vld [vmem:[%s9038 + $0x158] sm:$0xff]
    %v9083 = vld [vmem:[%s9038 + $0x160] sm:$0xff]
    %v9084 = vld [vmem:[%s9038 + $0x168] sm:$0xff]
    %v9085 = vld [vmem:[%s9038 + $0x170] sm:$0xff]
    %v9086 = vld [vmem:[%s9038 + $0x178] sm:$0xff]
    %v9087 = vld [vmem:[%s9038 + $0x180] sm:$0xff]
    %v9088 = vld [vmem:[%s9038 + $0x188] sm:$0xff]
    %v9089 = vld [vmem:[%s9038 + $0x190] sm:$0xff]
    %v9090 = vld [vmem:[%s9038 + $0x198] sm:$0xff]
    %v9091 = vld [vmem:[%s9038 + $0x1a0] sm:$0xff]
    %v9092 = vld [vmem:[%s9038 + $0x1a8] sm:$0xff]
    %v9093 = vld [vmem:[%s9038 + $0x1b0] sm:$0xff]
    %v9094 = vld [vmem:[%s9038 + $0x1b8] sm:$0xff]
    %v9095 = vld [vmem:[%s9038 + $0x1c0] sm:$0xff]
    %v9096 = vld [vmem:[%s9038 + $0x1c8] sm:$0xff]
    %v9097 = vld [vmem:[%s9038 + $0x1d0] sm:$0xff]
    %v9098 = vld [vmem:[%s9038 + $0x1d8] sm:$0xff]
    %v9099 = vld [vmem:[%s9038 + $0x1e0] sm:$0xff]
    %v9100 = vld [vmem:[%s9038 + $0x1e8] sm:$0xff]
    %v9101 = vld [vmem:[%s9038 + $0x1f0] sm:$0xff]
    %v9102 = vld [vmem:[%s9038 + $0x1f8] sm:$0xff]
    %v9167 = vunpack.c.l.b16 %v9039
    %v9168 = vunpack.c.h.b16 %v9039
    %v9169 = vunpack.c.l.b16 %v9040
    %v9170 = vunpack.c.h.b16 %v9040
    %v9171 = vunpack.c.l.b16 %v9041
    %v9172 = vunpack.c.h.b16 %v9041
    %v9173 = vunpack.c.l.b16 %v9042
    %v9174 = vunpack.c.h.b16 %v9042
    %v9175 = vunpack.c.l.b16 %v9043
    %v9176 = vunpack.c.h.b16 %v9043
    %v9177 = vunpack.c.l.b16 %v9044
    %v9178 = vunpack.c.h.b16 %v9044
    %v9179 = vunpack.c.l.b16 %v9045
    %v9180 = vunpack.c.h.b16 %v9045
    %v9181 = vunpack.c.l.b16 %v9046
    %v9182 = vunpack.c.h.b16 %v9046
    %v9183 = vunpack.c.l.b16 %v9047
    %v9184 = vunpack.c.h.b16 %v9047
    %v9185 = vunpack.c.l.b16 %v9048
    %v9186 = vunpack.c.h.b16 %v9048
    %v9187 = vunpack.c.l.b16 %v9049
    %v9188 = vunpack.c.h.b16 %v9049
    %v9189 = vunpack.c.l.b16 %v9050
    %v9190 = vunpack.c.h.b16 %v9050
    %v9191 = vunpack.c.l.b16 %v9051
    %v9192 = vunpack.c.h.b16 %v9051
    %v9193 = vunpack.c.l.b16 %v9052
    %v9194 = vunpack.c.h.b16 %v9052
    %v9195 = vunpack.c.l.b16 %v9053
    %v9196 = vunpack.c.h.b16 %v9053
    %v9197 = vunpack.c.l.b16 %v9054
    %v9198 = vunpack.c.h.b16 %v9054
    %v9199 = vunpack.c.l.b16 %v9055
    %v9200 = vunpack.c.h.b16 %v9055
    %v9201 = vunpack.c.l.b16 %v9056
    %v9202 = vunpack.c.h.b16 %v9056
    %v9203 = vunpack.c.l.b16 %v9057
    %v9204 = vunpack.c.h.b16 %v9057
    %v9205 = vunpack.c.l.b16 %v9058
    %v9206 = vunpack.c.h.b16 %v9058
    %v9207 = vunpack.c.l.b16 %v9059
    %v9208 = vunpack.c.h.b16 %v9059
    %v9209 = vunpack.c.l.b16 %v9060
    %v9210 = vunpack.c.h.b16 %v9060
    %v9211 = vunpack.c.l.b16 %v9061
    %v9212 = vunpack.c.h.b16 %v9061
    %v9213 = vunpack.c.l.b16 %v9062
    %v9214 = vunpack.c.h.b16 %v9062
    %v9215 = vunpack.c.l.b16 %v9063
    %v9216 = vunpack.c.h.b16 %v9063
    %v9217 = vunpack.c.l.b16 %v9064
    %v9218 = vunpack.c.h.b16 %v9064
    %v9219 = vunpack.c.l.b16 %v9065
    %v9220 = vunpack.c.h.b16 %v9065
    %v9221 = vunpack.c.l.b16 %v9066
    %v9222 = vunpack.c.h.b16 %v9066
    %v9223 = vunpack.c.l.b16 %v9067
    %v9224 = vunpack.c.h.b16 %v9067
    %v9225 = vunpack.c.l.b16 %v9068
    %v9226 = vunpack.c.h.b16 %v9068
    %v9227 = vunpack.c.l.b16 %v9069
    %v9228 = vunpack.c.h.b16 %v9069
    %v9229 = vunpack.c.l.b16 %v9070
    %v9230 = vunpack.c.h.b16 %v9070
    %v9231 = vunpack.c.l.b16 %v9071
    %v9232 = vunpack.c.h.b16 %v9071
    %v9233 = vunpack.c.l.b16 %v9072
    %v9234 = vunpack.c.h.b16 %v9072
    %v9235 = vunpack.c.l.b16 %v9073
    %v9236 = vunpack.c.h.b16 %v9073
    %v9237 = vunpack.c.l.b16 %v9074
    %v9238 = vunpack.c.h.b16 %v9074
    %v9239 = vunpack.c.l.b16 %v9075
    %v9240 = vunpack.c.h.b16 %v9075
    %v9241 = vunpack.c.l.b16 %v9076
    %v9242 = vunpack.c.h.b16 %v9076
    %v9243 = vunpack.c.l.b16 %v9077
    %v9244 = vunpack.c.h.b16 %v9077
    %v9245 = vunpack.c.l.b16 %v9078
    %v9246 = vunpack.c.h.b16 %v9078
    %v9247 = vunpack.c.l.b16 %v9079
    %v9248 = vunpack.c.h.b16 %v9079
    %v9249 = vunpack.c.l.b16 %v9080
    %v9250 = vunpack.c.h.b16 %v9080
    %v9251 = vunpack.c.l.b16 %v9081
    %v9252 = vunpack.c.h.b16 %v9081
    %v9253 = vunpack.c.l.b16 %v9082
    %v9254 = vunpack.c.h.b16 %v9082
    %v9255 = vunpack.c.l.b16 %v9083
    %v9256 = vunpack.c.h.b16 %v9083
    %v9257 = vunpack.c.l.b16 %v9084
    %v9258 = vunpack.c.h.b16 %v9084
    %v9259 = vunpack.c.l.b16 %v9085
    %v9260 = vunpack.c.h.b16 %v9085
    %v9261 = vunpack.c.l.b16 %v9086
    %v9262 = vunpack.c.h.b16 %v9086
    %v9263 = vunpack.c.l.b16 %v9087
    %v9264 = vunpack.c.h.b16 %v9087
    %v9265 = vunpack.c.l.b16 %v9088
    %v9266 = vunpack.c.h.b16 %v9088
    %v9267 = vunpack.c.l.b16 %v9089
    %v9268 = vunpack.c.h.b16 %v9089
    %v9269 = vunpack.c.l.b16 %v9090
    %v9270 = vunpack.c.h.b16 %v9090
    %v9271 = vunpack.c.l.b16 %v9091
    %v9272 = vunpack.c.h.b16 %v9091
    %v9273 = vunpack.c.l.b16 %v9092
    %v9274 = vunpack.c.h.b16 %v9092
    %v9275 = vunpack.c.l.b16 %v9093
    %v9276 = vunpack.c.h.b16 %v9093
    %v9277 = vunpack.c.l.b16 %v9094
    %v9278 = vunpack.c.h.b16 %v9094
    %v9279 = vunpack.c.l.b16 %v9095
    %v9280 = vunpack.c.h.b16 %v9095
    %v9281 = vunpack.c.l.b16 %v9096
    %v9282 = vunpack.c.h.b16 %v9096
    %v9283 = vunpack.c.l.b16 %v9097
    %v9284 = vunpack.c.h.b16 %v9097
    %v9285 = vunpack.c.l.b16 %v9098
    %v9286 = vunpack.c.h.b16 %v9098
    %v9287 = vunpack.c.l.b16 %v9099
    %v9288 = vunpack.c.h.b16 %v9099
    %v9289 = vunpack.c.l.b16 %v9100
    %v9290 = vunpack.c.h.b16 %v9100
    %v9291 = vunpack.c.l.b16 %v9101
    %v9292 = vunpack.c.h.b16 %v9101
    %v9293 = vunpack.c.l.b16 %v9102
    %v9294 = vunpack.c.h.b16 %v9102
    %v9295 = vpack.c.b16 %v9175, %v9167
    %v9296 = vpack.c.b16 %v9176, %v9168
    %v9297 = vpack.c.b16 %v9177, %v9169
    %v9298 = vpack.c.b16 %v9178, %v9170
    %v9299 = vpack.c.b16 %v9179, %v9171
    %v9300 = vpack.c.b16 %v9180, %v9172
    %v9301 = vpack.c.b16 %v9181, %v9173
    %v9302 = vpack.c.b16 %v9182, %v9174
    %v9303 = vpack.c.b16 %v9191, %v9183
    %v9304 = vpack.c.b16 %v9192, %v9184
    %v9305 = vpack.c.b16 %v9193, %v9185
    %v9306 = vpack.c.b16 %v9194, %v9186
    %v9307 = vpack.c.b16 %v9195, %v9187
    %v9308 = vpack.c.b16 %v9196, %v9188
    %v9309 = vpack.c.b16 %v9197, %v9189
    %v9310 = vpack.c.b16 %v9198, %v9190
    %v9311 = vpack.c.b16 %v9207, %v9199
    %v9312 = vpack.c.b16 %v9208, %v9200
    %v9313 = vpack.c.b16 %v9209, %v9201
    %v9314 = vpack.c.b16 %v9210, %v9202
    %v9315 = vpack.c.b16 %v9211, %v9203
    %v9316 = vpack.c.b16 %v9212, %v9204
    %v9317 = vpack.c.b16 %v9213, %v9205
    %v9318 = vpack.c.b16 %v9214, %v9206
    %v9319 = vpack.c.b16 %v9223, %v9215
    %v9320 = vpack.c.b16 %v9224, %v9216
    %v9321 = vpack.c.b16 %v9225, %v9217
    %v9322 = vpack.c.b16 %v9226, %v9218
    %v9323 = vpack.c.b16 %v9227, %v9219
    %v9324 = vpack.c.b16 %v9228, %v9220
    %v9325 = vpack.c.b16 %v9229, %v9221
    %v9326 = vpack.c.b16 %v9230, %v9222
    %v9327 = vpack.c.b16 %v9239, %v9231
    %v9328 = vpack.c.b16 %v9240, %v9232
    %v9329 = vpack.c.b16 %v9241, %v9233
    %v9330 = vpack.c.b16 %v9242, %v9234
    %v9331 = vpack.c.b16 %v9243, %v9235
    %v9332 = vpack.c.b16 %v9244, %v9236
    %v9333 = vpack.c.b16 %v9245, %v9237
    %v9334 = vpack.c.b16 %v9246, %v9238
    %v9335 = vpack.c.b16 %v9255, %v9247
    %v9336 = vpack.c.b16 %v9256, %v9248
    %v9337 = vpack.c.b16 %v9257, %v9249
    %v9338 = vpack.c.b16 %v9258, %v9250
    %v9339 = vpack.c.b16 %v9259, %v9251
    %v9340 = vpack.c.b16 %v9260, %v9252
    %v9341 = vpack.c.b16 %v9261, %v9253
    %v9342 = vpack.c.b16 %v9262, %v9254
    %v9343 = vpack.c.b16 %v9271, %v9263
    %v9344 = vpack.c.b16 %v9272, %v9264
    %v9345 = vpack.c.b16 %v9273, %v9265
    %v9346 = vpack.c.b16 %v9274, %v9266
    %v9347 = vpack.c.b16 %v9275, %v9267
    %v9348 = vpack.c.b16 %v9276, %v9268
    %v9349 = vpack.c.b16 %v9277, %v9269
    %v9350 = vpack.c.b16 %v9278, %v9270
    %v9351 = vpack.c.b16 %v9287, %v9279
    %v9352 = vpack.c.b16 %v9288, %v9280
    %v9353 = vpack.c.b16 %v9289, %v9281
    %v9354 = vpack.c.b16 %v9290, %v9282
    %v9355 = vpack.c.b16 %v9291, %v9283
    %v9356 = vpack.c.b16 %v9292, %v9284
    %v9357 = vpack.c.b16 %v9293, %v9285
    %v9358 = vpack.c.b16 %v9294, %v9286
    %9423 = vmatprep.subr.bf16.mxu0 %v9296
    %9424 = vmatpush1.bf16.msra.mxu0 %v9295
    %9425 = vmatprep.subr.bf16.mxu0 %v9304
    %9426 = vmatpush1.bf16.msra.mxu0 %v9303
    %9427 = vmatprep.subr.bf16.mxu0 %v9312
    %9428 = vmatpush1.bf16.msra.mxu0 %v9311
    %9429 = vmatprep.subr.bf16.mxu0 %v9320
    %9430 = vmatpush1.bf16.msra.mxu0 %v9319
    %9431 = vmatprep.subr.bf16.mxu0 %v9328
    %9432 = vmatpush1.bf16.msra.mxu0 %v9327
    %9433 = vmatprep.subr.bf16.mxu0 %v9336
    %9434 = vmatpush1.bf16.msra.mxu0 %v9335
    %9435 = vmatprep.subr.bf16.mxu0 %v9344
    %9436 = vmatpush1.bf16.msra.mxu0 %v9343
    %9437 = vmatprep.subr.bf16.mxu0 %v9352
    %9438 = vmatpush1.bf16.msra.mxu0 %v9351
    %9439 = vmatprep.subr.bf16.mxu0 0
    %9440 = vmatpush1.bf16.msra.mxu0 0
    %9441 = vmatprep.subr.bf16.mxu0 0
    %9442 = vmatpush1.bf16.msra.mxu0 0
    %9443 = vmatprep.subr.bf16.mxu0 0
    %9444 = vmatpush1.bf16.msra.mxu0 0
    %9445 = vmatprep.subr.bf16.mxu0 0
    %9446 = vmatpush1.bf16.msra.mxu0 0
    %9447 = vmatprep.subr.bf16.mxu0 0
    %9448 = vmatpush1.bf16.msra.mxu0 0
    %9449 = vmatprep.subr.bf16.mxu0 0
    %9450 = vmatpush1.bf16.msra.mxu0 0
    %9451 = vmatprep.subr.bf16.mxu0 0
    %9452 = vmatpush1.bf16.msra.mxu0 0
    %9453 = vmatprep.subr.bf16.mxu0 0
    %9454 = vmatpush1.bf16.msra.mxu0 0
    %9455 = vmatprep.mubr.bf16.mxu0 0
    %9456 = vmatmul.mubr.bf16.gmra.mrb[0].mxu0 %v9037
    %v9457 = vpop.f32.mrb[0].mxu0
    %v9458 = vadd.f32 0.0, %v9457
    %v9459 = vpop.f32.mrb[0].mxu0
    %v9460 = vadd.f32 0.0, %v9459
    %v9461 = vpop.f32.mrb[0].mxu0
    %v9462 = vadd.f32 0.0, %v9461
    %v9463 = vpop.f32.mrb[0].mxu0
    %v9464 = vadd.f32 0.0, %v9463
    %9465 = vdwg.mxu0
    %9466 = vmatprep.subr.bf16.mxu0 %v9298
    %9467 = vmatpush1.bf16.msra.mxu0 %v9297
    %9468 = vmatprep.subr.bf16.mxu0 %v9306
    %9469 = vmatpush1.bf16.msra.mxu0 %v9305
    %9470 = vmatprep.subr.bf16.mxu0 %v9314
    %9471 = vmatpush1.bf16.msra.mxu0 %v9313
    %9472 = vmatprep.subr.bf16.mxu0 %v9322
    %9473 = vmatpush1.bf16.msra.mxu0 %v9321
    %9474 = vmatprep.subr.bf16.mxu0 %v9330
    %9475 = vmatpush1.bf16.msra.mxu0 %v9329
    %9476 = vmatprep.subr.bf16.mxu0 %v9338
    %9477 = vmatpush1.bf16.msra.mxu0 %v9337
    %9478 = vmatprep.subr.bf16.mxu0 %v9346
    %9479 = vmatpush1.bf16.msra.mxu0 %v9345
    %9480 = vmatprep.subr.bf16.mxu0 %v9354
    %9481 = vmatpush1.bf16.msra.mxu0 %v9353
    %9482 = vmatprep.subr.bf16.mxu0 0
    %9483 = vmatpush1.bf16.msra.mxu0 0
    %9484 = vmatprep.subr.bf16.mxu0 0
    %9485 = vmatpush1.bf16.msra.mxu0 0
    %9486 = vmatprep.subr.bf16.mxu0 0
    %9487 = vmatpush1.bf16.msra.mxu0 0
    %9488 = vmatprep.subr.bf16.mxu0 0
    %9489 = vmatpush1.bf16.msra.mxu0 0
    %9490 = vmatprep.subr.bf16.mxu0 0
    %9491 = vmatpush1.bf16.msra.mxu0 0
    %9492 = vmatprep.subr.bf16.mxu0 0
    %9493 = vmatpush1.bf16.msra.mxu0 0
    %9494 = vmatprep.subr.bf16.mxu0 0
    %9495 = vmatpush1.bf16.msra.mxu0 0
    %9496 = vmatprep.subr.bf16.mxu0 0
    %9497 = vmatpush1.bf16.msra.mxu0 0
    %9498 = vmatprep.mubr.bf16.mxu0 0
    %9499 = vmatmul.mubr.bf16.gmra.mrb[0].mxu0 %v9037
    %v9500 = vpop.f32.mrb[0].mxu0
    %v9501 = vadd.f32 0.0, %v9500
    %v9502 = vpop.f32.mrb[0].mxu0
    %v9503 = vadd.f32 0.0, %v9502
    %v9504 = vpop.f32.mrb[0].mxu0
    %v9505 = vadd.f32 0.0, %v9504
    %v9506 = vpop.f32.mrb[0].mxu0
    %v9507 = vadd.f32 0.0, %v9506
    %9508 = vdwg.mxu0
    %9509 = vmatprep.subr.bf16.mxu0 %v9300
    %9510 = vmatpush1.bf16.msra.mxu0 %v9299
    %9511 = vmatprep.subr.bf16.mxu0 %v9308
    %9512 = vmatpush1.bf16.msra.mxu0 %v9307
    %9513 = vmatprep.subr.bf16.mxu0 %v9316
    %9514 = vmatpush1.bf16.msra.mxu0 %v9315
    %9515 = vmatprep.subr.bf16.mxu0 %v9324
    %9516 = vmatpush1.bf16.msra.mxu0 %v9323
    %9517 = vmatprep.subr.bf16.mxu0 %v9332
    %9518 = vmatpush1.bf16.msra.mxu0 %v9331
    %9519 = vmatprep.subr.bf16.mxu0 %v9340
    %9520 = vmatpush1.bf16.msra.mxu0 %v9339
    %9521 = vmatprep.subr.bf16.mxu0 %v9348
    %9522 = vmatpush1.bf16.msra.mxu0 %v9347
    %9523 = vmatprep.subr.bf16.mxu0 %v9356
    %9524 = vmatpush1.bf16.msra.mxu0 %v9355
    %9525 = vmatprep.subr.bf16.mxu0 0
    %9526 = vmatpush1.bf16.msra.mxu0 0
    %9527 = vmatprep.subr.bf16.mxu0 0
    %9528 = vmatpush1.bf16.msra.mxu0 0
    %9529 = vmatprep.subr.bf16.mxu0 0
    %9530 = vmatpush1.bf16.msra.mxu0 0
    %9531 = vmatprep.subr.bf16.mxu0 0
    %9532 = vmatpush1.bf16.msra.mxu0 0
    %9533 = vmatprep.subr.bf16.mxu0 0
    %9534 = vmatpush1.bf16.msra.mxu0 0
    %9535 = vmatprep.subr.bf16.mxu0 0
    %9536 = vmatpush1.bf16.msra.mxu0 0
    %9537 = vmatprep.subr.bf16.mxu0 0
    %9538 = vmatpush1.bf16.msra.mxu0 0
    %9539 = vmatprep.subr.bf16.mxu0 0
    %9540 = vmatpush1.bf16.msra.mxu0 0
    %9541 = vmatprep.mubr.bf16.mxu0 0
    %9542 = vmatmul.mubr.bf16.gmra.mrb[0].mxu0 %v9037
    %v9543 = vpop.f32.mrb[0].mxu0
    %v9544 = vadd.f32 0.0, %v9543
    %v9545 = vpop.f32.mrb[0].mxu0
    %v9546 = vadd.f32 0.0, %v9545
    %v9547 = vpop.f32.mrb[0].mxu0
    %v9548 = vadd.f32 0.0, %v9547
    %v9549 = vpop.f32.mrb[0].mxu0
    %v9550 = vadd.f32 0.0, %v9549
    %9551 = vdwg.mxu0
    %9552 = vmatprep.subr.bf16.mxu0 %v9302
    %9553 = vmatpush1.bf16.msra.mxu0 %v9301
    %9554 = vmatprep.subr.bf16.mxu0 %v9310
    %9555 = vmatpush1.bf16.msra.mxu0 %v9309
    %9556 = vmatprep.subr.bf16.mxu0 %v9318
    %9557 = vmatpush1.bf16.msra.mxu0 %v9317
    %9558 = vmatprep.subr.bf16.mxu0 %v9326
    %9559 = vmatpush1.bf16.msra.mxu0 %v9325
    %9560 = vmatprep.subr.bf16.mxu0 %v9334
    %9561 = vmatpush1.bf16.msra.mxu0 %v9333
    %9562 = vmatprep.subr.bf16.mxu0 %v9342
    %9563 = vmatpush1.bf16.msra.mxu0 %v9341
    %9564 = vmatprep.subr.bf16.mxu0 %v9350
    %9565 = vmatpush1.bf16.msra.mxu0 %v9349
    %9566 = vmatprep.subr.bf16.mxu0 %v9358
    %9567 = vmatpush1.bf16.msra.mxu0 %v9357
    %9568 = vmatprep.subr.bf16.mxu0 0
    %9569 = vmatpush1.bf16.msra.mxu0 0
    %9570 = vmatprep.subr.bf16.mxu0 0
    %9571 = vmatpush1.bf16.msra.mxu0 0
    %9572 = vmatprep.subr.bf16.mxu0 0
    %9573 = vmatpush1.bf16.msra.mxu0 0
    %9574 = vmatprep.subr.bf16.mxu0 0
    %9575 = vmatpush1.bf16.msra.mxu0 0
    %9576 = vmatprep.subr.bf16.mxu0 0
    %9577 = vmatpush1.bf16.msra.mxu0 0
    %9578 = vmatprep.subr.bf16.mxu0 0
    %9579 = vmatpush1.bf16.msra.mxu0 0
    %9580 = vmatprep.subr.bf16.mxu0 0
    %9581 = vmatpush1.bf16.msra.mxu0 0
    %9582 = vmatprep.subr.bf16.mxu0 0
    %9583 = vmatpush1.bf16.msra.mxu0 0
    %9584 = vmatprep.mubr.bf16.mxu0 0
    %9585 = vmatmul.mubr.bf16.gmra.mrb[0].mxu0 %v9037
    %v9586 = vpop.f32.mrb[0].mxu0
    %v9587 = vadd.f32 0.0, %v9586
    %v9588 = vpop.f32.mrb[0].mxu0
    %v9589 = vadd.f32 0.0, %v9588
    %v9590 = vpop.f32.mrb[0].mxu0
    %v9591 = vadd.f32 0.0, %v9590
    %v9592 = vpop.f32.mrb[0].mxu0
    %v9593 = vadd.f32 0.0, %v9592
    %9594 = vdwg.mxu0
    %v9595 = vadd.f32 %v8965, %v9458
    %v9596 = vadd.f32 %v8966, %v9460
    %v9597 = vadd.f32 %v8967, %v9501
    %v9598 = vadd.f32 %v8968, %v9503
    %v9599 = vadd.f32 %v8969, %v9544
    %v9600 = vadd.f32 %v8970, %v9546
    %v9601 = vadd.f32 %v8971, %v9587
    %v9602 = vadd.f32 %v8972, %v9589
    %v9603 = vadd.f32 %v8973, %v9462
    %v9604 = vadd.f32 %v8974, %v9464
    %v9605 = vadd.f32 %v8975, %v9505
    %v9606 = vadd.f32 %v8976, %v9507
    %v9607 = vadd.f32 %v8977, %v9548
    %v9608 = vadd.f32 %v8978, %v9550
    %v9609 = vadd.f32 %v8979, %v9591
    %v9610 = vadd.f32 %v8980, %v9593
    %s9611 = scalar_lea.vmem %s0, 120
    %v9612 = vld [vmem:[%s9611] sm:$0xf]
    %v9613 = vld [vmem:[%s9611 + $0x4] sm:$0xf]
    %v9616 = vunpack.c.l.b16 %v9612
    %v9617 = vunpack.c.l.b16 %v9613
    %v9618 = vpack.c.b16 %v9617, %v9616
    %9620 = vmatprep.subr.bf16.mxu0 0
    %9621 = vmatpush1.bf16.msra.mxu0 %v187
    %9622 = vmatprep.subr.bf16.mxu0 0
    %9623 = vmatpush1.bf16.msra.mxu0 %v188
    %9624 = vmatprep.subr.bf16.mxu0 0
    %9625 = vmatpush1.bf16.msra.mxu0 %v189
    %9626 = vmatprep.subr.bf16.mxu0 0
    %9627 = vmatpush1.bf16.msra.mxu0 %v190
    %9628 = vmatprep.subr.bf16.mxu0 0
    %9629 = vmatpush1.bf16.msra.mxu0 %v191
    %9630 = vmatprep.subr.bf16.mxu0 0
    %9631 = vmatpush1.bf16.msra.mxu0 %v192
    %9632 = vmatprep.subr.bf16.mxu0 0
    %9633 = vmatpush1.bf16.msra.mxu0 %v193
    %9634 = vmatprep.subr.bf16.mxu0 0
    %9635 = vmatpush1.bf16.msra.mxu0 %v194
    %9636 = vmatprep.subr.bf16.mxu0 0
    %9637 = vmatpush1.bf16.msra.mxu0 0
    %9638 = vmatprep.subr.bf16.mxu0 0
    %9639 = vmatpush1.bf16.msra.mxu0 0
    %9640 = vmatprep.subr.bf16.mxu0 0
    %9641 = vmatpush1.bf16.msra.mxu0 0
    %9642 = vmatprep.subr.bf16.mxu0 0
    %9643 = vmatpush1.bf16.msra.mxu0 0
    %9644 = vmatprep.subr.bf16.mxu0 0
    %9645 = vmatpush1.bf16.msra.mxu0 0
    %9646 = vmatprep.subr.bf16.mxu0 0
    %9647 = vmatpush1.bf16.msra.mxu0 0
    %9648 = vmatprep.subr.bf16.mxu0 0
    %9649 = vmatpush1.bf16.msra.mxu0 0
    %9650 = vmatprep.subr.bf16.mxu0 0
    %9651 = vmatpush1.bf16.msra.mxu0 0
    %9652 = vmatprep.mubr.bf16.mxu0 0
    %9653 = vmatmul.mubr.bf16.gmra.mrb[0].mxu0 %v9618
    %v9654 = vpop.f32.mrb[0].mxu0
    %v9655 = vadd.f32 0.0, %v9654
    %v9656 = vpop.f32.mrb[0].mxu0
    %v9657 = vpop.f32.mrb[0].mxu0
    %v9658 = vadd.f32 0.0, %v9657
    %v9659 = vpop.f32.mrb[0].mxu0
    %9660 = vdwg.mxu0
    %v9661 = vmul.f32 %v9655, %v138
    %v9662 = vmul.f32 %v9658, %v138
    %v9663 = vadd.f32 %v9661, %v145
    %v9664 = vadd.f32 %v9662, %v145
    %v9665 = vmax.f32 %v9663, 0.0
    %v9666 = vmax.f32 %v9664, 0.0
    %v9667 = vpack.c.bf16 %v9666, %v9665
    %s9668 = scalar_lea.vmem [#allocation7], 7680
    %v9669 = vld [vmem:[%s9668] sm:$0xff]
    %v9670 = vld [vmem:[%s9668 + $0x8] sm:$0xff]
    %v9671 = vld [vmem:[%s9668 + $0x10] sm:$0xff]
    %v9672 = vld [vmem:[%s9668 + $0x18] sm:$0xff]
    %v9673 = vld [vmem:[%s9668 + $0x20] sm:$0xff]
    %v9674 = vld [vmem:[%s9668 + $0x28] sm:$0xff]
    %v9675 = vld [vmem:[%s9668 + $0x30] sm:$0xff]
    %v9676 = vld [vmem:[%s9668 + $0x38] sm:$0xff]
    %v9677 = vld [vmem:[%s9668 + $0x40] sm:$0xff]
    %v9678 = vld [vmem:[%s9668 + $0x48] sm:$0xff]
    %v9679 = vld [vmem:[%s9668 + $0x50] sm:$0xff]
    %v9680 = vld [vmem:[%s9668 + $0x58] sm:$0xff]
    %v9681 = vld [vmem:[%s9668 + $0x60] sm:$0xff]
    %v9682 = vld [vmem:[%s9668 + $0x68] sm:$0xff]
    %v9683 = vld [vmem:[%s9668 + $0x70] sm:$0xff]
    %v9684 = vld [vmem:[%s9668 + $0x78] sm:$0xff]
    %v9685 = vld [vmem:[%s9668 + $0x80] sm:$0xff]
    %v9686 = vld [vmem:[%s9668 + $0x88] sm:$0xff]
    %v9687 = vld [vmem:[%s9668 + $0x90] sm:$0xff]
    %v9688 = vld [vmem:[%s9668 + $0x98] sm:$0xff]
    %v9689 = vld [vmem:[%s9668 + $0xa0] sm:$0xff]
    %v9690 = vld [vmem:[%s9668 + $0xa8] sm:$0xff]
    %v9691 = vld [vmem:[%s9668 + $0xb0] sm:$0xff]
    %v9692 = vld [vmem:[%s9668 + $0xb8] sm:$0xff]
    %v9693 = vld [vmem:[%s9668 + $0xc0] sm:$0xff]
    %v9694 = vld [vmem:[%s9668 + $0xc8] sm:$0xff]
    %v9695 = vld [vmem:[%s9668 + $0xd0] sm:$0xff]
    %v9696 = vld [vmem:[%s9668 + $0xd8] sm:$0xff]
    %v9697 = vld [vmem:[%s9668 + $0xe0] sm:$0xff]
    %v9698 = vld [vmem:[%s9668 + $0xe8] sm:$0xff]
    %v9699 = vld [vmem:[%s9668 + $0xf0] sm:$0xff]
    %v9700 = vld [vmem:[%s9668 + $0xf8] sm:$0xff]
    %v9701 = vld [vmem:[%s9668 + $0x100] sm:$0xff]
    %v9702 = vld [vmem:[%s9668 + $0x108] sm:$0xff]
    %v9703 = vld [vmem:[%s9668 + $0x110] sm:$0xff]
    %v9704 = vld [vmem:[%s9668 + $0x118] sm:$0xff]
    %v9705 = vld [vmem:[%s9668 + $0x120] sm:$0xff]
    %v9706 = vld [vmem:[%s9668 + $0x128] sm:$0xff]
    %v9707 = vld [vmem:[%s9668 + $0x130] sm:$0xff]
    %v9708 = vld [vmem:[%s9668 + $0x138] sm:$0xff]
    %v9709 = vld [vmem:[%s9668 + $0x140] sm:$0xff]
    %v9710 = vld [vmem:[%s9668 + $0x148] sm:$0xff]
    %v9711 = vld [vmem:[%s9668 + $0x150] sm:$0xff]
    %v9712 = vld [vmem:[%s9668 + $0x158] sm:$0xff]
    %v9713 = vld [vmem:[%s9668 + $0x160] sm:$0xff]
    %v9714 = vld [vmem:[%s9668 + $0x168] sm:$0xff]
    %v9715 = vld [vmem:[%s9668 + $0x170] sm:$0xff]
    %v9716 = vld [vmem:[%s9668 + $0x178] sm:$0xff]
    %v9717 = vld [vmem:[%s9668 + $0x180] sm:$0xff]
    %v9718 = vld [vmem:[%s9668 + $0x188] sm:$0xff]
    %v9719 = vld [vmem:[%s9668 + $0x190] sm:$0xff]
    %v9720 = vld [vmem:[%s9668 + $0x198] sm:$0xff]
    %v9721 = vld [vmem:[%s9668 + $0x1a0] sm:$0xff]
    %v9722 = vld [vmem:[%s9668 + $0x1a8] sm:$0xff]
    %v9723 = vld [vmem:[%s9668 + $0x1b0] sm:$0xff]
    %v9724 = vld [vmem:[%s9668 + $0x1b8] sm:$0xff]
    %v9725 = vld [vmem:[%s9668 + $0x1c0] sm:$0xff]
    %v9726 = vld [vmem:[%s9668 + $0x1c8] sm:$0xff]
    %v9727 = vld [vmem:[%s9668 + $0x1d0] sm:$0xff]
    %v9728 = vld [vmem:[%s9668 + $0x1d8] sm:$0xff]
    %v9729 = vld [vmem:[%s9668 + $0x1e0] sm:$0xff]
    %v9730 = vld [vmem:[%s9668 + $0x1e8] sm:$0xff]
    %v9731 = vld [vmem:[%s9668 + $0x1f0] sm:$0xff]
    %v9732 = vld [vmem:[%s9668 + $0x1f8] sm:$0xff]
    %v9797 = vunpack.c.l.b16 %v9669
    %v9798 = vunpack.c.h.b16 %v9669
    %v9799 = vunpack.c.l.b16 %v9670
    %v9800 = vunpack.c.h.b16 %v9670
    %v9801 = vunpack.c.l.b16 %v9671
    %v9802 = vunpack.c.h.b16 %v9671
    %v9803 = vunpack.c.l.b16 %v9672
    %v9804 = vunpack.c.h.b16 %v9672
    %v9805 = vunpack.c.l.b16 %v9673
    %v9806 = vunpack.c.h.b16 %v9673
    %v9807 = vunpack.c.l.b16 %v9674
    %v9808 = vunpack.c.h.b16 %v9674
    %v9809 = vunpack.c.l.b16 %v9675
    %v9810 = vunpack.c.h.b16 %v9675
    %v9811 = vunpack.c.l.b16 %v9676
    %v9812 = vunpack.c.h.b16 %v9676
    %v9813 = vunpack.c.l.b16 %v9677
    %v9814 = vunpack.c.h.b16 %v9677
    %v9815 = vunpack.c.l.b16 %v9678
    %v9816 = vunpack.c.h.b16 %v9678
    %v9817 = vunpack.c.l.b16 %v9679
    %v9818 = vunpack.c.h.b16 %v9679
    %v9819 = vunpack.c.l.b16 %v9680
    %v9820 = vunpack.c.h.b16 %v9680
    %v9821 = vunpack.c.l.b16 %v9681
    %v9822 = vunpack.c.h.b16 %v9681
    %v9823 = vunpack.c.l.b16 %v9682
    %v9824 = vunpack.c.h.b16 %v9682
    %v9825 = vunpack.c.l.b16 %v9683
    %v9826 = vunpack.c.h.b16 %v9683
    %v9827 = vunpack.c.l.b16 %v9684
    %v9828 = vunpack.c.h.b16 %v9684
    %v9829 = vunpack.c.l.b16 %v9685
    %v9830 = vunpack.c.h.b16 %v9685
    %v9831 = vunpack.c.l.b16 %v9686
    %v9832 = vunpack.c.h.b16 %v9686
    %v9833 = vunpack.c.l.b16 %v9687
    %v9834 = vunpack.c.h.b16 %v9687
    %v9835 = vunpack.c.l.b16 %v9688
    %v9836 = vunpack.c.h.b16 %v9688
    %v9837 = vunpack.c.l.b16 %v9689
    %v9838 = vunpack.c.h.b16 %v9689
    %v9839 = vunpack.c.l.b16 %v9690
    %v9840 = vunpack.c.h.b16 %v9690
    %v9841 = vunpack.c.l.b16 %v9691
    %v9842 = vunpack.c.h.b16 %v9691
    %v9843 = vunpack.c.l.b16 %v9692
    %v9844 = vunpack.c.h.b16 %v9692
    %v9845 = vunpack.c.l.b16 %v9693
    %v9846 = vunpack.c.h.b16 %v9693
    %v9847 = vunpack.c.l.b16 %v9694
    %v9848 = vunpack.c.h.b16 %v9694
    %v9849 = vunpack.c.l.b16 %v9695
    %v9850 = vunpack.c.h.b16 %v9695
    %v9851 = vunpack.c.l.b16 %v9696
    %v9852 = vunpack.c.h.b16 %v9696
    %v9853 = vunpack.c.l.b16 %v9697
    %v9854 = vunpack.c.h.b16 %v9697
    %v9855 = vunpack.c.l.b16 %v9698
    %v9856 = vunpack.c.h.b16 %v9698
    %v9857 = vunpack.c.l.b16 %v9699
    %v9858 = vunpack.c.h.b16 %v9699
    %v9859 = vunpack.c.l.b16 %v9700
    %v9860 = vunpack.c.h.b16 %v9700
    %v9861 = vunpack.c.l.b16 %v9701
    %v9862 = vunpack.c.h.b16 %v9701
    %v9863 = vunpack.c.l.b16 %v9702
    %v9864 = vunpack.c.h.b16 %v9702
    %v9865 = vunpack.c.l.b16 %v9703
    %v9866 = vunpack.c.h.b16 %v9703
    %v9867 = vunpack.c.l.b16 %v9704
    %v9868 = vunpack.c.h.b16 %v9704
    %v9869 = vunpack.c.l.b16 %v9705
    %v9870 = vunpack.c.h.b16 %v9705
    %v9871 = vunpack.c.l.b16 %v9706
    %v9872 = vunpack.c.h.b16 %v9706
    %v9873 = vunpack.c.l.b16 %v9707
    %v9874 = vunpack.c.h.b16 %v9707
    %v9875 = vunpack.c.l.b16 %v9708
    %v9876 = vunpack.c.h.b16 %v9708
    %v9877 = vunpack.c.l.b16 %v9709
    %v9878 = vunpack.c.h.b16 %v9709
    %v9879 = vunpack.c.l.b16 %v9710
    %v9880 = vunpack.c.h.b16 %v9710
    %v9881 = vunpack.c.l.b16 %v9711
    %v9882 = vunpack.c.h.b16 %v9711
    %v9883 = vunpack.c.l.b16 %v9712
    %v9884 = vunpack.c.h.b16 %v9712
    %v9885 = vunpack.c.l.b16 %v9713
    %v9886 = vunpack.c.h.b16 %v9713
    %v9887 = vunpack.c.l.b16 %v9714
    %v9888 = vunpack.c.h.b16 %v9714
    %v9889 = vunpack.c.l.b16 %v9715
    %v9890 = vunpack.c.h.b16 %v9715
    %v9891 = vunpack.c.l.b16 %v9716
    %v9892 = vunpack.c.h.b16 %v9716
    %v9893 = vunpack.c.l.b16 %v9717
    %v9894 = vunpack.c.h.b16 %v9717
    %v9895 = vunpack.c.l.b16 %v9718
    %v9896 = vunpack.c.h.b16 %v9718
    %v9897 = vunpack.c.l.b16 %v9719
    %v9898 = vunpack.c.h.b16 %v9719
    %v9899 = vunpack.c.l.b16 %v9720
    %v9900 = vunpack.c.h.b16 %v9720
    %v9901 = vunpack.c.l.b16 %v9721
    %v9902 = vunpack.c.h.b16 %v9721
    %v9903 = vunpack.c.l.b16 %v9722
    %v9904 = vunpack.c.h.b16 %v9722
    %v9905 = vunpack.c.l.b16 %v9723
    %v9906 = vunpack.c.h.b16 %v9723
    %v9907 = vunpack.c.l.b16 %v9724
    %v9908 = vunpack.c.h.b16 %v9724
    %v9909 = vunpack.c.l.b16 %v9725
    %v9910 = vunpack.c.h.b16 %v9725
    %v9911 = vunpack.c.l.b16 %v9726
    %v9912 = vunpack.c.h.b16 %v9726
    %v9913 = vunpack.c.l.b16 %v9727
    %v9914 = vunpack.c.h.b16 %v9727
    %v9915 = vunpack.c.l.b16 %v9728
    %v9916 = vunpack.c.h.b16 %v9728
    %v9917 = vunpack.c.l.b16 %v9729
    %v9918 = vunpack.c.h.b16 %v9729
    %v9919 = vunpack.c.l.b16 %v9730
    %v9920 = vunpack.c.h.b16 %v9730
    %v9921 = vunpack.c.l.b16 %v9731
    %v9922 = vunpack.c.h.b16 %v9731
    %v9923 = vunpack.c.l.b16 %v9732
    %v9924 = vunpack.c.h.b16 %v9732
    %v9925 = vpack.c.b16 %v9805, %v9797
    %v9926 = vpack.c.b16 %v9806, %v9798
    %v9927 = vpack.c.b16 %v9807, %v9799
    %v9928 = vpack.c.b16 %v9808, %v9800
    %v9929 = vpack.c.b16 %v9809, %v9801
    %v9930 = vpack.c.b16 %v9810, %v9802
    %v9931 = vpack.c.b16 %v9811, %v9803
    %v9932 = vpack.c.b16 %v9812, %v9804
    %v9933 = vpack.c.b16 %v9821, %v9813
    %v9934 = vpack.c.b16 %v9822, %v9814
    %v9935 = vpack.c.b16 %v9823, %v9815
    %v9936 = vpack.c.b16 %v9824, %v9816
    %v9937 = vpack.c.b16 %v9825, %v9817
    %v9938 = vpack.c.b16 %v9826, %v9818
    %v9939 = vpack.c.b16 %v9827, %v9819
    %v9940 = vpack.c.b16 %v9828, %v9820
    %v9941 = vpack.c.b16 %v9837, %v9829
    %v9942 = vpack.c.b16 %v9838, %v9830
    %v9943 = vpack.c.b16 %v9839, %v9831
    %v9944 = vpack.c.b16 %v9840, %v9832
    %v9945 = vpack.c.b16 %v9841, %v9833
    %v9946 = vpack.c.b16 %v9842, %v9834
    %v9947 = vpack.c.b16 %v9843, %v9835
    %v9948 = vpack.c.b16 %v9844, %v9836
    %v9949 = vpack.c.b16 %v9853, %v9845
    %v9950 = vpack.c.b16 %v9854, %v9846
    %v9951 = vpack.c.b16 %v9855, %v9847
    %v9952 = vpack.c.b16 %v9856, %v9848
    %v9953 = vpack.c.b16 %v9857, %v9849
    %v9954 = vpack.c.b16 %v9858, %v9850
    %v9955 = vpack.c.b16 %v9859, %v9851
    %v9956 = vpack.c.b16 %v9860, %v9852
    %v9957 = vpack.c.b16 %v9869, %v9861
    %v9958 = vpack.c.b16 %v9870, %v9862
    %v9959 = vpack.c.b16 %v9871, %v9863
    %v9960 = vpack.c.b16 %v9872, %v9864
    %v9961 = vpack.c.b16 %v9873, %v9865
    %v9962 = vpack.c.b16 %v9874, %v9866
    %v9963 = vpack.c.b16 %v9875, %v9867
    %v9964 = vpack.c.b16 %v9876, %v9868
    %v9965 = vpack.c.b16 %v9885, %v9877
    %v9966 = vpack.c.b16 %v9886, %v9878
    %v9967 = vpack.c.b16 %v9887, %v9879
    %v9968 = vpack.c.b16 %v9888, %v9880
    %v9969 = vpack.c.b16 %v9889, %v9881
    %v9970 = vpack.c.b16 %v9890, %v9882
    %v9971 = vpack.c.b16 %v9891, %v9883
    %v9972 = vpack.c.b16 %v9892, %v9884
    %v9973 = vpack.c.b16 %v9901, %v9893
    %v9974 = vpack.c.b16 %v9902, %v9894
    %v9975 = vpack.c.b16 %v9903, %v9895
    %v9976 = vpack.c.b16 %v9904, %v9896
    %v9977 = vpack.c.b16 %v9905, %v9897
    %v9978 = vpack.c.b16 %v9906, %v9898
    %v9979 = vpack.c.b16 %v9907, %v9899
    %v9980 = vpack.c.b16 %v9908, %v9900
    %v9981 = vpack.c.b16 %v9917, %v9909
    %v9982 = vpack.c.b16 %v9918, %v9910
    %v9983 = vpack.c.b16 %v9919, %v9911
    %v9984 = vpack.c.b16 %v9920, %v9912
    %v9985 = vpack.c.b16 %v9921, %v9913
    %v9986 = vpack.c.b16 %v9922, %v9914
    %v9987 = vpack.c.b16 %v9923, %v9915
    %v9988 = vpack.c.b16 %v9924, %v9916
    %10053 = vmatprep.subr.bf16.mxu0 %v9926
    %10054 = vmatpush1.bf16.msra.mxu0 %v9925
    %10055 = vmatprep.subr.bf16.mxu0 %v9934
    %10056 = vmatpush1.bf16.msra.mxu0 %v9933
    %10057 = vmatprep.subr.bf16.mxu0 %v9942
    %10058 = vmatpush1.bf16.msra.mxu0 %v9941
    %10059 = vmatprep.subr.bf16.mxu0 %v9950
    %10060 = vmatpush1.bf16.msra.mxu0 %v9949
    %10061 = vmatprep.subr.bf16.mxu0 %v9958
    %10062 = vmatpush1.bf16.msra.mxu0 %v9957
    %10063 = vmatprep.subr.bf16.mxu0 %v9966
    %10064 = vmatpush1.bf16.msra.mxu0 %v9965
    %10065 = vmatprep.subr.bf16.mxu0 %v9974
    %10066 = vmatpush1.bf16.msra.mxu0 %v9973
    %10067 = vmatprep.subr.bf16.mxu0 %v9982
    %10068 = vmatpush1.bf16.msra.mxu0 %v9981
    %10069 = vmatprep.subr.bf16.mxu0 0
    %10070 = vmatpush1.bf16.msra.mxu0 0
    %10071 = vmatprep.subr.bf16.mxu0 0
    %10072 = vmatpush1.bf16.msra.mxu0 0
    %10073 = vmatprep.subr.bf16.mxu0 0
    %10074 = vmatpush1.bf16.msra.mxu0 0
    %10075 = vmatprep.subr.bf16.mxu0 0
    %10076 = vmatpush1.bf16.msra.mxu0 0
    %10077 = vmatprep.subr.bf16.mxu0 0
    %10078 = vmatpush1.bf16.msra.mxu0 0
    %10079 = vmatprep.subr.bf16.mxu0 0
    %10080 = vmatpush1.bf16.msra.mxu0 0
    %10081 = vmatprep.subr.bf16.mxu0 0
    %10082 = vmatpush1.bf16.msra.mxu0 0
    %10083 = vmatprep.subr.bf16.mxu0 0
    %10084 = vmatpush1.bf16.msra.mxu0 0
    %10085 = vmatprep.mubr.bf16.mxu0 0
    %10086 = vmatmul.mubr.bf16.gmra.mrb[0].mxu0 %v9667
    %v10087 = vpop.f32.mrb[0].mxu0
    %v10088 = vadd.f32 0.0, %v10087
    %v10089 = vpop.f32.mrb[0].mxu0
    %v10090 = vadd.f32 0.0, %v10089
    %v10091 = vpop.f32.mrb[0].mxu0
    %v10092 = vadd.f32 0.0, %v10091
    %v10093 = vpop.f32.mrb[0].mxu0
    %v10094 = vadd.f32 0.0, %v10093
    %10095 = vdwg.mxu0
    %10096 = vmatprep.subr.bf16.mxu0 %v9928
    %10097 = vmatpush1.bf16.msra.mxu0 %v9927
    %10098 = vmatprep.subr.bf16.mxu0 %v9936
    %10099 = vmatpush1.bf16.msra.mxu0 %v9935
    %10100 = vmatprep.subr.bf16.mxu0 %v9944
    %10101 = vmatpush1.bf16.msra.mxu0 %v9943
    %10102 = vmatprep.subr.bf16.mxu0 %v9952
    %10103 = vmatpush1.bf16.msra.mxu0 %v9951
    %10104 = vmatprep.subr.bf16.mxu0 %v9960
    %10105 = vmatpush1.bf16.msra.mxu0 %v9959
    %10106 = vmatprep.subr.bf16.mxu0 %v9968
    %10107 = vmatpush1.bf16.msra.mxu0 %v9967
    %10108 = vmatprep.subr.bf16.mxu0 %v9976
    %10109 = vmatpush1.bf16.msra.mxu0 %v9975
    %10110 = vmatprep.subr.bf16.mxu0 %v9984
    %10111 = vmatpush1.bf16.msra.mxu0 %v9983
    %10112 = vmatprep.subr.bf16.mxu0 0
    %10113 = vmatpush1.bf16.msra.mxu0 0
    %10114 = vmatprep.subr.bf16.mxu0 0
    %10115 = vmatpush1.bf16.msra.mxu0 0
    %10116 = vmatprep.subr.bf16.mxu0 0
    %10117 = vmatpush1.bf16.msra.mxu0 0
    %10118 = vmatprep.subr.bf16.mxu0 0
    %10119 = vmatpush1.bf16.msra.mxu0 0
    %10120 = vmatprep.subr.bf16.mxu0 0
    %10121 = vmatpush1.bf16.msra.mxu0 0
    %10122 = vmatprep.subr.bf16.mxu0 0
    %10123 = vmatpush1.bf16.msra.mxu0 0
    %10124 = vmatprep.subr.bf16.mxu0 0
    %10125 = vmatpush1.bf16.msra.mxu0 0
    %10126 = vmatprep.subr.bf16.mxu0 0
    %10127 = vmatpush1.bf16.msra.mxu0 0
    %10128 = vmatprep.mubr.bf16.mxu0 0
    %10129 = vmatmul.mubr.bf16.gmra.mrb[0].mxu0 %v9667
    %v10130 = vpop.f32.mrb[0].mxu0
    %v10131 = vadd.f32 0.0, %v10130
    %v10132 = vpop.f32.mrb[0].mxu0
    %v10133 = vadd.f32 0.0, %v10132
    %v10134 = vpop.f32.mrb[0].mxu0
    %v10135 = vadd.f32 0.0, %v10134
    %v10136 = vpop.f32.mrb[0].mxu0
    %v10137 = vadd.f32 0.0, %v10136
    %10138 = vdwg.mxu0
    %10139 = vmatprep.subr.bf16.mxu0 %v9930
    %10140 = vmatpush1.bf16.msra.mxu0 %v9929
    %10141 = vmatprep.subr.bf16.mxu0 %v9938
    %10142 = vmatpush1.bf16.msra.mxu0 %v9937
    %10143 = vmatprep.subr.bf16.mxu0 %v9946
    %10144 = vmatpush1.bf16.msra.mxu0 %v9945
    %10145 = vmatprep.subr.bf16.mxu0 %v9954
    %10146 = vmatpush1.bf16.msra.mxu0 %v9953
    %10147 = vmatprep.subr.bf16.mxu0 %v9962
    %10148 = vmatpush1.bf16.msra.mxu0 %v9961
    %10149 = vmatprep.subr.bf16.mxu0 %v9970
    %10150 = vmatpush1.bf16.msra.mxu0 %v9969
    %10151 = vmatprep.subr.bf16.mxu0 %v9978
    %10152 = vmatpush1.bf16.msra.mxu0 %v9977
    %10153 = vmatprep.subr.bf16.mxu0 %v9986
    %10154 = vmatpush1.bf16.msra.mxu0 %v9985
    %10155 = vmatprep.subr.bf16.mxu0 0
    %10156 = vmatpush1.bf16.msra.mxu0 0
    %10157 = vmatprep.subr.bf16.mxu0 0
    %10158 = vmatpush1.bf16.msra.mxu0 0
    %10159 = vmatprep.subr.bf16.mxu0 0
    %10160 = vmatpush1.bf16.msra.mxu0 0
    %10161 = vmatprep.subr.bf16.mxu0 0
    %10162 = vmatpush1.bf16.msra.mxu0 0
    %10163 = vmatprep.subr.bf16.mxu0 0
    %10164 = vmatpush1.bf16.msra.mxu0 0
    %10165 = vmatprep.subr.bf16.mxu0 0
    %10166 = vmatpush1.bf16.msra.mxu0 0
    %10167 = vmatprep.subr.bf16.mxu0 0
    %10168 = vmatpush1.bf16.msra.mxu0 0
    %10169 = vmatprep.subr.bf16.mxu0 0
    %10170 = vmatpush1.bf16.msra.mxu0 0
    %10171 = vmatprep.mubr.bf16.mxu0 0
    %10172 = vmatmul.mubr.bf16.gmra.mrb[0].mxu0 %v9667
    %v10173 = vpop.f32.mrb[0].mxu0
    %v10174 = vadd.f32 0.0, %v10173
    %v10175 = vpop.f32.mrb[0].mxu0
    %v10176 = vadd.f32 0.0, %v10175
    %v10177 = vpop.f32.mrb[0].mxu0
    %v10178 = vadd.f32 0.0, %v10177
    %v10179 = vpop.f32.mrb[0].mxu0
    %v10180 = vadd.f32 0.0, %v10179
    %10181 = vdwg.mxu0
    %10182 = vmatprep.subr.bf16.mxu0 %v9932
    %10183 = vmatpush1.bf16.msra.mxu0 %v9931
    %10184 = vmatprep.subr.bf16.mxu0 %v9940
    %10185 = vmatpush1.bf16.msra.mxu0 %v9939
    %10186 = vmatprep.subr.bf16.mxu0 %v9948
    %10187 = vmatpush1.bf16.msra.mxu0 %v9947
    %10188 = vmatprep.subr.bf16.mxu0 %v9956
    %10189 = vmatpush1.bf16.msra.mxu0 %v9955
    %10190 = vmatprep.subr.bf16.mxu0 %v9964
    %10191 = vmatpush1.bf16.msra.mxu0 %v9963
    %10192 = vmatprep.subr.bf16.mxu0 %v9972
    %10193 = vmatpush1.bf16.msra.mxu0 %v9971
    %10194 = vmatprep.subr.bf16.mxu0 %v9980
    %10195 = vmatpush1.bf16.msra.mxu0 %v9979
    %10196 = vmatprep.subr.bf16.mxu0 %v9988
    %10197 = vmatpush1.bf16.msra.mxu0 %v9987
    %10198 = vmatprep.subr.bf16.mxu0 0
    %10199 = vmatpush1.bf16.msra.mxu0 0
    %10200 = vmatprep.subr.bf16.mxu0 0
    %10201 = vmatpush1.bf16.msra.mxu0 0
    %10202 = vmatprep.subr.bf16.mxu0 0
    %10203 = vmatpush1.bf16.msra.mxu0 0
    %10204 = vmatprep.subr.bf16.mxu0 0
    %10205 = vmatpush1.bf16.msra.mxu0 0
    %10206 = vmatprep.subr.bf16.mxu0 0
    %10207 = vmatpush1.bf16.msra.mxu0 0
    %10208 = vmatprep.subr.bf16.mxu0 0
    %10209 = vmatpush1.bf16.msra.mxu0 0
    %10210 = vmatprep.subr.bf16.mxu0 0
    %10211 = vmatpush1.bf16.msra.mxu0 0
    %10212 = vmatprep.subr.bf16.mxu0 0
    %10213 = vmatpush1.bf16.msra.mxu0 0
    %10214 = vmatprep.mubr.bf16.mxu0 0
    %10215 = vmatmul.mubr.bf16.gmra.mrb[0].mxu0 %v9667
    %v10216 = vpop.f32.mrb[0].mxu0
    %v10217 = vadd.f32 0.0, %v10216
    %v10218 = vpop.f32.mrb[0].mxu0
    %v10219 = vadd.f32 0.0, %v10218
    %v10220 = vpop.f32.mrb[0].mxu0
    %v10221 = vadd.f32 0.0, %v10220
    %v10222 = vpop.f32.mrb[0].mxu0
    %v10223 = vadd.f32 0.0, %v10222
    %10224 = vdwg.mxu0
    %v10225 = vadd.f32 %v9595, %v10088
    %v10226 = vadd.f32 %v9596, %v10090
    %v10227 = vadd.f32 %v9597, %v10131
    %v10228 = vadd.f32 %v9598, %v10133
    %v10229 = vadd.f32 %v9599, %v10174
    %v10230 = vadd.f32 %v9600, %v10176
    %v10231 = vadd.f32 %v9601, %v10217
    %v10232 = vadd.f32 %v9602, %v10219
    %v10233 = vadd.f32 %v9603, %v10092
    %v10234 = vadd.f32 %v9604, %v10094
    %v10235 = vadd.f32 %v9605, %v10135
    %v10236 = vadd.f32 %v9606, %v10137
    %v10237 = vadd.f32 %v9607, %v10178
    %v10238 = vadd.f32 %v9608, %v10180
    %v10239 = vadd.f32 %v9609, %v10221
    %v10240 = vadd.f32 %v9610, %v10223
    %v10241 = vld [vmem:[#allocation9] sm:$0xff]
    %v10243 = vlaneseq
    %v10244 = vshrl.u32 %v10243, 7
    %v10245 = vsub.s32 0, %v10244
    %v10246 = vrot.slane %v10241, %v10245
    %v10247 = vlaneseq
    %v10248 = vshrl.u32 %v10247, 7
    %v10249 = vsub.s32 1, %v10248
    %v10250 = vrot.slane %v10241, %v10249
    %v10251 = vlaneseq
    %v10252 = vshrl.u32 %v10251, 7
    %v10253 = vsub.s32 2, %v10252
    %v10254 = vrot.slane %v10241, %v10253
    %v10255 = vlaneseq
    %v10256 = vshrl.u32 %v10255, 7
    %v10257 = vsub.s32 3, %v10256
    %v10258 = vrot.slane %v10241, %v10257
    %v10259 = vlaneseq
    %v10260 = vshrl.u32 %v10259, 7
    %v10261 = vsub.s32 4, %v10260
    %v10262 = vrot.slane %v10241, %v10261
    %v10263 = vlaneseq
    %v10264 = vshrl.u32 %v10263, 7
    %v10265 = vsub.s32 5, %v10264
    %v10266 = vrot.slane %v10241, %v10265
    %v10267 = vlaneseq
    %v10268 = vshrl.u32 %v10267, 7
    %v10269 = vsub.s32 6, %v10268
    %v10270 = vrot.slane %v10241, %v10269
    %v10271 = vlaneseq
    %v10272 = vshrl.u32 %v10271, 7
    %v10273 = vsub.s32 7, %v10272
    %v10274 = vrot.slane %v10241, %v10273
    %v10283 = vadd.f32 %v10225, %v10246
    %v10284 = vadd.f32 %v10226, %v10250
    %v10285 = vadd.f32 %v10227, %v10254
    %v10286 = vadd.f32 %v10228, %v10258
    %v10287 = vadd.f32 %v10229, %v10262
    %v10288 = vadd.f32 %v10230, %v10266
    %v10289 = vadd.f32 %v10231, %v10270
    %v10290 = vadd.f32 %v10232, %v10274
    %v10291 = vadd.f32 %v10233, %v10246
    %v10292 = vadd.f32 %v10234, %v10250
    %v10293 = vadd.f32 %v10235, %v10254
    %v10294 = vadd.f32 %v10236, %v10258
    %v10295 = vadd.f32 %v10237, %v10262
    %v10296 = vadd.f32 %v10238, %v10266
    %v10297 = vadd.f32 %v10239, %v10270
    %v10298 = vadd.f32 %v10240, %v10274
    %v10299 = vmax.f32 %v10283, 0.0
    %v10300 = vmax.f32 %v10284, 0.0
    %v10301 = vmax.f32 %v10285, 0.0
    %v10302 = vmax.f32 %v10286, 0.0
    %v10303 = vmax.f32 %v10287, 0.0
    %v10304 = vmax.f32 %v10288, 0.0
    %v10305 = vmax.f32 %v10289, 0.0
    %v10306 = vmax.f32 %v10290, 0.0
    %v10307 = vmax.f32 %v10291, 0.0
    %v10308 = vmax.f32 %v10292, 0.0
    %v10309 = vmax.f32 %v10293, 0.0
    %v10310 = vmax.f32 %v10294, 0.0
    %v10311 = vmax.f32 %v10295, 0.0
    %v10312 = vmax.f32 %v10296, 0.0
    %v10313 = vmax.f32 %v10297, 0.0
    %v10314 = vmax.f32 %v10298, 0.0
    %v10315 = vpack.c.bf16 %v10307, %v10299
    %v10316 = vpack.c.bf16 %v10308, %v10300
    %v10317 = vpack.c.bf16 %v10309, %v10301
    %v10318 = vpack.c.bf16 %v10310, %v10302
    %v10319 = vpack.c.bf16 %v10311, %v10303
    %v10320 = vpack.c.bf16 %v10312, %v10304
    %v10321 = vpack.c.bf16 %v10313, %v10305
    %v10322 = vpack.c.bf16 %v10314, %v10306
    %v10323 = vld [vmem:[#allocation10] sm:$0xf]
    %v10324 = vld [vmem:[#allocation10 + $0x4] sm:$0xf]
    %v10325 = vld [vmem:[#allocation10 + $0x8] sm:$0xf]
    %v10326 = vld [vmem:[#allocation10 + $0xc] sm:$0xf]
    %v10327 = vld [vmem:[#allocation10 + $0x10] sm:$0xf]
    %v10328 = vld [vmem:[#allocation10 + $0x14] sm:$0xf]
    %v10329 = vld [vmem:[#allocation10 + $0x18] sm:$0xf]
    %v10330 = vld [vmem:[#allocation10 + $0x1c] sm:$0xf]
    %v10331 = vld [vmem:[#allocation10 + $0x20] sm:$0xf]
    %v10332 = vld [vmem:[#allocation10 + $0x24] sm:$0xf]
    %v10333 = vld [vmem:[#allocation10 + $0x28] sm:$0xf]
    %v10334 = vld [vmem:[#allocation10 + $0x2c] sm:$0xf]
    %v10335 = vld [vmem:[#allocation10 + $0x30] sm:$0xf]
    %v10336 = vld [vmem:[#allocation10 + $0x34] sm:$0xf]
    %v10337 = vld [vmem:[#allocation10 + $0x38] sm:$0xf]
    %v10338 = vld [vmem:[#allocation10 + $0x3c] sm:$0xf]
    %v10339 = vld [vmem:[#allocation10 + $0x40] sm:$0xf]
    %v10340 = vld [vmem:[#allocation10 + $0x44] sm:$0xf]
    %v10341 = vld [vmem:[#allocation10 + $0x48] sm:$0xf]
    %v10342 = vld [vmem:[#allocation10 + $0x4c] sm:$0xf]
    %v10343 = vld [vmem:[#allocation10 + $0x50] sm:$0xf]
    %v10344 = vld [vmem:[#allocation10 + $0x54] sm:$0xf]
    %v10345 = vld [vmem:[#allocation10 + $0x58] sm:$0xf]
    %v10346 = vld [vmem:[#allocation10 + $0x5c] sm:$0xf]
    %v10347 = vld [vmem:[#allocation10 + $0x60] sm:$0xf]
    %v10348 = vld [vmem:[#allocation10 + $0x64] sm:$0xf]
    %v10349 = vld [vmem:[#allocation10 + $0x68] sm:$0xf]
    %v10350 = vld [vmem:[#allocation10 + $0x6c] sm:$0xf]
    %v10351 = vld [vmem:[#allocation10 + $0x70] sm:$0xf]
    %v10352 = vld [vmem:[#allocation10 + $0x74] sm:$0xf]
    %v10353 = vld [vmem:[#allocation10 + $0x78] sm:$0xf]
    %v10354 = vld [vmem:[#allocation10 + $0x7c] sm:$0xf]
    %v10355 = vld [vmem:[#allocation10 + $0x80] sm:$0xf]
    %v10356 = vld [vmem:[#allocation10 + $0x84] sm:$0xf]
    %v10357 = vld [vmem:[#allocation10 + $0x88] sm:$0xf]
    %v10358 = vld [vmem:[#allocation10 + $0x8c] sm:$0xf]
    %v10359 = vld [vmem:[#allocation10 + $0x90] sm:$0xf]
    %v10360 = vld [vmem:[#allocation10 + $0x94] sm:$0xf]
    %v10361 = vld [vmem:[#allocation10 + $0x98] sm:$0xf]
    %v10362 = vld [vmem:[#allocation10 + $0x9c] sm:$0xf]
    %v10363 = vld [vmem:[#allocation10 + $0xa0] sm:$0xf]
    %v10364 = vld [vmem:[#allocation10 + $0xa4] sm:$0xf]
    %v10365 = vld [vmem:[#allocation10 + $0xa8] sm:$0xf]
    %v10366 = vld [vmem:[#allocation10 + $0xac] sm:$0xf]
    %v10367 = vld [vmem:[#allocation10 + $0xb0] sm:$0xf]
    %v10368 = vld [vmem:[#allocation10 + $0xb4] sm:$0xf]
    %v10369 = vld [vmem:[#allocation10 + $0xb8] sm:$0xf]
    %v10370 = vld [vmem:[#allocation10 + $0xbc] sm:$0xf]
    %v10371 = vld [vmem:[#allocation10 + $0xc0] sm:$0xf]
    %v10372 = vld [vmem:[#allocation10 + $0xc4] sm:$0xf]
    %v10373 = vld [vmem:[#allocation10 + $0xc8] sm:$0xf]
    %v10374 = vld [vmem:[#allocation10 + $0xcc] sm:$0xf]
    %v10375 = vld [vmem:[#allocation10 + $0xd0] sm:$0xf]
    %v10376 = vld [vmem:[#allocation10 + $0xd4] sm:$0xf]
    %v10377 = vld [vmem:[#allocation10 + $0xd8] sm:$0xf]
    %v10378 = vld [vmem:[#allocation10 + $0xdc] sm:$0xf]
    %v10379 = vld [vmem:[#allocation10 + $0xe0] sm:$0xf]
    %v10380 = vld [vmem:[#allocation10 + $0xe4] sm:$0xf]
    %v10381 = vld [vmem:[#allocation10 + $0xe8] sm:$0xf]
    %v10382 = vld [vmem:[#allocation10 + $0xec] sm:$0xf]
    %v10383 = vld [vmem:[#allocation10 + $0xf0] sm:$0xf]
    %v10384 = vld [vmem:[#allocation10 + $0xf4] sm:$0xf]
    %v10385 = vld [vmem:[#allocation10 + $0xf8] sm:$0xf]
    %v10386 = vld [vmem:[#allocation10 + $0xfc] sm:$0xf]
    %v10387 = vld [vmem:[#allocation10 + $0x100] sm:$0xf]
    %v10388 = vld [vmem:[#allocation10 + $0x104] sm:$0xf]
    %v10389 = vld [vmem:[#allocation10 + $0x108] sm:$0xf]
    %v10390 = vld [vmem:[#allocation10 + $0x10c] sm:$0xf]
    %v10391 = vld [vmem:[#allocation10 + $0x110] sm:$0xf]
    %v10392 = vld [vmem:[#allocation10 + $0x114] sm:$0xf]
    %v10393 = vld [vmem:[#allocation10 + $0x118] sm:$0xf]
    %v10394 = vld [vmem:[#allocation10 + $0x11c] sm:$0xf]
    %v10395 = vld [vmem:[#allocation10 + $0x120] sm:$0xf]
    %v10396 = vld [vmem:[#allocation10 + $0x124] sm:$0xf]
    %v10397 = vld [vmem:[#allocation10 + $0x128] sm:$0xf]
    %v10398 = vld [vmem:[#allocation10 + $0x12c] sm:$0xf]
    %v10399 = vld [vmem:[#allocation10 + $0x130] sm:$0xf]
    %v10400 = vld [vmem:[#allocation10 + $0x134] sm:$0xf]
    %v10401 = vld [vmem:[#allocation10 + $0x138] sm:$0xf]
    %v10402 = vld [vmem:[#allocation10 + $0x13c] sm:$0xf]
    %v10403 = vld [vmem:[#allocation10 + $0x140] sm:$0xf]
    %v10404 = vld [vmem:[#allocation10 + $0x144] sm:$0xf]
    %v10405 = vld [vmem:[#allocation10 + $0x148] sm:$0xf]
    %v10406 = vld [vmem:[#allocation10 + $0x14c] sm:$0xf]
    %v10407 = vld [vmem:[#allocation10 + $0x150] sm:$0xf]
    %v10408 = vld [vmem:[#allocation10 + $0x154] sm:$0xf]
    %v10409 = vld [vmem:[#allocation10 + $0x158] sm:$0xf]
    %v10410 = vld [vmem:[#allocation10 + $0x15c] sm:$0xf]
    %v10411 = vld [vmem:[#allocation10 + $0x160] sm:$0xf]
    %v10412 = vld [vmem:[#allocation10 + $0x164] sm:$0xf]
    %v10413 = vld [vmem:[#allocation10 + $0x168] sm:$0xf]
    %v10414 = vld [vmem:[#allocation10 + $0x16c] sm:$0xf]
    %v10415 = vld [vmem:[#allocation10 + $0x170] sm:$0xf]
    %v10416 = vld [vmem:[#allocation10 + $0x174] sm:$0xf]
    %v10417 = vld [vmem:[#allocation10 + $0x178] sm:$0xf]
    %v10418 = vld [vmem:[#allocation10 + $0x17c] sm:$0xf]
    %v10419 = vld [vmem:[#allocation10 + $0x180] sm:$0xf]
    %v10420 = vld [vmem:[#allocation10 + $0x184] sm:$0xf]
    %v10421 = vld [vmem:[#allocation10 + $0x188] sm:$0xf]
    %v10422 = vld [vmem:[#allocation10 + $0x18c] sm:$0xf]
    %v10423 = vld [vmem:[#allocation10 + $0x190] sm:$0xf]
    %v10424 = vld [vmem:[#allocation10 + $0x194] sm:$0xf]
    %v10425 = vld [vmem:[#allocation10 + $0x198] sm:$0xf]
    %v10426 = vld [vmem:[#allocation10 + $0x19c] sm:$0xf]
    %v10427 = vld [vmem:[#allocation10 + $0x1a0] sm:$0xf]
    %v10428 = vld [vmem:[#allocation10 + $0x1a4] sm:$0xf]
    %v10429 = vld [vmem:[#allocation10 + $0x1a8] sm:$0xf]
    %v10430 = vld [vmem:[#allocation10 + $0x1ac] sm:$0xf]
    %v10431 = vld [vmem:[#allocation10 + $0x1b0] sm:$0xf]
    %v10432 = vld [vmem:[#allocation10 + $0x1b4] sm:$0xf]
    %v10433 = vld [vmem:[#allocation10 + $0x1b8] sm:$0xf]
    %v10434 = vld [vmem:[#allocation10 + $0x1bc] sm:$0xf]
    %v10435 = vld [vmem:[#allocation10 + $0x1c0] sm:$0xf]
    %v10436 = vld [vmem:[#allocation10 + $0x1c4] sm:$0xf]
    %v10437 = vld [vmem:[#allocation10 + $0x1c8] sm:$0xf]
    %v10438 = vld [vmem:[#allocation10 + $0x1cc] sm:$0xf]
    %v10439 = vld [vmem:[#allocation10 + $0x1d0] sm:$0xf]
    %v10440 = vld [vmem:[#allocation10 + $0x1d4] sm:$0xf]
    %v10441 = vld [vmem:[#allocation10 + $0x1d8] sm:$0xf]
    %v10442 = vld [vmem:[#allocation10 + $0x1dc] sm:$0xf]
    %v10443 = vld [vmem:[#allocation10 + $0x1e0] sm:$0xf]
    %v10444 = vld [vmem:[#allocation10 + $0x1e4] sm:$0xf]
    %v10445 = vld [vmem:[#allocation10 + $0x1e8] sm:$0xf]
    %v10446 = vld [vmem:[#allocation10 + $0x1ec] sm:$0xf]
    %v10447 = vld [vmem:[#allocation10 + $0x1f0] sm:$0xf]
    %v10448 = vld [vmem:[#allocation10 + $0x1f4] sm:$0xf]
    %v10449 = vld [vmem:[#allocation10 + $0x1f8] sm:$0xf]
    %v10450 = vld [vmem:[#allocation10 + $0x1fc] sm:$0xf]
    %v10451 = vld [vmem:[#allocation12] sm:$0x1]
    %v10453 = vlaneseq
    %v10454 = vshrl.u32 %v10453, 7
    %v10455 = vsub.s32 0, %v10454
    %v10456 = vrot.slane %v10451, %v10455
    %v10586 = vunpack.c.l.b16 %v10323
    %v10587 = vunpack.c.l.b16 %v10324
    %v10588 = vunpack.c.l.b16 %v10325
    %v10589 = vunpack.c.l.b16 %v10326
    %v10590 = vunpack.c.l.b16 %v10327
    %v10591 = vunpack.c.l.b16 %v10328
    %v10592 = vunpack.c.l.b16 %v10329
    %v10593 = vunpack.c.l.b16 %v10330
    %v10594 = vunpack.c.l.b16 %v10331
    %v10595 = vunpack.c.l.b16 %v10332
    %v10596 = vunpack.c.l.b16 %v10333
    %v10597 = vunpack.c.l.b16 %v10334
    %v10598 = vunpack.c.l.b16 %v10335
    %v10599 = vunpack.c.l.b16 %v10336
    %v10600 = vunpack.c.l.b16 %v10337
    %v10601 = vunpack.c.l.b16 %v10338
    %v10602 = vunpack.c.l.b16 %v10339
    %v10603 = vunpack.c.l.b16 %v10340
    %v10604 = vunpack.c.l.b16 %v10341
    %v10605 = vunpack.c.l.b16 %v10342
    %v10606 = vunpack.c.l.b16 %v10343
    %v10607 = vunpack.c.l.b16 %v10344
    %v10608 = vunpack.c.l.b16 %v10345
    %v10609 = vunpack.c.l.b16 %v10346
    %v10610 = vunpack.c.l.b16 %v10347
    %v10611 = vunpack.c.l.b16 %v10348
    %v10612 = vunpack.c.l.b16 %v10349
    %v10613 = vunpack.c.l.b16 %v10350
    %v10614 = vunpack.c.l.b16 %v10351
    %v10615 = vunpack.c.l.b16 %v10352
    %v10616 = vunpack.c.l.b16 %v10353
    %v10617 = vunpack.c.l.b16 %v10354
    %v10618 = vunpack.c.l.b16 %v10355
    %v10619 = vunpack.c.l.b16 %v10356
    %v10620 = vunpack.c.l.b16 %v10357
    %v10621 = vunpack.c.l.b16 %v10358
    %v10622 = vunpack.c.l.b16 %v10359
    %v10623 = vunpack.c.l.b16 %v10360
    %v10624 = vunpack.c.l.b16 %v10361
    %v10625 = vunpack.c.l.b16 %v10362
    %v10626 = vunpack.c.l.b16 %v10363
    %v10627 = vunpack.c.l.b16 %v10364
    %v10628 = vunpack.c.l.b16 %v10365
    %v10629 = vunpack.c.l.b16 %v10366
    %v10630 = vunpack.c.l.b16 %v10367
    %v10631 = vunpack.c.l.b16 %v10368
    %v10632 = vunpack.c.l.b16 %v10369
    %v10633 = vunpack.c.l.b16 %v10370
    %v10634 = vunpack.c.l.b16 %v10371
    %v10635 = vunpack.c.l.b16 %v10372
    %v10636 = vunpack.c.l.b16 %v10373
    %v10637 = vunpack.c.l.b16 %v10374
    %v10638 = vunpack.c.l.b16 %v10375
    %v10639 = vunpack.c.l.b16 %v10376
    %v10640 = vunpack.c.l.b16 %v10377
    %v10641 = vunpack.c.l.b16 %v10378
    %v10642 = vunpack.c.l.b16 %v10379
    %v10643 = vunpack.c.l.b16 %v10380
    %v10644 = vunpack.c.l.b16 %v10381
    %v10645 = vunpack.c.l.b16 %v10382
    %v10646 = vunpack.c.l.b16 %v10383
    %v10647 = vunpack.c.l.b16 %v10384
    %v10648 = vunpack.c.l.b16 %v10385
    %v10649 = vunpack.c.l.b16 %v10386
    %v10650 = vunpack.c.l.b16 %v10387
    %v10651 = vunpack.c.l.b16 %v10388
    %v10652 = vunpack.c.l.b16 %v10389
    %v10653 = vunpack.c.l.b16 %v10390
    %v10654 = vunpack.c.l.b16 %v10391
    %v10655 = vunpack.c.l.b16 %v10392
    %v10656 = vunpack.c.l.b16 %v10393
    %v10657 = vunpack.c.l.b16 %v10394
    %v10658 = vunpack.c.l.b16 %v10395
    %v10659 = vunpack.c.l.b16 %v10396
    %v10660 = vunpack.c.l.b16 %v10397
    %v10661 = vunpack.c.l.b16 %v10398
    %v10662 = vunpack.c.l.b16 %v10399
    %v10663 = vunpack.c.l.b16 %v10400
    %v10664 = vunpack.c.l.b16 %v10401
    %v10665 = vunpack.c.l.b16 %v10402
    %v10666 = vunpack.c.l.b16 %v10403
    %v10667 = vunpack.c.l.b16 %v10404
    %v10668 = vunpack.c.l.b16 %v10405
    %v10669 = vunpack.c.l.b16 %v10406
    %v10670 = vunpack.c.l.b16 %v10407
    %v10671 = vunpack.c.l.b16 %v10408
    %v10672 = vunpack.c.l.b16 %v10409
    %v10673 = vunpack.c.l.b16 %v10410
    %v10674 = vunpack.c.l.b16 %v10411
    %v10675 = vunpack.c.l.b16 %v10412
    %v10676 = vunpack.c.l.b16 %v10413
    %v10677 = vunpack.c.l.b16 %v10414
    %v10678 = vunpack.c.l.b16 %v10415
    %v10679 = vunpack.c.l.b16 %v10416
    %v10680 = vunpack.c.l.b16 %v10417
    %v10681 = vunpack.c.l.b16 %v10418
    %v10682 = vunpack.c.l.b16 %v10419
    %v10683 = vunpack.c.l.b16 %v10420
    %v10684 = vunpack.c.l.b16 %v10421
    %v10685 = vunpack.c.l.b16 %v10422
    %v10686 = vunpack.c.l.b16 %v10423
    %v10687 = vunpack.c.l.b16 %v10424
    %v10688 = vunpack.c.l.b16 %v10425
    %v10689 = vunpack.c.l.b16 %v10426
    %v10690 = vunpack.c.l.b16 %v10427
    %v10691 = vunpack.c.l.b16 %v10428
    %v10692 = vunpack.c.l.b16 %v10429
    %v10693 = vunpack.c.l.b16 %v10430
    %v10694 = vunpack.c.l.b16 %v10431
    %v10695 = vunpack.c.l.b16 %v10432
    %v10696 = vunpack.c.l.b16 %v10433
    %v10697 = vunpack.c.l.b16 %v10434
    %v10698 = vunpack.c.l.b16 %v10435
    %v10699 = vunpack.c.l.b16 %v10436
    %v10700 = vunpack.c.l.b16 %v10437
    %v10701 = vunpack.c.l.b16 %v10438
    %v10702 = vunpack.c.l.b16 %v10439
    %v10703 = vunpack.c.l.b16 %v10440
    %v10704 = vunpack.c.l.b16 %v10441
    %v10705 = vunpack.c.l.b16 %v10442
    %v10706 = vunpack.c.l.b16 %v10443
    %v10707 = vunpack.c.l.b16 %v10444
    %v10708 = vunpack.c.l.b16 %v10445
    %v10709 = vunpack.c.l.b16 %v10446
    %v10710 = vunpack.c.l.b16 %v10447
    %v10711 = vunpack.c.l.b16 %v10448
    %v10712 = vunpack.c.l.b16 %v10449
    %v10713 = vunpack.c.l.b16 %v10450
    %v10714 = vpack.c.b16 %v10587, %v10586
    %v10715 = vpack.c.b16 %v10589, %v10588
    %v10716 = vpack.c.b16 %v10591, %v10590
    %v10717 = vpack.c.b16 %v10593, %v10592
    %v10718 = vpack.c.b16 %v10595, %v10594
    %v10719 = vpack.c.b16 %v10597, %v10596
    %v10720 = vpack.c.b16 %v10599, %v10598
    %v10721 = vpack.c.b16 %v10601, %v10600
    %v10722 = vpack.c.b16 %v10603, %v10602
    %v10723 = vpack.c.b16 %v10605, %v10604
    %v10724 = vpack.c.b16 %v10607, %v10606
    %v10725 = vpack.c.b16 %v10609, %v10608
    %v10726 = vpack.c.b16 %v10611, %v10610
    %v10727 = vpack.c.b16 %v10613, %v10612
    %v10728 = vpack.c.b16 %v10615, %v10614
    %v10729 = vpack.c.b16 %v10617, %v10616
    %v10730 = vpack.c.b16 %v10619, %v10618
    %v10731 = vpack.c.b16 %v10621, %v10620
    %v10732 = vpack.c.b16 %v10623, %v10622
    %v10733 = vpack.c.b16 %v10625, %v10624
    %v10734 = vpack.c.b16 %v10627, %v10626
    %v10735 = vpack.c.b16 %v10629, %v10628
    %v10736 = vpack.c.b16 %v10631, %v10630
    %v10737 = vpack.c.b16 %v10633, %v10632
    %v10738 = vpack.c.b16 %v10635, %v10634
    %v10739 = vpack.c.b16 %v10637, %v10636
    %v10740 = vpack.c.b16 %v10639, %v10638
    %v10741 = vpack.c.b16 %v10641, %v10640
    %v10742 = vpack.c.b16 %v10643, %v10642
    %v10743 = vpack.c.b16 %v10645, %v10644
    %v10744 = vpack.c.b16 %v10647, %v10646
    %v10745 = vpack.c.b16 %v10649, %v10648
    %v10746 = vpack.c.b16 %v10651, %v10650
    %v10747 = vpack.c.b16 %v10653, %v10652
    %v10748 = vpack.c.b16 %v10655, %v10654
    %v10749 = vpack.c.b16 %v10657, %v10656
    %v10750 = vpack.c.b16 %v10659, %v10658
    %v10751 = vpack.c.b16 %v10661, %v10660
    %v10752 = vpack.c.b16 %v10663, %v10662
    %v10753 = vpack.c.b16 %v10665, %v10664
    %v10754 = vpack.c.b16 %v10667, %v10666
    %v10755 = vpack.c.b16 %v10669, %v10668
    %v10756 = vpack.c.b16 %v10671, %v10670
    %v10757 = vpack.c.b16 %v10673, %v10672
    %v10758 = vpack.c.b16 %v10675, %v10674
    %v10759 = vpack.c.b16 %v10677, %v10676
    %v10760 = vpack.c.b16 %v10679, %v10678
    %v10761 = vpack.c.b16 %v10681, %v10680
    %v10762 = vpack.c.b16 %v10683, %v10682
    %v10763 = vpack.c.b16 %v10685, %v10684
    %v10764 = vpack.c.b16 %v10687, %v10686
    %v10765 = vpack.c.b16 %v10689, %v10688
    %v10766 = vpack.c.b16 %v10691, %v10690
    %v10767 = vpack.c.b16 %v10693, %v10692
    %v10768 = vpack.c.b16 %v10695, %v10694
    %v10769 = vpack.c.b16 %v10697, %v10696
    %v10770 = vpack.c.b16 %v10699, %v10698
    %v10771 = vpack.c.b16 %v10701, %v10700
    %v10772 = vpack.c.b16 %v10703, %v10702
    %v10773 = vpack.c.b16 %v10705, %v10704
    %v10774 = vpack.c.b16 %v10707, %v10706
    %v10775 = vpack.c.b16 %v10709, %v10708
    %v10776 = vpack.c.b16 %v10711, %v10710
    %v10777 = vpack.c.b16 %v10713, %v10712
    %10842 = vmatprep.subr.bf16.mxu0 0
    %10843 = vmatpush1.bf16.msra.mxu0 %v10714
    %10844 = vmatprep.subr.bf16.mxu0 0
    %10845 = vmatpush1.bf16.msra.mxu0 %v10715
    %10846 = vmatprep.subr.bf16.mxu0 0
    %10847 = vmatpush1.bf16.msra.mxu0 %v10716
    %10848 = vmatprep.subr.bf16.mxu0 0
    %10849 = vmatpush1.bf16.msra.mxu0 %v10717
    %10850 = vmatprep.subr.bf16.mxu0 0
    %10851 = vmatpush1.bf16.msra.mxu0 %v10718
    %10852 = vmatprep.subr.bf16.mxu0 0
    %10853 = vmatpush1.bf16.msra.mxu0 %v10719
    %10854 = vmatprep.subr.bf16.mxu0 0
    %10855 = vmatpush1.bf16.msra.mxu0 %v10720
    %10856 = vmatprep.subr.bf16.mxu0 0
    %10857 = vmatpush1.bf16.msra.mxu0 %v10721
    %10858 = vmatprep.subr.bf16.mxu0 0
    %10859 = vmatpush1.bf16.msra.mxu0 %v10722
    %10860 = vmatprep.subr.bf16.mxu0 0
    %10861 = vmatpush1.bf16.msra.mxu0 %v10723
    %10862 = vmatprep.subr.bf16.mxu0 0
    %10863 = vmatpush1.bf16.msra.mxu0 %v10724
    %10864 = vmatprep.subr.bf16.mxu0 0
    %10865 = vmatpush1.bf16.msra.mxu0 %v10725
    %10866 = vmatprep.subr.bf16.mxu0 0
    %10867 = vmatpush1.bf16.msra.mxu0 %v10726
    %10868 = vmatprep.subr.bf16.mxu0 0
    %10869 = vmatpush1.bf16.msra.mxu0 %v10727
    %10870 = vmatprep.subr.bf16.mxu0 0
    %10871 = vmatpush1.bf16.msra.mxu0 %v10728
    %10872 = vmatprep.subr.bf16.mxu0 0
    %10873 = vmatpush1.bf16.msra.mxu0 %v10729
    %10874 = vmatprep.mubr.bf16.mxu0 %v10316
    %10875 = vmatmul.mubr.bf16.gmra.mrb[0].mxu0 %v10315
    %v10876 = vpop.f32.mrb[0].mxu0
    %v10877 = vadd.f32 %v10456, %v10876
    %v10878 = vpop.f32.mrb[0].mxu0
    %v10879 = vpop.f32.mrb[0].mxu0
    %v10880 = vadd.f32 %v10456, %v10879
    %v10881 = vpop.f32.mrb[0].mxu0
    %10882 = vdwg.mxu0
    %10883 = vmatprep.subr.bf16.mxu0 0
    %10884 = vmatpush1.bf16.msra.mxu0 %v10730
    %10885 = vmatprep.subr.bf16.mxu0 0
    %10886 = vmatpush1.bf16.msra.mxu0 %v10731
    %10887 = vmatprep.subr.bf16.mxu0 0
    %10888 = vmatpush1.bf16.msra.mxu0 %v10732
    %10889 = vmatprep.subr.bf16.mxu0 0
    %10890 = vmatpush1.bf16.msra.mxu0 %v10733
    %10891 = vmatprep.subr.bf16.mxu0 0
    %10892 = vmatpush1.bf16.msra.mxu0 %v10734
    %10893 = vmatprep.subr.bf16.mxu0 0
    %10894 = vmatpush1.bf16.msra.mxu0 %v10735
    %10895 = vmatprep.subr.bf16.mxu0 0
    %10896 = vmatpush1.bf16.msra.mxu0 %v10736
    %10897 = vmatprep.subr.bf16.mxu0 0
    %10898 = vmatpush1.bf16.msra.mxu0 %v10737
    %10899 = vmatprep.subr.bf16.mxu0 0
    %10900 = vmatpush1.bf16.msra.mxu0 %v10738
    %10901 = vmatprep.subr.bf16.mxu0 0
    %10902 = vmatpush1.bf16.msra.mxu0 %v10739
    %10903 = vmatprep.subr.bf16.mxu0 0
    %10904 = vmatpush1.bf16.msra.mxu0 %v10740
    %10905 = vmatprep.subr.bf16.mxu0 0
    %10906 = vmatpush1.bf16.msra.mxu0 %v10741
    %10907 = vmatprep.subr.bf16.mxu0 0
    %10908 = vmatpush1.bf16.msra.mxu0 %v10742
    %10909 = vmatprep.subr.bf16.mxu0 0
    %10910 = vmatpush1.bf16.msra.mxu0 %v10743
    %10911 = vmatprep.subr.bf16.mxu0 0
    %10912 = vmatpush1.bf16.msra.mxu0 %v10744
    %10913 = vmatprep.subr.bf16.mxu0 0
    %10914 = vmatpush1.bf16.msra.mxu0 %v10745
    %10915 = vmatprep.mubr.bf16.mxu0 %v10318
    %10916 = vmatmul.mubr.bf16.gmra.mrb[0].mxu0 %v10317
    %v10917 = vpop.f32.mrb[0].mxu0
    %v10918 = vadd.f32 %v10877, %v10917
    %v10919 = vpop.f32.mrb[0].mxu0
    %v10920 = vpop.f32.mrb[0].mxu0
    %v10921 = vadd.f32 %v10880, %v10920
    %v10922 = vpop.f32.mrb[0].mxu0
    %10923 = vdwg.mxu0
    %10924 = vmatprep.subr.bf16.mxu0 0
    %10925 = vmatpush1.bf16.msra.mxu0 %v10746
    %10926 = vmatprep.subr.bf16.mxu0 0
    %10927 = vmatpush1.bf16.msra.mxu0 %v10747
    %10928 = vmatprep.subr.bf16.mxu0 0
    %10929 = vmatpush1.bf16.msra.mxu0 %v10748
    %10930 = vmatprep.subr.bf16.mxu0 0
    %10931 = vmatpush1.bf16.msra.mxu0 %v10749
    %10932 = vmatprep.subr.bf16.mxu0 0
    %10933 = vmatpush1.bf16.msra.mxu0 %v10750
    %10934 = vmatprep.subr.bf16.mxu0 0
    %10935 = vmatpush1.bf16.msra.mxu0 %v10751
    %10936 = vmatprep.subr.bf16.mxu0 0
    %10937 = vmatpush1.bf16.msra.mxu0 %v10752
    %10938 = vmatprep.subr.bf16.mxu0 0
    %10939 = vmatpush1.bf16.msra.mxu0 %v10753
    %10940 = vmatprep.subr.bf16.mxu0 0
    %10941 = vmatpush1.bf16.msra.mxu0 %v10754
    %10942 = vmatprep.subr.bf16.mxu0 0
    %10943 = vmatpush1.bf16.msra.mxu0 %v10755
    %10944 = vmatprep.subr.bf16.mxu0 0
    %10945 = vmatpush1.bf16.msra.mxu0 %v10756
    %10946 = vmatprep.subr.bf16.mxu0 0
    %10947 = vmatpush1.bf16.msra.mxu0 %v10757
    %10948 = vmatprep.subr.bf16.mxu0 0
    %10949 = vmatpush1.bf16.msra.mxu0 %v10758
    %10950 = vmatprep.subr.bf16.mxu0 0
    %10951 = vmatpush1.bf16.msra.mxu0 %v10759
    %10952 = vmatprep.subr.bf16.mxu0 0
    %10953 = vmatpush1.bf16.msra.mxu0 %v10760
    %10954 = vmatprep.subr.bf16.mxu0 0
    %10955 = vmatpush1.bf16.msra.mxu0 %v10761
    %10956 = vmatprep.mubr.bf16.mxu0 %v10320
    %10957 = vmatmul.mubr.bf16.gmra.mrb[0].mxu0 %v10319
    %v10958 = vpop.f32.mrb[0].mxu0
    %v10959 = vadd.f32 %v10918, %v10958
    %v10960 = vpop.f32.mrb[0].mxu0
    %v10961 = vpop.f32.mrb[0].mxu0
    %v10962 = vadd.f32 %v10921, %v10961
    %v10963 = vpop.f32.mrb[0].mxu0
    %10964 = vdwg.mxu0
    %10965 = vmatprep.subr.bf16.mxu0 0
    %10966 = vmatpush1.bf16.msra.mxu0 %v10762
    %10967 = vmatprep.subr.bf16.mxu0 0
    %10968 = vmatpush1.bf16.msra.mxu0 %v10763
    %10969 = vmatprep.subr.bf16.mxu0 0
    %10970 = vmatpush1.bf16.msra.mxu0 %v10764
    %10971 = vmatprep.subr.bf16.mxu0 0
    %10972 = vmatpush1.bf16.msra.mxu0 %v10765
    %10973 = vmatprep.subr.bf16.mxu0 0
    %10974 = vmatpush1.bf16.msra.mxu0 %v10766
    %10975 = vmatprep.subr.bf16.mxu0 0
    %10976 = vmatpush1.bf16.msra.mxu0 %v10767
    %10977 = vmatprep.subr.bf16.mxu0 0
    %10978 = vmatpush1.bf16.msra.mxu0 %v10768
    %10979 = vmatprep.subr.bf16.mxu0 0
    %10980 = vmatpush1.bf16.msra.mxu0 %v10769
    %10981 = vmatprep.subr.bf16.mxu0 0
    %10982 = vmatpush1.bf16.msra.mxu0 %v10770
    %10983 = vmatprep.subr.bf16.mxu0 0
    %10984 = vmatpush1.bf16.msra.mxu0 %v10771
    %10985 = vmatprep.subr.bf16.mxu0 0
    %10986 = vmatpush1.bf16.msra.mxu0 %v10772
    %10987 = vmatprep.subr.bf16.mxu0 0
    %10988 = vmatpush1.bf16.msra.mxu0 %v10773
    %10989 = vmatprep.subr.bf16.mxu0 0
    %10990 = vmatpush1.bf16.msra.mxu0 %v10774
    %10991 = vmatprep.subr.bf16.mxu0 0
    %10992 = vmatpush1.bf16.msra.mxu0 %v10775
    %10993 = vmatprep.subr.bf16.mxu0 0
    %10994 = vmatpush1.bf16.msra.mxu0 %v10776
    %10995 = vmatprep.subr.bf16.mxu0 0
    %10996 = vmatpush1.bf16.msra.mxu0 %v10777
    %10997 = vmatprep.mubr.bf16.mxu0 %v10322
    %10998 = vmatmul.mubr.bf16.gmra.mrb[0].mxu0 %v10321
    %v10999 = vpop.f32.mrb[0].mxu0
    %v11000 = vadd.f32 %v10959, %v10999
    %v11001 = vpop.f32.mrb[0].mxu0
    %v11002 = vpop.f32.mrb[0].mxu0
    %v11003 = vadd.f32 %v10962, %v11002
    %v11004 = vpop.f32.mrb[0].mxu0
    %11005 = vdwg.mxu0
    %11006 = vst [vmem:[%s8] sm:$0xff] %v11000
    %11007 = vst [vmem:[%s8 + $0x8] sm:$0xff] %v11003
    // Predicated region
    $region62: #{aux_forward.1} parent=1 // pred_check
      _
    $region63: #{aux_forward.1} parent=1 // pred_check_branch
      %11009 = sbr.rel (0) target = $region65
    $region64: #{aux_forward.1} parent=1 // pred_region
      _
    $region65: #{aux_forward.1} parent=1 // pred_fallthru
      _
    // Predicated region
    $region66: #{aux_forward.1} parent=1 // pred_check
      _
    $region67: #{aux_forward.1} parent=1 // pred_check_branch
      %11011 = sbr.rel (0) target = $region69
    $region68: #{aux_forward.1} parent=1 // pred_region
      _
    $region69: #{aux_forward.1} parent=1 // pred_fallthru
      _
    %11012 = vsyncpa [#allocation3], 1
    %11013 = vsyncpa [#allocation5], 1
    %11014 = vsyncpa [#allocation8], 1
    %11015 = vsyncpa [#allocation11], 1

</llo_original>
